<compile_context>
chip_gen: v6e
topology: v6e:2x2x1
jax: 0.10.0
libtpu: 0.0.40
codegen_flags: <defaults>
</compile_context>

<pallas_src>
import functools

import jax
import jax.numpy as jnp
from jax import lax
from jax.experimental import pallas as pl
from jax.experimental.pallas import tpu as pltpu

EPS = 1e-8  # args.eps (PyTorch LayerNorm default would be 1e-5)


# ----------------------------- Pallas kernels -----------------------------

def _layernorm_kernel(x_ref, w_ref, b_ref, o_ref, *, eps):
    x = x_ref[...].astype(jnp.float32)
    mu = jnp.mean(x, axis=-1, keepdims=True)
    var = jnp.mean(jnp.square(x - mu), axis=-1, keepdims=True)
    y = (x - mu) * lax.rsqrt(var + eps) * w_ref[...].astype(jnp.float32) \
        + b_ref[...].astype(jnp.float32)
    o_ref[...] = y.astype(o_ref.dtype)


def _block_kernel(q_ref, k_ref, v_ref, keep_ref,
                  vec_ref, wqkv_ref, bqkv_ref, wo_ref, wffn_ref,
                  out_ref, attn_ref,
                  kln_s, kp_s, vp_s,
                  *, num_heads, eps, scale, matmul_dtype, apply_final_ln):
    """One transformer block for one (batch element, query tile) grid step.

    Block shapes:
      q_ref:  (1, tq, D)      k_ref/v_ref: (1, T, D)     keep_ref: (1, tq, 1)
      vec_ref: (13, D)  rows: [lnq_w, lnq_b, lnk_w, lnk_b, lnv_w, lnv_b,
                               lnf_w, lnf_b, bo, b1, b2, last_ln_w, last_ln_b]
      wqkv_ref: (3, H, D, Dh)   bqkv_ref: (3, H, 1, Dh)
      wo_ref:   (H, Dh, D)      wffn_ref: (2, D, D)
      out_ref:  (1, tq, D)      attn_ref: (1, H, tq, T)
      scratch: kln_s (T, D) f32, kp_s/vp_s (H, T, Dh) f32
    """
    H = num_heads
    T = k_ref.shape[1]
    tq = q_ref.shape[1]
    D = q_ref.shape[2]
    qi = pl.program_id(1)

    def ln(x, w, b):
        mu = jnp.mean(x, axis=-1, keepdims=True)
        var = jnp.mean(jnp.square(x - mu), axis=-1, keepdims=True)
        return (x - mu) * lax.rsqrt(var + eps) * w + b

    def cast(x):
        return x if matmul_dtype is None else x.astype(matmul_dtype)

    vecs = vec_ref[...].astype(jnp.float32)                          # (13, D)

    # ---- once per batch element: LayerNorm + head-batched K / V projection ----
    @pl.when(qi == 0)
    def _():
        Kln = ln(k_ref[0].astype(jnp.float32), vecs[2:3], vecs[3:4])  # (T, D)
        Vln = ln(v_ref[0].astype(jnp.float32), vecs[4:5], vecs[5:6])  # (T, D)
        kln_s[...] = Kln
        kb = jnp.broadcast_to(cast(Kln), (H, T, D))
        vb = jnp.broadcast_to(cast(Vln), (H, T, D))
        kp_s[...] = (jnp.einsum('htd,hdf->htf', kb, cast(wqkv_ref[1]),
                                preferred_element_type=jnp.float32)
                     + bqkv_ref[1].astype(jnp.float32))
        vp_s[...] = (jnp.einsum('htd,hdf->htf', vb, cast(wqkv_ref[2]),
                                preferred_element_type=jnp.float32)
                     + bqkv_ref[2].astype(jnp.float32))

    # ---- query tile: LayerNorm + head-batched Q projection ----
    Qln = ln(q_ref[0].astype(jnp.float32), vecs[0:1], vecs[1:2])      # (tq, D)
    qb = jnp.broadcast_to(cast(Qln), (H, tq, D))
    qh = (jnp.einsum('htd,hdf->htf', qb, cast(wqkv_ref[0]),
                     preferred_element_type=jnp.float32)
          + bqkv_ref[0].astype(jnp.float32)) * scale                  # (H, tq, Dh)

    # ---- attention over all keys, causal mask built in-kernel ----
    s = jnp.einsum('hqf,hkf->hqk', cast(qh), cast(kp_s[...]),
                   preferred_element_type=jnp.float32)                # (H, tq, T)
    row = lax.broadcasted_iota(jnp.int32, (tq, T), 0) + qi * tq
    col = lax.broadcasted_iota(jnp.int32, (tq, T), 1)
    s = s + jnp.where(col <= row, 0.0, -jnp.inf).astype(jnp.float32)
    s = s - jnp.max(s, axis=-1, keepdims=True)
    e = jnp.exp(s)
    p = e / jnp.sum(e, axis=-1, keepdims=True)        # exact softmax (maps sum to 1)
    attn_ref[0] = p.astype(attn_ref.dtype)            # one dense (H, tq, T) store

    ctx = jnp.einsum('hqk,hkf->hqf', cast(p), cast(vp_s[...]),
                     preferred_element_type=jnp.float32)              # (H, tq, Dh)

    # ---- output projection (sum over heads) + residual with LayerNormed K ----
    attn_out = jnp.einsum('hqf,hfd->hqd', cast(ctx), cast(wo_ref[...]),
                          preferred_element_type=jnp.float32).sum(axis=0)
    attn_out = attn_out + vecs[8:9]                                   # bo
    row0 = pl.multiple_of(qi * tq, tq)
    x = attn_out + kln_s[pl.ds(row0, tq), :]                          # queries += K

    # ---- forward LayerNorm + pointwise FFN (Conv1d k=1 == per-token Linear) ----
    x = ln(x, vecs[6:7], vecs[7:8])
    h1 = jnp.maximum(jnp.dot(cast(x), cast(wffn_ref[0]),
                             preferred_element_type=jnp.float32) + vecs[9:10], 0.0)
    y = jnp.dot(cast(h1), cast(wffn_ref[1]),
                preferred_element_type=jnp.float32) + vecs[10:11] + x

    # ---- end-of-block padding-mask multiply (source_timeline_mask) ----
    y = y * keep_ref[0].astype(jnp.float32)

    # ---- last block only: fused final LayerNorm ----
    if apply_final_ln:
        y = ln(y, vecs[11:12], vecs[12:13])

    out_ref[0] = y.astype(out_ref.dtype)


# ----------------------------- helpers -----------------------------

def _row_tile(n):
    for t in (512, 256, 128, 64, 32, 16, 8):
        if n % t == 0:
            return t
    return n


def _choose_tq(T):
    """Query-tile length: a multiple of 8 dividing T, or T itself (full dim)."""
    if T <= 256:
        return T
    for t in (256, 128, 64, 32, 16, 8):
        if T % t == 0:
            return t
    return T


def _vmem_budget(T, tq, D, H, Dh, single_buffer):
    f32 = 4
    wbuf = 1 if single_buffer else 2
    weights = wbuf * (6 * D * D + 13 * D + 3 * H * Dh) * f32
    io = 2 * (2 * tq * D + 2 * T * D + tq + H * tq * T) * f32
    scratch = 3 * T * D * f32
    temps = (3 * H * T * D + 4 * H * tq * T + 6 * H * tq * D) * f32
    est = weights + io + scratch + temps + (8 << 20)
    return int(min(max(est, 32 << 20), 100 << 20))


# ----------------------------- Pallas wrappers -----------------------------

def layernorm(x, w, b, eps=EPS):
    """Row-tiled LayerNorm over a (B, T, D) tensor (only used if num_blocks==0)."""
    B, T, D = x.shape
    N = B * T
    x2 = x.reshape(N, D)
    tm = _row_tile(N)
    out = pl.pallas_call(
        functools.partial(_layernorm_kernel, eps=eps),
        grid=(N // tm,),
        out_shape=jax.ShapeDtypeStruct((N, D), x.dtype),
        in_specs=[pl.BlockSpec((tm, D), lambda i: (i, 0)),
                  pl.BlockSpec((1, D), lambda i: (0, 0)),
                  pl.BlockSpec((1, D), lambda i: (0, 0))],
        out_specs=pl.BlockSpec((tm, D), lambda i: (i, 0)),
        compiler_params=pltpu.CompilerParams(dimension_semantics=("parallel",)),
    )(x2, w, b)
    return out.reshape(B, T, D)


def transformer_block(x_q, x_k, x_v, keep, blk, *, num_heads, eps=EPS,
                      matmul_dtype=None, apply_final_ln=False,
                      attn_dtype=jnp.float32, single_buffer_weights=True):
    """One fused pallas_call per transformer block, grid over (batch, q-tile)."""
    B, T, D = x_q.shape
    H = num_heads
    assert D % H == 0
    Dh = D // H
    tq = _choose_tq(T)
    nqt = T // tq

    def const_spec(shape):
        # Grid-invariant parameter: constant index_map; single-buffer if possible.
        idx = lambda b, qi, _r=len(shape): (0,) * _r
        if single_buffer_weights:
            return pl.BlockSpec(shape, idx, pipeline_mode=pl.Buffered(1))
        return pl.BlockSpec(shape, idx)

    kernel = functools.partial(_block_kernel, num_heads=H, eps=eps,
                               scale=float(Dh) ** -0.5,
                               matmul_dtype=matmul_dtype,
                               apply_final_ln=apply_final_ln)

    out, attn = pl.pallas_call(
        kernel,
        grid=(B, nqt),
        out_shape=(jax.ShapeDtypeStruct((B, T, D), x_q.dtype),
                   jax.ShapeDtypeStruct((B, H, T, T), attn_dtype)),
        in_specs=[
            pl.BlockSpec((1, tq, D), lambda b, qi: (b, qi, 0)),   # queries tile
            pl.BlockSpec((1, T, D), lambda b, qi: (b, 0, 0)),     # key (full)
            pl.BlockSpec((1, T, D), lambda b, qi: (b, 0, 0)),     # value (full)
            pl.BlockSpec((1, tq, 1), lambda b, qi: (b, qi, 0)),   # keep mask tile
            const_spec((13, D)),          # packed LN params + biases
            const_spec((3, H, D, Dh)),    # head-blocked Wq/Wk/Wv
            const_spec((3, H, 1, Dh)),    # head-blocked bq/bk/bv
            const_spec((H, Dh, D)),       # head-blocked Wo
            const_spec((2, D, D)),        # FFN W1/W2 (pre-transposed)
        ],
        out_specs=(pl.BlockSpec((1, tq, D), lambda b, qi: (b, qi, 0)),
                   pl.BlockSpec((1, H, tq, T), lambda b, qi: (b, 0, qi, 0))),
        scratch_shapes=[pltpu.VMEM((T, D), jnp.float32),       # LayerNormed K
                        pltpu.VMEM((H, T, Dh), jnp.float32),   # projected K
                        pltpu.VMEM((H, T, Dh), jnp.float32)],  # projected V
        compiler_params=pltpu.CompilerParams(
            dimension_semantics=("parallel", "arbitrary"),
            vmem_limit_bytes=_vmem_budget(T, tq, D, H, Dh, single_buffer_weights)),
    )(x_q, x_k, x_v, keep,
      blk["vecs"], blk["wqkv_h"], blk["bqkv_h"], blk["wo_h"], blk["wffn"])
    return out, attn


# ----------------------------- full forward -----------------------------

def text_aware_transformer(params, queries, timeline_mask, key, value,
                           source_timeline_mask, *, num_heads, num_blocks,
                           eps=EPS, matmul_dtype=None, attn_dtype=jnp.float32,
                           single_buffer_weights=True):
    dtype = queries.dtype
    q_keep = (~timeline_mask)[:, :, None].astype(dtype)
    kv_keep = (~source_timeline_mask)[:, :, None].astype(dtype)
    queries = queries * q_keep
    key = key * kv_keep
    value = value * kv_keep

    attention_map_list = []
    for i in range(num_blocks):
        queries, attn_map = transformer_block(
            queries, key, value, kv_keep, params["blocks"][i],
            num_heads=num_heads, eps=eps, matmul_dtype=matmul_dtype,
            apply_final_ln=(i == num_blocks - 1),      # fuse last_layernorm
            attn_dtype=attn_dtype,
            single_buffer_weights=single_buffer_weights)
        attention_map_list.append(attn_map)

    if num_blocks == 0:
        queries = layernorm(queries, params["last_ln_w"], params["last_ln_b"], eps)
    return queries, attention_map_list


# ----------------------------- parameter init -----------------------------

def init_params(key, D, H, num_blocks):
    """Random params in the packed / head-blocked layouts the kernel expects.

    From PyTorch: Linear weight W (out,in) -> flat (in,out) is W.T;
    Conv1d(k=1) weight (out,in,1) -> flat is w[:, :, 0].T.
    """
    Dh = D // H

    def nxt():
        nonlocal key
        key, sub = jax.random.split(key)
        return sub

    def dense(shape, scale=0.02):
        return scale * jax.random.normal(nxt(), shape, jnp.float32)

    def ln_pair():
        return (1.0 + 0.01 * jax.random.normal(nxt(), (D,), jnp.float32),
                0.01 * jax.random.normal(nxt(), (D,), jnp.float32))

    last_w, last_b = ln_pair()
    blocks = []
    for _ in range(num_blocks):
        ln_q_w, ln_q_b = ln_pair()
        ln_k_w, ln_k_b = ln_pair()
        ln_v_w, ln_v_b = ln_pair()
        ln_f_w, ln_f_b = ln_pair()
        wq_t, wk_t, wv_t, wo_t = (dense((D, D)) for _ in range(4))   # (D_in, D_out)
        bq, bk, bv, bo = (dense((D,)) for _ in range(4))
        w1_t, w2_t = dense((D, D)), dense((D, D))
        b1, b2 = dense((D,)), dense((D,))

        vecs = jnp.stack([ln_q_w, ln_q_b, ln_k_w, ln_k_b, ln_v_w, ln_v_b,
                          ln_f_w, ln_f_b, bo, b1, b2, last_w, last_b], axis=0)
        wqkv_h = jnp.stack(
            [w.reshape(D, H, Dh).transpose(1, 0, 2) for w in (wq_t, wk_t, wv_t)],
            axis=0)                                        # (3, H, D, Dh)
        bqkv_h = jnp.stack([b.reshape(H, 1, Dh) for b in (bq, bk, bv)],
                           axis=0)                         # (3, H, 1, Dh)
        wo_h = wo_t.reshape(H, Dh, D)                      # (H, Dh, D)
        wffn = jnp.stack([w1_t, w2_t], axis=0)             # (2, D, D)
        blocks.append({"vecs": vecs, "wqkv_h": wqkv_h, "bqkv_h": bqkv_h,
                       "wo_h": wo_h, "wffn": wffn})

    return {"blocks": blocks,
            "last_ln_w": last_w.reshape(1, D),
            "last_ln_b": last_b.reshape(1, D)}


# ----------------------------- main -----------------------------

if __name__ == "__main__":
    B, T, D, H, NB = 2, 8, 32, 2, 2

    root = jax.random.PRNGKey(0)
    k1, k2, k3, k4, k5, kp = jax.random.split(root, 6)
    queries = jax.random.normal(k1, (B, T, D), jnp.float32)
    key_in = jax.random.normal(k2, (B, T, D), jnp.float32)
    value_in = jax.random.normal(k3, (B, T, D), jnp.float32)
    timeline_mask = jax.random.bernoulli(k4, 0.2, (B, T))
    source_timeline_mask = jax.random.bernoulli(k5, 0.2, (B, T))

    params = init_params(kp, D, H, NB)

    def run(single_buffer):
        # matmul_dtype=jnp.bfloat16 is recommended on v6e/v7x; default f32
        # keeps PyTorch-equivalent numerics at these toy sizes.
        fwd = jax.jit(functools.partial(
            text_aware_transformer, num_heads=H, num_blocks=NB,
            single_buffer_weights=single_buffer))
        lf, am = fwd(params, queries, timeline_mask, key_in, value_in,
                     source_timeline_mask)
        jax.block_until_ready(lf)
        for m in am:
            jax.block_until_ready(m)
        return lf, am

    try:
        log_feats, attn_maps = run(True)
    except Exception:
        # TODO(synk): pl.Buffered(1) single-buffering rejected by this jax
        # version -- fall back to default double-buffered weight specs.
        log_feats, attn_maps = run(False)

    assert log_feats.shape == (B, T, D)
    assert all(m.shape == (B, H, T, T) for m in attn_maps)
    print("KERNEL_OK")
</pallas_src>

<mosaic_0001>
module attributes {stable_mosaic.version = 11 : i64} {
  func.func @_block_kernel(%arg0: i32, %arg1: i32, %arg2: memref<1x8x32xf32, #tpu.memory_space<vmem>>, %arg3: memref<1x8x32xf32, #tpu.memory_space<vmem>>, %arg4: memref<1x8x32xf32, #tpu.memory_space<vmem>>, %arg5: memref<1x8x1xf32, #tpu.memory_space<vmem>>, %arg6: memref<13x32xf32, #tpu.memory_space<vmem>>, %arg7: memref<3x2x32x16xf32, #tpu.memory_space<vmem>>, %arg8: memref<3x2x1x16xf32, #tpu.memory_space<vmem>>, %arg9: memref<2x16x32xf32, #tpu.memory_space<vmem>>, %arg10: memref<2x32x32xf32, #tpu.memory_space<vmem>>, %arg11: memref<1x8x32xf32, #tpu.memory_space<vmem>>, %arg12: memref<1x2x8x8xf32, #tpu.memory_space<vmem>>, %arg13: memref<8x32xf32, #tpu.memory_space<vmem>>, %arg14: memref<2x8x16xf32, #tpu.memory_space<vmem>>, %arg15: memref<2x8x16xf32, #tpu.memory_space<vmem>>) attributes {dimension_semantics = [#tpu.dimension_semantics<parallel>, #tpu.dimension_semantics<arbitrary>], iteration_bounds = array<i64: 2, 1>, scalar_prefetch = 0 : i64, scratch_operands = 3 : i64, tpu.core_type = #tpu.core_type<tc>, window_params = [{transform_indices = @transform_0, window_bounds = array<i64: 1, 8, 32>}, {transform_indices = @transform_1, window_bounds = array<i64: 1, 8, 32>}, {transform_indices = @transform_2, window_bounds = array<i64: 1, 8, 32>}, {transform_indices = @transform_3, window_bounds = array<i64: 1, 8, 1>}, {pipeline_mode = #tpu.pipeline_mode<synchronous>, transform_indices = @transform_4, window_bounds = array<i64: 13, 32>}, {pipeline_mode = #tpu.pipeline_mode<synchronous>, transform_indices = @transform_5, window_bounds = array<i64: 3, 2, 32, 16>}, {pipeline_mode = #tpu.pipeline_mode<synchronous>, transform_indices = @transform_6, window_bounds = array<i64: 3, 2, 1, 16>}, {pipeline_mode = #tpu.pipeline_mode<synchronous>, transform_indices = @transform_7, window_bounds = array<i64: 2, 16, 32>}, {pipeline_mode = #tpu.pipeline_mode<synchronous>, transform_indices = @transform_8, window_bounds = array<i64: 2, 32, 32>}, {transform_indices = @transform_9, window_bounds = array<i64: 1, 8, 32>}, {transform_indices = @transform_10, window_bounds = array<i64: 1, 2, 8, 8>}]} {
    %c0 = arith.constant 0 : index
    %c0_0 = arith.constant 0 : index
    %0 = vector.load %arg6[%c0, %c0_0] : memref<13x32xf32, #tpu.memory_space<vmem>>, vector<13x32xf32>
    %c0_i32 = arith.constant 0 : i32
    %1 = arith.cmpi eq, %arg1, %c0_i32 : i32
    %2 = arith.extui %1 : i1 to i32
    %c0_i32_1 = arith.constant 0 : i32
    %3 = arith.cmpi ne, %2, %c0_i32_1 : i32
    scf.if %3 {
      %c0_61 = arith.constant 0 : index
      %c0_62 = arith.constant 0 : index
      %c0_63 = arith.constant 0 : index
      %126 = vector.load %arg3[%c0_61, %c0_62, %c0_63] : memref<1x8x32xf32, #tpu.memory_space<vmem>>, vector<1x8x32xf32>
      %127 = vector.shape_cast %126 : vector<1x8x32xf32> to vector<8x32xf32>
      %128 = vector.extract_strided_slice %0 {offsets = [2, 0], sizes = [1, 32], strides = [1, 1]} : vector<13x32xf32> to vector<1x32xf32>
      %129 = vector.extract_strided_slice %0 {offsets = [3, 0], sizes = [1, 32], strides = [1, 1]} : vector<13x32xf32> to vector<1x32xf32>
      %cst_64 = arith.constant dense<0.000000e+00> : vector<8xf32>
      %130 = vector.multi_reduction <add>, %127, %cst_64 [1] : vector<8x32xf32> to vector<8xf32>
      %131 = vector.shape_cast %130 : vector<8xf32> to vector<8x1xf32>
      %cst_65 = arith.constant 3.200000e+01 : f32
      %132 = vector.broadcast %cst_65 : f32 to vector<8x1xf32>
      %133 = arith.divf %131, %132 : vector<8x1xf32>
      %134 = vector.broadcast %133 : vector<8x1xf32> to vector<8x32xf32>
      %135 = arith.subf %127, %134 : vector<8x32xf32>
      %136 = arith.mulf %135, %135 : vector<8x32xf32>
      %cst_66 = arith.constant dense<0.000000e+00> : vector<8xf32>
      %137 = vector.multi_reduction <add>, %136, %cst_66 [1] : vector<8x32xf32> to vector<8xf32>
      %138 = vector.shape_cast %137 : vector<8xf32> to vector<8x1xf32>
      %cst_67 = arith.constant 3.200000e+01 : f32
      %139 = vector.broadcast %cst_67 : f32 to vector<8x1xf32>
      %140 = arith.divf %138, %139 : vector<8x1xf32>
      %141 = vector.broadcast %133 : vector<8x1xf32> to vector<8x32xf32>
      %142 = arith.subf %127, %141 : vector<8x32xf32>
      %cst_68 = arith.constant 9.99999993E-9 : f32
      %143 = vector.broadcast %cst_68 : f32 to vector<8x1xf32>
      %144 = arith.addf %140, %143 : vector<8x1xf32>
      %145 = math.rsqrt %144 : vector<8x1xf32>
      %146 = vector.broadcast %145 : vector<8x1xf32> to vector<8x32xf32>
      %147 = arith.mulf %142, %146 : vector<8x32xf32>
      %148 = vector.broadcast %128 : vector<1x32xf32> to vector<8x32xf32>
      %149 = arith.mulf %147, %148 : vector<8x32xf32>
      %150 = vector.broadcast %129 : vector<1x32xf32> to vector<8x32xf32>
      %151 = arith.addf %149, %150 : vector<8x32xf32>
      %c0_69 = arith.constant 0 : index
      %c0_70 = arith.constant 0 : index
      %c0_71 = arith.constant 0 : index
      %152 = vector.load %arg4[%c0_69, %c0_70, %c0_71] : memref<1x8x32xf32, #tpu.memory_space<vmem>>, vector<1x8x32xf32>
      %153 = vector.shape_cast %152 : vector<1x8x32xf32> to vector<8x32xf32>
      %154 = vector.extract_strided_slice %0 {offsets = [4, 0], sizes = [1, 32], strides = [1, 1]} : vector<13x32xf32> to vector<1x32xf32>
      %155 = vector.extract_strided_slice %0 {offsets = [5, 0], sizes = [1, 32], strides = [1, 1]} : vector<13x32xf32> to vector<1x32xf32>
      %cst_72 = arith.constant dense<0.000000e+00> : vector<8xf32>
      %156 = vector.multi_reduction <add>, %153, %cst_72 [1] : vector<8x32xf32> to vector<8xf32>
      %157 = vector.shape_cast %156 : vector<8xf32> to vector<8x1xf32>
      %cst_73 = arith.constant 3.200000e+01 : f32
      %158 = vector.broadcast %cst_73 : f32 to vector<8x1xf32>
      %159 = arith.divf %157, %158 : vector<8x1xf32>
      %160 = vector.broadcast %159 : vector<8x1xf32> to vector<8x32xf32>
      %161 = arith.subf %153, %160 : vector<8x32xf32>
      %162 = arith.mulf %161, %161 : vector<8x32xf32>
      %cst_74 = arith.constant dense<0.000000e+00> : vector<8xf32>
      %163 = vector.multi_reduction <add>, %162, %cst_74 [1] : vector<8x32xf32> to vector<8xf32>
      %164 = vector.shape_cast %163 : vector<8xf32> to vector<8x1xf32>
      %cst_75 = arith.constant 3.200000e+01 : f32
      %165 = vector.broadcast %cst_75 : f32 to vector<8x1xf32>
      %166 = arith.divf %164, %165 : vector<8x1xf32>
      %167 = vector.broadcast %159 : vector<8x1xf32> to vector<8x32xf32>
      %168 = arith.subf %153, %167 : vector<8x32xf32>
      %cst_76 = arith.constant 9.99999993E-9 : f32
      %169 = vector.broadcast %cst_76 : f32 to vector<8x1xf32>
      %170 = arith.addf %166, %169 : vector<8x1xf32>
      %171 = math.rsqrt %170 : vector<8x1xf32>
      %172 = vector.broadcast %171 : vector<8x1xf32> to vector<8x32xf32>
      %173 = arith.mulf %168, %172 : vector<8x32xf32>
      %174 = vector.broadcast %154 : vector<1x32xf32> to vector<8x32xf32>
      %175 = arith.mulf %173, %174 : vector<8x32xf32>
      %176 = vector.broadcast %155 : vector<1x32xf32> to vector<8x32xf32>
      %177 = arith.addf %175, %176 : vector<8x32xf32>
      %c0_77 = arith.constant 0 : index
      %c0_78 = arith.constant 0 : index
      %178 = vector.load %arg13[%c0_77, %c0_78] : memref<8x32xf32, #tpu.memory_space<vmem>>, vector<8x32xf32>
      tpu.vector_store %arg13[%c0_77, %c0_78], %151 {strides = array<i32>} : memref<8x32xf32, #tpu.memory_space<vmem>>, vector<8x32xf32>,
      %179 = vector.shape_cast %151 : vector<8x32xf32> to vector<1x8x32xf32>
      %180 = vector.broadcast %179 : vector<1x8x32xf32> to vector<2x8x32xf32>
      %181 = vector.shape_cast %177 : vector<8x32xf32> to vector<1x8x32xf32>
      %182 = vector.broadcast %181 : vector<1x8x32xf32> to vector<2x8x32xf32>
      %c1_79 = arith.constant 1 : index
      %c0_80 = arith.constant 0 : index
      %c0_81 = arith.constant 0 : index
      %c0_82 = arith.constant 0 : index
      %183 = vector.load %arg7[%c1_79, %c0_80, %c0_81, %c0_82] : memref<3x2x32x16xf32, #tpu.memory_space<vmem>>, vector<1x2x32x16xf32>
      %184 = vector.shape_cast %183 : vector<1x2x32x16xf32> to vector<2x32x16xf32>
      "tpu.trace_start"() <{level = 10 : i32, message = "htd,hdf->htf"}> : () -> ()
      %cst_83 = arith.constant dense<0.000000e+00> : vector<2x8x16xf32>
      %185 = tpu.matmul %180, %184, %cst_83 {dimension_numbers = #tpu.dot_dimension_numbers<[2], [1], [1], [2], [0, 0, 0, 1, 1, 2], [0], [0]>} : vector<2x8x32xf32>, vector<2x32x16xf32>, vector<2x8x16xf32> -> vector<2x8x16xf32>
      "tpu.trace_stop"() : () -> ()
      %c1_84 = arith.constant 1 : index
      %c0_85 = arith.constant 0 : index
      %c0_86 = arith.constant 0 : index
      %c0_87 = arith.constant 0 : index
      %186 = vector.load %arg8[%c1_84, %c0_85, %c0_86, %c0_87] : memref<3x2x1x16xf32, #tpu.memory_space<vmem>>, vector<1x2x1x16xf32>
      %187 = vector.shape_cast %186 : vector<1x2x1x16xf32> to vector<2x1x16xf32>
      %188 = vector.broadcast %187 : vector<2x1x16xf32> to vector<2x8x16xf32>
      %189 = arith.addf %185, %188 : vector<2x8x16xf32>
      %c0_88 = arith.constant 0 : index
      %c0_89 = arith.constant 0 : index
      %c0_90 = arith.constant 0 : index
      %190 = vector.load %arg14[%c0_88, %c0_89, %c0_90] : memref<2x8x16xf32, #tpu.memory_space<vmem>>, vector<2x8x16xf32>
      tpu.vector_store %arg14[%c0_88, %c0_89, %c0_90], %189 {strides = array<i32>} : memref<2x8x16xf32, #tpu.memory_space<vmem>>, vector<2x8x16xf32>,
      %c2 = arith.constant 2 : index
      %c0_91 = arith.constant 0 : index
      %c0_92 = arith.constant 0 : index
      %c0_93 = arith.constant 0 : index
      %191 = vector.load %arg7[%c2, %c0_91, %c0_92, %c0_93] : memref<3x2x32x16xf32, #tpu.memory_space<vmem>>, vector<1x2x32x16xf32>
      %192 = vector.shape_cast %191 : vector<1x2x32x16xf32> to vector<2x32x16xf32>
      "tpu.trace_start"() <{level = 10 : i32, message = "htd,hdf->htf"}> : () -> ()
      %cst_94 = arith.constant dense<0.000000e+00> : vector<2x8x16xf32>
      %193 = tpu.matmul %182, %192, %cst_94 {dimension_numbers = #tpu.dot_dimension_numbers<[2], [1], [1], [2], [0, 0, 0, 1, 1, 2], [0], [0]>} : vector<2x8x32xf32>, vector<2x32x16xf32>, vector<2x8x16xf32> -> vector<2x8x16xf32>
      "tpu.trace_stop"() : () -> ()
      %c2_95 = arith.constant 2 : index
      %c0_96 = arith.constant 0 : index
      %c0_97 = arith.constant 0 : index
      %c0_98 = arith.constant 0 : index
      %194 = vector.load %arg8[%c2_95, %c0_96, %c0_97, %c0_98] : memref<3x2x1x16xf32, #tpu.memory_space<vmem>>, vector<1x2x1x16xf32>
      %195 = vector.shape_cast %194 : vector<1x2x1x16xf32> to vector<2x1x16xf32>
      %196 = vector.broadcast %195 : vector<2x1x16xf32> to vector<2x8x16xf32>
      %197 = arith.addf %193, %196 : vector<2x8x16xf32>
      %c0_99 = arith.constant 0 : index
      %c0_100 = arith.constant 0 : index
      %c0_101 = arith.constant 0 : index
      %198 = vector.load %arg15[%c0_99, %c0_100, %c0_101] : memref<2x8x16xf32, #tpu.memory_space<vmem>>, vector<2x8x16xf32>
      tpu.vector_store %arg15[%c0_99, %c0_100, %c0_101], %197 {strides = array<i32>} : memref<2x8x16xf32, #tpu.memory_space<vmem>>, vector<2x8x16xf32>,
    } else {
    }
    %c0_2 = arith.constant 0 : index
    %c0_3 = arith.constant 0 : index
    %c0_4 = arith.constant 0 : index
    %4 = vector.load %arg2[%c0_2, %c0_3, %c0_4] : memref<1x8x32xf32, #tpu.memory_space<vmem>>, vector<1x8x32xf32>
    %5 = vector.shape_cast %4 : vector<1x8x32xf32> to vector<8x32xf32>
    %6 = vector.extract_strided_slice %0 {offsets = [0, 0], sizes = [1, 32], strides = [1, 1]} : vector<13x32xf32> to vector<1x32xf32>
    %7 = vector.extract_strided_slice %0 {offsets = [1, 0], sizes = [1, 32], strides = [1, 1]} : vector<13x32xf32> to vector<1x32xf32>
    %cst = arith.constant dense<0.000000e+00> : vector<8xf32>
    %8 = vector.multi_reduction <add>, %5, %cst [1] : vector<8x32xf32> to vector<8xf32>
    %9 = vector.shape_cast %8 : vector<8xf32> to vector<8x1xf32>
    %cst_5 = arith.constant 3.200000e+01 : f32
    %10 = vector.broadcast %cst_5 : f32 to vector<8x1xf32>
    %11 = arith.divf %9, %10 : vector<8x1xf32>
    %12 = vector.broadcast %11 : vector<8x1xf32> to vector<8x32xf32>
    %13 = arith.subf %5, %12 : vector<8x32xf32>
    %14 = arith.mulf %13, %13 : vector<8x32xf32>
    %cst_6 = arith.constant dense<0.000000e+00> : vector<8xf32>
    %15 = vector.multi_reduction <add>, %14, %cst_6 [1] : vector<8x32xf32> to vector<8xf32>
    %16 = vector.shape_cast %15 : vector<8xf32> to vector<8x1xf32>
    %cst_7 = arith.constant 3.200000e+01 : f32
    %17 = vector.broadcast %cst_7 : f32 to vector<8x1xf32>
    %18 = arith.divf %16, %17 : vector<8x1xf32>
    %19 = vector.broadcast %11 : vector<8x1xf32> to vector<8x32xf32>
    %20 = arith.subf %5, %19 : vector<8x32xf32>
    %cst_8 = arith.constant 9.99999993E-9 : f32
    %21 = vector.broadcast %cst_8 : f32 to vector<8x1xf32>
    %22 = arith.addf %18, %21 : vector<8x1xf32>
    %23 = math.rsqrt %22 : vector<8x1xf32>
    %24 = vector.broadcast %23 : vector<8x1xf32> to vector<8x32xf32>
    %25 = arith.mulf %20, %24 : vector<8x32xf32>
    %26 = vector.broadcast %6 : vector<1x32xf32> to vector<8x32xf32>
    %27 = arith.mulf %25, %26 : vector<8x32xf32>
    %28 = vector.broadcast %7 : vector<1x32xf32> to vector<8x32xf32>
    %29 = arith.addf %27, %28 : vector<8x32xf32>
    %30 = vector.shape_cast %29 : vector<8x32xf32> to vector<1x8x32xf32>
    %31 = vector.broadcast %30 : vector<1x8x32xf32> to vector<2x8x32xf32>
    %c0_9 = arith.constant 0 : index
    %c0_10 = arith.constant 0 : index
    %c0_11 = arith.constant 0 : index
    %c0_12 = arith.constant 0 : index
    %32 = vector.load %arg7[%c0_9, %c0_10, %c0_11, %c0_12] : memref<3x2x32x16xf32, #tpu.memory_space<vmem>>, vector<1x2x32x16xf32>
    %33 = vector.shape_cast %32 : vector<1x2x32x16xf32> to vector<2x32x16xf32>
    "tpu.trace_start"() <{level = 10 : i32, message = "htd,hdf->htf"}> : () -> ()
    %cst_13 = arith.constant dense<0.000000e+00> : vector<2x8x16xf32>
    %34 = tpu.matmul %31, %33, %cst_13 {dimension_numbers = #tpu.dot_dimension_numbers<[2], [1], [1], [2], [0, 0, 0, 1, 1, 2], [0], [0]>} : vector<2x8x32xf32>, vector<2x32x16xf32>, vector<2x8x16xf32> -> vector<2x8x16xf32>
    "tpu.trace_stop"() : () -> ()
    %c0_14 = arith.constant 0 : index
    %c0_15 = arith.constant 0 : index
    %c0_16 = arith.constant 0 : index
    %c0_17 = arith.constant 0 : index
    %35 = vector.load %arg8[%c0_14, %c0_15, %c0_16, %c0_17] : memref<3x2x1x16xf32, #tpu.memory_space<vmem>>, vector<1x2x1x16xf32>
    %36 = vector.shape_cast %35 : vector<1x2x1x16xf32> to vector<2x1x16xf32>
    %37 = vector.broadcast %36 : vector<2x1x16xf32> to vector<2x8x16xf32>
    %38 = arith.addf %34, %37 : vector<2x8x16xf32>
    %cst_18 = arith.constant 2.500000e-01 : f32
    %39 = vector.broadcast %cst_18 : f32 to vector<2x8x16xf32>
    %40 = arith.mulf %38, %39 : vector<2x8x16xf32>
    %c0_19 = arith.constant 0 : index
    %c0_20 = arith.constant 0 : index
    %c0_21 = arith.constant 0 : index
    %41 = vector.load %arg14[%c0_19, %c0_20, %c0_21] : memref<2x8x16xf32, #tpu.memory_space<vmem>>, vector<2x8x16xf32>
    "tpu.trace_start"() <{level = 10 : i32, message = "hqf,hkf->hqk"}> : () -> ()
    %cst_22 = arith.constant dense<0.000000e+00> : vector<2x8x8xf32>
    %42 = tpu.matmul %40, %41, %cst_22 {dimension_numbers = #tpu.dot_dimension_numbers<[2], [2], [1], [1], [0, 0, 0, 1, 1, 1], [0], [0]>} : vector<2x8x16xf32>, vector<2x8x16xf32>, vector<2x8x8xf32> -> vector<2x8x8xf32>
    "tpu.trace_stop"() : () -> ()
    %43 = tpu.iota {dimensions = array<i32: 0>} : vector<8x8xi32>
    %c8_i32 = arith.constant 8 : i32
    %44 = arith.muli %arg1, %c8_i32 : i32
    %45 = vector.broadcast %44 : i32 to vector<8x8xi32>
    %46 = arith.addi %43, %45 : vector<8x8xi32>
    %47 = tpu.iota {dimensions = array<i32: 1>} : vector<8x8xi32>
    %48 = arith.cmpi sle, %47, %46 : vector<8x8xi32>
    %cst_23 = arith.constant 0.000000e+00 : f32
    %cst_24 = arith.constant 0xFF800000 : f32
    %49 = vector.broadcast %cst_23 : f32 to vector<8x8xf32>
    %50 = vector.broadcast %cst_24 : f32 to vector<8x8xf32>
    %51 = arith.select %48, %49, %50 : vector<8x8xi1>, vector<8x8xf32>
    %52 = vector.shape_cast %51 : vector<8x8xf32> to vector<1x8x8xf32>
    %53 = vector.broadcast %52 : vector<1x8x8xf32> to vector<2x8x8xf32>
    %54 = arith.addf %42, %53 : vector<2x8x8xf32>
    %cst_25 = arith.constant dense<0xFF800000> : vector<2x8xf32>
    %55 = vector.multi_reduction <maximumf>, %54, %cst_25 [2] : vector<2x8x8xf32> to vector<2x8xf32>
    %56 = vector.shape_cast %55 : vector<2x8xf32> to vector<2x8x1xf32>
    %57 = vector.broadcast %56 : vector<2x8x1xf32> to vector<2x8x8xf32>
    %58 = arith.subf %54, %57 : vector<2x8x8xf32>
    %59 = math.exp %58 : vector<2x8x8xf32>
    %cst_26 = arith.constant dense<0.000000e+00> : vector<2x8xf32>
    %60 = vector.multi_reduction <add>, %59, %cst_26 [2] : vector<2x8x8xf32> to vector<2x8xf32>
    %61 = vector.shape_cast %60 : vector<2x8xf32> to vector<2x8x1xf32>
    %62 = vector.broadcast %61 : vector<2x8x1xf32> to vector<2x8x8xf32>
    %63 = arith.divf %59, %62 : vector<2x8x8xf32>
    %c0_27 = arith.constant 0 : index
    %c0_28 = arith.constant 0 : index
    %c0_29 = arith.constant 0 : index
    %c0_30 = arith.constant 0 : index
    %64 = vector.load %arg12[%c0_27, %c0_28, %c0_29, %c0_30] : memref<1x2x8x8xf32, #tpu.memory_space<vmem>>, vector<1x2x8x8xf32>
    %65 = vector.shape_cast %64 : vector<1x2x8x8xf32> to vector<2x8x8xf32>
    %66 = vector.shape_cast %63 : vector<2x8x8xf32> to vector<1x2x8x8xf32>
    tpu.vector_store %arg12[%c0_27, %c0_28, %c0_29, %c0_30], %66 {strides = array<i32>} : memref<1x2x8x8xf32, #tpu.memory_space<vmem>>, vector<1x2x8x8xf32>,
    %c0_31 = arith.constant 0 : index
    %c0_32 = arith.constant 0 : index
    %c0_33 = arith.constant 0 : index
    %67 = vector.load %arg15[%c0_31, %c0_32, %c0_33] : memref<2x8x16xf32, #tpu.memory_space<vmem>>, vector<2x8x16xf32>
    "tpu.trace_start"() <{level = 10 : i32, message = "hqk,hkf->hqf"}> : () -> ()
    %cst_34 = arith.constant dense<0.000000e+00> : vector<2x8x16xf32>
    %68 = tpu.matmul %63, %67, %cst_34 {dimension_numbers = #tpu.dot_dimension_numbers<[2], [1], [1], [2], [0, 0, 0, 1, 1, 2], [0], [0]>} : vector<2x8x8xf32>, vector<2x8x16xf32>, vector<2x8x16xf32> -> vector<2x8x16xf32>
    "tpu.trace_stop"() : () -> ()
    %c0_35 = arith.constant 0 : index
    %c0_36 = arith.constant 0 : index
    %c0_37 = arith.constant 0 : index
    %69 = vector.load %arg9[%c0_35, %c0_36, %c0_37] : memref<2x16x32xf32, #tpu.memory_space<vmem>>, vector<2x16x32xf32>
    "tpu.trace_start"() <{level = 10 : i32, message = "hqf,hfd->hqd"}> : () -> ()
    %cst_38 = arith.constant dense<0.000000e+00> : vector<2x8x32xf32>
    %70 = tpu.matmul %68, %69, %cst_38 {dimension_numbers = #tpu.dot_dimension_numbers<[2], [1], [1], [2], [0, 0, 0, 1, 1, 2], [0], [0]>} : vector<2x8x16xf32>, vector<2x16x32xf32>, vector<2x8x32xf32> -> vector<2x8x32xf32>
    "tpu.trace_stop"() : () -> ()
    %cst_39 = arith.constant dense<0.000000e+00> : vector<8x32xf32>
    %71 = vector.multi_reduction <add>, %70, %cst_39 [0] : vector<2x8x32xf32> to vector<8x32xf32>
    %72 = vector.extract_strided_slice %0 {offsets = [8, 0], sizes = [1, 32], strides = [1, 1]} : vector<13x32xf32> to vector<1x32xf32>
    %73 = vector.broadcast %72 : vector<1x32xf32> to vector<8x32xf32>
    %74 = arith.addf %71, %73 : vector<8x32xf32>
    %c8_i32_40 = arith.constant 8 : i32
    %75 = arith.muli %arg1, %c8_i32_40 : i32
    %76 = tpu.assume_multiple %75, 8 : i32
    %77 = arith.index_cast %76 : i32 to index
    %c0_41 = arith.constant 0 : index
    %78 = vector.load %arg13[%77, %c0_41] : memref<8x32xf32, #tpu.memory_space<vmem>>, vector<8x32xf32>
    %79 = arith.addf %74, %78 : vector<8x32xf32>
    %80 = vector.extract_strided_slice %0 {offsets = [6, 0], sizes = [1, 32], strides = [1, 1]} : vector<13x32xf32> to vector<1x32xf32>
    %81 = vector.extract_strided_slice %0 {offsets = [7, 0], sizes = [1, 32], strides = [1, 1]} : vector<13x32xf32> to vector<1x32xf32>
    %cst_42 = arith.constant dense<0.000000e+00> : vector<8xf32>
    %82 = vector.multi_reduction <add>, %79, %cst_42 [1] : vector<8x32xf32> to vector<8xf32>
    %83 = vector.shape_cast %82 : vector<8xf32> to vector<8x1xf32>
    %cst_43 = arith.constant 3.200000e+01 : f32
    %84 = vector.broadcast %cst_43 : f32 to vector<8x1xf32>
    %85 = arith.divf %83, %84 : vector<8x1xf32>
    %86 = vector.broadcast %85 : vector<8x1xf32> to vector<8x32xf32>
    %87 = arith.subf %79, %86 : vector<8x32xf32>
    %88 = arith.mulf %87, %87 : vector<8x32xf32>
    %cst_44 = arith.constant dense<0.000000e+00> : vector<8xf32>
    %89 = vector.multi_reduction <add>, %88, %cst_44 [1] : vector<8x32xf32> to vector<8xf32>
    %90 = vector.shape_cast %89 : vector<8xf32> to vector<8x1xf32>
    %cst_45 = arith.constant 3.200000e+01 : f32
    %91 = vector.broadcast %cst_45 : f32 to vector<8x1xf32>
    %92 = arith.divf %90, %91 : vector<8x1xf32>
    %93 = vector.broadcast %85 : vector<8x1xf32> to vector<8x32xf32>
    %94 = arith.subf %79, %93 : vector<8x32xf32>
    %cst_46 = arith.constant 9.99999993E-9 : f32
    %95 = vector.broadcast %cst_46 : f32 to vector<8x1xf32>
    %96 = arith.addf %92, %95 : vector<8x1xf32>
    %97 = math.rsqrt %96 : vector<8x1xf32>
    %98 = vector.broadcast %97 : vector<8x1xf32> to vector<8x32xf32>
    %99 = arith.mulf %94, %98 : vector<8x32xf32>
    %100 = vector.broadcast %80 : vector<1x32xf32> to vector<8x32xf32>
    %101 = arith.mulf %99, %100 : vector<8x32xf32>
    %102 = vector.broadcast %81 : vector<1x32xf32> to vector<8x32xf32>
    %103 = arith.addf %101, %102 : vector<8x32xf32>
    %c0_47 = arith.constant 0 : index
    %c0_48 = arith.constant 0 : index
    %c0_49 = arith.constant 0 : index
    %104 = vector.load %arg10[%c0_47, %c0_48, %c0_49] : memref<2x32x32xf32, #tpu.memory_space<vmem>>, vector<1x32x32xf32>
    %105 = vector.shape_cast %104 : vector<1x32x32xf32> to vector<32x32xf32>
    %cst_50 = arith.constant dense<0.000000e+00> : vector<8x32xf32>
    %106 = tpu.matmul %103, %105, %cst_50 {dimension_numbers = #tpu.dot_dimension_numbers<[1], [0], [0], [1], [0, 0, 1, 1], [], []>} : vector<8x32xf32>, vector<32x32xf32>, vector<8x32xf32> -> vector<8x32xf32>
    %107 = vector.extract_strided_slice %0 {offsets = [9, 0], sizes = [1, 32], strides = [1, 1]} : vector<13x32xf32> to vector<1x32xf32>
    %108 = vector.broadcast %107 : vector<1x32xf32> to vector<8x32xf32>
    %109 = arith.addf %106, %108 : vector<8x32xf32>
    %cst_51 = arith.constant 0.000000e+00 : f32
    %110 = vector.broadcast %cst_51 : f32 to vector<8x32xf32>
    %111 = arith.maximumf %109, %110 : vector<8x32xf32>
    %c1 = arith.constant 1 : index
    %c0_52 = arith.constant 0 : index
    %c0_53 = arith.constant 0 : index
    %112 = vector.load %arg10[%c1, %c0_52, %c0_53] : memref<2x32x32xf32, #tpu.memory_space<vmem>>, vector<1x32x32xf32>
    %113 = vector.shape_cast %112 : vector<1x32x32xf32> to vector<32x32xf32>
    %cst_54 = arith.constant dense<0.000000e+00> : vector<8x32xf32>
    %114 = tpu.matmul %111, %113, %cst_54 {dimension_numbers = #tpu.dot_dimension_numbers<[1], [0], [0], [1], [0, 0, 1, 1], [], []>} : vector<8x32xf32>, vector<32x32xf32>, vector<8x32xf32> -> vector<8x32xf32>
    %115 = vector.extract_strided_slice %0 {offsets = [10, 0], sizes = [1, 32], strides = [1, 1]} : vector<13x32xf32> to vector<1x32xf32>
    %116 = vector.broadcast %115 : vector<1x32xf32> to vector<8x32xf32>
    %117 = arith.addf %114, %116 : vector<8x32xf32>
    %118 = arith.addf %117, %103 : vector<8x32xf32>
    %c0_55 = arith.constant 0 : index
    %c0_56 = arith.constant 0 : index
    %c0_57 = arith.constant 0 : index
    %119 = vector.load %arg5[%c0_55, %c0_56, %c0_57] : memref<1x8x1xf32, #tpu.memory_space<vmem>>, vector<1x8x1xf32>
    %120 = vector.shape_cast %119 : vector<1x8x1xf32> to vector<8x1xf32>
    %121 = vector.broadcast %120 : vector<8x1xf32> to vector<8x32xf32>
    %122 = arith.mulf %118, %121 : vector<8x32xf32>
    %c0_58 = arith.constant 0 : index
    %c0_59 = arith.constant 0 : index
    %c0_60 = arith.constant 0 : index
    %123 = vector.load %arg11[%c0_58, %c0_59, %c0_60] : memref<1x8x32xf32, #tpu.memory_space<vmem>>, vector<1x8x32xf32>
    %124 = vector.shape_cast %123 : vector<1x8x32xf32> to vector<8x32xf32>
    %125 = vector.shape_cast %122 : vector<8x32xf32> to vector<1x8x32xf32>
    tpu.vector_store %arg11[%c0_58, %c0_59, %c0_60], %125 {strides = array<i32>} : memref<1x8x32xf32, #tpu.memory_space<vmem>>, vector<1x8x32xf32>,
    return
  }
  func.func @transform_0(%arg0: i32, %arg1: i32) -> (i32, i32, i32) {
    %c0_i32 = arith.constant 0 : i32
    %c0_i32_0 = arith.constant 0 : i32
    return %arg0, %arg1, %c0_i32 : i32, i32, i32
  }
  func.func @transform_1(%arg0: i32, %arg1: i32) -> (i32, i32, i32) {
    %c0_i32 = arith.constant 0 : i32
    %c0_i32_0 = arith.constant 0 : i32
    %c0_i32_1 = arith.constant 0 : i32
    return %arg0, %c0_i32, %c0_i32_0 : i32, i32, i32
  }
  func.func @transform_2(%arg0: i32, %arg1: i32) -> (i32, i32, i32) {
    %c0_i32 = arith.constant 0 : i32
    %c0_i32_0 = arith.constant 0 : i32
    %c0_i32_1 = arith.constant 0 : i32
    return %arg0, %c0_i32, %c0_i32_0 : i32, i32, i32
  }
  func.func @transform_3(%arg0: i32, %arg1: i32) -> (i32, i32, i32) {
    %c0_i32 = arith.constant 0 : i32
    %c0_i32_0 = arith.constant 0 : i32
    return %arg0, %arg1, %c0_i32 : i32, i32, i32
  }
  func.func @transform_4(%arg0: i32, %arg1: i32) -> (i32, i32) {
    %c0_i32 = arith.constant 0 : i32
    %c0_i32_0 = arith.constant 0 : i32
    %c0_i32_1 = arith.constant 0 : i32
    return %c0_i32, %c0_i32_0 : i32, i32
  }
  func.func @transform_5(%arg0: i32, %arg1: i32) -> (i32, i32, i32, i32) {
    %c0_i32 = arith.constant 0 : i32
    %c0_i32_0 = arith.constant 0 : i32
    %c0_i32_1 = arith.constant 0 : i32
    %c0_i32_2 = arith.constant 0 : i32
    %c0_i32_3 = arith.constant 0 : i32
    return %c0_i32, %c0_i32_0, %c0_i32_1, %c0_i32_2 : i32, i32, i32, i32
  }
  func.func @transform_6(%arg0: i32, %arg1: i32) -> (i32, i32, i32, i32) {
    %c0_i32 = arith.constant 0 : i32
    %c0_i32_0 = arith.constant 0 : i32
    %c0_i32_1 = arith.constant 0 : i32
    %c0_i32_2 = arith.constant 0 : i32
    %c0_i32_3 = arith.constant 0 : i32
    return %c0_i32, %c0_i32_0, %c0_i32_1, %c0_i32_2 : i32, i32, i32, i32
  }
  func.func @transform_7(%arg0: i32, %arg1: i32) -> (i32, i32, i32) {
    %c0_i32 = arith.constant 0 : i32
    %c0_i32_0 = arith.constant 0 : i32
    %c0_i32_1 = arith.constant 0 : i32
    %c0_i32_2 = arith.constant 0 : i32
    return %c0_i32, %c0_i32_0, %c0_i32_1 : i32, i32, i32
  }
  func.func @transform_8(%arg0: i32, %arg1: i32) -> (i32, i32, i32) {
    %c0_i32 = arith.constant 0 : i32
    %c0_i32_0 = arith.constant 0 : i32
    %c0_i32_1 = arith.constant 0 : i32
    %c0_i32_2 = arith.constant 0 : i32
    return %c0_i32, %c0_i32_0, %c0_i32_1 : i32, i32, i32
  }
  func.func @transform_9(%arg0: i32, %arg1: i32) -> (i32, i32, i32) {
    %c0_i32 = arith.constant 0 : i32
    %c0_i32_0 = arith.constant 0 : i32
    return %arg0, %arg1, %c0_i32 : i32, i32, i32
  }
  func.func @transform_10(%arg0: i32, %arg1: i32) -> (i32, i32, i32, i32) {
    %c0_i32 = arith.constant 0 : i32
    %c0_i32_0 = arith.constant 0 : i32
    %c0_i32_1 = arith.constant 0 : i32
    return %arg0, %c0_i32, %arg1, %c0_i32_0 : i32, i32, i32, i32
  }
}

module attributes {stable_mosaic.version = 11 : i64} {
  func.func @_block_kernel(%arg0: i32, %arg1: i32, %arg2: memref<1x8x32xf32, #tpu.memory_space<vmem>>, %arg3: memref<1x8x32xf32, #tpu.memory_space<vmem>>, %arg4: memref<1x8x32xf32, #tpu.memory_space<vmem>>, %arg5: memref<1x8x1xf32, #tpu.memory_space<vmem>>, %arg6: memref<13x32xf32, #tpu.memory_space<vmem>>, %arg7: memref<3x2x32x16xf32, #tpu.memory_space<vmem>>, %arg8: memref<3x2x1x16xf32, #tpu.memory_space<vmem>>, %arg9: memref<2x16x32xf32, #tpu.memory_space<vmem>>, %arg10: memref<2x32x32xf32, #tpu.memory_space<vmem>>, %arg11: memref<1x8x32xf32, #tpu.memory_space<vmem>>, %arg12: memref<1x2x8x8xf32, #tpu.memory_space<vmem>>, %arg13: memref<8x32xf32, #tpu.memory_space<vmem>>, %arg14: memref<2x8x16xf32, #tpu.memory_space<vmem>>, %arg15: memref<2x8x16xf32, #tpu.memory_space<vmem>>) attributes {dimension_semantics = [#tpu.dimension_semantics<parallel>, #tpu.dimension_semantics<arbitrary>], iteration_bounds = array<i64: 2, 1>, scalar_prefetch = 0 : i64, scratch_operands = 3 : i64, tpu.core_type = #tpu.core_type<tc>, window_params = [{transform_indices = @transform_0, window_bounds = array<i64: 1, 8, 32>}, {transform_indices = @transform_1, window_bounds = array<i64: 1, 8, 32>}, {transform_indices = @transform_2, window_bounds = array<i64: 1, 8, 32>}, {transform_indices = @transform_3, window_bounds = array<i64: 1, 8, 1>}, {pipeline_mode = #tpu.pipeline_mode<synchronous>, transform_indices = @transform_4, window_bounds = array<i64: 13, 32>}, {pipeline_mode = #tpu.pipeline_mode<synchronous>, transform_indices = @transform_5, window_bounds = array<i64: 3, 2, 32, 16>}, {pipeline_mode = #tpu.pipeline_mode<synchronous>, transform_indices = @transform_6, window_bounds = array<i64: 3, 2, 1, 16>}, {pipeline_mode = #tpu.pipeline_mode<synchronous>, transform_indices = @transform_7, window_bounds = array<i64: 2, 16, 32>}, {pipeline_mode = #tpu.pipeline_mode<synchronous>, transform_indices = @transform_8, window_bounds = array<i64: 2, 32, 32>}, {transform_indices = @transform_9, window_bounds = array<i64: 1, 8, 32>}, {transform_indices = @transform_10, window_bounds = array<i64: 1, 2, 8, 8>}]} {
    %c0 = arith.constant 0 : index
    %c0_0 = arith.constant 0 : index
    %0 = vector.load %arg6[%c0, %c0_0] : memref<13x32xf32, #tpu.memory_space<vmem>>, vector<13x32xf32>
    %c0_i32 = arith.constant 0 : i32
    %1 = arith.cmpi eq, %arg1, %c0_i32 : i32
    %2 = arith.extui %1 : i1 to i32
    %c0_i32_1 = arith.constant 0 : i32
    %3 = arith.cmpi ne, %2, %c0_i32_1 : i32
    scf.if %3 {
      %c0_66 = arith.constant 0 : index
      %c0_67 = arith.constant 0 : index
      %c0_68 = arith.constant 0 : index
      %150 = vector.load %arg3[%c0_66, %c0_67, %c0_68] : memref<1x8x32xf32, #tpu.memory_space<vmem>>, vector<1x8x32xf32>
      %151 = vector.shape_cast %150 : vector<1x8x32xf32> to vector<8x32xf32>
      %152 = vector.extract_strided_slice %0 {offsets = [2, 0], sizes = [1, 32], strides = [1, 1]} : vector<13x32xf32> to vector<1x32xf32>
      %153 = vector.extract_strided_slice %0 {offsets = [3, 0], sizes = [1, 32], strides = [1, 1]} : vector<13x32xf32> to vector<1x32xf32>
      %cst_69 = arith.constant dense<0.000000e+00> : vector<8xf32>
      %154 = vector.multi_reduction <add>, %151, %cst_69 [1] : vector<8x32xf32> to vector<8xf32>
      %155 = vector.shape_cast %154 : vector<8xf32> to vector<8x1xf32>
      %cst_70 = arith.constant 3.200000e+01 : f32
      %156 = vector.broadcast %cst_70 : f32 to vector<8x1xf32>
      %157 = arith.divf %155, %156 : vector<8x1xf32>
      %158 = vector.broadcast %157 : vector<8x1xf32> to vector<8x32xf32>
      %159 = arith.subf %151, %158 : vector<8x32xf32>
      %160 = arith.mulf %159, %159 : vector<8x32xf32>
      %cst_71 = arith.constant dense<0.000000e+00> : vector<8xf32>
      %161 = vector.multi_reduction <add>, %160, %cst_71 [1] : vector<8x32xf32> to vector<8xf32>
      %162 = vector.shape_cast %161 : vector<8xf32> to vector<8x1xf32>
      %cst_72 = arith.constant 3.200000e+01 : f32
      %163 = vector.broadcast %cst_72 : f32 to vector<8x1xf32>
      %164 = arith.divf %162, %163 : vector<8x1xf32>
      %165 = vector.broadcast %157 : vector<8x1xf32> to vector<8x32xf32>
      %166 = arith.subf %151, %165 : vector<8x32xf32>
      %cst_73 = arith.constant 9.99999993E-9 : f32
      %167 = vector.broadcast %cst_73 : f32 to vector<8x1xf32>
      %168 = arith.addf %164, %167 : vector<8x1xf32>
      %169 = math.rsqrt %168 : vector<8x1xf32>
      %170 = vector.broadcast %169 : vector<8x1xf32> to vector<8x32xf32>
      %171 = arith.mulf %166, %170 : vector<8x32xf32>
      %172 = vector.broadcast %152 : vector<1x32xf32> to vector<8x32xf32>
      %173 = arith.mulf %171, %172 : vector<8x32xf32>
      %174 = vector.broadcast %153 : vector<1x32xf32> to vector<8x32xf32>
      %175 = arith.addf %173, %174 : vector<8x32xf32>
      %c0_74 = arith.constant 0 : index
      %c0_75 = arith.constant 0 : index
      %c0_76 = arith.constant 0 : index
      %176 = vector.load %arg4[%c0_74, %c0_75, %c0_76] : memref<1x8x32xf32, #tpu.memory_space<vmem>>, vector<1x8x32xf32>
      %177 = vector.shape_cast %176 : vector<1x8x32xf32> to vector<8x32xf32>
      %178 = vector.extract_strided_slice %0 {offsets = [4, 0], sizes = [1, 32], strides = [1, 1]} : vector<13x32xf32> to vector<1x32xf32>
      %179 = vector.extract_strided_slice %0 {offsets = [5, 0], sizes = [1, 32], strides = [1, 1]} : vector<13x32xf32> to vector<1x32xf32>
      %cst_77 = arith.constant dense<0.000000e+00> : vector<8xf32>
      %180 = vector.multi_reduction <add>, %177, %cst_77 [1] : vector<8x32xf32> to vector<8xf32>
      %181 = vector.shape_cast %180 : vector<8xf32> to vector<8x1xf32>
      %cst_78 = arith.constant 3.200000e+01 : f32
      %182 = vector.broadcast %cst_78 : f32 to vector<8x1xf32>
      %183 = arith.divf %181, %182 : vector<8x1xf32>
      %184 = vector.broadcast %183 : vector<8x1xf32> to vector<8x32xf32>
      %185 = arith.subf %177, %184 : vector<8x32xf32>
      %186 = arith.mulf %185, %185 : vector<8x32xf32>
      %cst_79 = arith.constant dense<0.000000e+00> : vector<8xf32>
      %187 = vector.multi_reduction <add>, %186, %cst_79 [1] : vector<8x32xf32> to vector<8xf32>
      %188 = vector.shape_cast %187 : vector<8xf32> to vector<8x1xf32>
      %cst_80 = arith.constant 3.200000e+01 : f32
      %189 = vector.broadcast %cst_80 : f32 to vector<8x1xf32>
      %190 = arith.divf %188, %189 : vector<8x1xf32>
      %191 = vector.broadcast %183 : vector<8x1xf32> to vector<8x32xf32>
      %192 = arith.subf %177, %191 : vector<8x32xf32>
      %cst_81 = arith.constant 9.99999993E-9 : f32
      %193 = vector.broadcast %cst_81 : f32 to vector<8x1xf32>
      %194 = arith.addf %190, %193 : vector<8x1xf32>
      %195 = math.rsqrt %194 : vector<8x1xf32>
      %196 = vector.broadcast %195 : vector<8x1xf32> to vector<8x32xf32>
      %197 = arith.mulf %192, %196 : vector<8x32xf32>
      %198 = vector.broadcast %178 : vector<1x32xf32> to vector<8x32xf32>
      %199 = arith.mulf %197, %198 : vector<8x32xf32>
      %200 = vector.broadcast %179 : vector<1x32xf32> to vector<8x32xf32>
      %201 = arith.addf %199, %200 : vector<8x32xf32>
      %c0_82 = arith.constant 0 : index
      %c0_83 = arith.constant 0 : index
      %202 = vector.load %arg13[%c0_82, %c0_83] : memref<8x32xf32, #tpu.memory_space<vmem>>, vector<8x32xf32>
      tpu.vector_store %arg13[%c0_82, %c0_83], %175 {strides = array<i32>} : memref<8x32xf32, #tpu.memory_space<vmem>>, vector<8x32xf32>,
      %203 = vector.shape_cast %175 : vector<8x32xf32> to vector<1x8x32xf32>
      %204 = vector.broadcast %203 : vector<1x8x32xf32> to vector<2x8x32xf32>
      %205 = vector.shape_cast %201 : vector<8x32xf32> to vector<1x8x32xf32>
      %206 = vector.broadcast %205 : vector<1x8x32xf32> to vector<2x8x32xf32>
      %c1_84 = arith.constant 1 : index
      %c0_85 = arith.constant 0 : index
      %c0_86 = arith.constant 0 : index
      %c0_87 = arith.constant 0 : index
      %207 = vector.load %arg7[%c1_84, %c0_85, %c0_86, %c0_87] : memref<3x2x32x16xf32, #tpu.memory_space<vmem>>, vector<1x2x32x16xf32>
      %208 = vector.shape_cast %207 : vector<1x2x32x16xf32> to vector<2x32x16xf32>
      "tpu.trace_start"() <{level = 10 : i32, message = "htd,hdf->htf"}> : () -> ()
      %cst_88 = arith.constant dense<0.000000e+00> : vector<2x8x16xf32>
      %209 = tpu.matmul %204, %208, %cst_88 {dimension_numbers = #tpu.dot_dimension_numbers<[2], [1], [1], [2], [0, 0, 0, 1, 1, 2], [0], [0]>} : vector<2x8x32xf32>, vector<2x32x16xf32>, vector<2x8x16xf32> -> vector<2x8x16xf32>
      "tpu.trace_stop"() : () -> ()
      %c1_89 = arith.constant 1 : index
      %c0_90 = arith.constant 0 : index
      %c0_91 = arith.constant 0 : index
      %c0_92 = arith.constant 0 : index
      %210 = vector.load %arg8[%c1_89, %c0_90, %c0_91, %c0_92] : memref<3x2x1x16xf32, #tpu.memory_space<vmem>>, vector<1x2x1x16xf32>
      %211 = vector.shape_cast %210 : vector<1x2x1x16xf32> to vector<2x1x16xf32>
      %212 = vector.broadcast %211 : vector<2x1x16xf32> to vector<2x8x16xf32>
      %213 = arith.addf %209, %212 : vector<2x8x16xf32>
      %c0_93 = arith.constant 0 : index
      %c0_94 = arith.constant 0 : index
      %c0_95 = arith.constant 0 : index
      %214 = vector.load %arg14[%c0_93, %c0_94, %c0_95] : memref<2x8x16xf32, #tpu.memory_space<vmem>>, vector<2x8x16xf32>
      tpu.vector_store %arg14[%c0_93, %c0_94, %c0_95], %213 {strides = array<i32>} : memref<2x8x16xf32, #tpu.memory_space<vmem>>, vector<2x8x16xf32>,
      %c2 = arith.constant 2 : index
      %c0_96 = arith.constant 0 : index
      %c0_97 = arith.constant 0 : index
      %c0_98 = arith.constant 0 : index
      %215 = vector.load %arg7[%c2, %c0_96, %c0_97, %c0_98] : memref<3x2x32x16xf32, #tpu.memory_space<vmem>>, vector<1x2x32x16xf32>
      %216 = vector.shape_cast %215 : vector<1x2x32x16xf32> to vector<2x32x16xf32>
      "tpu.trace_start"() <{level = 10 : i32, message = "htd,hdf->htf"}> : () -> ()
      %cst_99 = arith.constant dense<0.000000e+00> : vector<2x8x16xf32>
      %217 = tpu.matmul %206, %216, %cst_99 {dimension_numbers = #tpu.dot_dimension_numbers<[2], [1], [1], [2], [0, 0, 0, 1, 1, 2], [0], [0]>} : vector<2x8x32xf32>, vector<2x32x16xf32>, vector<2x8x16xf32> -> vector<2x8x16xf32>
      "tpu.trace_stop"() : () -> ()
      %c2_100 = arith.constant 2 : index
      %c0_101 = arith.constant 0 : index
      %c0_102 = arith.constant 0 : index
      %c0_103 = arith.constant 0 : index
      %218 = vector.load %arg8[%c2_100, %c0_101, %c0_102, %c0_103] : memref<3x2x1x16xf32, #tpu.memory_space<vmem>>, vector<1x2x1x16xf32>
      %219 = vector.shape_cast %218 : vector<1x2x1x16xf32> to vector<2x1x16xf32>
      %220 = vector.broadcast %219 : vector<2x1x16xf32> to vector<2x8x16xf32>
      %221 = arith.addf %217, %220 : vector<2x8x16xf32>
      %c0_104 = arith.constant 0 : index
      %c0_105 = arith.constant 0 : index
      %c0_106 = arith.constant 0 : index
      %222 = vector.load %arg15[%c0_104, %c0_105, %c0_106] : memref<2x8x16xf32, #tpu.memory_space<vmem>>, vector<2x8x16xf32>
      tpu.vector_store %arg15[%c0_104, %c0_105, %c0_106], %221 {strides = array<i32>} : memref<2x8x16xf32, #tpu.memory_space<vmem>>, vector<2x8x16xf32>,
    } else {
    }
    %c0_2 = arith.constant 0 : index
    %c0_3 = arith.constant 0 : index
    %c0_4 = arith.constant 0 : index
    %4 = vector.load %arg2[%c0_2, %c0_3, %c0_4] : memref<1x8x32xf32, #tpu.memory_space<vmem>>, vector<1x8x32xf32>
    %5 = vector.shape_cast %4 : vector<1x8x32xf32> to vector<8x32xf32>
    %6 = vector.extract_strided_slice %0 {offsets = [0, 0], sizes = [1, 32], strides = [1, 1]} : vector<13x32xf32> to vector<1x32xf32>
    %7 = vector.extract_strided_slice %0 {offsets = [1, 0], sizes = [1, 32], strides = [1, 1]} : vector<13x32xf32> to vector<1x32xf32>
    %cst = arith.constant dense<0.000000e+00> : vector<8xf32>
    %8 = vector.multi_reduction <add>, %5, %cst [1] : vector<8x32xf32> to vector<8xf32>
    %9 = vector.shape_cast %8 : vector<8xf32> to vector<8x1xf32>
    %cst_5 = arith.constant 3.200000e+01 : f32
    %10 = vector.broadcast %cst_5 : f32 to vector<8x1xf32>
    %11 = arith.divf %9, %10 : vector<8x1xf32>
    %12 = vector.broadcast %11 : vector<8x1xf32> to vector<8x32xf32>
    %13 = arith.subf %5, %12 : vector<8x32xf32>
    %14 = arith.mulf %13, %13 : vector<8x32xf32>
    %cst_6 = arith.constant dense<0.000000e+00> : vector<8xf32>
    %15 = vector.multi_reduction <add>, %14, %cst_6 [1] : vector<8x32xf32> to vector<8xf32>
    %16 = vector.shape_cast %15 : vector<8xf32> to vector<8x1xf32>
    %cst_7 = arith.constant 3.200000e+01 : f32
    %17 = vector.broadcast %cst_7 : f32 to vector<8x1xf32>
    %18 = arith.divf %16, %17 : vector<8x1xf32>
    %19 = vector.broadcast %11 : vector<8x1xf32> to vector<8x32xf32>
    %20 = arith.subf %5, %19 : vector<8x32xf32>
    %cst_8 = arith.constant 9.99999993E-9 : f32
    %21 = vector.broadcast %cst_8 : f32 to vector<8x1xf32>
    %22 = arith.addf %18, %21 : vector<8x1xf32>
    %23 = math.rsqrt %22 : vector<8x1xf32>
    %24 = vector.broadcast %23 : vector<8x1xf32> to vector<8x32xf32>
    %25 = arith.mulf %20, %24 : vector<8x32xf32>
    %26 = vector.broadcast %6 : vector<1x32xf32> to vector<8x32xf32>
    %27 = arith.mulf %25, %26 : vector<8x32xf32>
    %28 = vector.broadcast %7 : vector<1x32xf32> to vector<8x32xf32>
    %29 = arith.addf %27, %28 : vector<8x32xf32>
    %30 = vector.shape_cast %29 : vector<8x32xf32> to vector<1x8x32xf32>
    %31 = vector.broadcast %30 : vector<1x8x32xf32> to vector<2x8x32xf32>
    %c0_9 = arith.constant 0 : index
    %c0_10 = arith.constant 0 : index
    %c0_11 = arith.constant 0 : index
    %c0_12 = arith.constant 0 : index
    %32 = vector.load %arg7[%c0_9, %c0_10, %c0_11, %c0_12] : memref<3x2x32x16xf32, #tpu.memory_space<vmem>>, vector<1x2x32x16xf32>
    %33 = vector.shape_cast %32 : vector<1x2x32x16xf32> to vector<2x32x16xf32>
    "tpu.trace_start"() <{level = 10 : i32, message = "htd,hdf->htf"}> : () -> ()
    %cst_13 = arith.constant dense<0.000000e+00> : vector<2x8x16xf32>
    %34 = tpu.matmul %31, %33, %cst_13 {dimension_numbers = #tpu.dot_dimension_numbers<[2], [1], [1], [2], [0, 0, 0, 1, 1, 2], [0], [0]>} : vector<2x8x32xf32>, vector<2x32x16xf32>, vector<2x8x16xf32> -> vector<2x8x16xf32>
    "tpu.trace_stop"() : () -> ()
    %c0_14 = arith.constant 0 : index
    %c0_15 = arith.constant 0 : index
    %c0_16 = arith.constant 0 : index
    %c0_17 = arith.constant 0 : index
    %35 = vector.load %arg8[%c0_14, %c0_15, %c0_16, %c0_17] : memref<3x2x1x16xf32, #tpu.memory_space<vmem>>, vector<1x2x1x16xf32>
    %36 = vector.shape_cast %35 : vector<1x2x1x16xf32> to vector<2x1x16xf32>
    %37 = vector.broadcast %36 : vector<2x1x16xf32> to vector<2x8x16xf32>
    %38 = arith.addf %34, %37 : vector<2x8x16xf32>
    %cst_18 = arith.constant 2.500000e-01 : f32
    %39 = vector.broadcast %cst_18 : f32 to vector<2x8x16xf32>
    %40 = arith.mulf %38, %39 : vector<2x8x16xf32>
    %c0_19 = arith.constant 0 : index
    %c0_20 = arith.constant 0 : index
    %c0_21 = arith.constant 0 : index
    %41 = vector.load %arg14[%c0_19, %c0_20, %c0_21] : memref<2x8x16xf32, #tpu.memory_space<vmem>>, vector<2x8x16xf32>
    "tpu.trace_start"() <{level = 10 : i32, message = "hqf,hkf->hqk"}> : () -> ()
    %cst_22 = arith.constant dense<0.000000e+00> : vector<2x8x8xf32>
    %42 = tpu.matmul %40, %41, %cst_22 {dimension_numbers = #tpu.dot_dimension_numbers<[2], [2], [1], [1], [0, 0, 0, 1, 1, 1], [0], [0]>} : vector<2x8x16xf32>, vector<2x8x16xf32>, vector<2x8x8xf32> -> vector<2x8x8xf32>
    "tpu.trace_stop"() : () -> ()
    %43 = tpu.iota {dimensions = array<i32: 0>} : vector<8x8xi32>
    %c8_i32 = arith.constant 8 : i32
    %44 = arith.muli %arg1, %c8_i32 : i32
    %45 = vector.broadcast %44 : i32 to vector<8x8xi32>
    %46 = arith.addi %43, %45 : vector<8x8xi32>
    %47 = tpu.iota {dimensions = array<i32: 1>} : vector<8x8xi32>
    %48 = arith.cmpi sle, %47, %46 : vector<8x8xi32>
    %cst_23 = arith.constant 0.000000e+00 : f32
    %cst_24 = arith.constant 0xFF800000 : f32
    %49 = vector.broadcast %cst_23 : f32 to vector<8x8xf32>
    %50 = vector.broadcast %cst_24 : f32 to vector<8x8xf32>
    %51 = arith.select %48, %49, %50 : vector<8x8xi1>, vector<8x8xf32>
    %52 = vector.shape_cast %51 : vector<8x8xf32> to vector<1x8x8xf32>
    %53 = vector.broadcast %52 : vector<1x8x8xf32> to vector<2x8x8xf32>
    %54 = arith.addf %42, %53 : vector<2x8x8xf32>
    %cst_25 = arith.constant dense<0xFF800000> : vector<2x8xf32>
    %55 = vector.multi_reduction <maximumf>, %54, %cst_25 [2] : vector<2x8x8xf32> to vector<2x8xf32>
    %56 = vector.shape_cast %55 : vector<2x8xf32> to vector<2x8x1xf32>
    %57 = vector.broadcast %56 : vector<2x8x1xf32> to vector<2x8x8xf32>
    %58 = arith.subf %54, %57 : vector<2x8x8xf32>
    %59 = math.exp %58 : vector<2x8x8xf32>
    %cst_26 = arith.constant dense<0.000000e+00> : vector<2x8xf32>
    %60 = vector.multi_reduction <add>, %59, %cst_26 [2] : vector<2x8x8xf32> to vector<2x8xf32>
    %61 = vector.shape_cast %60 : vector<2x8xf32> to vector<2x8x1xf32>
    %62 = vector.broadcast %61 : vector<2x8x1xf32> to vector<2x8x8xf32>
    %63 = arith.divf %59, %62 : vector<2x8x8xf32>
    %c0_27 = arith.constant 0 : index
    %c0_28 = arith.constant 0 : index
    %c0_29 = arith.constant 0 : index
    %c0_30 = arith.constant 0 : index
    %64 = vector.load %arg12[%c0_27, %c0_28, %c0_29, %c0_30] : memref<1x2x8x8xf32, #tpu.memory_space<vmem>>, vector<1x2x8x8xf32>
    %65 = vector.shape_cast %64 : vector<1x2x8x8xf32> to vector<2x8x8xf32>
    %66 = vector.shape_cast %63 : vector<2x8x8xf32> to vector<1x2x8x8xf32>
    tpu.vector_store %arg12[%c0_27, %c0_28, %c0_29, %c0_30], %66 {strides = array<i32>} : memref<1x2x8x8xf32, #tpu.memory_space<vmem>>, vector<1x2x8x8xf32>,
    %c0_31 = arith.constant 0 : index
    %c0_32 = arith.constant 0 : index
    %c0_33 = arith.constant 0 : index
    %67 = vector.load %arg15[%c0_31, %c0_32, %c0_33] : memref<2x8x16xf32, #tpu.memory_space<vmem>>, vector<2x8x16xf32>
    "tpu.trace_start"() <{level = 10 : i32, message = "hqk,hkf->hqf"}> : () -> ()
    %cst_34 = arith.constant dense<0.000000e+00> : vector<2x8x16xf32>
    %68 = tpu.matmul %63, %67, %cst_34 {dimension_numbers = #tpu.dot_dimension_numbers<[2], [1], [1], [2], [0, 0, 0, 1, 1, 2], [0], [0]>} : vector<2x8x8xf32>, vector<2x8x16xf32>, vector<2x8x16xf32> -> vector<2x8x16xf32>
    "tpu.trace_stop"() : () -> ()
    %c0_35 = arith.constant 0 : index
    %c0_36 = arith.constant 0 : index
    %c0_37 = arith.constant 0 : index
    %69 = vector.load %arg9[%c0_35, %c0_36, %c0_37] : memref<2x16x32xf32, #tpu.memory_space<vmem>>, vector<2x16x32xf32>
    "tpu.trace_start"() <{level = 10 : i32, message = "hqf,hfd->hqd"}> : () -> ()
    %cst_38 = arith.constant dense<0.000000e+00> : vector<2x8x32xf32>
    %70 = tpu.matmul %68, %69, %cst_38 {dimension_numbers = #tpu.dot_dimension_numbers<[2], [1], [1], [2], [0, 0, 0, 1, 1, 2], [0], [0]>} : vector<2x8x16xf32>, vector<2x16x32xf32>, vector<2x8x32xf32> -> vector<2x8x32xf32>
    "tpu.trace_stop"() : () -> ()
    %cst_39 = arith.constant dense<0.000000e+00> : vector<8x32xf32>
    %71 = vector.multi_reduction <add>, %70, %cst_39 [0] : vector<2x8x32xf32> to vector<8x32xf32>
    %72 = vector.extract_strided_slice %0 {offsets = [8, 0], sizes = [1, 32], strides = [1, 1]} : vector<13x32xf32> to vector<1x32xf32>
    %73 = vector.broadcast %72 : vector<1x32xf32> to vector<8x32xf32>
    %74 = arith.addf %71, %73 : vector<8x32xf32>
    %c8_i32_40 = arith.constant 8 : i32
    %75 = arith.muli %arg1, %c8_i32_40 : i32
    %76 = tpu.assume_multiple %75, 8 : i32
    %77 = arith.index_cast %76 : i32 to index
    %c0_41 = arith.constant 0 : index
    %78 = vector.load %arg13[%77, %c0_41] : memref<8x32xf32, #tpu.memory_space<vmem>>, vector<8x32xf32>
    %79 = arith.addf %74, %78 : vector<8x32xf32>
    %80 = vector.extract_strided_slice %0 {offsets = [6, 0], sizes = [1, 32], strides = [1, 1]} : vector<13x32xf32> to vector<1x32xf32>
    %81 = vector.extract_strided_slice %0 {offsets = [7, 0], sizes = [1, 32], strides = [1, 1]} : vector<13x32xf32> to vector<1x32xf32>
    %cst_42 = arith.constant dense<0.000000e+00> : vector<8xf32>
    %82 = vector.multi_reduction <add>, %79, %cst_42 [1] : vector<8x32xf32> to vector<8xf32>
    %83 = vector.shape_cast %82 : vector<8xf32> to vector<8x1xf32>
    %cst_43 = arith.constant 3.200000e+01 : f32
    %84 = vector.broadcast %cst_43 : f32 to vector<8x1xf32>
    %85 = arith.divf %83, %84 : vector<8x1xf32>
    %86 = vector.broadcast %85 : vector<8x1xf32> to vector<8x32xf32>
    %87 = arith.subf %79, %86 : vector<8x32xf32>
    %88 = arith.mulf %87, %87 : vector<8x32xf32>
    %cst_44 = arith.constant dense<0.000000e+00> : vector<8xf32>
    %89 = vector.multi_reduction <add>, %88, %cst_44 [1] : vector<8x32xf32> to vector<8xf32>
    %90 = vector.shape_cast %89 : vector<8xf32> to vector<8x1xf32>
    %cst_45 = arith.constant 3.200000e+01 : f32
    %91 = vector.broadcast %cst_45 : f32 to vector<8x1xf32>
    %92 = arith.divf %90, %91 : vector<8x1xf32>
    %93 = vector.broadcast %85 : vector<8x1xf32> to vector<8x32xf32>
    %94 = arith.subf %79, %93 : vector<8x32xf32>
    %cst_46 = arith.constant 9.99999993E-9 : f32
    %95 = vector.broadcast %cst_46 : f32 to vector<8x1xf32>
    %96 = arith.addf %92, %95 : vector<8x1xf32>
    %97 = math.rsqrt %96 : vector<8x1xf32>
    %98 = vector.broadcast %97 : vector<8x1xf32> to vector<8x32xf32>
    %99 = arith.mulf %94, %98 : vector<8x32xf32>
    %100 = vector.broadcast %80 : vector<1x32xf32> to vector<8x32xf32>
    %101 = arith.mulf %99, %100 : vector<8x32xf32>
    %102 = vector.broadcast %81 : vector<1x32xf32> to vector<8x32xf32>
    %103 = arith.addf %101, %102 : vector<8x32xf32>
    %c0_47 = arith.constant 0 : index
    %c0_48 = arith.constant 0 : index
    %c0_49 = arith.constant 0 : index
    %104 = vector.load %arg10[%c0_47, %c0_48, %c0_49] : memref<2x32x32xf32, #tpu.memory_space<vmem>>, vector<1x32x32xf32>
    %105 = vector.shape_cast %104 : vector<1x32x32xf32> to vector<32x32xf32>
    %cst_50 = arith.constant dense<0.000000e+00> : vector<8x32xf32>
    %106 = tpu.matmul %103, %105, %cst_50 {dimension_numbers = #tpu.dot_dimension_numbers<[1], [0], [0], [1], [0, 0, 1, 1], [], []>} : vector<8x32xf32>, vector<32x32xf32>, vector<8x32xf32> -> vector<8x32xf32>
    %107 = vector.extract_strided_slice %0 {offsets = [9, 0], sizes = [1, 32], strides = [1, 1]} : vector<13x32xf32> to vector<1x32xf32>
    %108 = vector.broadcast %107 : vector<1x32xf32> to vector<8x32xf32>
    %109 = arith.addf %106, %108 : vector<8x32xf32>
    %cst_51 = arith.constant 0.000000e+00 : f32
    %110 = vector.broadcast %cst_51 : f32 to vector<8x32xf32>
    %111 = arith.maximumf %109, %110 : vector<8x32xf32>
    %c1 = arith.constant 1 : index
    %c0_52 = arith.constant 0 : index
    %c0_53 = arith.constant 0 : index
    %112 = vector.load %arg10[%c1, %c0_52, %c0_53] : memref<2x32x32xf32, #tpu.memory_space<vmem>>, vector<1x32x32xf32>
    %113 = vector.shape_cast %112 : vector<1x32x32xf32> to vector<32x32xf32>
    %cst_54 = arith.constant dense<0.000000e+00> : vector<8x32xf32>
    %114 = tpu.matmul %111, %113, %cst_54 {dimension_numbers = #tpu.dot_dimension_numbers<[1], [0], [0], [1], [0, 0, 1, 1], [], []>} : vector<8x32xf32>, vector<32x32xf32>, vector<8x32xf32> -> vector<8x32xf32>
    %115 = vector.extract_strided_slice %0 {offsets = [10, 0], sizes = [1, 32], strides = [1, 1]} : vector<13x32xf32> to vector<1x32xf32>
    %116 = vector.broadcast %115 : vector<1x32xf32> to vector<8x32xf32>
    %117 = arith.addf %114, %116 : vector<8x32xf32>
    %118 = arith.addf %117, %103 : vector<8x32xf32>
    %c0_55 = arith.constant 0 : index
    %c0_56 = arith.constant 0 : index
    %c0_57 = arith.constant 0 : index
    %119 = vector.load %arg5[%c0_55, %c0_56, %c0_57] : memref<1x8x1xf32, #tpu.memory_space<vmem>>, vector<1x8x1xf32>
    %120 = vector.shape_cast %119 : vector<1x8x1xf32> to vector<8x1xf32>
    %121 = vector.broadcast %120 : vector<8x1xf32> to vector<8x32xf32>
    %122 = arith.mulf %118, %121 : vector<8x32xf32>
    %123 = vector.extract_strided_slice %0 {offsets = [11, 0], sizes = [1, 32], strides = [1, 1]} : vector<13x32xf32> to vector<1x32xf32>
    %124 = vector.extract_strided_slice %0 {offsets = [12, 0], sizes = [1, 32], strides = [1, 1]} : vector<13x32xf32> to vector<1x32xf32>
    %cst_58 = arith.constant dense<0.000000e+00> : vector<8xf32>
    %125 = vector.multi_reduction <add>, %122, %cst_58 [1] : vector<8x32xf32> to vector<8xf32>
    %126 = vector.shape_cast %125 : vector<8xf32> to vector<8x1xf32>
    %cst_59 = arith.constant 3.200000e+01 : f32
    %127 = vector.broadcast %cst_59 : f32 to vector<8x1xf32>
    %128 = arith.divf %126, %127 : vector<8x1xf32>
    %129 = vector.broadcast %128 : vector<8x1xf32> to vector<8x32xf32>
    %130 = arith.subf %122, %129 : vector<8x32xf32>
    %131 = arith.mulf %130, %130 : vector<8x32xf32>
    %cst_60 = arith.constant dense<0.000000e+00> : vector<8xf32>
    %132 = vector.multi_reduction <add>, %131, %cst_60 [1] : vector<8x32xf32> to vector<8xf32>
    %133 = vector.shape_cast %132 : vector<8xf32> to vector<8x1xf32>
    %cst_61 = arith.constant 3.200000e+01 : f32
    %134 = vector.broadcast %cst_61 : f32 to vector<8x1xf32>
    %135 = arith.divf %133, %134 : vector<8x1xf32>
    %136 = vector.broadcast %128 : vector<8x1xf32> to vector<8x32xf32>
    %137 = arith.subf %122, %136 : vector<8x32xf32>
    %cst_62 = arith.constant 9.99999993E-9 : f32
    %138 = vector.broadcast %cst_62 : f32 to vector<8x1xf32>
    %139 = arith.addf %135, %138 : vector<8x1xf32>
    %140 = math.rsqrt %139 : vector<8x1xf32>
    %141 = vector.broadcast %140 : vector<8x1xf32> to vector<8x32xf32>
    %142 = arith.mulf %137, %141 : vector<8x32xf32>
    %143 = vector.broadcast %123 : vector<1x32xf32> to vector<8x32xf32>
    %144 = arith.mulf %142, %143 : vector<8x32xf32>
    %145 = vector.broadcast %124 : vector<1x32xf32> to vector<8x32xf32>
    %146 = arith.addf %144, %145 : vector<8x32xf32>
    %c0_63 = arith.constant 0 : index
    %c0_64 = arith.constant 0 : index
    %c0_65 = arith.constant 0 : index
    %147 = vector.load %arg11[%c0_63, %c0_64, %c0_65] : memref<1x8x32xf32, #tpu.memory_space<vmem>>, vector<1x8x32xf32>
    %148 = vector.shape_cast %147 : vector<1x8x32xf32> to vector<8x32xf32>
    %149 = vector.shape_cast %146 : vector<8x32xf32> to vector<1x8x32xf32>
    tpu.vector_store %arg11[%c0_63, %c0_64, %c0_65], %149 {strides = array<i32>} : memref<1x8x32xf32, #tpu.memory_space<vmem>>, vector<1x8x32xf32>,
    return
  }
  func.func @transform_0(%arg0: i32, %arg1: i32) -> (i32, i32, i32) {
    %c0_i32 = arith.constant 0 : i32
    %c0_i32_0 = arith.constant 0 : i32
    return %arg0, %arg1, %c0_i32 : i32, i32, i32
  }
  func.func @transform_1(%arg0: i32, %arg1: i32) -> (i32, i32, i32) {
    %c0_i32 = arith.constant 0 : i32
    %c0_i32_0 = arith.constant 0 : i32
    %c0_i32_1 = arith.constant 0 : i32
    return %arg0, %c0_i32, %c0_i32_0 : i32, i32, i32
  }
  func.func @transform_2(%arg0: i32, %arg1: i32) -> (i32, i32, i32) {
    %c0_i32 = arith.constant 0 : i32
    %c0_i32_0 = arith.constant 0 : i32
    %c0_i32_1 = arith.constant 0 : i32
    return %arg0, %c0_i32, %c0_i32_0 : i32, i32, i32
  }
  func.func @transform_3(%arg0: i32, %arg1: i32) -> (i32, i32, i32) {
    %c0_i32 = arith.constant 0 : i32
    %c0_i32_0 = arith.constant 0 : i32
    return %arg0, %arg1, %c0_i32 : i32, i32, i32
  }
  func.func @transform_4(%arg0: i32, %arg1: i32) -> (i32, i32) {
    %c0_i32 = arith.constant 0 : i32
    %c0_i32_0 = arith.constant 0 : i32
    %c0_i32_1 = arith.constant 0 : i32
    return %c0_i32, %c0_i32_0 : i32, i32
  }
  func.func @transform_5(%arg0: i32, %arg1: i32) -> (i32, i32, i32, i32) {
    %c0_i32 = arith.constant 0 : i32
    %c0_i32_0 = arith.constant 0 : i32
    %c0_i32_1 = arith.constant 0 : i32
    %c0_i32_2 = arith.constant 0 : i32
    %c0_i32_3 = arith.constant 0 : i32
    return %c0_i32, %c0_i32_0, %c0_i32_1, %c0_i32_2 : i32, i32, i32, i32
  }
  func.func @transform_6(%arg0: i32, %arg1: i32) -> (i32, i32, i32, i32) {
    %c0_i32 = arith.constant 0 : i32
    %c0_i32_0 = arith.constant 0 : i32
    %c0_i32_1 = arith.constant 0 : i32
    %c0_i32_2 = arith.constant 0 : i32
    %c0_i32_3 = arith.constant 0 : i32
    return %c0_i32, %c0_i32_0, %c0_i32_1, %c0_i32_2 : i32, i32, i32, i32
  }
  func.func @transform_7(%arg0: i32, %arg1: i32) -> (i32, i32, i32) {
    %c0_i32 = arith.constant 0 : i32
    %c0_i32_0 = arith.constant 0 : i32
    %c0_i32_1 = arith.constant 0 : i32
    %c0_i32_2 = arith.constant 0 : i32
    return %c0_i32, %c0_i32_0, %c0_i32_1 : i32, i32, i32
  }
  func.func @transform_8(%arg0: i32, %arg1: i32) -> (i32, i32, i32) {
    %c0_i32 = arith.constant 0 : i32
    %c0_i32_0 = arith.constant 0 : i32
    %c0_i32_1 = arith.constant 0 : i32
    %c0_i32_2 = arith.constant 0 : i32
    return %c0_i32, %c0_i32_0, %c0_i32_1 : i32, i32, i32
  }
  func.func @transform_9(%arg0: i32, %arg1: i32) -> (i32, i32, i32) {
    %c0_i32 = arith.constant 0 : i32
    %c0_i32_0 = arith.constant 0 : i32
    return %arg0, %arg1, %c0_i32 : i32, i32, i32
  }
  func.func @transform_10(%arg0: i32, %arg1: i32) -> (i32, i32, i32, i32) {
    %c0_i32 = arith.constant 0 : i32
    %c0_i32_0 = arith.constant 0 : i32
    %c0_i32_1 = arith.constant 0 : i32
    return %arg0, %c0_i32, %arg1, %c0_i32_0 : i32, i32, i32, i32
  }
}

module attributes {stable_mosaic.version = 11 : i64} {
  func.func @_block_kernel(%arg0: i32, %arg1: i32, %arg2: memref<1x8x32xf32, #tpu.memory_space<vmem>>, %arg3: memref<1x8x32xf32, #tpu.memory_space<vmem>>, %arg4: memref<1x8x32xf32, #tpu.memory_space<vmem>>, %arg5: memref<1x8x1xf32, #tpu.memory_space<vmem>>, %arg6: memref<13x32xf32, #tpu.memory_space<vmem>>, %arg7: memref<3x2x32x16xf32, #tpu.memory_space<vmem>>, %arg8: memref<3x2x1x16xf32, #tpu.memory_space<vmem>>, %arg9: memref<2x16x32xf32, #tpu.memory_space<vmem>>, %arg10: memref<2x32x32xf32, #tpu.memory_space<vmem>>, %arg11: memref<1x8x32xf32, #tpu.memory_space<vmem>>, %arg12: memref<1x2x8x8xf32, #tpu.memory_space<vmem>>, %arg13: memref<8x32xf32, #tpu.memory_space<vmem>>, %arg14: memref<2x8x16xf32, #tpu.memory_space<vmem>>, %arg15: memref<2x8x16xf32, #tpu.memory_space<vmem>>) attributes {dimension_semantics = [#tpu.dimension_semantics<parallel>, #tpu.dimension_semantics<arbitrary>], iteration_bounds = array<i64: 2, 1>, scalar_prefetch = 0 : i64, scratch_operands = 3 : i64, tpu.core_type = #tpu.core_type<tc>, window_params = [{transform_indices = @transform_0, window_bounds = array<i64: 1, 8, 32>}, {transform_indices = @transform_1, window_bounds = array<i64: 1, 8, 32>}, {transform_indices = @transform_2, window_bounds = array<i64: 1, 8, 32>}, {transform_indices = @transform_3, window_bounds = array<i64: 1, 8, 1>}, {pipeline_mode = #tpu.pipeline_mode<synchronous>, transform_indices = @transform_4, window_bounds = array<i64: 13, 32>}, {pipeline_mode = #tpu.pipeline_mode<synchronous>, transform_indices = @transform_5, window_bounds = array<i64: 3, 2, 32, 16>}, {pipeline_mode = #tpu.pipeline_mode<synchronous>, transform_indices = @transform_6, window_bounds = array<i64: 3, 2, 1, 16>}, {pipeline_mode = #tpu.pipeline_mode<synchronous>, transform_indices = @transform_7, window_bounds = array<i64: 2, 16, 32>}, {pipeline_mode = #tpu.pipeline_mode<synchronous>, transform_indices = @transform_8, window_bounds = array<i64: 2, 32, 32>}, {transform_indices = @transform_9, window_bounds = array<i64: 1, 8, 32>}, {transform_indices = @transform_10, window_bounds = array<i64: 1, 2, 8, 8>}]} {
    %c0 = arith.constant 0 : index
    %c0_0 = arith.constant 0 : index
    %0 = vector.load %arg6[%c0, %c0_0] : memref<13x32xf32, #tpu.memory_space<vmem>>, vector<13x32xf32>
    %c0_i32 = arith.constant 0 : i32
    %1 = arith.cmpi eq, %arg1, %c0_i32 : i32
    %2 = arith.extui %1 : i1 to i32
    %c0_i32_1 = arith.constant 0 : i32
    %3 = arith.cmpi ne, %2, %c0_i32_1 : i32
    scf.if %3 {
      %c0_66 = arith.constant 0 : index
      %c0_67 = arith.constant 0 : index
      %c0_68 = arith.constant 0 : index
      %150 = vector.load %arg3[%c0_66, %c0_67, %c0_68] : memref<1x8x32xf32, #tpu.memory_space<vmem>>, vector<1x8x32xf32>
      %151 = vector.shape_cast %150 : vector<1x8x32xf32> to vector<8x32xf32>
      %152 = vector.extract_strided_slice %0 {offsets = [2, 0], sizes = [1, 32], strides = [1, 1]} : vector<13x32xf32> to vector<1x32xf32>
      %153 = vector.extract_strided_slice %0 {offsets = [3, 0], sizes = [1, 32], strides = [1, 1]} : vector<13x32xf32> to vector<1x32xf32>
      %cst_69 = arith.constant dense<0.000000e+00> : vector<8xf32>
      %154 = vector.multi_reduction <add>, %151, %cst_69 [1] : vector<8x32xf32> to vector<8xf32>
      %155 = vector.shape_cast %154 : vector<8xf32> to vector<8x1xf32>
      %cst_70 = arith.constant 3.200000e+01 : f32
      %156 = vector.broadcast %cst_70 : f32 to vector<8x1xf32>
      %157 = arith.divf %155, %156 : vector<8x1xf32>
      %158 = vector.broadcast %157 : vector<8x1xf32> to vector<8x32xf32>
      %159 = arith.subf %151, %158 : vector<8x32xf32>
      %160 = arith.mulf %159, %159 : vector<8x32xf32>
      %cst_71 = arith.constant dense<0.000000e+00> : vector<8xf32>
      %161 = vector.multi_reduction <add>, %160, %cst_71 [1] : vector<8x32xf32> to vector<8xf32>
      %162 = vector.shape_cast %161 : vector<8xf32> to vector<8x1xf32>
      %cst_72 = arith.constant 3.200000e+01 : f32
      %163 = vector.broadcast %cst_72 : f32 to vector<8x1xf32>
      %164 = arith.divf %162, %163 : vector<8x1xf32>
      %165 = vector.broadcast %157 : vector<8x1xf32> to vector<8x32xf32>
      %166 = arith.subf %151, %165 : vector<8x32xf32>
      %cst_73 = arith.constant 9.99999993E-9 : f32
      %167 = vector.broadcast %cst_73 : f32 to vector<8x1xf32>
      %168 = arith.addf %164, %167 : vector<8x1xf32>
      %169 = math.rsqrt %168 : vector<8x1xf32>
      %170 = vector.broadcast %169 : vector<8x1xf32> to vector<8x32xf32>
      %171 = arith.mulf %166, %170 : vector<8x32xf32>
      %172 = vector.broadcast %152 : vector<1x32xf32> to vector<8x32xf32>
      %173 = arith.mulf %171, %172 : vector<8x32xf32>
      %174 = vector.broadcast %153 : vector<1x32xf32> to vector<8x32xf32>
      %175 = arith.addf %173, %174 : vector<8x32xf32>
      %c0_74 = arith.constant 0 : index
      %c0_75 = arith.constant 0 : index
      %c0_76 = arith.constant 0 : index
      %176 = vector.load %arg4[%c0_74, %c0_75, %c0_76] : memref<1x8x32xf32, #tpu.memory_space<vmem>>, vector<1x8x32xf32>
      %177 = vector.shape_cast %176 : vector<1x8x32xf32> to vector<8x32xf32>
      %178 = vector.extract_strided_slice %0 {offsets = [4, 0], sizes = [1, 32], strides = [1, 1]} : vector<13x32xf32> to vector<1x32xf32>
      %179 = vector.extract_strided_slice %0 {offsets = [5, 0], sizes = [1, 32], strides = [1, 1]} : vector<13x32xf32> to vector<1x32xf32>
      %cst_77 = arith.constant dense<0.000000e+00> : vector<8xf32>
      %180 = vector.multi_reduction <add>, %177, %cst_77 [1] : vector<8x32xf32> to vector<8xf32>
      %181 = vector.shape_cast %180 : vector<8xf32> to vector<8x1xf32>
      %cst_78 = arith.constant 3.200000e+01 : f32
      %182 = vector.broadcast %cst_78 : f32 to vector<8x1xf32>
      %183 = arith.divf %181, %182 : vector<8x1xf32>
      %184 = vector.broadcast %183 : vector<8x1xf32> to vector<8x32xf32>
      %185 = arith.subf %177, %184 : vector<8x32xf32>
      %186 = arith.mulf %185, %185 : vector<8x32xf32>
      %cst_79 = arith.constant dense<0.000000e+00> : vector<8xf32>
      %187 = vector.multi_reduction <add>, %186, %cst_79 [1] : vector<8x32xf32> to vector<8xf32>
      %188 = vector.shape_cast %187 : vector<8xf32> to vector<8x1xf32>
      %cst_80 = arith.constant 3.200000e+01 : f32
      %189 = vector.broadcast %cst_80 : f32 to vector<8x1xf32>
      %190 = arith.divf %188, %189 : vector<8x1xf32>
      %191 = vector.broadcast %183 : vector<8x1xf32> to vector<8x32xf32>
      %192 = arith.subf %177, %191 : vector<8x32xf32>
      %cst_81 = arith.constant 9.99999993E-9 : f32
      %193 = vector.broadcast %cst_81 : f32 to vector<8x1xf32>
      %194 = arith.addf %190, %193 : vector<8x1xf32>
      %195 = math.rsqrt %194 : vector<8x1xf32>
      %196 = vector.broadcast %195 : vector<8x1xf32> to vector<8x32xf32>
      %197 = arith.mulf %192, %196 : vector<8x32xf32>
      %198 = vector.broadcast %178 : vector<1x32xf32> to vector<8x32xf32>
      %199 = arith.mulf %197, %198 : vector<8x32xf32>
      %200 = vector.broadcast %179 : vector<1x32xf32> to vector<8x32xf32>
      %201 = arith.addf %199, %200 : vector<8x32xf32>
      %c0_82 = arith.constant 0 : index
      %c0_83 = arith.constant 0 : index
      %202 = vector.load %arg13[%c0_82, %c0_83] : memref<8x32xf32, #tpu.memory_space<vmem>>, vector<8x32xf32>
      tpu.vector_store %arg13[%c0_82, %c0_83], %175 {strides = array<i32>} : memref<8x32xf32, #tpu.memory_space<vmem>>, vector<8x32xf32>,
      %203 = vector.shape_cast %175 : vector<8x32xf32> to vector<1x8x32xf32>
      %204 = vector.broadcast %203 : vector<1x8x32xf32> to vector<2x8x32xf32>
      %205 = vector.shape_cast %201 : vector<8x32xf32> to vector<1x8x32xf32>
      %206 = vector.broadcast %205 : vector<1x8x32xf32> to vector<2x8x32xf32>
      %c1_84 = arith.constant 1 : index
      %c0_85 = arith.constant 0 : index
      %c0_86 = arith.constant 0 : index
      %c0_87 = arith.constant 0 : index
      %207 = vector.load %arg7[%c1_84, %c0_85, %c0_86, %c0_87] : memref<3x2x32x16xf32, #tpu.memory_space<vmem>>, vector<1x2x32x16xf32>
      %208 = vector.shape_cast %207 : vector<1x2x32x16xf32> to vector<2x32x16xf32>
      "tpu.trace_start"() <{level = 10 : i32, message = "htd,hdf->htf"}> : () -> ()
      %cst_88 = arith.constant dense<0.000000e+00> : vector<2x8x16xf32>
      %209 = tpu.matmul %204, %208, %cst_88 {dimension_numbers = #tpu.dot_dimension_numbers<[2], [1], [1], [2], [0, 0, 0, 1, 1, 2], [0], [0]>} : vector<2x8x32xf32>, vector<2x32x16xf32>, vector<2x8x16xf32> -> vector<2x8x16xf32>
      "tpu.trace_stop"() : () -> ()
      %c1_89 = arith.constant 1 : index
      %c0_90 = arith.constant 0 : index
      %c0_91 = arith.constant 0 : index
      %c0_92 = arith.constant 0 : index
      %210 = vector.load %arg8[%c1_89, %c0_90, %c0_91, %c0_92] : memref<3x2x1x16xf32, #tpu.memory_space<vmem>>, vector<1x2x1x16xf32>
      %211 = vector.shape_cast %210 : vector<1x2x1x16xf32> to vector<2x1x16xf32>
      %212 = vector.broadcast %211 : vector<2x1x16xf32> to vector<2x8x16xf32>
      %213 = arith.addf %209, %212 : vector<2x8x16xf32>
      %c0_93 = arith.constant 0 : index
      %c0_94 = arith.constant 0 : index
      %c0_95 = arith.constant 0 : index
      %214 = vector.load %arg14[%c0_93, %c0_94, %c0_95] : memref<2x8x16xf32, #tpu.memory_space<vmem>>, vector<2x8x16xf32>
      tpu.vector_store %arg14[%c0_93, %c0_94, %c0_95], %213 {strides = array<i32>} : memref<2x8x16xf32, #tpu.memory_space<vmem>>, vector<2x8x16xf32>,
      %c2 = arith.constant 2 : index
      %c0_96 = arith.constant 0 : index
      %c0_97 = arith.constant 0 : index
      %c0_98 = arith.constant 0 : index
      %215 = vector.load %arg7[%c2, %c0_96, %c0_97, %c0_98] : memref<3x2x32x16xf32, #tpu.memory_space<vmem>>, vector<1x2x32x16xf32>
      %216 = vector.shape_cast %215 : vector<1x2x32x16xf32> to vector<2x32x16xf32>
      "tpu.trace_start"() <{level = 10 : i32, message = "htd,hdf->htf"}> : () -> ()
      %cst_99 = arith.constant dense<0.000000e+00> : vector<2x8x16xf32>
      %217 = tpu.matmul %206, %216, %cst_99 {dimension_numbers = #tpu.dot_dimension_numbers<[2], [1], [1], [2], [0, 0, 0, 1, 1, 2], [0], [0]>} : vector<2x8x32xf32>, vector<2x32x16xf32>, vector<2x8x16xf32> -> vector<2x8x16xf32>
      "tpu.trace_stop"() : () -> ()
      %c2_100 = arith.constant 2 : index
      %c0_101 = arith.constant 0 : index
      %c0_102 = arith.constant 0 : index
      %c0_103 = arith.constant 0 : index
      %218 = vector.load %arg8[%c2_100, %c0_101, %c0_102, %c0_103] : memref<3x2x1x16xf32, #tpu.memory_space<vmem>>, vector<1x2x1x16xf32>
      %219 = vector.shape_cast %218 : vector<1x2x1x16xf32> to vector<2x1x16xf32>
      %220 = vector.broadcast %219 : vector<2x1x16xf32> to vector<2x8x16xf32>
      %221 = arith.addf %217, %220 : vector<2x8x16xf32>
      %c0_104 = arith.constant 0 : index
      %c0_105 = arith.constant 0 : index
      %c0_106 = arith.constant 0 : index
      %222 = vector.load %arg15[%c0_104, %c0_105, %c0_106] : memref<2x8x16xf32, #tpu.memory_space<vmem>>, vector<2x8x16xf32>
      tpu.vector_store %arg15[%c0_104, %c0_105, %c0_106], %221 {strides = array<i32>} : memref<2x8x16xf32, #tpu.memory_space<vmem>>, vector<2x8x16xf32>,
    } else {
    }
    %c0_2 = arith.constant 0 : index
    %c0_3 = arith.constant 0 : index
    %c0_4 = arith.constant 0 : index
    %4 = vector.load %arg2[%c0_2, %c0_3, %c0_4] : memref<1x8x32xf32, #tpu.memory_space<vmem>>, vector<1x8x32xf32>
    %5 = vector.shape_cast %4 : vector<1x8x32xf32> to vector<8x32xf32>
    %6 = vector.extract_strided_slice %0 {offsets = [0, 0], sizes = [1, 32], strides = [1, 1]} : vector<13x32xf32> to vector<1x32xf32>
    %7 = vector.extract_strided_slice %0 {offsets = [1, 0], sizes = [1, 32], strides = [1, 1]} : vector<13x32xf32> to vector<1x32xf32>
    %cst = arith.constant dense<0.000000e+00> : vector<8xf32>
    %8 = vector.multi_reduction <add>, %5, %cst [1] : vector<8x32xf32> to vector<8xf32>
    %9 = vector.shape_cast %8 : vector<8xf32> to vector<8x1xf32>
    %cst_5 = arith.constant 3.200000e+01 : f32
    %10 = vector.broadcast %cst_5 : f32 to vector<8x1xf32>
    %11 = arith.divf %9, %10 : vector<8x1xf32>
    %12 = vector.broadcast %11 : vector<8x1xf32> to vector<8x32xf32>
    %13 = arith.subf %5, %12 : vector<8x32xf32>
    %14 = arith.mulf %13, %13 : vector<8x32xf32>
    %cst_6 = arith.constant dense<0.000000e+00> : vector<8xf32>
    %15 = vector.multi_reduction <add>, %14, %cst_6 [1] : vector<8x32xf32> to vector<8xf32>
    %16 = vector.shape_cast %15 : vector<8xf32> to vector<8x1xf32>
    %cst_7 = arith.constant 3.200000e+01 : f32
    %17 = vector.broadcast %cst_7 : f32 to vector<8x1xf32>
    %18 = arith.divf %16, %17 : vector<8x1xf32>
    %19 = vector.broadcast %11 : vector<8x1xf32> to vector<8x32xf32>
    %20 = arith.subf %5, %19 : vector<8x32xf32>
    %cst_8 = arith.constant 9.99999993E-9 : f32
    %21 = vector.broadcast %cst_8 : f32 to vector<8x1xf32>
    %22 = arith.addf %18, %21 : vector<8x1xf32>
    %23 = math.rsqrt %22 : vector<8x1xf32>
    %24 = vector.broadcast %23 : vector<8x1xf32> to vector<8x32xf32>
    %25 = arith.mulf %20, %24 : vector<8x32xf32>
    %26 = vector.broadcast %6 : vector<1x32xf32> to vector<8x32xf32>
    %27 = arith.mulf %25, %26 : vector<8x32xf32>
    %28 = vector.broadcast %7 : vector<1x32xf32> to vector<8x32xf32>
    %29 = arith.addf %27, %28 : vector<8x32xf32>
    %30 = vector.shape_cast %29 : vector<8x32xf32> to vector<1x8x32xf32>
    %31 = vector.broadcast %30 : vector<1x8x32xf32> to vector<2x8x32xf32>
    %c0_9 = arith.constant 0 : index
    %c0_10 = arith.constant 0 : index
    %c0_11 = arith.constant 0 : index
    %c0_12 = arith.constant 0 : index
    %32 = vector.load %arg7[%c0_9, %c0_10, %c0_11, %c0_12] : memref<3x2x32x16xf32, #tpu.memory_space<vmem>>, vector<1x2x32x16xf32>
    %33 = vector.shape_cast %32 : vector<1x2x32x16xf32> to vector<2x32x16xf32>
    "tpu.trace_start"() <{level = 10 : i32, message = "htd,hdf->htf"}> : () -> ()
    %cst_13 = arith.constant dense<0.000000e+00> : vector<2x8x16xf32>
    %34 = tpu.matmul %31, %33, %cst_13 {dimension_numbers = #tpu.dot_dimension_numbers<[2], [1], [1], [2], [0, 0, 0, 1, 1, 2], [0], [0]>} : vector<2x8x32xf32>, vector<2x32x16xf32>, vector<2x8x16xf32> -> vector<2x8x16xf32>
    "tpu.trace_stop"() : () -> ()
    %c0_14 = arith.constant 0 : index
    %c0_15 = arith.constant 0 : index
    %c0_16 = arith.constant 0 : index
    %c0_17 = arith.constant 0 : index
    %35 = vector.load %arg8[%c0_14, %c0_15, %c0_16, %c0_17] : memref<3x2x1x16xf32, #tpu.memory_space<vmem>>, vector<1x2x1x16xf32>
    %36 = vector.shape_cast %35 : vector<1x2x1x16xf32> to vector<2x1x16xf32>
    %37 = vector.broadcast %36 : vector<2x1x16xf32> to vector<2x8x16xf32>
    %38 = arith.addf %34, %37 : vector<2x8x16xf32>
    %cst_18 = arith.constant 2.500000e-01 : f32
    %39 = vector.broadcast %cst_18 : f32 to vector<2x8x16xf32>
    %40 = arith.mulf %38, %39 : vector<2x8x16xf32>
    %c0_19 = arith.constant 0 : index
    %c0_20 = arith.constant 0 : index
    %c0_21 = arith.constant 0 : index
    %41 = vector.load %arg14[%c0_19, %c0_20, %c0_21] : memref<2x8x16xf32, #tpu.memory_space<vmem>>, vector<2x8x16xf32>
    "tpu.trace_start"() <{level = 10 : i32, message = "hqf,hkf->hqk"}> : () -> ()
    %cst_22 = arith.constant dense<0.000000e+00> : vector<2x8x8xf32>
    %42 = tpu.matmul %40, %41, %cst_22 {dimension_numbers = #tpu.dot_dimension_numbers<[2], [2], [1], [1], [0, 0, 0, 1, 1, 1], [0], [0]>} : vector<2x8x16xf32>, vector<2x8x16xf32>, vector<2x8x8xf32> -> vector<2x8x8xf32>
    "tpu.trace_stop"() : () -> ()
    %43 = tpu.iota {dimensions = array<i32: 0>} : vector<8x8xi32>
    %c8_i32 = arith.constant 8 : i32
    %44 = arith.muli %arg1, %c8_i32 : i32
    %45 = vector.broadcast %44 : i32 to vector<8x8xi32>
    %46 = arith.addi %43, %45 : vector<8x8xi32>
    %47 = tpu.iota {dimensions = array<i32: 1>} : vector<8x8xi32>
    %48 = arith.cmpi sle, %47, %46 : vector<8x8xi32>
    %cst_23 = arith.constant 0.000000e+00 : f32
    %cst_24 = arith.constant 0xFF800000 : f32
    %49 = vector.broadcast %cst_23 : f32 to vector<8x8xf32>
    %50 = vector.broadcast %cst_24 : f32 to vector<8x8xf32>
    %51 = arith.select %48, %49, %50 : vector<8x8xi1>, vector<8x8xf32>
    %52 = vector.shape_cast %51 : vector<8x8xf32> to vector<1x8x8xf32>
    %53 = vector.broadcast %52 : vector<1x8x8xf32> to vector<2x8x8xf32>
    %54 = arith.addf %42, %53 : vector<2x8x8xf32>
    %cst_25 = arith.constant dense<0xFF800000> : vector<2x8xf32>
    %55 = vector.multi_reduction <maximumf>, %54, %cst_25 [2] : vector<2x8x8xf32> to vector<2x8xf32>
    %56 = vector.shape_cast %55 : vector<2x8xf32> to vector<2x8x1xf32>
    %57 = vector.broadcast %56 : vector<2x8x1xf32> to vector<2x8x8xf32>
    %58 = arith.subf %54, %57 : vector<2x8x8xf32>
    %59 = math.exp %58 : vector<2x8x8xf32>
    %cst_26 = arith.constant dense<0.000000e+00> : vector<2x8xf32>
    %60 = vector.multi_reduction <add>, %59, %cst_26 [2] : vector<2x8x8xf32> to vector<2x8xf32>
    %61 = vector.shape_cast %60 : vector<2x8xf32> to vector<2x8x1xf32>
    %62 = vector.broadcast %61 : vector<2x8x1xf32> to vector<2x8x8xf32>
    %63 = arith.divf %59, %62 : vector<2x8x8xf32>
    %c0_27 = arith.constant 0 : index
    %c0_28 = arith.constant 0 : index
    %c0_29 = arith.constant 0 : index
    %c0_30 = arith.constant 0 : index
    %64 = vector.load %arg12[%c0_27, %c0_28, %c0_29, %c0_30] : memref<1x2x8x8xf32, #tpu.memory_space<vmem>>, vector<1x2x8x8xf32>
    %65 = vector.shape_cast %64 : vector<1x2x8x8xf32> to vector<2x8x8xf32>
    %66 = vector.shape_cast %63 : vector<2x8x8xf32> to vector<1x2x8x8xf32>
    tpu.vector_store %arg12[%c0_27, %c0_28, %c0_29, %c0_30], %66 {strides = array<i32>} : memref<1x2x8x8xf32, #tpu.memory_space<vmem>>, vector<1x2x8x8xf32>,
    %c0_31 = arith.constant 0 : index
    %c0_32 = arith.constant 0 : index
    %c0_33 = arith.constant 0 : index
    %67 = vector.load %arg15[%c0_31, %c0_32, %c0_33] : memref<2x8x16xf32, #tpu.memory_space<vmem>>, vector<2x8x16xf32>
    "tpu.trace_start"() <{level = 10 : i32, message = "hqk,hkf->hqf"}> : () -> ()
    %cst_34 = arith.constant dense<0.000000e+00> : vector<2x8x16xf32>
    %68 = tpu.matmul %63, %67, %cst_34 {dimension_numbers = #tpu.dot_dimension_numbers<[2], [1], [1], [2], [0, 0, 0, 1, 1, 2], [0], [0]>} : vector<2x8x8xf32>, vector<2x8x16xf32>, vector<2x8x16xf32> -> vector<2x8x16xf32>
    "tpu.trace_stop"() : () -> ()
    %c0_35 = arith.constant 0 : index
    %c0_36 = arith.constant 0 : index
    %c0_37 = arith.constant 0 : index
    %69 = vector.load %arg9[%c0_35, %c0_36, %c0_37] : memref<2x16x32xf32, #tpu.memory_space<vmem>>, vector<2x16x32xf32>
    "tpu.trace_start"() <{level = 10 : i32, message = "hqf,hfd->hqd"}> : () -> ()
    %cst_38 = arith.constant dense<0.000000e+00> : vector<2x8x32xf32>
    %70 = tpu.matmul %68, %69, %cst_38 {dimension_numbers = #tpu.dot_dimension_numbers<[2], [1], [1], [2], [0, 0, 0, 1, 1, 2], [0], [0]>} : vector<2x8x16xf32>, vector<2x16x32xf32>, vector<2x8x32xf32> -> vector<2x8x32xf32>
    "tpu.trace_stop"() : () -> ()
    %cst_39 = arith.constant dense<0.000000e+00> : vector<8x32xf32>
    %71 = vector.multi_reduction <add>, %70, %cst_39 [0] : vector<2x8x32xf32> to vector<8x32xf32>
    %72 = vector.extract_strided_slice %0 {offsets = [8, 0], sizes = [1, 32], strides = [1, 1]} : vector<13x32xf32> to vector<1x32xf32>
    %73 = vector.broadcast %72 : vector<1x32xf32> to vector<8x32xf32>
    %74 = arith.addf %71, %73 : vector<8x32xf32>
    %c8_i32_40 = arith.constant 8 : i32
    %75 = arith.muli %arg1, %c8_i32_40 : i32
    %76 = tpu.assume_multiple %75, 8 : i32
    %77 = arith.index_cast %76 : i32 to index
    %c0_41 = arith.constant 0 : index
    %78 = vector.load %arg13[%77, %c0_41] : memref<8x32xf32, #tpu.memory_space<vmem>>, vector<8x32xf32>
    %79 = arith.addf %74, %78 : vector<8x32xf32>
    %80 = vector.extract_strided_slice %0 {offsets = [6, 0], sizes = [1, 32], strides = [1, 1]} : vector<13x32xf32> to vector<1x32xf32>
    %81 = vector.extract_strided_slice %0 {offsets = [7, 0], sizes = [1, 32], strides = [1, 1]} : vector<13x32xf32> to vector<1x32xf32>
    %cst_42 = arith.constant dense<0.000000e+00> : vector<8xf32>
    %82 = vector.multi_reduction <add>, %79, %cst_42 [1] : vector<8x32xf32> to vector<8xf32>
    %83 = vector.shape_cast %82 : vector<8xf32> to vector<8x1xf32>
    %cst_43 = arith.constant 3.200000e+01 : f32
    %84 = vector.broadcast %cst_43 : f32 to vector<8x1xf32>
    %85 = arith.divf %83, %84 : vector<8x1xf32>
    %86 = vector.broadcast %85 : vector<8x1xf32> to vector<8x32xf32>
    %87 = arith.subf %79, %86 : vector<8x32xf32>
    %88 = arith.mulf %87, %87 : vector<8x32xf32>
    %cst_44 = arith.constant dense<0.000000e+00> : vector<8xf32>
    %89 = vector.multi_reduction <add>, %88, %cst_44 [1] : vector<8x32xf32> to vector<8xf32>
    %90 = vector.shape_cast %89 : vector<8xf32> to vector<8x1xf32>
    %cst_45 = arith.constant 3.200000e+01 : f32
    %91 = vector.broadcast %cst_45 : f32 to vector<8x1xf32>
    %92 = arith.divf %90, %91 : vector<8x1xf32>
    %93 = vector.broadcast %85 : vector<8x1xf32> to vector<8x32xf32>
    %94 = arith.subf %79, %93 : vector<8x32xf32>
    %cst_46 = arith.constant 9.99999993E-9 : f32
    %95 = vector.broadcast %cst_46 : f32 to vector<8x1xf32>
    %96 = arith.addf %92, %95 : vector<8x1xf32>
    %97 = math.rsqrt %96 : vector<8x1xf32>
    %98 = vector.broadcast %97 : vector<8x1xf32> to vector<8x32xf32>
    %99 = arith.mulf %94, %98 : vector<8x32xf32>
    %100 = vector.broadcast %80 : vector<1x32xf32> to vector<8x32xf32>
    %101 = arith.mulf %99, %100 : vector<8x32xf32>
    %102 = vector.broadcast %81 : vector<1x32xf32> to vector<8x32xf32>
    %103 = arith.addf %101, %102 : vector<8x32xf32>
    %c0_47 = arith.constant 0 : index
    %c0_48 = arith.constant 0 : index
    %c0_49 = arith.constant 0 : index
    %104 = vector.load %arg10[%c0_47, %c0_48, %c0_49] : memref<2x32x32xf32, #tpu.memory_space<vmem>>, vector<1x32x32xf32>
    %105 = vector.shape_cast %104 : vector<1x32x32xf32> to vector<32x32xf32>
    %cst_50 = arith.constant dense<0.000000e+00> : vector<8x32xf32>
    %106 = tpu.matmul %103, %105, %cst_50 {dimension_numbers = #tpu.dot_dimension_numbers<[1], [0], [0], [1], [0, 0, 1, 1], [], []>} : vector<8x32xf32>, vector<32x32xf32>, vector<8x32xf32> -> vector<8x32xf32>
    %107 = vector.extract_strided_slice %0 {offsets = [9, 0], sizes = [1, 32], strides = [1, 1]} : vector<13x32xf32> to vector<1x32xf32>
    %108 = vector.broadcast %107 : vector<1x32xf32> to vector<8x32xf32>
    %109 = arith.addf %106, %108 : vector<8x32xf32>
    %cst_51 = arith.constant 0.000000e+00 : f32
    %110 = vector.broadcast %cst_51 : f32 to vector<8x32xf32>
    %111 = arith.maximumf %109, %110 : vector<8x32xf32>
    %c1 = arith.constant 1 : index
    %c0_52 = arith.constant 0 : index
    %c0_53 = arith.constant 0 : index
    %112 = vector.load %arg10[%c1, %c0_52, %c0_53] : memref<2x32x32xf32, #tpu.memory_space<vmem>>, vector<1x32x32xf32>
    %113 = vector.shape_cast %112 : vector<1x32x32xf32> to vector<32x32xf32>
    %cst_54 = arith.constant dense<0.000000e+00> : vector<8x32xf32>
    %114 = tpu.matmul %111, %113, %cst_54 {dimension_numbers = #tpu.dot_dimension_numbers<[1], [0], [0], [1], [0, 0, 1, 1], [], []>} : vector<8x32xf32>, vector<32x32xf32>, vector<8x32xf32> -> vector<8x32xf32>
    %115 = vector.extract_strided_slice %0 {offsets = [10, 0], sizes = [1, 32], strides = [1, 1]} : vector<13x32xf32> to vector<1x32xf32>
    %116 = vector.broadcast %115 : vector<1x32xf32> to vector<8x32xf32>
    %117 = arith.addf %114, %116 : vector<8x32xf32>
    %118 = arith.addf %117, %103 : vector<8x32xf32>
    %c0_55 = arith.constant 0 : index
    %c0_56 = arith.constant 0 : index
    %c0_57 = arith.constant 0 : index
    %119 = vector.load %arg5[%c0_55, %c0_56, %c0_57] : memref<1x8x1xf32, #tpu.memory_space<vmem>>, vector<1x8x1xf32>
    %120 = vector.shape_cast %119 : vector<1x8x1xf32> to vector<8x1xf32>
    %121 = vector.broadcast %120 : vector<8x1xf32> to vector<8x32xf32>
    %122 = arith.mulf %118, %121 : vector<8x32xf32>
    %123 = vector.extract_strided_slice %0 {offsets = [11, 0], sizes = [1, 32], strides = [1, 1]} : vector<13x32xf32> to vector<1x32xf32>
    %124 = vector.extract_strided_slice %0 {offsets = [12, 0], sizes = [1, 32], strides = [1, 1]} : vector<13x32xf32> to vector<1x32xf32>
    %cst_58 = arith.constant dense<0.000000e+00> : vector<8xf32>
    %125 = vector.multi_reduction <add>, %122, %cst_58 [1] : vector<8x32xf32> to vector<8xf32>
    %126 = vector.shape_cast %125 : vector<8xf32> to vector<8x1xf32>
    %cst_59 = arith.constant 3.200000e+01 : f32
    %127 = vector.broadcast %cst_59 : f32 to vector<8x1xf32>
    %128 = arith.divf %126, %127 : vector<8x1xf32>
    %129 = vector.broadcast %128 : vector<8x1xf32> to vector<8x32xf32>
    %130 = arith.subf %122, %129 : vector<8x32xf32>
    %131 = arith.mulf %130, %130 : vector<8x32xf32>
    %cst_60 = arith.constant dense<0.000000e+00> : vector<8xf32>
    %132 = vector.multi_reduction <add>, %131, %cst_60 [1] : vector<8x32xf32> to vector<8xf32>
    %133 = vector.shape_cast %132 : vector<8xf32> to vector<8x1xf32>
    %cst_61 = arith.constant 3.200000e+01 : f32
    %134 = vector.broadcast %cst_61 : f32 to vector<8x1xf32>
    %135 = arith.divf %133, %134 : vector<8x1xf32>
    %136 = vector.broadcast %128 : vector<8x1xf32> to vector<8x32xf32>
    %137 = arith.subf %122, %136 : vector<8x32xf32>
    %cst_62 = arith.constant 9.99999993E-9 : f32
    %138 = vector.broadcast %cst_62 : f32 to vector<8x1xf32>
    %139 = arith.addf %135, %138 : vector<8x1xf32>
    %140 = math.rsqrt %139 : vector<8x1xf32>
    %141 = vector.broadcast %140 : vector<8x1xf32> to vector<8x32xf32>
    %142 = arith.mulf %137, %141 : vector<8x32xf32>
    %143 = vector.broadcast %123 : vector<1x32xf32> to vector<8x32xf32>
    %144 = arith.mulf %142, %143 : vector<8x32xf32>
    %145 = vector.broadcast %124 : vector<1x32xf32> to vector<8x32xf32>
    %146 = arith.addf %144, %145 : vector<8x32xf32>
    %c0_63 = arith.constant 0 : index
    %c0_64 = arith.constant 0 : index
    %c0_65 = arith.constant 0 : index
    %147 = vector.load %arg11[%c0_63, %c0_64, %c0_65] : memref<1x8x32xf32, #tpu.memory_space<vmem>>, vector<1x8x32xf32>
    %148 = vector.shape_cast %147 : vector<1x8x32xf32> to vector<8x32xf32>
    %149 = vector.shape_cast %146 : vector<8x32xf32> to vector<1x8x32xf32>
    tpu.vector_store %arg11[%c0_63, %c0_64, %c0_65], %149 {strides = array<i32>} : memref<1x8x32xf32, #tpu.memory_space<vmem>>, vector<1x8x32xf32>,
    return
  }
  func.func @transform_0(%arg0: i32, %arg1: i32) -> (i32, i32, i32) {
    %c0_i32 = arith.constant 0 : i32
    %c0_i32_0 = arith.constant 0 : i32
    return %arg0, %arg1, %c0_i32 : i32, i32, i32
  }
  func.func @transform_1(%arg0: i32, %arg1: i32) -> (i32, i32, i32) {
    %c0_i32 = arith.constant 0 : i32
    %c0_i32_0 = arith.constant 0 : i32
    %c0_i32_1 = arith.constant 0 : i32
    return %arg0, %c0_i32, %c0_i32_0 : i32, i32, i32
  }
  func.func @transform_2(%arg0: i32, %arg1: i32) -> (i32, i32, i32) {
    %c0_i32 = arith.constant 0 : i32
    %c0_i32_0 = arith.constant 0 : i32
    %c0_i32_1 = arith.constant 0 : i32
    return %arg0, %c0_i32, %c0_i32_0 : i32, i32, i32
  }
  func.func @transform_3(%arg0: i32, %arg1: i32) -> (i32, i32, i32) {
    %c0_i32 = arith.constant 0 : i32
    %c0_i32_0 = arith.constant 0 : i32
    return %arg0, %arg1, %c0_i32 : i32, i32, i32
  }
  func.func @transform_4(%arg0: i32, %arg1: i32) -> (i32, i32) {
    %c0_i32 = arith.constant 0 : i32
    %c0_i32_0 = arith.constant 0 : i32
    %c0_i32_1 = arith.constant 0 : i32
    return %c0_i32, %c0_i32_0 : i32, i32
  }
  func.func @transform_5(%arg0: i32, %arg1: i32) -> (i32, i32, i32, i32) {
    %c0_i32 = arith.constant 0 : i32
    %c0_i32_0 = arith.constant 0 : i32
    %c0_i32_1 = arith.constant 0 : i32
    %c0_i32_2 = arith.constant 0 : i32
    %c0_i32_3 = arith.constant 0 : i32
    return %c0_i32, %c0_i32_0, %c0_i32_1, %c0_i32_2 : i32, i32, i32, i32
  }
  func.func @transform_6(%arg0: i32, %arg1: i32) -> (i32, i32, i32, i32) {
    %c0_i32 = arith.constant 0 : i32
    %c0_i32_0 = arith.constant 0 : i32
    %c0_i32_1 = arith.constant 0 : i32
    %c0_i32_2 = arith.constant 0 : i32
    %c0_i32_3 = arith.constant 0 : i32
    return %c0_i32, %c0_i32_0, %c0_i32_1, %c0_i32_2 : i32, i32, i32, i32
  }
  func.func @transform_7(%arg0: i32, %arg1: i32) -> (i32, i32, i32) {
    %c0_i32 = arith.constant 0 : i32
    %c0_i32_0 = arith.constant 0 : i32
    %c0_i32_1 = arith.constant 0 : i32
    %c0_i32_2 = arith.constant 0 : i32
    return %c0_i32, %c0_i32_0, %c0_i32_1 : i32, i32, i32
  }
  func.func @transform_8(%arg0: i32, %arg1: i32) -> (i32, i32, i32) {
    %c0_i32 = arith.constant 0 : i32
    %c0_i32_0 = arith.constant 0 : i32
    %c0_i32_1 = arith.constant 0 : i32
    %c0_i32_2 = arith.constant 0 : i32
    return %c0_i32, %c0_i32_0, %c0_i32_1 : i32, i32, i32
  }
  func.func @transform_9(%arg0: i32, %arg1: i32) -> (i32, i32, i32) {
    %c0_i32 = arith.constant 0 : i32
    %c0_i32_0 = arith.constant 0 : i32
    return %arg0, %arg1, %c0_i32 : i32, i32, i32
  }
  func.func @transform_10(%arg0: i32, %arg1: i32) -> (i32, i32, i32, i32) {
    %c0_i32 = arith.constant 0 : i32
    %c0_i32_0 = arith.constant 0 : i32
    %c0_i32_1 = arith.constant 0 : i32
    return %arg0, %c0_i32, %arg1, %c0_i32_0 : i32, i32, i32, i32
  }
}

module attributes {stable_mosaic.version = 11 : i64} {
  func.func @_block_kernel(%arg0: i32, %arg1: i32, %arg2: memref<1x8x32xf32, #tpu.memory_space<vmem>>, %arg3: memref<1x8x32xf32, #tpu.memory_space<vmem>>, %arg4: memref<1x8x32xf32, #tpu.memory_space<vmem>>, %arg5: memref<1x8x1xf32, #tpu.memory_space<vmem>>, %arg6: memref<13x32xf32, #tpu.memory_space<vmem>>, %arg7: memref<3x2x32x16xf32, #tpu.memory_space<vmem>>, %arg8: memref<3x2x1x16xf32, #tpu.memory_space<vmem>>, %arg9: memref<2x16x32xf32, #tpu.memory_space<vmem>>, %arg10: memref<2x32x32xf32, #tpu.memory_space<vmem>>, %arg11: memref<1x8x32xf32, #tpu.memory_space<vmem>>, %arg12: memref<1x2x8x8xf32, #tpu.memory_space<vmem>>, %arg13: memref<8x32xf32, #tpu.memory_space<vmem>>, %arg14: memref<2x8x16xf32, #tpu.memory_space<vmem>>, %arg15: memref<2x8x16xf32, #tpu.memory_space<vmem>>) attributes {dimension_semantics = [#tpu.dimension_semantics<parallel>, #tpu.dimension_semantics<arbitrary>], iteration_bounds = array<i64: 2, 1>, scalar_prefetch = 0 : i64, scratch_operands = 3 : i64, tpu.core_type = #tpu.core_type<tc>, window_params = [{transform_indices = @transform_0, window_bounds = array<i64: 1, 8, 32>}, {transform_indices = @transform_1, window_bounds = array<i64: 1, 8, 32>}, {transform_indices = @transform_2, window_bounds = array<i64: 1, 8, 32>}, {transform_indices = @transform_3, window_bounds = array<i64: 1, 8, 1>}, {pipeline_mode = #tpu.pipeline_mode<synchronous>, transform_indices = @transform_4, window_bounds = array<i64: 13, 32>}, {pipeline_mode = #tpu.pipeline_mode<synchronous>, transform_indices = @transform_5, window_bounds = array<i64: 3, 2, 32, 16>}, {pipeline_mode = #tpu.pipeline_mode<synchronous>, transform_indices = @transform_6, window_bounds = array<i64: 3, 2, 1, 16>}, {pipeline_mode = #tpu.pipeline_mode<synchronous>, transform_indices = @transform_7, window_bounds = array<i64: 2, 16, 32>}, {pipeline_mode = #tpu.pipeline_mode<synchronous>, transform_indices = @transform_8, window_bounds = array<i64: 2, 32, 32>}, {transform_indices = @transform_9, window_bounds = array<i64: 1, 8, 32>}, {transform_indices = @transform_10, window_bounds = array<i64: 1, 2, 8, 8>}]} {
    %c0 = arith.constant 0 : index
    %c0_0 = arith.constant 0 : index
    %0 = vector.load %arg6[%c0, %c0_0] : memref<13x32xf32, #tpu.memory_space<vmem>>, vector<13x32xf32>
    %c0_i32 = arith.constant 0 : i32
    %1 = arith.cmpi eq, %arg1, %c0_i32 : i32
    %2 = arith.extui %1 : i1 to i32
    %c0_i32_1 = arith.constant 0 : i32
    %3 = arith.cmpi ne, %2, %c0_i32_1 : i32
    scf.if %3 {
      %c0_61 = arith.constant 0 : index
      %c0_62 = arith.constant 0 : index
      %c0_63 = arith.constant 0 : index
      %126 = vector.load %arg3[%c0_61, %c0_62, %c0_63] : memref<1x8x32xf32, #tpu.memory_space<vmem>>, vector<1x8x32xf32>
      %127 = vector.shape_cast %126 : vector<1x8x32xf32> to vector<8x32xf32>
      %128 = vector.extract_strided_slice %0 {offsets = [2, 0], sizes = [1, 32], strides = [1, 1]} : vector<13x32xf32> to vector<1x32xf32>
      %129 = vector.extract_strided_slice %0 {offsets = [3, 0], sizes = [1, 32], strides = [1, 1]} : vector<13x32xf32> to vector<1x32xf32>
      %cst_64 = arith.constant dense<0.000000e+00> : vector<8xf32>
      %130 = vector.multi_reduction <add>, %127, %cst_64 [1] : vector<8x32xf32> to vector<8xf32>
      %131 = vector.shape_cast %130 : vector<8xf32> to vector<8x1xf32>
      %cst_65 = arith.constant 3.200000e+01 : f32
      %132 = vector.broadcast %cst_65 : f32 to vector<8x1xf32>
      %133 = arith.divf %131, %132 : vector<8x1xf32>
      %134 = vector.broadcast %133 : vector<8x1xf32> to vector<8x32xf32>
      %135 = arith.subf %127, %134 : vector<8x32xf32>
      %136 = arith.mulf %135, %135 : vector<8x32xf32>
      %cst_66 = arith.constant dense<0.000000e+00> : vector<8xf32>
      %137 = vector.multi_reduction <add>, %136, %cst_66 [1] : vector<8x32xf32> to vector<8xf32>
      %138 = vector.shape_cast %137 : vector<8xf32> to vector<8x1xf32>
      %cst_67 = arith.constant 3.200000e+01 : f32
      %139 = vector.broadcast %cst_67 : f32 to vector<8x1xf32>
      %140 = arith.divf %138, %139 : vector<8x1xf32>
      %141 = vector.broadcast %133 : vector<8x1xf32> to vector<8x32xf32>
      %142 = arith.subf %127, %141 : vector<8x32xf32>
      %cst_68 = arith.constant 9.99999993E-9 : f32
      %143 = vector.broadcast %cst_68 : f32 to vector<8x1xf32>
      %144 = arith.addf %140, %143 : vector<8x1xf32>
      %145 = math.rsqrt %144 : vector<8x1xf32>
      %146 = vector.broadcast %145 : vector<8x1xf32> to vector<8x32xf32>
      %147 = arith.mulf %142, %146 : vector<8x32xf32>
      %148 = vector.broadcast %128 : vector<1x32xf32> to vector<8x32xf32>
      %149 = arith.mulf %147, %148 : vector<8x32xf32>
      %150 = vector.broadcast %129 : vector<1x32xf32> to vector<8x32xf32>
      %151 = arith.addf %149, %150 : vector<8x32xf32>
      %c0_69 = arith.constant 0 : index
      %c0_70 = arith.constant 0 : index
      %c0_71 = arith.constant 0 : index
      %152 = vector.load %arg4[%c0_69, %c0_70, %c0_71] : memref<1x8x32xf32, #tpu.memory_space<vmem>>, vector<1x8x32xf32>
      %153 = vector.shape_cast %152 : vector<1x8x32xf32> to vector<8x32xf32>
      %154 = vector.extract_strided_slice %0 {offsets = [4, 0], sizes = [1, 32], strides = [1, 1]} : vector<13x32xf32> to vector<1x32xf32>
      %155 = vector.extract_strided_slice %0 {offsets = [5, 0], sizes = [1, 32], strides = [1, 1]} : vector<13x32xf32> to vector<1x32xf32>
      %cst_72 = arith.constant dense<0.000000e+00> : vector<8xf32>
      %156 = vector.multi_reduction <add>, %153, %cst_72 [1] : vector<8x32xf32> to vector<8xf32>
      %157 = vector.shape_cast %156 : vector<8xf32> to vector<8x1xf32>
      %cst_73 = arith.constant 3.200000e+01 : f32
      %158 = vector.broadcast %cst_73 : f32 to vector<8x1xf32>
      %159 = arith.divf %157, %158 : vector<8x1xf32>
      %160 = vector.broadcast %159 : vector<8x1xf32> to vector<8x32xf32>
      %161 = arith.subf %153, %160 : vector<8x32xf32>
      %162 = arith.mulf %161, %161 : vector<8x32xf32>
      %cst_74 = arith.constant dense<0.000000e+00> : vector<8xf32>
      %163 = vector.multi_reduction <add>, %162, %cst_74 [1] : vector<8x32xf32> to vector<8xf32>
      %164 = vector.shape_cast %163 : vector<8xf32> to vector<8x1xf32>
      %cst_75 = arith.constant 3.200000e+01 : f32
      %165 = vector.broadcast %cst_75 : f32 to vector<8x1xf32>
      %166 = arith.divf %164, %165 : vector<8x1xf32>
      %167 = vector.broadcast %159 : vector<8x1xf32> to vector<8x32xf32>
      %168 = arith.subf %153, %167 : vector<8x32xf32>
      %cst_76 = arith.constant 9.99999993E-9 : f32
      %169 = vector.broadcast %cst_76 : f32 to vector<8x1xf32>
      %170 = arith.addf %166, %169 : vector<8x1xf32>
      %171 = math.rsqrt %170 : vector<8x1xf32>
      %172 = vector.broadcast %171 : vector<8x1xf32> to vector<8x32xf32>
      %173 = arith.mulf %168, %172 : vector<8x32xf32>
      %174 = vector.broadcast %154 : vector<1x32xf32> to vector<8x32xf32>
      %175 = arith.mulf %173, %174 : vector<8x32xf32>
      %176 = vector.broadcast %155 : vector<1x32xf32> to vector<8x32xf32>
      %177 = arith.addf %175, %176 : vector<8x32xf32>
      %c0_77 = arith.constant 0 : index
      %c0_78 = arith.constant 0 : index
      %178 = vector.load %arg13[%c0_77, %c0_78] : memref<8x32xf32, #tpu.memory_space<vmem>>, vector<8x32xf32>
      tpu.vector_store %arg13[%c0_77, %c0_78], %151 {strides = array<i32>} : memref<8x32xf32, #tpu.memory_space<vmem>>, vector<8x32xf32>,
      %179 = vector.shape_cast %151 : vector<8x32xf32> to vector<1x8x32xf32>
      %180 = vector.broadcast %179 : vector<1x8x32xf32> to vector<2x8x32xf32>
      %181 = vector.shape_cast %177 : vector<8x32xf32> to vector<1x8x32xf32>
      %182 = vector.broadcast %181 : vector<1x8x32xf32> to vector<2x8x32xf32>
      %c1_79 = arith.constant 1 : index
      %c0_80 = arith.constant 0 : index
      %c0_81 = arith.constant 0 : index
      %c0_82 = arith.constant 0 : index
      %183 = vector.load %arg7[%c1_79, %c0_80, %c0_81, %c0_82] : memref<3x2x32x16xf32, #tpu.memory_space<vmem>>, vector<1x2x32x16xf32>
      %184 = vector.shape_cast %183 : vector<1x2x32x16xf32> to vector<2x32x16xf32>
      "tpu.trace_start"() <{level = 10 : i32, message = "htd,hdf->htf"}> : () -> ()
      %cst_83 = arith.constant dense<0.000000e+00> : vector<2x8x16xf32>
      %185 = tpu.matmul %180, %184, %cst_83 {dimension_numbers = #tpu.dot_dimension_numbers<[2], [1], [1], [2], [0, 0, 0, 1, 1, 2], [0], [0]>} : vector<2x8x32xf32>, vector<2x32x16xf32>, vector<2x8x16xf32> -> vector<2x8x16xf32>
      "tpu.trace_stop"() : () -> ()
      %c1_84 = arith.constant 1 : index
      %c0_85 = arith.constant 0 : index
      %c0_86 = arith.constant 0 : index
      %c0_87 = arith.constant 0 : index
      %186 = vector.load %arg8[%c1_84, %c0_85, %c0_86, %c0_87] : memref<3x2x1x16xf32, #tpu.memory_space<vmem>>, vector<1x2x1x16xf32>
      %187 = vector.shape_cast %186 : vector<1x2x1x16xf32> to vector<2x1x16xf32>
      %188 = vector.broadcast %187 : vector<2x1x16xf32> to vector<2x8x16xf32>
      %189 = arith.addf %185, %188 : vector<2x8x16xf32>
      %c0_88 = arith.constant 0 : index
      %c0_89 = arith.constant 0 : index
      %c0_90 = arith.constant 0 : index
      %190 = vector.load %arg14[%c0_88, %c0_89, %c0_90] : memref<2x8x16xf32, #tpu.memory_space<vmem>>, vector<2x8x16xf32>
      tpu.vector_store %arg14[%c0_88, %c0_89, %c0_90], %189 {strides = array<i32>} : memref<2x8x16xf32, #tpu.memory_space<vmem>>, vector<2x8x16xf32>,
      %c2 = arith.constant 2 : index
      %c0_91 = arith.constant 0 : index
      %c0_92 = arith.constant 0 : index
      %c0_93 = arith.constant 0 : index
      %191 = vector.load %arg7[%c2, %c0_91, %c0_92, %c0_93] : memref<3x2x32x16xf32, #tpu.memory_space<vmem>>, vector<1x2x32x16xf32>
      %192 = vector.shape_cast %191 : vector<1x2x32x16xf32> to vector<2x32x16xf32>
      "tpu.trace_start"() <{level = 10 : i32, message = "htd,hdf->htf"}> : () -> ()
      %cst_94 = arith.constant dense<0.000000e+00> : vector<2x8x16xf32>
      %193 = tpu.matmul %182, %192, %cst_94 {dimension_numbers = #tpu.dot_dimension_numbers<[2], [1], [1], [2], [0, 0, 0, 1, 1, 2], [0], [0]>} : vector<2x8x32xf32>, vector<2x32x16xf32>, vector<2x8x16xf32> -> vector<2x8x16xf32>
      "tpu.trace_stop"() : () -> ()
      %c2_95 = arith.constant 2 : index
      %c0_96 = arith.constant 0 : index
      %c0_97 = arith.constant 0 : index
      %c0_98 = arith.constant 0 : index
      %194 = vector.load %arg8[%c2_95, %c0_96, %c0_97, %c0_98] : memref<3x2x1x16xf32, #tpu.memory_space<vmem>>, vector<1x2x1x16xf32>
      %195 = vector.shape_cast %194 : vector<1x2x1x16xf32> to vector<2x1x16xf32>
      %196 = vector.broadcast %195 : vector<2x1x16xf32> to vector<2x8x16xf32>
      %197 = arith.addf %193, %196 : vector<2x8x16xf32>
      %c0_99 = arith.constant 0 : index
      %c0_100 = arith.constant 0 : index
      %c0_101 = arith.constant 0 : index
      %198 = vector.load %arg15[%c0_99, %c0_100, %c0_101] : memref<2x8x16xf32, #tpu.memory_space<vmem>>, vector<2x8x16xf32>
      tpu.vector_store %arg15[%c0_99, %c0_100, %c0_101], %197 {strides = array<i32>} : memref<2x8x16xf32, #tpu.memory_space<vmem>>, vector<2x8x16xf32>,
    } else {
    }
    %c0_2 = arith.constant 0 : index
    %c0_3 = arith.constant 0 : index
    %c0_4 = arith.constant 0 : index
    %4 = vector.load %arg2[%c0_2, %c0_3, %c0_4] : memref<1x8x32xf32, #tpu.memory_space<vmem>>, vector<1x8x32xf32>
    %5 = vector.shape_cast %4 : vector<1x8x32xf32> to vector<8x32xf32>
    %6 = vector.extract_strided_slice %0 {offsets = [0, 0], sizes = [1, 32], strides = [1, 1]} : vector<13x32xf32> to vector<1x32xf32>
    %7 = vector.extract_strided_slice %0 {offsets = [1, 0], sizes = [1, 32], strides = [1, 1]} : vector<13x32xf32> to vector<1x32xf32>
    %cst = arith.constant dense<0.000000e+00> : vector<8xf32>
    %8 = vector.multi_reduction <add>, %5, %cst [1] : vector<8x32xf32> to vector<8xf32>
    %9 = vector.shape_cast %8 : vector<8xf32> to vector<8x1xf32>
    %cst_5 = arith.constant 3.200000e+01 : f32
    %10 = vector.broadcast %cst_5 : f32 to vector<8x1xf32>
    %11 = arith.divf %9, %10 : vector<8x1xf32>
    %12 = vector.broadcast %11 : vector<8x1xf32> to vector<8x32xf32>
    %13 = arith.subf %5, %12 : vector<8x32xf32>
    %14 = arith.mulf %13, %13 : vector<8x32xf32>
    %cst_6 = arith.constant dense<0.000000e+00> : vector<8xf32>
    %15 = vector.multi_reduction <add>, %14, %cst_6 [1] : vector<8x32xf32> to vector<8xf32>
    %16 = vector.shape_cast %15 : vector<8xf32> to vector<8x1xf32>
    %cst_7 = arith.constant 3.200000e+01 : f32
    %17 = vector.broadcast %cst_7 : f32 to vector<8x1xf32>
    %18 = arith.divf %16, %17 : vector<8x1xf32>
    %19 = vector.broadcast %11 : vector<8x1xf32> to vector<8x32xf32>
    %20 = arith.subf %5, %19 : vector<8x32xf32>
    %cst_8 = arith.constant 9.99999993E-9 : f32
    %21 = vector.broadcast %cst_8 : f32 to vector<8x1xf32>
    %22 = arith.addf %18, %21 : vector<8x1xf32>
    %23 = math.rsqrt %22 : vector<8x1xf32>
    %24 = vector.broadcast %23 : vector<8x1xf32> to vector<8x32xf32>
    %25 = arith.mulf %20, %24 : vector<8x32xf32>
    %26 = vector.broadcast %6 : vector<1x32xf32> to vector<8x32xf32>
    %27 = arith.mulf %25, %26 : vector<8x32xf32>
    %28 = vector.broadcast %7 : vector<1x32xf32> to vector<8x32xf32>
    %29 = arith.addf %27, %28 : vector<8x32xf32>
    %30 = vector.shape_cast %29 : vector<8x32xf32> to vector<1x8x32xf32>
    %31 = vector.broadcast %30 : vector<1x8x32xf32> to vector<2x8x32xf32>
    %c0_9 = arith.constant 0 : index
    %c0_10 = arith.constant 0 : index
    %c0_11 = arith.constant 0 : index
    %c0_12 = arith.constant 0 : index
    %32 = vector.load %arg7[%c0_9, %c0_10, %c0_11, %c0_12] : memref<3x2x32x16xf32, #tpu.memory_space<vmem>>, vector<1x2x32x16xf32>
    %33 = vector.shape_cast %32 : vector<1x2x32x16xf32> to vector<2x32x16xf32>
    "tpu.trace_start"() <{level = 10 : i32, message = "htd,hdf->htf"}> : () -> ()
    %cst_13 = arith.constant dense<0.000000e+00> : vector<2x8x16xf32>
    %34 = tpu.matmul %31, %33, %cst_13 {dimension_numbers = #tpu.dot_dimension_numbers<[2], [1], [1], [2], [0, 0, 0, 1, 1, 2], [0], [0]>} : vector<2x8x32xf32>, vector<2x32x16xf32>, vector<2x8x16xf32> -> vector<2x8x16xf32>
    "tpu.trace_stop"() : () -> ()
    %c0_14 = arith.constant 0 : index
    %c0_15 = arith.constant 0 : index
    %c0_16 = arith.constant 0 : index
    %c0_17 = arith.constant 0 : index
    %35 = vector.load %arg8[%c0_14, %c0_15, %c0_16, %c0_17] : memref<3x2x1x16xf32, #tpu.memory_space<vmem>>, vector<1x2x1x16xf32>
    %36 = vector.shape_cast %35 : vector<1x2x1x16xf32> to vector<2x1x16xf32>
    %37 = vector.broadcast %36 : vector<2x1x16xf32> to vector<2x8x16xf32>
    %38 = arith.addf %34, %37 : vector<2x8x16xf32>
    %cst_18 = arith.constant 2.500000e-01 : f32
    %39 = vector.broadcast %cst_18 : f32 to vector<2x8x16xf32>
    %40 = arith.mulf %38, %39 : vector<2x8x16xf32>
    %c0_19 = arith.constant 0 : index
    %c0_20 = arith.constant 0 : index
    %c0_21 = arith.constant 0 : index
    %41 = vector.load %arg14[%c0_19, %c0_20, %c0_21] : memref<2x8x16xf32, #tpu.memory_space<vmem>>, vector<2x8x16xf32>
    "tpu.trace_start"() <{level = 10 : i32, message = "hqf,hkf->hqk"}> : () -> ()
    %cst_22 = arith.constant dense<0.000000e+00> : vector<2x8x8xf32>
    %42 = tpu.matmul %40, %41, %cst_22 {dimension_numbers = #tpu.dot_dimension_numbers<[2], [2], [1], [1], [0, 0, 0, 1, 1, 1], [0], [0]>} : vector<2x8x16xf32>, vector<2x8x16xf32>, vector<2x8x8xf32> -> vector<2x8x8xf32>
    "tpu.trace_stop"() : () -> ()
    %43 = tpu.iota {dimensions = array<i32: 0>} : vector<8x8xi32>
    %c8_i32 = arith.constant 8 : i32
    %44 = arith.muli %arg1, %c8_i32 : i32
    %45 = vector.broadcast %44 : i32 to vector<8x8xi32>
    %46 = arith.addi %43, %45 : vector<8x8xi32>
    %47 = tpu.iota {dimensions = array<i32: 1>} : vector<8x8xi32>
    %48 = arith.cmpi sle, %47, %46 : vector<8x8xi32>
    %cst_23 = arith.constant 0.000000e+00 : f32
    %cst_24 = arith.constant 0xFF800000 : f32
    %49 = vector.broadcast %cst_23 : f32 to vector<8x8xf32>
    %50 = vector.broadcast %cst_24 : f32 to vector<8x8xf32>
    %51 = arith.select %48, %49, %50 : vector<8x8xi1>, vector<8x8xf32>
    %52 = vector.shape_cast %51 : vector<8x8xf32> to vector<1x8x8xf32>
    %53 = vector.broadcast %52 : vector<1x8x8xf32> to vector<2x8x8xf32>
    %54 = arith.addf %42, %53 : vector<2x8x8xf32>
    %cst_25 = arith.constant dense<0xFF800000> : vector<2x8xf32>
    %55 = vector.multi_reduction <maximumf>, %54, %cst_25 [2] : vector<2x8x8xf32> to vector<2x8xf32>
    %56 = vector.shape_cast %55 : vector<2x8xf32> to vector<2x8x1xf32>
    %57 = vector.broadcast %56 : vector<2x8x1xf32> to vector<2x8x8xf32>
    %58 = arith.subf %54, %57 : vector<2x8x8xf32>
    %59 = math.exp %58 : vector<2x8x8xf32>
    %cst_26 = arith.constant dense<0.000000e+00> : vector<2x8xf32>
    %60 = vector.multi_reduction <add>, %59, %cst_26 [2] : vector<2x8x8xf32> to vector<2x8xf32>
    %61 = vector.shape_cast %60 : vector<2x8xf32> to vector<2x8x1xf32>
    %62 = vector.broadcast %61 : vector<2x8x1xf32> to vector<2x8x8xf32>
    %63 = arith.divf %59, %62 : vector<2x8x8xf32>
    %c0_27 = arith.constant 0 : index
    %c0_28 = arith.constant 0 : index
    %c0_29 = arith.constant 0 : index
    %c0_30 = arith.constant 0 : index
    %64 = vector.load %arg12[%c0_27, %c0_28, %c0_29, %c0_30] : memref<1x2x8x8xf32, #tpu.memory_space<vmem>>, vector<1x2x8x8xf32>
    %65 = vector.shape_cast %64 : vector<1x2x8x8xf32> to vector<2x8x8xf32>
    %66 = vector.shape_cast %63 : vector<2x8x8xf32> to vector<1x2x8x8xf32>
    tpu.vector_store %arg12[%c0_27, %c0_28, %c0_29, %c0_30], %66 {strides = array<i32>} : memref<1x2x8x8xf32, #tpu.memory_space<vmem>>, vector<1x2x8x8xf32>,
    %c0_31 = arith.constant 0 : index
    %c0_32 = arith.constant 0 : index
    %c0_33 = arith.constant 0 : index
    %67 = vector.load %arg15[%c0_31, %c0_32, %c0_33] : memref<2x8x16xf32, #tpu.memory_space<vmem>>, vector<2x8x16xf32>
    "tpu.trace_start"() <{level = 10 : i32, message = "hqk,hkf->hqf"}> : () -> ()
    %cst_34 = arith.constant dense<0.000000e+00> : vector<2x8x16xf32>
    %68 = tpu.matmul %63, %67, %cst_34 {dimension_numbers = #tpu.dot_dimension_numbers<[2], [1], [1], [2], [0, 0, 0, 1, 1, 2], [0], [0]>} : vector<2x8x8xf32>, vector<2x8x16xf32>, vector<2x8x16xf32> -> vector<2x8x16xf32>
    "tpu.trace_stop"() : () -> ()
    %c0_35 = arith.constant 0 : index
    %c0_36 = arith.constant 0 : index
    %c0_37 = arith.constant 0 : index
    %69 = vector.load %arg9[%c0_35, %c0_36, %c0_37] : memref<2x16x32xf32, #tpu.memory_space<vmem>>, vector<2x16x32xf32>
    "tpu.trace_start"() <{level = 10 : i32, message = "hqf,hfd->hqd"}> : () -> ()
    %cst_38 = arith.constant dense<0.000000e+00> : vector<2x8x32xf32>
    %70 = tpu.matmul %68, %69, %cst_38 {dimension_numbers = #tpu.dot_dimension_numbers<[2], [1], [1], [2], [0, 0, 0, 1, 1, 2], [0], [0]>} : vector<2x8x16xf32>, vector<2x16x32xf32>, vector<2x8x32xf32> -> vector<2x8x32xf32>
    "tpu.trace_stop"() : () -> ()
    %cst_39 = arith.constant dense<0.000000e+00> : vector<8x32xf32>
    %71 = vector.multi_reduction <add>, %70, %cst_39 [0] : vector<2x8x32xf32> to vector<8x32xf32>
    %72 = vector.extract_strided_slice %0 {offsets = [8, 0], sizes = [1, 32], strides = [1, 1]} : vector<13x32xf32> to vector<1x32xf32>
    %73 = vector.broadcast %72 : vector<1x32xf32> to vector<8x32xf32>
    %74 = arith.addf %71, %73 : vector<8x32xf32>
    %c8_i32_40 = arith.constant 8 : i32
    %75 = arith.muli %arg1, %c8_i32_40 : i32
    %76 = tpu.assume_multiple %75, 8 : i32
    %77 = arith.index_cast %76 : i32 to index
    %c0_41 = arith.constant 0 : index
    %78 = vector.load %arg13[%77, %c0_41] : memref<8x32xf32, #tpu.memory_space<vmem>>, vector<8x32xf32>
    %79 = arith.addf %74, %78 : vector<8x32xf32>
    %80 = vector.extract_strided_slice %0 {offsets = [6, 0], sizes = [1, 32], strides = [1, 1]} : vector<13x32xf32> to vector<1x32xf32>
    %81 = vector.extract_strided_slice %0 {offsets = [7, 0], sizes = [1, 32], strides = [1, 1]} : vector<13x32xf32> to vector<1x32xf32>
    %cst_42 = arith.constant dense<0.000000e+00> : vector<8xf32>
    %82 = vector.multi_reduction <add>, %79, %cst_42 [1] : vector<8x32xf32> to vector<8xf32>
    %83 = vector.shape_cast %82 : vector<8xf32> to vector<8x1xf32>
    %cst_43 = arith.constant 3.200000e+01 : f32
    %84 = vector.broadcast %cst_43 : f32 to vector<8x1xf32>
    %85 = arith.divf %83, %84 : vector<8x1xf32>
    %86 = vector.broadcast %85 : vector<8x1xf32> to vector<8x32xf32>
    %87 = arith.subf %79, %86 : vector<8x32xf32>
    %88 = arith.mulf %87, %87 : vector<8x32xf32>
    %cst_44 = arith.constant dense<0.000000e+00> : vector<8xf32>
    %89 = vector.multi_reduction <add>, %88, %cst_44 [1] : vector<8x32xf32> to vector<8xf32>
    %90 = vector.shape_cast %89 : vector<8xf32> to vector<8x1xf32>
    %cst_45 = arith.constant 3.200000e+01 : f32
    %91 = vector.broadcast %cst_45 : f32 to vector<8x1xf32>
    %92 = arith.divf %90, %91 : vector<8x1xf32>
    %93 = vector.broadcast %85 : vector<8x1xf32> to vector<8x32xf32>
    %94 = arith.subf %79, %93 : vector<8x32xf32>
    %cst_46 = arith.constant 9.99999993E-9 : f32
    %95 = vector.broadcast %cst_46 : f32 to vector<8x1xf32>
    %96 = arith.addf %92, %95 : vector<8x1xf32>
    %97 = math.rsqrt %96 : vector<8x1xf32>
    %98 = vector.broadcast %97 : vector<8x1xf32> to vector<8x32xf32>
    %99 = arith.mulf %94, %98 : vector<8x32xf32>
    %100 = vector.broadcast %80 : vector<1x32xf32> to vector<8x32xf32>
    %101 = arith.mulf %99, %100 : vector<8x32xf32>
    %102 = vector.broadcast %81 : vector<1x32xf32> to vector<8x32xf32>
    %103 = arith.addf %101, %102 : vector<8x32xf32>
    %c0_47 = arith.constant 0 : index
    %c0_48 = arith.constant 0 : index
    %c0_49 = arith.constant 0 : index
    %104 = vector.load %arg10[%c0_47, %c0_48, %c0_49] : memref<2x32x32xf32, #tpu.memory_space<vmem>>, vector<1x32x32xf32>
    %105 = vector.shape_cast %104 : vector<1x32x32xf32> to vector<32x32xf32>
    %cst_50 = arith.constant dense<0.000000e+00> : vector<8x32xf32>
    %106 = tpu.matmul %103, %105, %cst_50 {dimension_numbers = #tpu.dot_dimension_numbers<[1], [0], [0], [1], [0, 0, 1, 1], [], []>} : vector<8x32xf32>, vector<32x32xf32>, vector<8x32xf32> -> vector<8x32xf32>
    %107 = vector.extract_strided_slice %0 {offsets = [9, 0], sizes = [1, 32], strides = [1, 1]} : vector<13x32xf32> to vector<1x32xf32>
    %108 = vector.broadcast %107 : vector<1x32xf32> to vector<8x32xf32>
    %109 = arith.addf %106, %108 : vector<8x32xf32>
    %cst_51 = arith.constant 0.000000e+00 : f32
    %110 = vector.broadcast %cst_51 : f32 to vector<8x32xf32>
    %111 = arith.maximumf %109, %110 : vector<8x32xf32>
    %c1 = arith.constant 1 : index
    %c0_52 = arith.constant 0 : index
    %c0_53 = arith.constant 0 : index
    %112 = vector.load %arg10[%c1, %c0_52, %c0_53] : memref<2x32x32xf32, #tpu.memory_space<vmem>>, vector<1x32x32xf32>
    %113 = vector.shape_cast %112 : vector<1x32x32xf32> to vector<32x32xf32>
    %cst_54 = arith.constant dense<0.000000e+00> : vector<8x32xf32>
    %114 = tpu.matmul %111, %113, %cst_54 {dimension_numbers = #tpu.dot_dimension_numbers<[1], [0], [0], [1], [0, 0, 1, 1], [], []>} : vector<8x32xf32>, vector<32x32xf32>, vector<8x32xf32> -> vector<8x32xf32>
    %115 = vector.extract_strided_slice %0 {offsets = [10, 0], sizes = [1, 32], strides = [1, 1]} : vector<13x32xf32> to vector<1x32xf32>
    %116 = vector.broadcast %115 : vector<1x32xf32> to vector<8x32xf32>
    %117 = arith.addf %114, %116 : vector<8x32xf32>
    %118 = arith.addf %117, %103 : vector<8x32xf32>
    %c0_55 = arith.constant 0 : index
    %c0_56 = arith.constant 0 : index
    %c0_57 = arith.constant 0 : index
    %119 = vector.load %arg5[%c0_55, %c0_56, %c0_57] : memref<1x8x1xf32, #tpu.memory_space<vmem>>, vector<1x8x1xf32>
    %120 = vector.shape_cast %119 : vector<1x8x1xf32> to vector<8x1xf32>
    %121 = vector.broadcast %120 : vector<8x1xf32> to vector<8x32xf32>
    %122 = arith.mulf %118, %121 : vector<8x32xf32>
    %c0_58 = arith.constant 0 : index
    %c0_59 = arith.constant 0 : index
    %c0_60 = arith.constant 0 : index
    %123 = vector.load %arg11[%c0_58, %c0_59, %c0_60] : memref<1x8x32xf32, #tpu.memory_space<vmem>>, vector<1x8x32xf32>
    %124 = vector.shape_cast %123 : vector<1x8x32xf32> to vector<8x32xf32>
    %125 = vector.shape_cast %122 : vector<8x32xf32> to vector<1x8x32xf32>
    tpu.vector_store %arg11[%c0_58, %c0_59, %c0_60], %125 {strides = array<i32>} : memref<1x8x32xf32, #tpu.memory_space<vmem>>, vector<1x8x32xf32>,
    return
  }
  func.func @transform_0(%arg0: i32, %arg1: i32) -> (i32, i32, i32) {
    %c0_i32 = arith.constant 0 : i32
    %c0_i32_0 = arith.constant 0 : i32
    return %arg0, %arg1, %c0_i32 : i32, i32, i32
  }
  func.func @transform_1(%arg0: i32, %arg1: i32) -> (i32, i32, i32) {
    %c0_i32 = arith.constant 0 : i32
    %c0_i32_0 = arith.constant 0 : i32
    %c0_i32_1 = arith.constant 0 : i32
    return %arg0, %c0_i32, %c0_i32_0 : i32, i32, i32
  }
  func.func @transform_2(%arg0: i32, %arg1: i32) -> (i32, i32, i32) {
    %c0_i32 = arith.constant 0 : i32
    %c0_i32_0 = arith.constant 0 : i32
    %c0_i32_1 = arith.constant 0 : i32
    return %arg0, %c0_i32, %c0_i32_0 : i32, i32, i32
  }
  func.func @transform_3(%arg0: i32, %arg1: i32) -> (i32, i32, i32) {
    %c0_i32 = arith.constant 0 : i32
    %c0_i32_0 = arith.constant 0 : i32
    return %arg0, %arg1, %c0_i32 : i32, i32, i32
  }
  func.func @transform_4(%arg0: i32, %arg1: i32) -> (i32, i32) {
    %c0_i32 = arith.constant 0 : i32
    %c0_i32_0 = arith.constant 0 : i32
    %c0_i32_1 = arith.constant 0 : i32
    return %c0_i32, %c0_i32_0 : i32, i32
  }
  func.func @transform_5(%arg0: i32, %arg1: i32) -> (i32, i32, i32, i32) {
    %c0_i32 = arith.constant 0 : i32
    %c0_i32_0 = arith.constant 0 : i32
    %c0_i32_1 = arith.constant 0 : i32
    %c0_i32_2 = arith.constant 0 : i32
    %c0_i32_3 = arith.constant 0 : i32
    return %c0_i32, %c0_i32_0, %c0_i32_1, %c0_i32_2 : i32, i32, i32, i32
  }
  func.func @transform_6(%arg0: i32, %arg1: i32) -> (i32, i32, i32, i32) {
    %c0_i32 = arith.constant 0 : i32
    %c0_i32_0 = arith.constant 0 : i32
    %c0_i32_1 = arith.constant 0 : i32
    %c0_i32_2 = arith.constant 0 : i32
    %c0_i32_3 = arith.constant 0 : i32
    return %c0_i32, %c0_i32_0, %c0_i32_1, %c0_i32_2 : i32, i32, i32, i32
  }
  func.func @transform_7(%arg0: i32, %arg1: i32) -> (i32, i32, i32) {
    %c0_i32 = arith.constant 0 : i32
    %c0_i32_0 = arith.constant 0 : i32
    %c0_i32_1 = arith.constant 0 : i32
    %c0_i32_2 = arith.constant 0 : i32
    return %c0_i32, %c0_i32_0, %c0_i32_1 : i32, i32, i32
  }
  func.func @transform_8(%arg0: i32, %arg1: i32) -> (i32, i32, i32) {
    %c0_i32 = arith.constant 0 : i32
    %c0_i32_0 = arith.constant 0 : i32
    %c0_i32_1 = arith.constant 0 : i32
    %c0_i32_2 = arith.constant 0 : i32
    return %c0_i32, %c0_i32_0, %c0_i32_1 : i32, i32, i32
  }
  func.func @transform_9(%arg0: i32, %arg1: i32) -> (i32, i32, i32) {
    %c0_i32 = arith.constant 0 : i32
    %c0_i32_0 = arith.constant 0 : i32
    return %arg0, %arg1, %c0_i32 : i32, i32, i32
  }
  func.func @transform_10(%arg0: i32, %arg1: i32) -> (i32, i32, i32, i32) {
    %c0_i32 = arith.constant 0 : i32
    %c0_i32_0 = arith.constant 0 : i32
    %c0_i32_1 = arith.constant 0 : i32
    return %arg0, %c0_i32, %arg1, %c0_i32_0 : i32, i32, i32, i32
  }
}

</mosaic_0001>

<llo_original>
// kernel: text_aware_transformer.2
$region0: #{text_aware_transformer.2}
  #allocation0 [shape = 'u32[]', space=smem, size = 0x4, offset = 0x4, fixed_abs, tag = 'smem constant byte address 0x4 - core index']
  #allocation1 [shape = 'u32[144,128]{1,0:T(1,128)}', space=vmem, size = 0x12000, scoped, tag = 'internal scratch']
  #allocation2 [shape = 'f32[8,32]{1,0:T(8,128)}', space=vmem, size = 0x1000, scoped, tag = 'scratch operand']
  #allocation3 [shape = 'f32[2,8,16]{2,1,0:T(8,128)}', space=vmem, size = 0x2000, scoped, tag = 'scratch operand']
  #allocation4 [shape = 'f32[2,8,16]{2,1,0:T(8,128)}', space=vmem, size = 0x2000, scoped, tag = 'scratch operand']
  %s0 = inlined_call_operand.vmem [shape: f32[2,8,32], index: 0, kind: input, shape index: {}]
  %s1 = inlined_call_operand.vmem [shape: f32[2,8,32], index: 1, kind: input, shape index: {}]
  %s2 = inlined_call_operand.vmem [shape: f32[2,8,32], index: 2, kind: input, shape index: {}]
  %s3 = inlined_call_operand.vmem [shape: f32[2,8,1], index: 3, kind: input, shape index: {}]
  %s4 = inlined_call_operand.vmem [shape: f32[13,32], index: 4, kind: input, shape index: {}]
  %s5 = inlined_call_operand.vmem [shape: f32[3,2,32,16], index: 5, kind: input, shape index: {}]
  %s6 = inlined_call_operand.vmem [shape: f32[3,2,1,16], index: 6, kind: input, shape index: {}]
  %s7 = inlined_call_operand.vmem [shape: f32[2,16,32], index: 7, kind: input, shape index: {}]
  %s8 = inlined_call_operand.vmem [shape: f32[2,32,32], index: 8, kind: input, shape index: {}]
  %s9 = inlined_call_operand.vmem [shape: f32[2,8,32], index: 9, kind: output, shape index: {0}]
  %s10 = inlined_call_operand.hbm [shape: f32[2,2,8,8], index: 10, kind: output, shape index: {1}]
  %11 = xla_tuple %s9, %s10
  %s12 = sld [smem:[#allocation0]]
  $region81: #{text_aware_transformer.2} parent=0
    _
  %s14 = ssub.s32 1, %s12
  %s15 = scalar_select 0, %s14, %s12
  $region1: #{text_aware_transformer.2} parent=0
    #allocation5 [shape = 'u8[16384]{0}', space=vmem, size = 0x4000, scoped, tag = 'output window, operand 1']
    #allocation6 [shape = 's32[2]{0}', space=sflag, size = 0x8, scoped, tag = 'scoped memory for text_aware_transformer.2']
    %16 = vsyncpa [#allocation6], 0
    %s17 = scalar_lea.sflag [#allocation6], 1
    %18 = vsyncpa %s17, 0
    loop: start=0, step=1, limit=4
    $region2: #{text_aware_transformer.2} parent=1 // loop_pre_header
      _
    $region3: #{text_aware_transformer.2} parent=1 // loop_header
      %s20 = sphi 0, %s24
      %p21 = scmp.ge.s32.totalorder %s20, 4
      %s27 = sphi 0, %s39
      %s28 = sphi 0, %s35
      %s29 = sphi 0, %s27
      %s30 = sphi 0, %s28
      %s31 = sphi 0, %s29
      %s32 = sphi 0, %s30
      %s44 = sphi 0, %s46
      %s47 = sphi 0, %s44
      %s48 = sphi 0, %s47
      %s64 = sphi 0, %s48
      %s70 = sphi 0, %s72
      %s73 = sphi 0, %s70
      %s74 = sphi 0, %s73
      %s90 = sphi 0, %s74
      %s96 = sphi 0, %s98
      %s99 = sphi 0, %s96
      %s100 = sphi 0, %s99
      %s116 = sphi 0, %s100
      %s124 = sphi 0, %s126
      %s127 = sphi 0, %s124
      %s128 = sphi 0, %s127
      %s144 = sphi 0, %s128
      %s148 = sphi 0, %s148
      %s150 = sphi 0, %s148
      %s151 = sphi 0, %s150
      %s165 = sphi 0, %s151
      %s169 = sphi 0, %s169
      %s171 = sphi 0, %s169
      %s172 = sphi 0, %s171
      %s186 = sphi 0, %s172
      %s190 = sphi 0, %s190
      %s192 = sphi 0, %s190
      %s193 = sphi 0, %s192
      %s207 = sphi 0, %s193
      %s211 = sphi 0, %s211
      %s213 = sphi 0, %s211
      %s214 = sphi 0, %s213
      %s228 = sphi 0, %s214
      %s232 = sphi 0, %s232
      %s234 = sphi 0, %s232
      %s235 = sphi 0, %s234
      %s249 = sphi 0, %s235
      %s257 = sphi 0, %s259
      %s260 = sphi 0, %s257
      %s261 = sphi 0, %s260
      %s277 = sphi 0, %s261
      %s285 = sphi 0, %s287
      %s288 = sphi 0, %s285
      %s289 = sphi 0, %s288
      %s305 = sphi 0, %s289
    $region4: #{text_aware_transformer.2} parent=1 // loop_header_branch
      %23 = sbr.rel (%p21) target = $region8
    $region5: #{text_aware_transformer.2} parent=1 // loop_body
      %s25 = ssub.s32 %s20, 1
      %s26 = ssub.s32 %s20, 2
      %s33 = sadd.s32 1, %s28
      %p34 = scmp.ge.s32.totalorder %s33, 1
      %s35 = scalar_select %p34, 0, %s33
      %s36 = sadd.s32 1, %s27
      %s37 = scalar_select %p34, %s36, %s27
      %p38 = scmp.ge.s32.totalorder %s37, 2
      %s39 = scalar_select %p38, 0, %s37
      %s40 = ssub.s32 %s27, %s39
      %s41 = ssub.s32 %s28, %s35
      %s42 = sor.u32 %s40, %s41
      %p43 = scmp.eq.s32.totalorder %s42, 0
      %s45 = sadd.s32 %s44, 1
      %s46 = scalar_select %p43, %s44, %s45
      %p49 = pneg %p43
      %p50 = scmp.eq.s32.totalorder %s20, 1
      %p51 = por %p49, %p50
      %p52 = scmp.ne.s32.totalorder %s44, %s47
      %p53 = scmp.eq.s32.totalorder %s20, 0
      %p54 = por %p52, %p53
      %p55 = scmp.ne.s32.totalorder %s44, %s47
      %p56 = scmp.eq.s32.totalorder %s25, 1
      %p57 = por %p55, %p56
      %p58 = scmp.ne.s32.totalorder %s47, %s48
      %p59 = scmp.eq.s32.totalorder %s25, 0
      %p60 = por %p58, %p59
      %p61 = scmp.ne.s32.totalorder %s47, %s48
      %p62 = scmp.eq.s32.totalorder %s26, 1
      %p63 = por %p61, %p62
      %p65 = scmp.ne.s32.totalorder %s48, %s64
      %p66 = scmp.eq.s32.totalorder %s26, 0
      %p67 = por %p65, %p66
      %s68 = ssub.s32 %s27, %s39
      %p69 = scmp.eq.s32.totalorder %s68, 0
      %s71 = sadd.s32 %s70, 1
      %s72 = scalar_select %p69, %s70, %s71
      %p75 = pneg %p69
      %p76 = scmp.eq.s32.totalorder %s20, 1
      %p77 = por %p75, %p76
      %p78 = scmp.ne.s32.totalorder %s70, %s73
      %p79 = scmp.eq.s32.totalorder %s20, 0
      %p80 = por %p78, %p79
      %p81 = scmp.ne.s32.totalorder %s70, %s73
      %p82 = scmp.eq.s32.totalorder %s25, 1
      %p83 = por %p81, %p82
      %p84 = scmp.ne.s32.totalorder %s73, %s74
      %p85 = scmp.eq.s32.totalorder %s25, 0
      %p86 = por %p84, %p85
      %p87 = scmp.ne.s32.totalorder %s73, %s74
      %p88 = scmp.eq.s32.totalorder %s26, 1
      %p89 = por %p87, %p88
      %p91 = scmp.ne.s32.totalorder %s74, %s90
      %p92 = scmp.eq.s32.totalorder %s26, 0
      %p93 = por %p91, %p92
      %s94 = ssub.s32 %s27, %s39
      %p95 = scmp.eq.s32.totalorder %s94, 0
      %s97 = sadd.s32 %s96, 1
      %s98 = scalar_select %p95, %s96, %s97
      %p101 = pneg %p95
      %p102 = scmp.eq.s32.totalorder %s20, 1
      %p103 = por %p101, %p102
      %p104 = scmp.ne.s32.totalorder %s96, %s99
      %p105 = scmp.eq.s32.totalorder %s20, 0
      %p106 = por %p104, %p105
      %p107 = scmp.ne.s32.totalorder %s96, %s99
      %p108 = scmp.eq.s32.totalorder %s25, 1
      %p109 = por %p107, %p108
      %p110 = scmp.ne.s32.totalorder %s99, %s100
      %p111 = scmp.eq.s32.totalorder %s25, 0
      %p112 = por %p110, %p111
      %p113 = scmp.ne.s32.totalorder %s99, %s100
      %p114 = scmp.eq.s32.totalorder %s26, 1
      %p115 = por %p113, %p114
      %p117 = scmp.ne.s32.totalorder %s100, %s116
      %p118 = scmp.eq.s32.totalorder %s26, 0
      %p119 = por %p117, %p118
      %s120 = ssub.s32 %s27, %s39
      %s121 = ssub.s32 %s28, %s35
      %s122 = sor.u32 %s120, %s121
      %p123 = scmp.eq.s32.totalorder %s122, 0
      %s125 = sadd.s32 %s124, 1
      %s126 = scalar_select %p123, %s124, %s125
      %p129 = pneg %p123
      %p130 = scmp.eq.s32.totalorder %s20, 1
      %p131 = por %p129, %p130
      %p132 = scmp.ne.s32.totalorder %s124, %s127
      %p133 = scmp.eq.s32.totalorder %s20, 0
      %p134 = por %p132, %p133
      %p135 = scmp.ne.s32.totalorder %s124, %s127
      %p136 = scmp.eq.s32.totalorder %s25, 1
      %p137 = por %p135, %p136
      %p138 = scmp.ne.s32.totalorder %s127, %s128
      %p139 = scmp.eq.s32.totalorder %s25, 0
      %p140 = por %p138, %p139
      %p141 = scmp.ne.s32.totalorder %s127, %s128
      %p142 = scmp.eq.s32.totalorder %s26, 1
      %p143 = por %p141, %p142
      %p145 = scmp.ne.s32.totalorder %s128, %s144
      %p146 = scmp.eq.s32.totalorder %s26, 0
      %p147 = por %p145, %p146
      %s149 = sadd.s32 %s148, 1
      %p152 = scmp.eq.s32.totalorder %s20, 1
      %p153 = scmp.ne.s32.totalorder %s148, %s150
      %p154 = scmp.eq.s32.totalorder %s20, 0
      %p155 = por %p153, %p154
      %p156 = scmp.ne.s32.totalorder %s148, %s150
      %p157 = scmp.eq.s32.totalorder %s25, 1
      %p158 = por %p156, %p157
      %p159 = scmp.ne.s32.totalorder %s150, %s151
      %p160 = scmp.eq.s32.totalorder %s25, 0
      %p161 = por %p159, %p160
      %p162 = scmp.ne.s32.totalorder %s150, %s151
      %p163 = scmp.eq.s32.totalorder %s26, 1
      %p164 = por %p162, %p163
      %p166 = scmp.ne.s32.totalorder %s151, %s165
      %p167 = scmp.eq.s32.totalorder %s26, 0
      %p168 = por %p166, %p167
      %s170 = sadd.s32 %s169, 1
      %p173 = scmp.eq.s32.totalorder %s20, 1
      %p174 = scmp.ne.s32.totalorder %s169, %s171
      %p175 = scmp.eq.s32.totalorder %s20, 0
      %p176 = por %p174, %p175
      %p177 = scmp.ne.s32.totalorder %s169, %s171
      %p178 = scmp.eq.s32.totalorder %s25, 1
      %p179 = por %p177, %p178
      %p180 = scmp.ne.s32.totalorder %s171, %s172
      %p181 = scmp.eq.s32.totalorder %s25, 0
      %p182 = por %p180, %p181
      %p183 = scmp.ne.s32.totalorder %s171, %s172
      %p184 = scmp.eq.s32.totalorder %s26, 1
      %p185 = por %p183, %p184
      %p187 = scmp.ne.s32.totalorder %s172, %s186
      %p188 = scmp.eq.s32.totalorder %s26, 0
      %p189 = por %p187, %p188
      %s191 = sadd.s32 %s190, 1
      %p194 = scmp.eq.s32.totalorder %s20, 1
      %p195 = scmp.ne.s32.totalorder %s190, %s192
      %p196 = scmp.eq.s32.totalorder %s20, 0
      %p197 = por %p195, %p196
      %p198 = scmp.ne.s32.totalorder %s190, %s192
      %p199 = scmp.eq.s32.totalorder %s25, 1
      %p200 = por %p198, %p199
      %p201 = scmp.ne.s32.totalorder %s192, %s193
      %p202 = scmp.eq.s32.totalorder %s25, 0
      %p203 = por %p201, %p202
      %p204 = scmp.ne.s32.totalorder %s192, %s193
      %p205 = scmp.eq.s32.totalorder %s26, 1
      %p206 = por %p204, %p205
      %p208 = scmp.ne.s32.totalorder %s193, %s207
      %p209 = scmp.eq.s32.totalorder %s26, 0
      %p210 = por %p208, %p209
      %s212 = sadd.s32 %s211, 1
      %p215 = scmp.eq.s32.totalorder %s20, 1
      %p216 = scmp.ne.s32.totalorder %s211, %s213
      %p217 = scmp.eq.s32.totalorder %s20, 0
      %p218 = por %p216, %p217
      %p219 = scmp.ne.s32.totalorder %s211, %s213
      %p220 = scmp.eq.s32.totalorder %s25, 1
      %p221 = por %p219, %p220
      %p222 = scmp.ne.s32.totalorder %s213, %s214
      %p223 = scmp.eq.s32.totalorder %s25, 0
      %p224 = por %p222, %p223
      %p225 = scmp.ne.s32.totalorder %s213, %s214
      %p226 = scmp.eq.s32.totalorder %s26, 1
      %p227 = por %p225, %p226
      %p229 = scmp.ne.s32.totalorder %s214, %s228
      %p230 = scmp.eq.s32.totalorder %s26, 0
      %p231 = por %p229, %p230
      %s233 = sadd.s32 %s232, 1
      %p236 = scmp.eq.s32.totalorder %s20, 1
      %p237 = scmp.ne.s32.totalorder %s232, %s234
      %p238 = scmp.eq.s32.totalorder %s20, 0
      %p239 = por %p237, %p238
      %p240 = scmp.ne.s32.totalorder %s232, %s234
      %p241 = scmp.eq.s32.totalorder %s25, 1
      %p242 = por %p240, %p241
      %p243 = scmp.ne.s32.totalorder %s234, %s235
      %p244 = scmp.eq.s32.totalorder %s25, 0
      %p245 = por %p243, %p244
      %p246 = scmp.ne.s32.totalorder %s234, %s235
      %p247 = scmp.eq.s32.totalorder %s26, 1
      %p248 = por %p246, %p247
      %p250 = scmp.ne.s32.totalorder %s235, %s249
      %p251 = scmp.eq.s32.totalorder %s26, 0
      %p252 = por %p250, %p251
      %s253 = ssub.s32 %s27, %s39
      %s254 = ssub.s32 %s28, %s35
      %s255 = sor.u32 %s253, %s254
      %p256 = scmp.eq.s32.totalorder %s255, 0
      %s258 = sadd.s32 %s257, 1
      %s259 = scalar_select %p256, %s257, %s258
      %p262 = pneg %p256
      %p263 = scmp.eq.s32.totalorder %s20, 1
      %p264 = por %p262, %p263
      %p265 = scmp.ne.s32.totalorder %s257, %s260
      %p266 = scmp.eq.s32.totalorder %s20, 0
      %p267 = por %p265, %p266
      %p268 = scmp.ne.s32.totalorder %s257, %s260
      %p269 = scmp.eq.s32.totalorder %s25, 1
      %p270 = por %p268, %p269
      %p271 = scmp.ne.s32.totalorder %s260, %s261
      %p272 = scmp.eq.s32.totalorder %s25, 0
      %p273 = por %p271, %p272
      %p274 = scmp.ne.s32.totalorder %s260, %s261
      %p275 = scmp.eq.s32.totalorder %s26, 1
      %p276 = por %p274, %p275
      %p278 = scmp.ne.s32.totalorder %s261, %s277
      %p279 = scmp.eq.s32.totalorder %s26, 0
      %p280 = por %p278, %p279
      %s281 = ssub.s32 %s27, %s39
      %s282 = ssub.s32 %s28, %s35
      %s283 = sor.u32 %s281, %s282
      %p284 = scmp.eq.s32.totalorder %s283, 0
      %s286 = sadd.s32 %s285, 1
      %s287 = scalar_select %p284, %s285, %s286
      %p290 = pneg %p284
      %p291 = scmp.eq.s32.totalorder %s20, 1
      %p292 = por %p290, %p291
      %p293 = scmp.ne.s32.totalorder %s285, %s288
      %p294 = scmp.eq.s32.totalorder %s20, 0
      %p295 = por %p293, %p294
      %p296 = scmp.ne.s32.totalorder %s285, %s288
      %p297 = scmp.eq.s32.totalorder %s25, 1
      %p298 = por %p296, %p297
      %p299 = scmp.ne.s32.totalorder %s288, %s289
      %p300 = scmp.eq.s32.totalorder %s25, 0
      %p301 = por %p299, %p300
      %p302 = scmp.ne.s32.totalorder %s288, %s289
      %p303 = scmp.eq.s32.totalorder %s26, 1
      %p304 = por %p302, %p303
      %p306 = scmp.ne.s32.totalorder %s289, %s305
      %p307 = scmp.eq.s32.totalorder %s26, 0
      %p308 = por %p306, %p307
      %p309 = scmp.le.s32.totalorder 1, %s20
      %p310 = scmp.lt.s32.totalorder %s20, 3
      %p311 = pnand %p309, %p310
      %p312 = pneg %p311
      // Predicated region
      $region9: #{text_aware_transformer.2} parent=5 // pred_check
        _
      $region10: #{text_aware_transformer.2} parent=5 // pred_check_branch
        %314 = sbr.rel (%p311) target = $region12
      $region11: #{text_aware_transformer.2} parent=5 // pred_region
        %s315 = ssub.s32 %s20, 1
        // Predicated region
        $region13: #{text_aware_transformer.2} parent=11 // pred_check
          %p316 = pneg %p161
        $region14: #{text_aware_transformer.2} parent=11 // pred_check_branch
          %318 = sbr.rel (%p316) target = $region16
        $region15: #{text_aware_transformer.2} parent=11 // pred_region
          _
        $region16: #{text_aware_transformer.2} parent=11 // pred_fallthru
          _
        // Predicated region
        $region17: #{text_aware_transformer.2} parent=11 // pred_check
          %p319 = pneg %p182
        $region18: #{text_aware_transformer.2} parent=11 // pred_check_branch
          %321 = sbr.rel (%p319) target = $region20
        $region19: #{text_aware_transformer.2} parent=11 // pred_region
          _
        $region20: #{text_aware_transformer.2} parent=11 // pred_fallthru
          _
        // Predicated region
        $region21: #{text_aware_transformer.2} parent=11 // pred_check
          %p322 = pneg %p203
        $region22: #{text_aware_transformer.2} parent=11 // pred_check_branch
          %324 = sbr.rel (%p322) target = $region24
        $region23: #{text_aware_transformer.2} parent=11 // pred_region
          _
        $region24: #{text_aware_transformer.2} parent=11 // pred_fallthru
          _
        // Predicated region
        $region25: #{text_aware_transformer.2} parent=11 // pred_check
          %p325 = pneg %p224
        $region26: #{text_aware_transformer.2} parent=11 // pred_check_branch
          %327 = sbr.rel (%p325) target = $region28
        $region27: #{text_aware_transformer.2} parent=11 // pred_region
          _
        $region28: #{text_aware_transformer.2} parent=11 // pred_fallthru
          _
        // Predicated region
        $region29: #{text_aware_transformer.2} parent=11 // pred_check
          %p328 = pneg %p245
        $region30: #{text_aware_transformer.2} parent=11 // pred_check_branch
          %330 = sbr.rel (%p328) target = $region32
        $region31: #{text_aware_transformer.2} parent=11 // pred_region
          _
        $region32: #{text_aware_transformer.2} parent=11 // pred_fallthru
          _
      $region12: #{text_aware_transformer.2} parent=5 // pred_fallthru
        _
      %p331 = scmp.lt.s32.totalorder %s20, 2
      // Predicated region
      $region33: #{text_aware_transformer.2} parent=5 // pred_check
        %p332 = pneg %p331
      $region34: #{text_aware_transformer.2} parent=5 // pred_check_branch
        %334 = sbr.rel (%p332) target = $region36
      $region35: #{text_aware_transformer.2} parent=5 // pred_region
        // Predicated region
        $region37: #{text_aware_transformer.2} parent=35 // pred_check
          %p335 = pneg %p54
        $region38: #{text_aware_transformer.2} parent=35 // pred_check_branch
          %337 = sbr.rel (%p335) target = $region40
        $region39: #{text_aware_transformer.2} parent=35 // pred_region
          %p338 = scmp.lt.s32.totalorder %s27, 1
          %s339 = scalar_select %p338, %s27, 1
          %p340 = scmp.lt.s32.totalorder %s28, 0
          %s341 = scalar_select %p340, %s28, 0
          %s342 = sadd.s32 %s341, %s339
          %s343 = smul.addr %s342, 8
          %s344 = scalar_lea.vmem %s0, %s343
        $region40: #{text_aware_transformer.2} parent=35 // pred_fallthru
          _
        // Predicated region
        $region41: #{text_aware_transformer.2} parent=35 // pred_check
          %p345 = pneg %p80
        $region42: #{text_aware_transformer.2} parent=35 // pred_check_branch
          %347 = sbr.rel (%p345) target = $region44
        $region43: #{text_aware_transformer.2} parent=35 // pred_region
          %p348 = scmp.lt.s32.totalorder %s27, 1
          %s349 = scalar_select %p348, %s27, 1
          %s350 = smul.addr %s349, 8
          %s351 = scalar_lea.vmem %s1, %s350
        $region44: #{text_aware_transformer.2} parent=35 // pred_fallthru
          _
        // Predicated region
        $region45: #{text_aware_transformer.2} parent=35 // pred_check
          %p352 = pneg %p106
        $region46: #{text_aware_transformer.2} parent=35 // pred_check_branch
          %354 = sbr.rel (%p352) target = $region48
        $region47: #{text_aware_transformer.2} parent=35 // pred_region
          %p355 = scmp.lt.s32.totalorder %s27, 1
          %s356 = scalar_select %p355, %s27, 1
          %s357 = smul.addr %s356, 8
          %s358 = scalar_lea.vmem %s2, %s357
        $region48: #{text_aware_transformer.2} parent=35 // pred_fallthru
          _
        // Predicated region
        $region49: #{text_aware_transformer.2} parent=35 // pred_check
          %p359 = pneg %p134
        $region50: #{text_aware_transformer.2} parent=35 // pred_check_branch
          %361 = sbr.rel (%p359) target = $region52
        $region51: #{text_aware_transformer.2} parent=35 // pred_region
          %p362 = scmp.lt.s32.totalorder %s27, 1
          %s363 = scalar_select %p362, %s27, 1
          %p364 = scmp.lt.s32.totalorder %s28, 0
          %s365 = scalar_select %p364, %s28, 0
          %s366 = sadd.s32 %s365, %s363
          %s367 = smul.addr %s366, 8
          %s368 = scalar_lea.vmem %s3, %s367
        $region52: #{text_aware_transformer.2} parent=35 // pred_fallthru
          _
      $region36: #{text_aware_transformer.2} parent=5 // pred_fallthru
        _
      %p369 = scmp.le.s32.totalorder 1, %s20
      %p370 = scmp.lt.s32.totalorder %s20, 3
      %p371 = pnand %p369, %p370
      %p372 = pneg %p371
      // Predicated region
      $region53: #{text_aware_transformer.2} parent=5 // pred_check
        _
      $region54: #{text_aware_transformer.2} parent=5 // pred_check_branch
        %374 = sbr.rel (%p371) target = $region56
      $region55: #{text_aware_transformer.2} parent=5 // pred_region
        %s375 = ssub.s32 %s20, 1
        %p376 = scmp.lt.s32.totalorder %s29, 1
        %s377 = scalar_select %p376, %s29, 1
        %p378 = scmp.lt.s32.totalorder %s30, 0
        %s379 = scalar_select %p378, %s30, 0
        %s380 = sadd.s32 %s379, %s377
        %s381 = smul.addr %s380, 8
        %s382 = scalar_lea.vmem %s0, %s381
        %p383 = pneg %p60
        %p384 = pneg %p57
        %p385 = scmp.lt.s32.totalorder %s29, 1
        %s386 = scalar_select %p385, %s29, 1
        %s387 = smul.addr %s386, 8
        %s388 = scalar_lea.vmem %s1, %s387
        %p389 = pneg %p86
        %p390 = pneg %p83
        %p391 = scmp.lt.s32.totalorder %s29, 1
        %s392 = scalar_select %p391, %s29, 1
        %s393 = smul.addr %s392, 8
        %s394 = scalar_lea.vmem %s2, %s393
        %p395 = pneg %p112
        %p396 = pneg %p109
        %p397 = scmp.lt.s32.totalorder %s29, 1
        %s398 = scalar_select %p397, %s29, 1
        %p399 = scmp.lt.s32.totalorder %s30, 0
        %s400 = scalar_select %p399, %s30, 0
        %s401 = sadd.s32 %s400, %s398
        %s402 = smul.addr %s401, 8
        %s403 = scalar_lea.vmem %s3, %s402
        %p404 = pneg %p140
        %p405 = pneg %p137
        %p406 = pneg %p161
        %p407 = pneg %p158
        %p408 = pneg %p182
        %p409 = pneg %p179
        %p410 = pneg %p203
        %p411 = pneg %p200
        %p412 = pneg %p224
        %p413 = pneg %p221
        %p414 = pneg %p245
        %p415 = pneg %p242
        %p416 = pneg %p273
        %p417 = pneg %p270
        %p418 = scmp.lt.s32.totalorder %s29, 1
        %s419 = scalar_select %p418, %s29, 1
        %p420 = scmp.lt.s32.totalorder %s30, 0
        %s421 = scalar_select %p420, %s30, 0
        %s422 = sadd.s32 %s421, %s419
        %s423 = smul.addr %s422, 8
        %s424 = scalar_lea.vmem %s9, %s423
        %p425 = pneg %p301
        %p426 = pneg %p298
        %s427 = sand.u32 %s288, 1
        %s428 = scalar_lea.sflag [#allocation6], %s427
        %s429 = sand.u32 %s288, 1
        %s430 = smul.addr %s429, 16
        %s431 = scalar_lea.vmem [#allocation5], %s430
        %p432 = scmp.lt.s32.totalorder %s29, 1
        %s433 = scalar_select %p432, %s29, 1
        %p434 = scmp.lt.s32.totalorder %s30, 0
        %s435 = scalar_select %p434, %s30, 0
        %s436 = sadd.s32 %s435, %s433
        %s437 = smul.addr %s436, 8
        %s438 = scalar_lea.vmem %s0, %s437
        %p439 = scmp.lt.s32.totalorder %s29, 1
        %s440 = scalar_select %p439, %s29, 1
        %s441 = smul.addr %s440, 8
        %s442 = scalar_lea.vmem %s1, %s441
        %p443 = scmp.lt.s32.totalorder %s29, 1
        %s444 = scalar_select %p443, %s29, 1
        %s445 = smul.addr %s444, 8
        %s446 = scalar_lea.vmem %s2, %s445
        %p447 = scmp.lt.s32.totalorder %s29, 1
        %s448 = scalar_select %p447, %s29, 1
        %p449 = scmp.lt.s32.totalorder %s30, 0
        %s450 = scalar_select %p449, %s30, 0
        %s451 = sadd.s32 %s450, %s448
        %s452 = smul.addr %s451, 8
        %s453 = scalar_lea.vmem %s3, %s452
        %p454 = scmp.lt.s32.totalorder %s29, 1
        %s455 = scalar_select %p454, %s29, 1
        %p456 = scmp.lt.s32.totalorder %s30, 0
        %s457 = scalar_select %p456, %s30, 0
        %s458 = sadd.s32 %s457, %s455
        %s459 = smul.addr %s458, 8
        %s460 = scalar_lea.vmem %s9, %s459
        %v461 = vld [vmem:[%s4] sm:$0xff]
        %v462 = vld [vmem:[%s4 + $0x8] sm:$0x1f]
        %p463 = scmp.eq.s32.totalorder %s30, 0
        // Predicated region
        $region57: #{text_aware_transformer.2} parent=55 // pred_check
          %p464 = pneg %p463
        $region58: #{text_aware_transformer.2} parent=55 // pred_check_branch
          %466 = sbr.rel (%p464) target = $region60
        $region59: #{text_aware_transformer.2} parent=55 // pred_region
          %v467 = vld [vmem:[%s442] sm:$0xff]
          %vm468 = vcmask 261120
          %v469 = vsel %vm468, %v467, 0.0
          %470 = vadd.xlane.f32.xlu0 %v469
          %v471 = vpop.xlane.xlu0 %470
          %v472 = vrcp.pop 32.0
          %v473 = vmul.f32 %v471, %v472
          %v474 = vsub.f32 %v467, %v473
          %v475 = vmul.f32 %v474, %v474
          %v476 = vsel %vm468, %v475, 0.0
          %477 = vadd.xlane.f32.xlu0 %v476
          %v478 = vpop.xlane.xlu0 %477
          %v479 = vmul.f32 %v478, %v472
          %v480 = vadd.f32 %v479, 1e-08
          %v481 = vrsqrt.pop %v480
          %v482 = vmul.f32 %v474, %v481
          %v483 = vlaneseq
          %v484 = vshrl.u32 %v483, 7
          %v485 = vsub.s32 2, %v484
          %v486 = vrot.slane %v461, %v485
          %v487 = vmul.f32 %v482, %v486
          %v488 = vlaneseq
          %v489 = vshrl.u32 %v488, 7
          %v490 = vsub.s32 3, %v489
          %v491 = vrot.slane %v461, %v490
          %v492 = vadd.f32 %v487, %v491
          %v493 = vld [vmem:[%s446] sm:$0xff]
          %v494 = vsel %vm468, %v493, 0.0
          %495 = vadd.xlane.f32.xlu0 %v494
          %v496 = vpop.xlane.xlu0 %495
          %v497 = vmul.f32 %v496, %v472
          %v498 = vsub.f32 %v493, %v497
          %v499 = vmul.f32 %v498, %v498
          %v500 = vsel %vm468, %v499, 0.0
          %501 = vadd.xlane.f32.xlu0 %v500
          %v502 = vpop.xlane.xlu0 %501
          %v503 = vmul.f32 %v502, %v472
          %v504 = vadd.f32 %v503, 1e-08
          %v505 = vrsqrt.pop %v504
          %v506 = vmul.f32 %v498, %v505
          %v507 = vlaneseq
          %v508 = vshrl.u32 %v507, 7
          %v509 = vsub.s32 4, %v508
          %v510 = vrot.slane %v461, %v509
          %v511 = vmul.f32 %v506, %v510
          %v512 = vlaneseq
          %v513 = vshrl.u32 %v512, 7
          %v514 = vsub.s32 5, %v513
          %v515 = vrot.slane %v461, %v514
          %v516 = vadd.f32 %v511, %v515
          %517 = vst.msk [vmem:[#allocation2] sm:$0xff] %vm468, %v492
          %s518 = scalar_lea.vmem %s5, 64
          %v519 = vld [vmem:[%s518] sm:$0xff]
          %v520 = vld [vmem:[%s518 + $0x8] sm:$0xff]
          %v521 = vld [vmem:[%s518 + $0x10] sm:$0xff]
          %v522 = vld [vmem:[%s518 + $0x18] sm:$0xff]
          %v523 = vld [vmem:[%s518 + $0x20] sm:$0xff]
          %v524 = vld [vmem:[%s518 + $0x28] sm:$0xff]
          %v525 = vld [vmem:[%s518 + $0x30] sm:$0xff]
          %v526 = vld [vmem:[%s518 + $0x38] sm:$0xff]
          %s527 = scalar_lea.vmem %s6, 2
          %v528 = vld [vmem:[%s527] sm:$0x1]
          %v529 = vld [vmem:[%s527 + $0x1] sm:$0x1]
          %v532 = vlaneseq
          %v533 = vshrl.u32 %v532, 7
          %v534 = vsub.s32 0, %v533
          %v535 = vrot.slane %v528, %v534
          %v536 = vlaneseq
          %v537 = vshrl.u32 %v536, 7
          %v538 = vsub.s32 0, %v537
          %v539 = vrot.slane %v529, %v538
          %v543 = vsel %vm468, %v492, 0
          %545 = vmatprep.subr.mxu0 0.0
          %546 = vmatpush1.msra.mxu0 0.0
          %547 = vmatprep.subr.mxu0 0.0
          %548 = vmatpush1.msra.mxu0 0.0
          %549 = vmatprep.subr.mxu0 0.0
          %550 = vmatpush1.msra.mxu0 0.0
          %551 = vmatprep.subr.mxu0 0.0
          %552 = vmatpush1.msra.mxu0 0.0
          %553 = vmatprep.subr.mxu0 0.0
          %554 = vmatpush1.msra.mxu0 0.0
          %555 = vmatprep.subr.mxu0 0.0
          %556 = vmatpush1.msra.mxu0 0.0
          %557 = vmatprep.subr.mxu0 0.0
          %558 = vmatpush1.msra.mxu0 0.0
          %559 = vmatprep.subr.mxu0 0.0
          %560 = vmatpush1.msra.mxu0 0.0
          %561 = vmatprep.subr.mxu0 0.0
          %562 = vmatpush1.msra.mxu0 0.0
          %563 = vmatprep.subr.mxu0 0.0
          %564 = vmatpush1.msra.mxu0 0.0
          %565 = vmatprep.subr.mxu0 0.0
          %566 = vmatpush1.msra.mxu0 0.0
          %567 = vmatprep.subr.mxu0 0.0
          %568 = vmatpush1.msra.mxu0 0.0
          %569 = vmatprep.subr.mxu0 0.0
          %570 = vmatpush1.msra.mxu0 %v522
          %571 = vmatprep.subr.mxu0 0.0
          %572 = vmatpush1.msra.mxu0 %v521
          %573 = vmatprep.subr.mxu0 0.0
          %574 = vmatpush1.msra.mxu0 %v520
          %575 = vmatprep.subr.mxu0 0.0
          %576 = vmatpush1.msra.mxu0 %v519
          %577 = vmatprep.subr.mxu0 0.0
          %578 = vmatpush2.msra.mxu0 0.0
          %579 = vmatprep.subr.mxu0 0.0
          %580 = vmatpush2.msra.mxu0 0.0
          %581 = vmatprep.subr.mxu0 0.0
          %582 = vmatpush2.msra.mxu0 0.0
          %583 = vmatprep.subr.mxu0 0.0
          %584 = vmatpush2.msra.mxu0 0.0
          %585 = vmatprep.subr.mxu0 0.0
          %586 = vmatpush2.msra.mxu0 0.0
          %587 = vmatprep.subr.mxu0 0.0
          %588 = vmatpush2.msra.mxu0 0.0
          %589 = vmatprep.subr.mxu0 0.0
          %590 = vmatpush2.msra.mxu0 0.0
          %591 = vmatprep.subr.mxu0 0.0
          %592 = vmatpush2.msra.mxu0 0.0
          %593 = vmatprep.subr.mxu0 0.0
          %594 = vmatpush2.msra.mxu0 0.0
          %595 = vmatprep.subr.mxu0 0.0
          %596 = vmatpush2.msra.mxu0 0.0
          %597 = vmatprep.subr.mxu0 0.0
          %598 = vmatpush2.msra.mxu0 0.0
          %599 = vmatprep.subr.mxu0 0.0
          %600 = vmatpush2.msra.mxu0 0.0
          %601 = vmatprep.subr.mxu0 0.0
          %602 = vmatpush2.msra.mxu0 0.0
          %603 = vmatprep.subr.mxu0 0.0
          %604 = vmatpush2.msra.mxu0 0.0
          %605 = vmatprep.subr.mxu0 0.0
          %606 = vmatpush2.msra.mxu0 0.0
          %607 = vmatprep.subr.mxu0 0.0
          %608 = vmatpush2.msra.mxu0 0.0
          %609 = vmatprep.mubr.f32.mxu0 0.0
          %610 = vmatmul.mubr.f32.gmra.mxu0 %v543
          %v611 = vpop.f32.mrf.mxu0
          %v612 = vadd.f32 %v535, %v611
          %v613 = vpop.f32.mrf.mxu0
          %614 = vdwg.mxu0
          %615 = vmatprep.subr.mxu0 0.0
          %616 = vmatpush1.msra.mxu0 0.0
          %617 = vmatprep.subr.mxu0 0.0
          %618 = vmatpush1.msra.mxu0 0.0
          %619 = vmatprep.subr.mxu0 0.0
          %620 = vmatpush1.msra.mxu0 0.0
          %621 = vmatprep.subr.mxu0 0.0
          %622 = vmatpush1.msra.mxu0 0.0
          %623 = vmatprep.subr.mxu0 0.0
          %624 = vmatpush1.msra.mxu0 0.0
          %625 = vmatprep.subr.mxu0 0.0
          %626 = vmatpush1.msra.mxu0 0.0
          %627 = vmatprep.subr.mxu0 0.0
          %628 = vmatpush1.msra.mxu0 0.0
          %629 = vmatprep.subr.mxu0 0.0
          %630 = vmatpush1.msra.mxu0 0.0
          %631 = vmatprep.subr.mxu0 0.0
          %632 = vmatpush1.msra.mxu0 0.0
          %633 = vmatprep.subr.mxu0 0.0
          %634 = vmatpush1.msra.mxu0 0.0
          %635 = vmatprep.subr.mxu0 0.0
          %636 = vmatpush1.msra.mxu0 0.0
          %637 = vmatprep.subr.mxu0 0.0
          %638 = vmatpush1.msra.mxu0 0.0
          %639 = vmatprep.subr.mxu0 0.0
          %640 = vmatpush1.msra.mxu0 %v526
          %641 = vmatprep.subr.mxu0 0.0
          %642 = vmatpush1.msra.mxu0 %v525
          %643 = vmatprep.subr.mxu0 0.0
          %644 = vmatpush1.msra.mxu0 %v524
          %645 = vmatprep.subr.mxu0 0.0
          %646 = vmatpush1.msra.mxu0 %v523
          %647 = vmatprep.subr.mxu0 0.0
          %648 = vmatpush2.msra.mxu0 0.0
          %649 = vmatprep.subr.mxu0 0.0
          %650 = vmatpush2.msra.mxu0 0.0
          %651 = vmatprep.subr.mxu0 0.0
          %652 = vmatpush2.msra.mxu0 0.0
          %653 = vmatprep.subr.mxu0 0.0
          %654 = vmatpush2.msra.mxu0 0.0
          %655 = vmatprep.subr.mxu0 0.0
          %656 = vmatpush2.msra.mxu0 0.0
          %657 = vmatprep.subr.mxu0 0.0
          %658 = vmatpush2.msra.mxu0 0.0
          %659 = vmatprep.subr.mxu0 0.0
          %660 = vmatpush2.msra.mxu0 0.0
          %661 = vmatprep.subr.mxu0 0.0
          %662 = vmatpush2.msra.mxu0 0.0
          %663 = vmatprep.subr.mxu0 0.0
          %664 = vmatpush2.msra.mxu0 0.0
          %665 = vmatprep.subr.mxu0 0.0
          %666 = vmatpush2.msra.mxu0 0.0
          %667 = vmatprep.subr.mxu0 0.0
          %668 = vmatpush2.msra.mxu0 0.0
          %669 = vmatprep.subr.mxu0 0.0
          %670 = vmatpush2.msra.mxu0 0.0
          %671 = vmatprep.subr.mxu0 0.0
          %672 = vmatpush2.msra.mxu0 0.0
          %673 = vmatprep.subr.mxu0 0.0
          %674 = vmatpush2.msra.mxu0 0.0
          %675 = vmatprep.subr.mxu0 0.0
          %676 = vmatpush2.msra.mxu0 0.0
          %677 = vmatprep.subr.mxu0 0.0
          %678 = vmatpush2.msra.mxu0 0.0
          %679 = vmatprep.mubr.f32.mxu0 0.0
          %680 = vmatmul.mubr.f32.gmra.mxu0 %v543
          %v681 = vpop.f32.mrf.mxu0
          %v682 = vadd.f32 %v539, %v681
          %v683 = vpop.f32.mrf.mxu0
          %684 = vdwg.mxu0
          %vm685 = vcmask 130048
          %686 = vst.msk [vmem:[#allocation3] sm:$0xff] %vm685, %v612
          %687 = vst.msk [vmem:[#allocation3 + $0x8] sm:$0xff] %vm685, %v682
          %s688 = scalar_lea.vmem %s5, 128
          %v689 = vld [vmem:[%s688] sm:$0xff]
          %v690 = vld [vmem:[%s688 + $0x8] sm:$0xff]
          %v691 = vld [vmem:[%s688 + $0x10] sm:$0xff]
          %v692 = vld [vmem:[%s688 + $0x18] sm:$0xff]
          %v693 = vld [vmem:[%s688 + $0x20] sm:$0xff]
          %v694 = vld [vmem:[%s688 + $0x28] sm:$0xff]
          %v695 = vld [vmem:[%s688 + $0x30] sm:$0xff]
          %v696 = vld [vmem:[%s688 + $0x38] sm:$0xff]
          %s697 = scalar_lea.vmem %s6, 4
          %v698 = vld [vmem:[%s697] sm:$0x1]
          %v699 = vld [vmem:[%s697 + $0x1] sm:$0x1]
          %v702 = vlaneseq
          %v703 = vshrl.u32 %v702, 7
          %v704 = vsub.s32 0, %v703
          %v705 = vrot.slane %v698, %v704
          %v706 = vlaneseq
          %v707 = vshrl.u32 %v706, 7
          %v708 = vsub.s32 0, %v707
          %v709 = vrot.slane %v699, %v708
          %v713 = vsel %vm468, %v516, 0
          %715 = vmatprep.subr.mxu0 0.0
          %716 = vmatpush1.msra.mxu0 0.0
          %717 = vmatprep.subr.mxu0 0.0
          %718 = vmatpush1.msra.mxu0 0.0
          %719 = vmatprep.subr.mxu0 0.0
          %720 = vmatpush1.msra.mxu0 0.0
          %721 = vmatprep.subr.mxu0 0.0
          %722 = vmatpush1.msra.mxu0 0.0
          %723 = vmatprep.subr.mxu0 0.0
          %724 = vmatpush1.msra.mxu0 0.0
          %725 = vmatprep.subr.mxu0 0.0
          %726 = vmatpush1.msra.mxu0 0.0
          %727 = vmatprep.subr.mxu0 0.0
          %728 = vmatpush1.msra.mxu0 0.0
          %729 = vmatprep.subr.mxu0 0.0
          %730 = vmatpush1.msra.mxu0 0.0
          %731 = vmatprep.subr.mxu0 0.0
          %732 = vmatpush1.msra.mxu0 0.0
          %733 = vmatprep.subr.mxu0 0.0
          %734 = vmatpush1.msra.mxu0 0.0
          %735 = vmatprep.subr.mxu0 0.0
          %736 = vmatpush1.msra.mxu0 0.0
          %737 = vmatprep.subr.mxu0 0.0
          %738 = vmatpush1.msra.mxu0 0.0
          %739 = vmatprep.subr.mxu0 0.0
          %740 = vmatpush1.msra.mxu0 %v692
          %741 = vmatprep.subr.mxu0 0.0
          %742 = vmatpush1.msra.mxu0 %v691
          %743 = vmatprep.subr.mxu0 0.0
          %744 = vmatpush1.msra.mxu0 %v690
          %745 = vmatprep.subr.mxu0 0.0
          %746 = vmatpush1.msra.mxu0 %v689
          %747 = vmatprep.subr.mxu0 0.0
          %748 = vmatpush2.msra.mxu0 0.0
          %749 = vmatprep.subr.mxu0 0.0
          %750 = vmatpush2.msra.mxu0 0.0
          %751 = vmatprep.subr.mxu0 0.0
          %752 = vmatpush2.msra.mxu0 0.0
          %753 = vmatprep.subr.mxu0 0.0
          %754 = vmatpush2.msra.mxu0 0.0
          %755 = vmatprep.subr.mxu0 0.0
          %756 = vmatpush2.msra.mxu0 0.0
          %757 = vmatprep.subr.mxu0 0.0
          %758 = vmatpush2.msra.mxu0 0.0
          %759 = vmatprep.subr.mxu0 0.0
          %760 = vmatpush2.msra.mxu0 0.0
          %761 = vmatprep.subr.mxu0 0.0
          %762 = vmatpush2.msra.mxu0 0.0
          %763 = vmatprep.subr.mxu0 0.0
          %764 = vmatpush2.msra.mxu0 0.0
          %765 = vmatprep.subr.mxu0 0.0
          %766 = vmatpush2.msra.mxu0 0.0
          %767 = vmatprep.subr.mxu0 0.0
          %768 = vmatpush2.msra.mxu0 0.0
          %769 = vmatprep.subr.mxu0 0.0
          %770 = vmatpush2.msra.mxu0 0.0
          %771 = vmatprep.subr.mxu0 0.0
          %772 = vmatpush2.msra.mxu0 0.0
          %773 = vmatprep.subr.mxu0 0.0
          %774 = vmatpush2.msra.mxu0 0.0
          %775 = vmatprep.subr.mxu0 0.0
          %776 = vmatpush2.msra.mxu0 0.0
          %777 = vmatprep.subr.mxu0 0.0
          %778 = vmatpush2.msra.mxu0 0.0
          %779 = vmatprep.mubr.f32.mxu0 0.0
          %780 = vmatmul.mubr.f32.gmra.mxu0 %v713
          %v781 = vpop.f32.mrf.mxu0
          %v782 = vadd.f32 %v705, %v781
          %v783 = vpop.f32.mrf.mxu0
          %784 = vdwg.mxu0
          %785 = vmatprep.subr.mxu0 0.0
          %786 = vmatpush1.msra.mxu0 0.0
          %787 = vmatprep.subr.mxu0 0.0
          %788 = vmatpush1.msra.mxu0 0.0
          %789 = vmatprep.subr.mxu0 0.0
          %790 = vmatpush1.msra.mxu0 0.0
          %791 = vmatprep.subr.mxu0 0.0
          %792 = vmatpush1.msra.mxu0 0.0
          %793 = vmatprep.subr.mxu0 0.0
          %794 = vmatpush1.msra.mxu0 0.0
          %795 = vmatprep.subr.mxu0 0.0
          %796 = vmatpush1.msra.mxu0 0.0
          %797 = vmatprep.subr.mxu0 0.0
          %798 = vmatpush1.msra.mxu0 0.0
          %799 = vmatprep.subr.mxu0 0.0
          %800 = vmatpush1.msra.mxu0 0.0
          %801 = vmatprep.subr.mxu0 0.0
          %802 = vmatpush1.msra.mxu0 0.0
          %803 = vmatprep.subr.mxu0 0.0
          %804 = vmatpush1.msra.mxu0 0.0
          %805 = vmatprep.subr.mxu0 0.0
          %806 = vmatpush1.msra.mxu0 0.0
          %807 = vmatprep.subr.mxu0 0.0
          %808 = vmatpush1.msra.mxu0 0.0
          %809 = vmatprep.subr.mxu0 0.0
          %810 = vmatpush1.msra.mxu0 %v696
          %811 = vmatprep.subr.mxu0 0.0
          %812 = vmatpush1.msra.mxu0 %v695
          %813 = vmatprep.subr.mxu0 0.0
          %814 = vmatpush1.msra.mxu0 %v694
          %815 = vmatprep.subr.mxu0 0.0
          %816 = vmatpush1.msra.mxu0 %v693
          %817 = vmatprep.subr.mxu0 0.0
          %818 = vmatpush2.msra.mxu0 0.0
          %819 = vmatprep.subr.mxu0 0.0
          %820 = vmatpush2.msra.mxu0 0.0
          %821 = vmatprep.subr.mxu0 0.0
          %822 = vmatpush2.msra.mxu0 0.0
          %823 = vmatprep.subr.mxu0 0.0
          %824 = vmatpush2.msra.mxu0 0.0
          %825 = vmatprep.subr.mxu0 0.0
          %826 = vmatpush2.msra.mxu0 0.0
          %827 = vmatprep.subr.mxu0 0.0
          %828 = vmatpush2.msra.mxu0 0.0
          %829 = vmatprep.subr.mxu0 0.0
          %830 = vmatpush2.msra.mxu0 0.0
          %831 = vmatprep.subr.mxu0 0.0
          %832 = vmatpush2.msra.mxu0 0.0
          %833 = vmatprep.subr.mxu0 0.0
          %834 = vmatpush2.msra.mxu0 0.0
          %835 = vmatprep.subr.mxu0 0.0
          %836 = vmatpush2.msra.mxu0 0.0
          %837 = vmatprep.subr.mxu0 0.0
          %838 = vmatpush2.msra.mxu0 0.0
          %839 = vmatprep.subr.mxu0 0.0
          %840 = vmatpush2.msra.mxu0 0.0
          %841 = vmatprep.subr.mxu0 0.0
          %842 = vmatpush2.msra.mxu0 0.0
          %843 = vmatprep.subr.mxu0 0.0
          %844 = vmatpush2.msra.mxu0 0.0
          %845 = vmatprep.subr.mxu0 0.0
          %846 = vmatpush2.msra.mxu0 0.0
          %847 = vmatprep.subr.mxu0 0.0
          %848 = vmatpush2.msra.mxu0 0.0
          %849 = vmatprep.mubr.f32.mxu0 0.0
          %850 = vmatmul.mubr.f32.gmra.mxu0 %v713
          %v851 = vpop.f32.mrf.mxu0
          %v852 = vadd.f32 %v709, %v851
          %v853 = vpop.f32.mrf.mxu0
          %854 = vdwg.mxu0
          %855 = vst.msk [vmem:[#allocation4] sm:$0xff] %vm685, %v782
          %856 = vst.msk [vmem:[#allocation4 + $0x8] sm:$0xff] %vm685, %v852
        $region60: #{text_aware_transformer.2} parent=55 // pred_fallthru
          _
        %v857 = vld [vmem:[%s438] sm:$0xff]
        %vm858 = vcmask 261120
        %v859 = vsel %vm858, %v857, 0.0
        %860 = vadd.xlane.f32.xlu0 %v859
        %v861 = vpop.xlane.xlu0 %860
        %v862 = vrcp.pop 32.0
        %v863 = vmul.f32 %v861, %v862
        %v864 = vsub.f32 %v857, %v863
        %v865 = vmul.f32 %v864, %v864
        %v866 = vsel %vm858, %v865, 0.0
        %867 = vadd.xlane.f32.xlu0 %v866
        %v868 = vpop.xlane.xlu0 %867
        %v869 = vmul.f32 %v868, %v862
        %v870 = vadd.f32 %v869, 1e-08
        %v871 = vrsqrt.pop %v870
        %v872 = vmul.f32 %v864, %v871
        %v873 = vlaneseq
        %v874 = vshrl.u32 %v873, 7
        %v875 = vsub.s32 0, %v874
        %v876 = vrot.slane %v461, %v875
        %v877 = vmul.f32 %v872, %v876
        %v878 = vlaneseq
        %v879 = vshrl.u32 %v878, 7
        %v880 = vsub.s32 1, %v879
        %v881 = vrot.slane %v461, %v880
        %v882 = vadd.f32 %v877, %v881
        %v883 = vld [vmem:[%s5] sm:$0xff]
        %v884 = vld [vmem:[%s5 + $0x8] sm:$0xff]
        %v885 = vld [vmem:[%s5 + $0x10] sm:$0xff]
        %v886 = vld [vmem:[%s5 + $0x18] sm:$0xff]
        %v887 = vld [vmem:[%s5 + $0x20] sm:$0xff]
        %v888 = vld [vmem:[%s5 + $0x28] sm:$0xff]
        %v889 = vld [vmem:[%s5 + $0x30] sm:$0xff]
        %v890 = vld [vmem:[%s5 + $0x38] sm:$0xff]
        %v891 = vld [vmem:[%s6] sm:$0x1]
        %v892 = vld [vmem:[%s6 + $0x1] sm:$0x1]
        %v895 = vlaneseq
        %v896 = vshrl.u32 %v895, 7
        %v897 = vsub.s32 0, %v896
        %v898 = vrot.slane %v891, %v897
        %v899 = vlaneseq
        %v900 = vshrl.u32 %v899, 7
        %v901 = vsub.s32 0, %v900
        %v902 = vrot.slane %v892, %v901
        %v906 = vsel %vm858, %v882, 0
        %908 = vmatprep.subr.mxu0 0.0
        %909 = vmatpush1.msra.mxu0 0.0
        %910 = vmatprep.subr.mxu0 0.0
        %911 = vmatpush1.msra.mxu0 0.0
        %912 = vmatprep.subr.mxu0 0.0
        %913 = vmatpush1.msra.mxu0 0.0
        %914 = vmatprep.subr.mxu0 0.0
        %915 = vmatpush1.msra.mxu0 0.0
        %916 = vmatprep.subr.mxu0 0.0
        %917 = vmatpush1.msra.mxu0 0.0
        %918 = vmatprep.subr.mxu0 0.0
        %919 = vmatpush1.msra.mxu0 0.0
        %920 = vmatprep.subr.mxu0 0.0
        %921 = vmatpush1.msra.mxu0 0.0
        %922 = vmatprep.subr.mxu0 0.0
        %923 = vmatpush1.msra.mxu0 0.0
        %924 = vmatprep.subr.mxu0 0.0
        %925 = vmatpush1.msra.mxu0 0.0
        %926 = vmatprep.subr.mxu0 0.0
        %927 = vmatpush1.msra.mxu0 0.0
        %928 = vmatprep.subr.mxu0 0.0
        %929 = vmatpush1.msra.mxu0 0.0
        %930 = vmatprep.subr.mxu0 0.0
        %931 = vmatpush1.msra.mxu0 0.0
        %932 = vmatprep.subr.mxu0 0.0
        %933 = vmatpush1.msra.mxu0 %v886
        %934 = vmatprep.subr.mxu0 0.0
        %935 = vmatpush1.msra.mxu0 %v885
        %936 = vmatprep.subr.mxu0 0.0
        %937 = vmatpush1.msra.mxu0 %v884
        %938 = vmatprep.subr.mxu0 0.0
        %939 = vmatpush1.msra.mxu0 %v883
        %940 = vmatprep.subr.mxu0 0.0
        %941 = vmatpush2.msra.mxu0 0.0
        %942 = vmatprep.subr.mxu0 0.0
        %943 = vmatpush2.msra.mxu0 0.0
        %944 = vmatprep.subr.mxu0 0.0
        %945 = vmatpush2.msra.mxu0 0.0
        %946 = vmatprep.subr.mxu0 0.0
        %947 = vmatpush2.msra.mxu0 0.0
        %948 = vmatprep.subr.mxu0 0.0
        %949 = vmatpush2.msra.mxu0 0.0
        %950 = vmatprep.subr.mxu0 0.0
        %951 = vmatpush2.msra.mxu0 0.0
        %952 = vmatprep.subr.mxu0 0.0
        %953 = vmatpush2.msra.mxu0 0.0
        %954 = vmatprep.subr.mxu0 0.0
        %955 = vmatpush2.msra.mxu0 0.0
        %956 = vmatprep.subr.mxu0 0.0
        %957 = vmatpush2.msra.mxu0 0.0
        %958 = vmatprep.subr.mxu0 0.0
        %959 = vmatpush2.msra.mxu0 0.0
        %960 = vmatprep.subr.mxu0 0.0
        %961 = vmatpush2.msra.mxu0 0.0
        %962 = vmatprep.subr.mxu0 0.0
        %963 = vmatpush2.msra.mxu0 0.0
        %964 = vmatprep.subr.mxu0 0.0
        %965 = vmatpush2.msra.mxu0 0.0
        %966 = vmatprep.subr.mxu0 0.0
        %967 = vmatpush2.msra.mxu0 0.0
        %968 = vmatprep.subr.mxu0 0.0
        %969 = vmatpush2.msra.mxu0 0.0
        %970 = vmatprep.subr.mxu0 0.0
        %971 = vmatpush2.msra.mxu0 0.0
        %972 = vmatprep.mubr.f32.mxu0 0.0
        %973 = vmatmul.mubr.f32.gmra.mxu0 %v906
        %v974 = vpop.f32.mrf.mxu0
        %v975 = vadd.f32 %v898, %v974
        %v976 = vpop.f32.mrf.mxu0
        %977 = vdwg.mxu0
        %978 = vmatprep.subr.mxu0 0.0
        %979 = vmatpush1.msra.mxu0 0.0
        %980 = vmatprep.subr.mxu0 0.0
        %981 = vmatpush1.msra.mxu0 0.0
        %982 = vmatprep.subr.mxu0 0.0
        %983 = vmatpush1.msra.mxu0 0.0
        %984 = vmatprep.subr.mxu0 0.0
        %985 = vmatpush1.msra.mxu0 0.0
        %986 = vmatprep.subr.mxu0 0.0
        %987 = vmatpush1.msra.mxu0 0.0
        %988 = vmatprep.subr.mxu0 0.0
        %989 = vmatpush1.msra.mxu0 0.0
        %990 = vmatprep.subr.mxu0 0.0
        %991 = vmatpush1.msra.mxu0 0.0
        %992 = vmatprep.subr.mxu0 0.0
        %993 = vmatpush1.msra.mxu0 0.0
        %994 = vmatprep.subr.mxu0 0.0
        %995 = vmatpush1.msra.mxu0 0.0
        %996 = vmatprep.subr.mxu0 0.0
        %997 = vmatpush1.msra.mxu0 0.0
        %998 = vmatprep.subr.mxu0 0.0
        %999 = vmatpush1.msra.mxu0 0.0
        %1000 = vmatprep.subr.mxu0 0.0
        %1001 = vmatpush1.msra.mxu0 0.0
        %1002 = vmatprep.subr.mxu0 0.0
        %1003 = vmatpush1.msra.mxu0 %v890
        %1004 = vmatprep.subr.mxu0 0.0
        %1005 = vmatpush1.msra.mxu0 %v889
        %1006 = vmatprep.subr.mxu0 0.0
        %1007 = vmatpush1.msra.mxu0 %v888
        %1008 = vmatprep.subr.mxu0 0.0
        %1009 = vmatpush1.msra.mxu0 %v887
        %1010 = vmatprep.subr.mxu0 0.0
        %1011 = vmatpush2.msra.mxu0 0.0
        %1012 = vmatprep.subr.mxu0 0.0
        %1013 = vmatpush2.msra.mxu0 0.0
        %1014 = vmatprep.subr.mxu0 0.0
        %1015 = vmatpush2.msra.mxu0 0.0
        %1016 = vmatprep.subr.mxu0 0.0
        %1017 = vmatpush2.msra.mxu0 0.0
        %1018 = vmatprep.subr.mxu0 0.0
        %1019 = vmatpush2.msra.mxu0 0.0
        %1020 = vmatprep.subr.mxu0 0.0
        %1021 = vmatpush2.msra.mxu0 0.0
        %1022 = vmatprep.subr.mxu0 0.0
        %1023 = vmatpush2.msra.mxu0 0.0
        %1024 = vmatprep.subr.mxu0 0.0
        %1025 = vmatpush2.msra.mxu0 0.0
        %1026 = vmatprep.subr.mxu0 0.0
        %1027 = vmatpush2.msra.mxu0 0.0
        %1028 = vmatprep.subr.mxu0 0.0
        %1029 = vmatpush2.msra.mxu0 0.0
        %1030 = vmatprep.subr.mxu0 0.0
        %1031 = vmatpush2.msra.mxu0 0.0
        %1032 = vmatprep.subr.mxu0 0.0
        %1033 = vmatpush2.msra.mxu0 0.0
        %1034 = vmatprep.subr.mxu0 0.0
        %1035 = vmatpush2.msra.mxu0 0.0
        %1036 = vmatprep.subr.mxu0 0.0
        %1037 = vmatpush2.msra.mxu0 0.0
        %1038 = vmatprep.subr.mxu0 0.0
        %1039 = vmatpush2.msra.mxu0 0.0
        %1040 = vmatprep.subr.mxu0 0.0
        %1041 = vmatpush2.msra.mxu0 0.0
        %1042 = vmatprep.mubr.f32.mxu0 0.0
        %1043 = vmatmul.mubr.f32.gmra.mxu0 %v906
        %v1044 = vpop.f32.mrf.mxu0
        %v1045 = vadd.f32 %v902, %v1044
        %v1046 = vpop.f32.mrf.mxu0
        %1047 = vdwg.mxu0
        %v1048 = vmul.f32 %v975, 0.25
        %v1049 = vmul.f32 %v1045, 0.25
        %v1050 = vld [vmem:[#allocation3] sm:$0xff]
        %v1051 = vld [vmem:[#allocation3 + $0x8] sm:$0xff]
        %v1052 = vlaneseq
        %v1053 = vshrl.u32 %v1052, 7
        %s1054 = smul.u32 %s30, 8
        %v1055 = vstv %s1054
        %v1056 = vadd.s32 %v1053, %v1055
        %v1057 = vlaneseq
        %v1058 = vand.u32 %v1057, 127
        %vm1059 = vcmp.le.s32.totalorder %v1058, %v1056
        %v1060 = vsel %vm1059, 0.0, -inf
        %vm1061 = vcmask 130048
        %v1063 = vsel %vm1061, %v1048, 0
        %v1066 = vsel %vm1061, %v1050, 0
        %1068 = vmatprep.subr.mxu0 0.0
        %1069 = vmatpush1.xpose.msra.mxu0 0.0
        %1070 = vmatprep.subr.mxu0 0.0
        %1071 = vmatpush1.xpose.msra.mxu0 0.0
        %1072 = vmatprep.subr.mxu0 0.0
        %1073 = vmatpush1.xpose.msra.mxu0 0.0
        %1074 = vmatprep.subr.mxu0 0.0
        %1075 = vmatpush1.xpose.msra.mxu0 0.0
        %1076 = vmatprep.subr.mxu0 0.0
        %1077 = vmatpush1.xpose.msra.mxu0 0.0
        %1078 = vmatprep.subr.mxu0 0.0
        %1079 = vmatpush1.xpose.msra.mxu0 0.0
        %1080 = vmatprep.subr.mxu0 0.0
        %1081 = vmatpush1.xpose.msra.mxu0 0.0
        %1082 = vmatprep.subr.mxu0 0.0
        %1083 = vmatpush1.xpose.msra.mxu0 0.0
        %1084 = vmatprep.subr.mxu0 0.0
        %1085 = vmatpush1.xpose.msra.mxu0 0.0
        %1086 = vmatprep.subr.mxu0 0.0
        %1087 = vmatpush1.xpose.msra.mxu0 0.0
        %1088 = vmatprep.subr.mxu0 0.0
        %1089 = vmatpush1.xpose.msra.mxu0 0.0
        %1090 = vmatprep.subr.mxu0 0.0
        %1091 = vmatpush1.xpose.msra.mxu0 0.0
        %1092 = vmatprep.subr.mxu0 0.0
        %1093 = vmatpush1.xpose.msra.mxu0 0.0
        %1094 = vmatprep.subr.mxu0 0.0
        %1095 = vmatpush1.xpose.msra.mxu0 0.0
        %1096 = vmatprep.subr.mxu0 0.0
        %1097 = vmatpush1.xpose.msra.mxu0 0.0
        %1098 = vmatprep.subr.mxu0 0.0
        %1099 = vmatpush1.xpose.msra.mxu0 %v1066
        %1100 = vmatprep.subr.mxu0 0.0
        %1101 = vmatpush2.xpose.msra.mxu0 0.0
        %1102 = vmatprep.subr.mxu0 0.0
        %1103 = vmatpush2.xpose.msra.mxu0 0.0
        %1104 = vmatprep.subr.mxu0 0.0
        %1105 = vmatpush2.xpose.msra.mxu0 0.0
        %1106 = vmatprep.subr.mxu0 0.0
        %1107 = vmatpush2.xpose.msra.mxu0 0.0
        %1108 = vmatprep.subr.mxu0 0.0
        %1109 = vmatpush2.xpose.msra.mxu0 0.0
        %1110 = vmatprep.subr.mxu0 0.0
        %1111 = vmatpush2.xpose.msra.mxu0 0.0
        %1112 = vmatprep.subr.mxu0 0.0
        %1113 = vmatpush2.xpose.msra.mxu0 0.0
        %1114 = vmatprep.subr.mxu0 0.0
        %1115 = vmatpush2.xpose.msra.mxu0 0.0
        %1116 = vmatprep.subr.mxu0 0.0
        %1117 = vmatpush2.xpose.msra.mxu0 0.0
        %1118 = vmatprep.subr.mxu0 0.0
        %1119 = vmatpush2.xpose.msra.mxu0 0.0
        %1120 = vmatprep.subr.mxu0 0.0
        %1121 = vmatpush2.xpose.msra.mxu0 0.0
        %1122 = vmatprep.subr.mxu0 0.0
        %1123 = vmatpush2.xpose.msra.mxu0 0.0
        %1124 = vmatprep.subr.mxu0 0.0
        %1125 = vmatpush2.xpose.msra.mxu0 0.0
        %1126 = vmatprep.subr.mxu0 0.0
        %1127 = vmatpush2.xpose.msra.mxu0 0.0
        %1128 = vmatprep.subr.mxu0 0.0
        %1129 = vmatpush2.xpose.msra.mxu0 0.0
        %1130 = vmatprep.subr.mxu0 0.0
        %1131 = vmatpush2.xpose.msra.mxu0 0.0
        %1132 = vmatprep.mubr.f32.mxu0 0.0
        %1133 = vmatmul.mubr.f32.gmra.mxu0 %v1063
        %v1134 = vpop.f32.mrf.mxu0
        %v1135 = vadd.f32 %v1060, %v1134
        %v1136 = vpop.f32.mrf.mxu0
        %1137 = vdwg.mxu0
        %v1139 = vsel %vm1061, %v1049, 0
        %v1142 = vsel %vm1061, %v1051, 0
        %1144 = vmatprep.subr.mxu0 0.0
        %1145 = vmatpush1.xpose.msra.mxu0 0.0
        %1146 = vmatprep.subr.mxu0 0.0
        %1147 = vmatpush1.xpose.msra.mxu0 0.0
        %1148 = vmatprep.subr.mxu0 0.0
        %1149 = vmatpush1.xpose.msra.mxu0 0.0
        %1150 = vmatprep.subr.mxu0 0.0
        %1151 = vmatpush1.xpose.msra.mxu0 0.0
        %1152 = vmatprep.subr.mxu0 0.0
        %1153 = vmatpush1.xpose.msra.mxu0 0.0
        %1154 = vmatprep.subr.mxu0 0.0
        %1155 = vmatpush1.xpose.msra.mxu0 0.0
        %1156 = vmatprep.subr.mxu0 0.0
        %1157 = vmatpush1.xpose.msra.mxu0 0.0
        %1158 = vmatprep.subr.mxu0 0.0
        %1159 = vmatpush1.xpose.msra.mxu0 0.0
        %1160 = vmatprep.subr.mxu0 0.0
        %1161 = vmatpush1.xpose.msra.mxu0 0.0
        %1162 = vmatprep.subr.mxu0 0.0
        %1163 = vmatpush1.xpose.msra.mxu0 0.0
        %1164 = vmatprep.subr.mxu0 0.0
        %1165 = vmatpush1.xpose.msra.mxu0 0.0
        %1166 = vmatprep.subr.mxu0 0.0
        %1167 = vmatpush1.xpose.msra.mxu0 0.0
        %1168 = vmatprep.subr.mxu0 0.0
        %1169 = vmatpush1.xpose.msra.mxu0 0.0
        %1170 = vmatprep.subr.mxu0 0.0
        %1171 = vmatpush1.xpose.msra.mxu0 0.0
        %1172 = vmatprep.subr.mxu0 0.0
        %1173 = vmatpush1.xpose.msra.mxu0 0.0
        %1174 = vmatprep.subr.mxu0 0.0
        %1175 = vmatpush1.xpose.msra.mxu0 %v1142
        %1176 = vmatprep.subr.mxu0 0.0
        %1177 = vmatpush2.xpose.msra.mxu0 0.0
        %1178 = vmatprep.subr.mxu0 0.0
        %1179 = vmatpush2.xpose.msra.mxu0 0.0
        %1180 = vmatprep.subr.mxu0 0.0
        %1181 = vmatpush2.xpose.msra.mxu0 0.0
        %1182 = vmatprep.subr.mxu0 0.0
        %1183 = vmatpush2.xpose.msra.mxu0 0.0
        %1184 = vmatprep.subr.mxu0 0.0
        %1185 = vmatpush2.xpose.msra.mxu0 0.0
        %1186 = vmatprep.subr.mxu0 0.0
        %1187 = vmatpush2.xpose.msra.mxu0 0.0
        %1188 = vmatprep.subr.mxu0 0.0
        %1189 = vmatpush2.xpose.msra.mxu0 0.0
        %1190 = vmatprep.subr.mxu0 0.0
        %1191 = vmatpush2.xpose.msra.mxu0 0.0
        %1192 = vmatprep.subr.mxu0 0.0
        %1193 = vmatpush2.xpose.msra.mxu0 0.0
        %1194 = vmatprep.subr.mxu0 0.0
        %1195 = vmatpush2.xpose.msra.mxu0 0.0
        %1196 = vmatprep.subr.mxu0 0.0
        %1197 = vmatpush2.xpose.msra.mxu0 0.0
        %1198 = vmatprep.subr.mxu0 0.0
        %1199 = vmatpush2.xpose.msra.mxu0 0.0
        %1200 = vmatprep.subr.mxu0 0.0
        %1201 = vmatpush2.xpose.msra.mxu0 0.0
        %1202 = vmatprep.subr.mxu0 0.0
        %1203 = vmatpush2.xpose.msra.mxu0 0.0
        %1204 = vmatprep.subr.mxu0 0.0
        %1205 = vmatpush2.xpose.msra.mxu0 0.0
        %1206 = vmatprep.subr.mxu0 0.0
        %1207 = vmatpush2.xpose.msra.mxu0 0.0
        %1208 = vmatprep.mubr.f32.mxu0 0.0
        %1209 = vmatmul.mubr.f32.gmra.mxu0 %v1139
        %v1210 = vpop.f32.mrf.mxu0
        %v1211 = vadd.f32 %v1060, %v1210
        %v1212 = vpop.f32.mrf.mxu0
        %1213 = vdwg.mxu0
        %vm1214 = vcmask 64512
        %v1215 = vsel %vm1214, %v1135, -inf
        %1216 = vmax.xlane.f32.xlu0 %v1215
        %v1217 = vpop.xlane.xlu0 %1216
        %v1218 = vsel %vm1214, %v1211, -inf
        %1219 = vmax.xlane.f32.xlu0 %v1218
        %v1220 = vpop.xlane.xlu0 %1219
        %v1221 = vsub.f32 %v1135, %v1217
        %v1222 = vsub.f32 %v1211, %v1220
        %v1223 = vmul.f32 %v1221, 1.442695
        %v1224 = vpow.pop %v1223
        %v1225 = vmul.f32 %v1222, 1.442695
        %v1226 = vpow.pop %v1225
        %v1227 = vsel %vm1214, %v1224, 0.0
        %1228 = vadd.xlane.f32.xlu0 %v1227
        %v1229 = vpop.xlane.xlu0 %1228
        %v1230 = vsel %vm1214, %v1226, 0.0
        %1231 = vadd.xlane.f32.xlu0 %v1230
        %v1232 = vpop.xlane.xlu0 %1231
        %v1233 = vrcp.pop %v1229
        %v1234 = vmul.f32 %v1224, %v1233
        %v1235 = vrcp.pop %v1232
        %v1236 = vmul.f32 %v1226, %v1235
        %1237 = vst.msk [vmem:[%s431] sm:$0xff] %vm1214, %v1234
        %1238 = vst.msk [vmem:[%s431 + $0x8] sm:$0xff] %vm1214, %v1236
        %v1239 = vld [vmem:[#allocation4] sm:$0xff]
        %v1240 = vld [vmem:[#allocation4 + $0x8] sm:$0xff]
        %v1242 = vsel %vm1214, %v1234, 0
        %1244 = vmatprep.subr.mxu0 0.0
        %1245 = vmatpush1.msra.mxu0 0.0
        %1246 = vmatprep.subr.mxu0 0.0
        %1247 = vmatpush1.msra.mxu0 0.0
        %1248 = vmatprep.subr.mxu0 0.0
        %1249 = vmatpush1.msra.mxu0 0.0
        %1250 = vmatprep.subr.mxu0 0.0
        %1251 = vmatpush1.msra.mxu0 0.0
        %1252 = vmatprep.subr.mxu0 0.0
        %1253 = vmatpush1.msra.mxu0 0.0
        %1254 = vmatprep.subr.mxu0 0.0
        %1255 = vmatpush1.msra.mxu0 0.0
        %1256 = vmatprep.subr.mxu0 0.0
        %1257 = vmatpush1.msra.mxu0 0.0
        %1258 = vmatprep.subr.mxu0 0.0
        %1259 = vmatpush1.msra.mxu0 0.0
        %1260 = vmatprep.subr.mxu0 0.0
        %1261 = vmatpush1.msra.mxu0 0.0
        %1262 = vmatprep.subr.mxu0 0.0
        %1263 = vmatpush1.msra.mxu0 0.0
        %1264 = vmatprep.subr.mxu0 0.0
        %1265 = vmatpush1.msra.mxu0 0.0
        %1266 = vmatprep.subr.mxu0 0.0
        %1267 = vmatpush1.msra.mxu0 0.0
        %1268 = vmatprep.subr.mxu0 0.0
        %1269 = vmatpush1.msra.mxu0 0.0
        %1270 = vmatprep.subr.mxu0 0.0
        %1271 = vmatpush1.msra.mxu0 0.0
        %1272 = vmatprep.subr.mxu0 0.0
        %1273 = vmatpush1.msra.mxu0 0.0
        %1274 = vmatprep.subr.mxu0 0.0
        %1275 = vmatpush1.msra.mxu0 %v1239
        %1276 = vmatprep.subr.mxu0 0.0
        %1277 = vmatpush2.msra.mxu0 0.0
        %1278 = vmatprep.subr.mxu0 0.0
        %1279 = vmatpush2.msra.mxu0 0.0
        %1280 = vmatprep.subr.mxu0 0.0
        %1281 = vmatpush2.msra.mxu0 0.0
        %1282 = vmatprep.subr.mxu0 0.0
        %1283 = vmatpush2.msra.mxu0 0.0
        %1284 = vmatprep.subr.mxu0 0.0
        %1285 = vmatpush2.msra.mxu0 0.0
        %1286 = vmatprep.subr.mxu0 0.0
        %1287 = vmatpush2.msra.mxu0 0.0
        %1288 = vmatprep.subr.mxu0 0.0
        %1289 = vmatpush2.msra.mxu0 0.0
        %1290 = vmatprep.subr.mxu0 0.0
        %1291 = vmatpush2.msra.mxu0 0.0
        %1292 = vmatprep.subr.mxu0 0.0
        %1293 = vmatpush2.msra.mxu0 0.0
        %1294 = vmatprep.subr.mxu0 0.0
        %1295 = vmatpush2.msra.mxu0 0.0
        %1296 = vmatprep.subr.mxu0 0.0
        %1297 = vmatpush2.msra.mxu0 0.0
        %1298 = vmatprep.subr.mxu0 0.0
        %1299 = vmatpush2.msra.mxu0 0.0
        %1300 = vmatprep.subr.mxu0 0.0
        %1301 = vmatpush2.msra.mxu0 0.0
        %1302 = vmatprep.subr.mxu0 0.0
        %1303 = vmatpush2.msra.mxu0 0.0
        %1304 = vmatprep.subr.mxu0 0.0
        %1305 = vmatpush2.msra.mxu0 0.0
        %1306 = vmatprep.subr.mxu0 0.0
        %1307 = vmatpush2.msra.mxu0 0.0
        %1308 = vmatprep.mubr.f32.mxu0 0.0
        %1309 = vmatmul.mubr.f32.gmra.mxu0 %v1242
        %v1310 = vpop.f32.mrf.mxu0
        %v1311 = vadd.f32 0.0, %v1310
        %v1312 = vpop.f32.mrf.mxu0
        %1313 = vdwg.mxu0
        %v1315 = vsel %vm1214, %v1236, 0
        %1317 = vmatprep.subr.mxu0 0.0
        %1318 = vmatpush1.msra.mxu0 0.0
        %1319 = vmatprep.subr.mxu0 0.0
        %1320 = vmatpush1.msra.mxu0 0.0
        %1321 = vmatprep.subr.mxu0 0.0
        %1322 = vmatpush1.msra.mxu0 0.0
        %1323 = vmatprep.subr.mxu0 0.0
        %1324 = vmatpush1.msra.mxu0 0.0
        %1325 = vmatprep.subr.mxu0 0.0
        %1326 = vmatpush1.msra.mxu0 0.0
        %1327 = vmatprep.subr.mxu0 0.0
        %1328 = vmatpush1.msra.mxu0 0.0
        %1329 = vmatprep.subr.mxu0 0.0
        %1330 = vmatpush1.msra.mxu0 0.0
        %1331 = vmatprep.subr.mxu0 0.0
        %1332 = vmatpush1.msra.mxu0 0.0
        %1333 = vmatprep.subr.mxu0 0.0
        %1334 = vmatpush1.msra.mxu0 0.0
        %1335 = vmatprep.subr.mxu0 0.0
        %1336 = vmatpush1.msra.mxu0 0.0
        %1337 = vmatprep.subr.mxu0 0.0
        %1338 = vmatpush1.msra.mxu0 0.0
        %1339 = vmatprep.subr.mxu0 0.0
        %1340 = vmatpush1.msra.mxu0 0.0
        %1341 = vmatprep.subr.mxu0 0.0
        %1342 = vmatpush1.msra.mxu0 0.0
        %1343 = vmatprep.subr.mxu0 0.0
        %1344 = vmatpush1.msra.mxu0 0.0
        %1345 = vmatprep.subr.mxu0 0.0
        %1346 = vmatpush1.msra.mxu0 0.0
        %1347 = vmatprep.subr.mxu0 0.0
        %1348 = vmatpush1.msra.mxu0 %v1240
        %1349 = vmatprep.subr.mxu0 0.0
        %1350 = vmatpush2.msra.mxu0 0.0
        %1351 = vmatprep.subr.mxu0 0.0
        %1352 = vmatpush2.msra.mxu0 0.0
        %1353 = vmatprep.subr.mxu0 0.0
        %1354 = vmatpush2.msra.mxu0 0.0
        %1355 = vmatprep.subr.mxu0 0.0
        %1356 = vmatpush2.msra.mxu0 0.0
        %1357 = vmatprep.subr.mxu0 0.0
        %1358 = vmatpush2.msra.mxu0 0.0
        %1359 = vmatprep.subr.mxu0 0.0
        %1360 = vmatpush2.msra.mxu0 0.0
        %1361 = vmatprep.subr.mxu0 0.0
        %1362 = vmatpush2.msra.mxu0 0.0
        %1363 = vmatprep.subr.mxu0 0.0
        %1364 = vmatpush2.msra.mxu0 0.0
        %1365 = vmatprep.subr.mxu0 0.0
        %1366 = vmatpush2.msra.mxu0 0.0
        %1367 = vmatprep.subr.mxu0 0.0
        %1368 = vmatpush2.msra.mxu0 0.0
        %1369 = vmatprep.subr.mxu0 0.0
        %1370 = vmatpush2.msra.mxu0 0.0
        %1371 = vmatprep.subr.mxu0 0.0
        %1372 = vmatpush2.msra.mxu0 0.0
        %1373 = vmatprep.subr.mxu0 0.0
        %1374 = vmatpush2.msra.mxu0 0.0
        %1375 = vmatprep.subr.mxu0 0.0
        %1376 = vmatpush2.msra.mxu0 0.0
        %1377 = vmatprep.subr.mxu0 0.0
        %1378 = vmatpush2.msra.mxu0 0.0
        %1379 = vmatprep.subr.mxu0 0.0
        %1380 = vmatpush2.msra.mxu0 0.0
        %1381 = vmatprep.mubr.f32.mxu0 0.0
        %1382 = vmatmul.mubr.f32.gmra.mxu0 %v1315
        %v1383 = vpop.f32.mrf.mxu0
        %v1384 = vadd.f32 0.0, %v1383
        %v1385 = vpop.f32.mrf.mxu0
        %1386 = vdwg.mxu0
        %v1387 = vld [vmem:[%s7] sm:$0xff]
        %v1388 = vld [vmem:[%s7 + $0x8] sm:$0xff]
        %v1389 = vld [vmem:[%s7 + $0x10] sm:$0xff]
        %v1390 = vld [vmem:[%s7 + $0x18] sm:$0xff]
        %v1392 = vsel %vm1061, %v1311, 0
        %1394 = vmatprep.subr.mxu0 0.0
        %1395 = vmatpush1.msra.mxu0 0.0
        %1396 = vmatprep.subr.mxu0 0.0
        %1397 = vmatpush1.msra.mxu0 0.0
        %1398 = vmatprep.subr.mxu0 0.0
        %1399 = vmatpush1.msra.mxu0 0.0
        %1400 = vmatprep.subr.mxu0 0.0
        %1401 = vmatpush1.msra.mxu0 0.0
        %1402 = vmatprep.subr.mxu0 0.0
        %1403 = vmatpush1.msra.mxu0 0.0
        %1404 = vmatprep.subr.mxu0 0.0
        %1405 = vmatpush1.msra.mxu0 0.0
        %1406 = vmatprep.subr.mxu0 0.0
        %1407 = vmatpush1.msra.mxu0 0.0
        %1408 = vmatprep.subr.mxu0 0.0
        %1409 = vmatpush1.msra.mxu0 0.0
        %1410 = vmatprep.subr.mxu0 0.0
        %1411 = vmatpush1.msra.mxu0 0.0
        %1412 = vmatprep.subr.mxu0 0.0
        %1413 = vmatpush1.msra.mxu0 0.0
        %1414 = vmatprep.subr.mxu0 0.0
        %1415 = vmatpush1.msra.mxu0 0.0
        %1416 = vmatprep.subr.mxu0 0.0
        %1417 = vmatpush1.msra.mxu0 0.0
        %1418 = vmatprep.subr.mxu0 0.0
        %1419 = vmatpush1.msra.mxu0 0.0
        %1420 = vmatprep.subr.mxu0 0.0
        %1421 = vmatpush1.msra.mxu0 0.0
        %1422 = vmatprep.subr.mxu0 0.0
        %1423 = vmatpush1.msra.mxu0 %v1388
        %1424 = vmatprep.subr.mxu0 0.0
        %1425 = vmatpush1.msra.mxu0 %v1387
        %1426 = vmatprep.subr.mxu0 0.0
        %1427 = vmatpush2.msra.mxu0 0.0
        %1428 = vmatprep.subr.mxu0 0.0
        %1429 = vmatpush2.msra.mxu0 0.0
        %1430 = vmatprep.subr.mxu0 0.0
        %1431 = vmatpush2.msra.mxu0 0.0
        %1432 = vmatprep.subr.mxu0 0.0
        %1433 = vmatpush2.msra.mxu0 0.0
        %1434 = vmatprep.subr.mxu0 0.0
        %1435 = vmatpush2.msra.mxu0 0.0
        %1436 = vmatprep.subr.mxu0 0.0
        %1437 = vmatpush2.msra.mxu0 0.0
        %1438 = vmatprep.subr.mxu0 0.0
        %1439 = vmatpush2.msra.mxu0 0.0
        %1440 = vmatprep.subr.mxu0 0.0
        %1441 = vmatpush2.msra.mxu0 0.0
        %1442 = vmatprep.subr.mxu0 0.0
        %1443 = vmatpush2.msra.mxu0 0.0
        %1444 = vmatprep.subr.mxu0 0.0
        %1445 = vmatpush2.msra.mxu0 0.0
        %1446 = vmatprep.subr.mxu0 0.0
        %1447 = vmatpush2.msra.mxu0 0.0
        %1448 = vmatprep.subr.mxu0 0.0
        %1449 = vmatpush2.msra.mxu0 0.0
        %1450 = vmatprep.subr.mxu0 0.0
        %1451 = vmatpush2.msra.mxu0 0.0
        %1452 = vmatprep.subr.mxu0 0.0
        %1453 = vmatpush2.msra.mxu0 0.0
        %1454 = vmatprep.subr.mxu0 0.0
        %1455 = vmatpush2.msra.mxu0 0.0
        %1456 = vmatprep.subr.mxu0 0.0
        %1457 = vmatpush2.msra.mxu0 0.0
        %1458 = vmatprep.mubr.f32.mxu0 0.0
        %1459 = vmatmul.mubr.f32.gmra.mxu0 %v1392
        %v1460 = vpop.f32.mrf.mxu0
        %v1461 = vadd.f32 0.0, %v1460
        %v1462 = vpop.f32.mrf.mxu0
        %1463 = vdwg.mxu0
        %v1465 = vsel %vm1061, %v1384, 0
        %1467 = vmatprep.subr.mxu0 0.0
        %1468 = vmatpush1.msra.mxu0 0.0
        %1469 = vmatprep.subr.mxu0 0.0
        %1470 = vmatpush1.msra.mxu0 0.0
        %1471 = vmatprep.subr.mxu0 0.0
        %1472 = vmatpush1.msra.mxu0 0.0
        %1473 = vmatprep.subr.mxu0 0.0
        %1474 = vmatpush1.msra.mxu0 0.0
        %1475 = vmatprep.subr.mxu0 0.0
        %1476 = vmatpush1.msra.mxu0 0.0
        %1477 = vmatprep.subr.mxu0 0.0
        %1478 = vmatpush1.msra.mxu0 0.0
        %1479 = vmatprep.subr.mxu0 0.0
        %1480 = vmatpush1.msra.mxu0 0.0
        %1481 = vmatprep.subr.mxu0 0.0
        %1482 = vmatpush1.msra.mxu0 0.0
        %1483 = vmatprep.subr.mxu0 0.0
        %1484 = vmatpush1.msra.mxu0 0.0
        %1485 = vmatprep.subr.mxu0 0.0
        %1486 = vmatpush1.msra.mxu0 0.0
        %1487 = vmatprep.subr.mxu0 0.0
        %1488 = vmatpush1.msra.mxu0 0.0
        %1489 = vmatprep.subr.mxu0 0.0
        %1490 = vmatpush1.msra.mxu0 0.0
        %1491 = vmatprep.subr.mxu0 0.0
        %1492 = vmatpush1.msra.mxu0 0.0
        %1493 = vmatprep.subr.mxu0 0.0
        %1494 = vmatpush1.msra.mxu0 0.0
        %1495 = vmatprep.subr.mxu0 0.0
        %1496 = vmatpush1.msra.mxu0 %v1390
        %1497 = vmatprep.subr.mxu0 0.0
        %1498 = vmatpush1.msra.mxu0 %v1389
        %1499 = vmatprep.subr.mxu0 0.0
        %1500 = vmatpush2.msra.mxu0 0.0
        %1501 = vmatprep.subr.mxu0 0.0
        %1502 = vmatpush2.msra.mxu0 0.0
        %1503 = vmatprep.subr.mxu0 0.0
        %1504 = vmatpush2.msra.mxu0 0.0
        %1505 = vmatprep.subr.mxu0 0.0
        %1506 = vmatpush2.msra.mxu0 0.0
        %1507 = vmatprep.subr.mxu0 0.0
        %1508 = vmatpush2.msra.mxu0 0.0
        %1509 = vmatprep.subr.mxu0 0.0
        %1510 = vmatpush2.msra.mxu0 0.0
        %1511 = vmatprep.subr.mxu0 0.0
        %1512 = vmatpush2.msra.mxu0 0.0
        %1513 = vmatprep.subr.mxu0 0.0
        %1514 = vmatpush2.msra.mxu0 0.0
        %1515 = vmatprep.subr.mxu0 0.0
        %1516 = vmatpush2.msra.mxu0 0.0
        %1517 = vmatprep.subr.mxu0 0.0
        %1518 = vmatpush2.msra.mxu0 0.0
        %1519 = vmatprep.subr.mxu0 0.0
        %1520 = vmatpush2.msra.mxu0 0.0
        %1521 = vmatprep.subr.mxu0 0.0
        %1522 = vmatpush2.msra.mxu0 0.0
        %1523 = vmatprep.subr.mxu0 0.0
        %1524 = vmatpush2.msra.mxu0 0.0
        %1525 = vmatprep.subr.mxu0 0.0
        %1526 = vmatpush2.msra.mxu0 0.0
        %1527 = vmatprep.subr.mxu0 0.0
        %1528 = vmatpush2.msra.mxu0 0.0
        %1529 = vmatprep.subr.mxu0 0.0
        %1530 = vmatpush2.msra.mxu0 0.0
        %1531 = vmatprep.mubr.f32.mxu0 0.0
        %1532 = vmatmul.mubr.f32.gmra.mxu0 %v1465
        %v1533 = vpop.f32.mrf.mxu0
        %v1534 = vadd.f32 0.0, %v1533
        %v1535 = vpop.f32.mrf.mxu0
        %1536 = vdwg.mxu0
        %v1537 = vsel %vm858, %v1461, 0.0
        %v1538 = vsel %vm858, %v1534, 0.0
        %v1539 = vadd.f32 %v1537, %v1538
        %v1540 = vlaneseq
        %v1541 = vshrl.u32 %v1540, 7
        %v1542 = vsub.s32 0, %v1541
        %v1543 = vrot.slane %v462, %v1542
        %v1544 = vadd.f32 %v1539, %v1543
        %s1545 = scalar_lea.vmem [#allocation2], %s1054
        %v1546 = vld [vmem:[%s1545] sm:$0xff]
        %v1547 = vadd.f32 %v1544, %v1546
        %v1548 = vsel %vm858, %v1547, 0.0
        %1549 = vadd.xlane.f32.xlu0 %v1548
        %v1550 = vpop.xlane.xlu0 %1549
        %v1551 = vmul.f32 %v1550, %v862
        %v1552 = vsub.f32 %v1547, %v1551
        %v1553 = vmul.f32 %v1552, %v1552
        %v1554 = vsel %vm858, %v1553, 0.0
        %1555 = vadd.xlane.f32.xlu0 %v1554
        %v1556 = vpop.xlane.xlu0 %1555
        %v1557 = vmul.f32 %v1556, %v862
        %v1558 = vadd.f32 %v1557, 1e-08
        %v1559 = vrsqrt.pop %v1558
        %v1560 = vmul.f32 %v1552, %v1559
        %v1561 = vlaneseq
        %v1562 = vshrl.u32 %v1561, 7
        %v1563 = vsub.s32 6, %v1562
        %v1564 = vrot.slane %v461, %v1563
        %v1565 = vmul.f32 %v1560, %v1564
        %v1566 = vlaneseq
        %v1567 = vshrl.u32 %v1566, 7
        %v1568 = vsub.s32 7, %v1567
        %v1569 = vrot.slane %v461, %v1568
        %v1570 = vadd.f32 %v1565, %v1569
        %v1571 = vld [vmem:[%s8] sm:$0xff]
        %v1572 = vld [vmem:[%s8 + $0x8] sm:$0xff]
        %v1573 = vld [vmem:[%s8 + $0x10] sm:$0xff]
        %v1574 = vld [vmem:[%s8 + $0x18] sm:$0xff]
        %v1575 = vlaneseq
        %v1576 = vshrl.u32 %v1575, 7
        %v1577 = vsub.s32 1, %v1576
        %v1578 = vrot.slane %v462, %v1577
        %v1580 = vsel %vm858, %v1570, 0
        %1582 = vmatprep.subr.mxu0 0.0
        %1583 = vmatpush1.msra.mxu0 0.0
        %1584 = vmatprep.subr.mxu0 0.0
        %1585 = vmatpush1.msra.mxu0 0.0
        %1586 = vmatprep.subr.mxu0 0.0
        %1587 = vmatpush1.msra.mxu0 0.0
        %1588 = vmatprep.subr.mxu0 0.0
        %1589 = vmatpush1.msra.mxu0 0.0
        %1590 = vmatprep.subr.mxu0 0.0
        %1591 = vmatpush1.msra.mxu0 0.0
        %1592 = vmatprep.subr.mxu0 0.0
        %1593 = vmatpush1.msra.mxu0 0.0
        %1594 = vmatprep.subr.mxu0 0.0
        %1595 = vmatpush1.msra.mxu0 0.0
        %1596 = vmatprep.subr.mxu0 0.0
        %1597 = vmatpush1.msra.mxu0 0.0
        %1598 = vmatprep.subr.mxu0 0.0
        %1599 = vmatpush1.msra.mxu0 0.0
        %1600 = vmatprep.subr.mxu0 0.0
        %1601 = vmatpush1.msra.mxu0 0.0
        %1602 = vmatprep.subr.mxu0 0.0
        %1603 = vmatpush1.msra.mxu0 0.0
        %1604 = vmatprep.subr.mxu0 0.0
        %1605 = vmatpush1.msra.mxu0 0.0
        %1606 = vmatprep.subr.mxu0 0.0
        %1607 = vmatpush1.msra.mxu0 %v1574
        %1608 = vmatprep.subr.mxu0 0.0
        %1609 = vmatpush1.msra.mxu0 %v1573
        %1610 = vmatprep.subr.mxu0 0.0
        %1611 = vmatpush1.msra.mxu0 %v1572
        %1612 = vmatprep.subr.mxu0 0.0
        %1613 = vmatpush1.msra.mxu0 %v1571
        %1614 = vmatprep.subr.mxu0 0.0
        %1615 = vmatpush2.msra.mxu0 0.0
        %1616 = vmatprep.subr.mxu0 0.0
        %1617 = vmatpush2.msra.mxu0 0.0
        %1618 = vmatprep.subr.mxu0 0.0
        %1619 = vmatpush2.msra.mxu0 0.0
        %1620 = vmatprep.subr.mxu0 0.0
        %1621 = vmatpush2.msra.mxu0 0.0
        %1622 = vmatprep.subr.mxu0 0.0
        %1623 = vmatpush2.msra.mxu0 0.0
        %1624 = vmatprep.subr.mxu0 0.0
        %1625 = vmatpush2.msra.mxu0 0.0
        %1626 = vmatprep.subr.mxu0 0.0
        %1627 = vmatpush2.msra.mxu0 0.0
        %1628 = vmatprep.subr.mxu0 0.0
        %1629 = vmatpush2.msra.mxu0 0.0
        %1630 = vmatprep.subr.mxu0 0.0
        %1631 = vmatpush2.msra.mxu0 0.0
        %1632 = vmatprep.subr.mxu0 0.0
        %1633 = vmatpush2.msra.mxu0 0.0
        %1634 = vmatprep.subr.mxu0 0.0
        %1635 = vmatpush2.msra.mxu0 0.0
        %1636 = vmatprep.subr.mxu0 0.0
        %1637 = vmatpush2.msra.mxu0 0.0
        %1638 = vmatprep.subr.mxu0 0.0
        %1639 = vmatpush2.msra.mxu0 0.0
        %1640 = vmatprep.subr.mxu0 0.0
        %1641 = vmatpush2.msra.mxu0 0.0
        %1642 = vmatprep.subr.mxu0 0.0
        %1643 = vmatpush2.msra.mxu0 0.0
        %1644 = vmatprep.subr.mxu0 0.0
        %1645 = vmatpush2.msra.mxu0 0.0
        %1646 = vmatprep.mubr.f32.mxu0 0.0
        %1647 = vmatmul.mubr.f32.gmra.mxu0 %v1580
        %v1648 = vpop.f32.mrf.mxu0
        %v1649 = vadd.f32 %v1578, %v1648
        %v1650 = vpop.f32.mrf.mxu0
        %1651 = vdwg.mxu0
        %v1652 = vmax.f32 %v1649, 0.0
        %s1653 = scalar_lea.vmem %s8, 32
        %v1654 = vld [vmem:[%s1653] sm:$0xff]
        %v1655 = vld [vmem:[%s1653 + $0x8] sm:$0xff]
        %v1656 = vld [vmem:[%s1653 + $0x10] sm:$0xff]
        %v1657 = vld [vmem:[%s1653 + $0x18] sm:$0xff]
        %v1658 = vlaneseq
        %v1659 = vshrl.u32 %v1658, 7
        %v1660 = vsub.s32 2, %v1659
        %v1661 = vrot.slane %v462, %v1660
        %v1663 = vsel %vm858, %v1652, 0
        %1665 = vmatprep.subr.mxu0 0.0
        %1666 = vmatpush1.msra.mxu0 0.0
        %1667 = vmatprep.subr.mxu0 0.0
        %1668 = vmatpush1.msra.mxu0 0.0
        %1669 = vmatprep.subr.mxu0 0.0
        %1670 = vmatpush1.msra.mxu0 0.0
        %1671 = vmatprep.subr.mxu0 0.0
        %1672 = vmatpush1.msra.mxu0 0.0
        %1673 = vmatprep.subr.mxu0 0.0
        %1674 = vmatpush1.msra.mxu0 0.0
        %1675 = vmatprep.subr.mxu0 0.0
        %1676 = vmatpush1.msra.mxu0 0.0
        %1677 = vmatprep.subr.mxu0 0.0
        %1678 = vmatpush1.msra.mxu0 0.0
        %1679 = vmatprep.subr.mxu0 0.0
        %1680 = vmatpush1.msra.mxu0 0.0
        %1681 = vmatprep.subr.mxu0 0.0
        %1682 = vmatpush1.msra.mxu0 0.0
        %1683 = vmatprep.subr.mxu0 0.0
        %1684 = vmatpush1.msra.mxu0 0.0
        %1685 = vmatprep.subr.mxu0 0.0
        %1686 = vmatpush1.msra.mxu0 0.0
        %1687 = vmatprep.subr.mxu0 0.0
        %1688 = vmatpush1.msra.mxu0 0.0
        %1689 = vmatprep.subr.mxu0 0.0
        %1690 = vmatpush1.msra.mxu0 %v1657
        %1691 = vmatprep.subr.mxu0 0.0
        %1692 = vmatpush1.msra.mxu0 %v1656
        %1693 = vmatprep.subr.mxu0 0.0
        %1694 = vmatpush1.msra.mxu0 %v1655
        %1695 = vmatprep.subr.mxu0 0.0
        %1696 = vmatpush1.msra.mxu0 %v1654
        %1697 = vmatprep.subr.mxu0 0.0
        %1698 = vmatpush2.msra.mxu0 0.0
        %1699 = vmatprep.subr.mxu0 0.0
        %1700 = vmatpush2.msra.mxu0 0.0
        %1701 = vmatprep.subr.mxu0 0.0
        %1702 = vmatpush2.msra.mxu0 0.0
        %1703 = vmatprep.subr.mxu0 0.0
        %1704 = vmatpush2.msra.mxu0 0.0
        %1705 = vmatprep.subr.mxu0 0.0
        %1706 = vmatpush2.msra.mxu0 0.0
        %1707 = vmatprep.subr.mxu0 0.0
        %1708 = vmatpush2.msra.mxu0 0.0
        %1709 = vmatprep.subr.mxu0 0.0
        %1710 = vmatpush2.msra.mxu0 0.0
        %1711 = vmatprep.subr.mxu0 0.0
        %1712 = vmatpush2.msra.mxu0 0.0
        %1713 = vmatprep.subr.mxu0 0.0
        %1714 = vmatpush2.msra.mxu0 0.0
        %1715 = vmatprep.subr.mxu0 0.0
        %1716 = vmatpush2.msra.mxu0 0.0
        %1717 = vmatprep.subr.mxu0 0.0
        %1718 = vmatpush2.msra.mxu0 0.0
        %1719 = vmatprep.subr.mxu0 0.0
        %1720 = vmatpush2.msra.mxu0 0.0
        %1721 = vmatprep.subr.mxu0 0.0
        %1722 = vmatpush2.msra.mxu0 0.0
        %1723 = vmatprep.subr.mxu0 0.0
        %1724 = vmatpush2.msra.mxu0 0.0
        %1725 = vmatprep.subr.mxu0 0.0
        %1726 = vmatpush2.msra.mxu0 0.0
        %1727 = vmatprep.subr.mxu0 0.0
        %1728 = vmatpush2.msra.mxu0 0.0
        %1729 = vmatprep.mubr.f32.mxu0 0.0
        %1730 = vmatmul.mubr.f32.gmra.mxu0 %v1663
        %v1731 = vpop.f32.mrf.mxu0
        %v1732 = vadd.f32 %v1661, %v1731
        %v1733 = vpop.f32.mrf.mxu0
        %1734 = vdwg.mxu0
        %v1735 = vadd.f32 %v1732, %v1570
        %v1736 = vld [vmem:[%s453] sm:$0xff]
        %1738 = vset.pattern.permute.xlu0 0
        %1739 = vperm.xlu0 %1738, %v1736
        %v1740 = vpop.permute.xlu0 %1739
        %v1742 = vmul.f32 %v1735, %v1740
        %1743 = vst.msk [vmem:[%s460] sm:$0xff] %vm858, %v1742
        %p1744 = scmp.lt.s32.totalorder %s29, 1
        %s1745 = scalar_select %p1744, %s29, 1
        %p1746 = scmp.lt.s32.totalorder %s30, 0
        %s1747 = scalar_select %p1746, %s30, 0
        %s1748 = sadd.s32 %s1747, %s1745
        %s1749 = smul.addr %s1748, 8
        %s1750 = scalar_lea.vmem %s9, %s1749
        %s1751 = sand.u32 %s288, 1
        %s1752 = scalar_lea.sflag [#allocation6], %s1751
        %s1753 = sand.u32 %s288, 1
        %s1754 = smul.addr %s1753, 16
        %s1755 = scalar_lea.vmem [#allocation5], %s1754
        // Predicated region
        $region61: #{text_aware_transformer.2} parent=55 // pred_check
          %p1756 = pneg %p270
        $region62: #{text_aware_transformer.2} parent=55 // pred_check_branch
          %1758 = sbr.rel (%p1756) target = $region64
        $region63: #{text_aware_transformer.2} parent=55 // pred_region
          _
        $region64: #{text_aware_transformer.2} parent=55 // pred_fallthru
          _
        // Predicated region
        $region65: #{text_aware_transformer.2} parent=55 // pred_check
          %p1759 = pneg %p298
        $region66: #{text_aware_transformer.2} parent=55 // pred_check_branch
          %1761 = sbr.rel (%p1759) target = $region68
        $region67: #{text_aware_transformer.2} parent=55 // pred_region
          %s1763 = ssub.s32 256, 256
          %1764 = vsyncadd %s1752, %s1763
          %s1765 = smul.addr %s29, 2
          %s1766 = sadd.s32 %s30, %s1765
          %s1767 = smul.addr %s1766, 128
          %s1768 = scalar_lea.hbm %s10, %s1767
          %s1769 = sshll.u32 %s1755, 4
          %s1770 = int_to_ptr.vmem [resolvable:$true] %s1769
          %1775 = dma.vmem_to_hbm [thread:$0]  %s1770, 256, %s1768, %s1752, 128, 128, 8
        $region68: #{text_aware_transformer.2} parent=55 // pred_fallthru
          _
      $region56: #{text_aware_transformer.2} parent=5 // pred_fallthru
        _
      %p1776 = scmp.le.s32.totalorder 2, %s20
      // Predicated region
      $region69: #{text_aware_transformer.2} parent=5 // pred_check
        %p1777 = pneg %p1776
      $region70: #{text_aware_transformer.2} parent=5 // pred_check_branch
        %1779 = sbr.rel (%p1777) target = $region72
      $region71: #{text_aware_transformer.2} parent=5 // pred_region
        %s1780 = ssub.s32 %s20, 2
        // Predicated region
        $region73: #{text_aware_transformer.2} parent=71 // pred_check
          %p1781 = pneg %p276
        $region74: #{text_aware_transformer.2} parent=71 // pred_check_branch
          %1783 = sbr.rel (%p1781) target = $region76
        $region75: #{text_aware_transformer.2} parent=71 // pred_region
          %p1784 = scmp.lt.s32.totalorder %s31, 1
          %s1785 = scalar_select %p1784, %s31, 1
          %p1786 = scmp.lt.s32.totalorder %s32, 0
          %s1787 = scalar_select %p1786, %s32, 0
          %s1788 = sadd.s32 %s1787, %s1785
          %s1789 = smul.addr %s1788, 8
          %s1790 = scalar_lea.vmem %s9, %s1789
        $region76: #{text_aware_transformer.2} parent=71 // pred_fallthru
          _
        // Predicated region
        $region77: #{text_aware_transformer.2} parent=71 // pred_check
          %p1791 = pneg %p304
        $region78: #{text_aware_transformer.2} parent=71 // pred_check_branch
          %1793 = sbr.rel (%p1791) target = $region80
        $region79: #{text_aware_transformer.2} parent=71 // pred_region
          %s1794 = sand.u32 %s289, 1
          %s1795 = scalar_lea.sflag [#allocation6], %s1794
          %s1796 = sand.u32 %s289, 1
          %s1797 = smul.addr %s1796, 16
          %s1798 = scalar_lea.vmem [#allocation5], %s1797
          %1799 = dma.done %s1795, 256
        $region80: #{text_aware_transformer.2} parent=71 // pred_fallthru
          _
      $region72: #{text_aware_transformer.2} parent=5 // pred_fallthru
        _
    $region6: #{text_aware_transformer.2} parent=1 // loop_footer
      %s24 = sadd.s32 1, %s20
    $region7: #{text_aware_transformer.2} parent=1 // loop_footer_branch
      %19 = sbr.rel target = $region3
    $region8: #{text_aware_transformer.2} parent=1 // loop_exit
      _
    %1800 = vsyncpa [#allocation6], 1
    %s1801 = scalar_lea.sflag [#allocation6], 1
    %1802 = vsyncpa %s1801, 1

// kernel: text_aware_transformer.3
$region0: #{text_aware_transformer.3}
  #allocation0 [shape = 'u32[]', space=smem, size = 0x4, offset = 0x4, fixed_abs, tag = 'smem constant byte address 0x4 - core index']
  #allocation1 [shape = 'u32[144,128]{1,0:T(1,128)}', space=vmem, size = 0x12000, scoped, tag = 'internal scratch']
  #allocation2 [shape = 'f32[8,32]{1,0:T(8,128)}', space=vmem, size = 0x1000, scoped, tag = 'scratch operand']
  #allocation3 [shape = 'f32[2,8,16]{2,1,0:T(8,128)}', space=vmem, size = 0x2000, scoped, tag = 'scratch operand']
  #allocation4 [shape = 'f32[2,8,16]{2,1,0:T(8,128)}', space=vmem, size = 0x2000, scoped, tag = 'scratch operand']
  %s0 = inlined_call_operand.vmem [shape: f32[2,8,32], index: 0, kind: input, shape index: {}]
  %s1 = inlined_call_operand.vmem [shape: f32[2,8,32], index: 1, kind: input, shape index: {}]
  %s2 = inlined_call_operand.vmem [shape: f32[2,8,32], index: 2, kind: input, shape index: {}]
  %s3 = inlined_call_operand.vmem [shape: f32[2,8,1], index: 3, kind: input, shape index: {}]
  %s4 = inlined_call_operand.vmem [shape: f32[13,32], index: 4, kind: input, shape index: {}]
  %s5 = inlined_call_operand.vmem [shape: f32[3,2,32,16], index: 5, kind: input, shape index: {}]
  %s6 = inlined_call_operand.vmem [shape: f32[3,2,1,16], index: 6, kind: input, shape index: {}]
  %s7 = inlined_call_operand.vmem [shape: f32[2,16,32], index: 7, kind: input, shape index: {}]
  %s8 = inlined_call_operand.vmem [shape: f32[2,32,32], index: 8, kind: input, shape index: {}]
  %s9 = inlined_call_operand.hbm [shape: f32[2,8,32], index: 9, kind: output, shape index: {0}]
  %s10 = inlined_call_operand.hbm [shape: f32[2,2,8,8], index: 10, kind: output, shape index: {1}]
  %11 = xla_tuple %s9, %s10
  %s12 = sld [smem:[#allocation0]]
  $region81: #{text_aware_transformer.3} parent=0
    _
  %s14 = ssub.s32 1, %s12
  %s15 = scalar_select 0, %s14, %s12
  $region1: #{text_aware_transformer.3} parent=0
    #allocation5 [shape = 'u8[8192]{0}', space=vmem, size = 0x2000, scoped, tag = 'output window, operand 0']
    #allocation6 [shape = 's32[2]{0}', space=sflag, size = 0x8, scoped, tag = 'scoped memory for text_aware_transformer.3']
    #allocation7 [shape = 'u8[16384]{0}', space=vmem, size = 0x4000, scoped, tag = 'output window, operand 1']
    #allocation8 [shape = 's32[2]{0}', space=sflag, size = 0x8, scoped, tag = 'scoped memory for text_aware_transformer.3']
    %16 = vsyncpa [#allocation6], 0
    %s17 = scalar_lea.sflag [#allocation6], 1
    %18 = vsyncpa %s17, 0
    %19 = vsyncpa [#allocation8], 0
    %s20 = scalar_lea.sflag [#allocation8], 1
    %21 = vsyncpa %s20, 0
    loop: start=0, step=1, limit=4
    $region2: #{text_aware_transformer.3} parent=1 // loop_pre_header
      _
    $region3: #{text_aware_transformer.3} parent=1 // loop_header
      %s23 = sphi 0, %s27
      %p24 = scmp.ge.s32.totalorder %s23, 4
      %s30 = sphi 0, %s42
      %s31 = sphi 0, %s38
      %s32 = sphi 0, %s30
      %s33 = sphi 0, %s31
      %s34 = sphi 0, %s32
      %s35 = sphi 0, %s33
      %s47 = sphi 0, %s49
      %s50 = sphi 0, %s47
      %s51 = sphi 0, %s50
      %s67 = sphi 0, %s51
      %s73 = sphi 0, %s75
      %s76 = sphi 0, %s73
      %s77 = sphi 0, %s76
      %s93 = sphi 0, %s77
      %s99 = sphi 0, %s101
      %s102 = sphi 0, %s99
      %s103 = sphi 0, %s102
      %s119 = sphi 0, %s103
      %s127 = sphi 0, %s129
      %s130 = sphi 0, %s127
      %s131 = sphi 0, %s130
      %s147 = sphi 0, %s131
      %s151 = sphi 0, %s151
      %s153 = sphi 0, %s151
      %s154 = sphi 0, %s153
      %s168 = sphi 0, %s154
      %s172 = sphi 0, %s172
      %s174 = sphi 0, %s172
      %s175 = sphi 0, %s174
      %s189 = sphi 0, %s175
      %s193 = sphi 0, %s193
      %s195 = sphi 0, %s193
      %s196 = sphi 0, %s195
      %s210 = sphi 0, %s196
      %s214 = sphi 0, %s214
      %s216 = sphi 0, %s214
      %s217 = sphi 0, %s216
      %s231 = sphi 0, %s217
      %s235 = sphi 0, %s235
      %s237 = sphi 0, %s235
      %s238 = sphi 0, %s237
      %s252 = sphi 0, %s238
      %s260 = sphi 0, %s262
      %s263 = sphi 0, %s260
      %s264 = sphi 0, %s263
      %s280 = sphi 0, %s264
      %s288 = sphi 0, %s290
      %s291 = sphi 0, %s288
      %s292 = sphi 0, %s291
      %s308 = sphi 0, %s292
    $region4: #{text_aware_transformer.3} parent=1 // loop_header_branch
      %26 = sbr.rel (%p24) target = $region8
    $region5: #{text_aware_transformer.3} parent=1 // loop_body
      %s28 = ssub.s32 %s23, 1
      %s29 = ssub.s32 %s23, 2
      %s36 = sadd.s32 1, %s31
      %p37 = scmp.ge.s32.totalorder %s36, 1
      %s38 = scalar_select %p37, 0, %s36
      %s39 = sadd.s32 1, %s30
      %s40 = scalar_select %p37, %s39, %s30
      %p41 = scmp.ge.s32.totalorder %s40, 2
      %s42 = scalar_select %p41, 0, %s40
      %s43 = ssub.s32 %s30, %s42
      %s44 = ssub.s32 %s31, %s38
      %s45 = sor.u32 %s43, %s44
      %p46 = scmp.eq.s32.totalorder %s45, 0
      %s48 = sadd.s32 %s47, 1
      %s49 = scalar_select %p46, %s47, %s48
      %p52 = pneg %p46
      %p53 = scmp.eq.s32.totalorder %s23, 1
      %p54 = por %p52, %p53
      %p55 = scmp.ne.s32.totalorder %s47, %s50
      %p56 = scmp.eq.s32.totalorder %s23, 0
      %p57 = por %p55, %p56
      %p58 = scmp.ne.s32.totalorder %s47, %s50
      %p59 = scmp.eq.s32.totalorder %s28, 1
      %p60 = por %p58, %p59
      %p61 = scmp.ne.s32.totalorder %s50, %s51
      %p62 = scmp.eq.s32.totalorder %s28, 0
      %p63 = por %p61, %p62
      %p64 = scmp.ne.s32.totalorder %s50, %s51
      %p65 = scmp.eq.s32.totalorder %s29, 1
      %p66 = por %p64, %p65
      %p68 = scmp.ne.s32.totalorder %s51, %s67
      %p69 = scmp.eq.s32.totalorder %s29, 0
      %p70 = por %p68, %p69
      %s71 = ssub.s32 %s30, %s42
      %p72 = scmp.eq.s32.totalorder %s71, 0
      %s74 = sadd.s32 %s73, 1
      %s75 = scalar_select %p72, %s73, %s74
      %p78 = pneg %p72
      %p79 = scmp.eq.s32.totalorder %s23, 1
      %p80 = por %p78, %p79
      %p81 = scmp.ne.s32.totalorder %s73, %s76
      %p82 = scmp.eq.s32.totalorder %s23, 0
      %p83 = por %p81, %p82
      %p84 = scmp.ne.s32.totalorder %s73, %s76
      %p85 = scmp.eq.s32.totalorder %s28, 1
      %p86 = por %p84, %p85
      %p87 = scmp.ne.s32.totalorder %s76, %s77
      %p88 = scmp.eq.s32.totalorder %s28, 0
      %p89 = por %p87, %p88
      %p90 = scmp.ne.s32.totalorder %s76, %s77
      %p91 = scmp.eq.s32.totalorder %s29, 1
      %p92 = por %p90, %p91
      %p94 = scmp.ne.s32.totalorder %s77, %s93
      %p95 = scmp.eq.s32.totalorder %s29, 0
      %p96 = por %p94, %p95
      %s97 = ssub.s32 %s30, %s42
      %p98 = scmp.eq.s32.totalorder %s97, 0
      %s100 = sadd.s32 %s99, 1
      %s101 = scalar_select %p98, %s99, %s100
      %p104 = pneg %p98
      %p105 = scmp.eq.s32.totalorder %s23, 1
      %p106 = por %p104, %p105
      %p107 = scmp.ne.s32.totalorder %s99, %s102
      %p108 = scmp.eq.s32.totalorder %s23, 0
      %p109 = por %p107, %p108
      %p110 = scmp.ne.s32.totalorder %s99, %s102
      %p111 = scmp.eq.s32.totalorder %s28, 1
      %p112 = por %p110, %p111
      %p113 = scmp.ne.s32.totalorder %s102, %s103
      %p114 = scmp.eq.s32.totalorder %s28, 0
      %p115 = por %p113, %p114
      %p116 = scmp.ne.s32.totalorder %s102, %s103
      %p117 = scmp.eq.s32.totalorder %s29, 1
      %p118 = por %p116, %p117
      %p120 = scmp.ne.s32.totalorder %s103, %s119
      %p121 = scmp.eq.s32.totalorder %s29, 0
      %p122 = por %p120, %p121
      %s123 = ssub.s32 %s30, %s42
      %s124 = ssub.s32 %s31, %s38
      %s125 = sor.u32 %s123, %s124
      %p126 = scmp.eq.s32.totalorder %s125, 0
      %s128 = sadd.s32 %s127, 1
      %s129 = scalar_select %p126, %s127, %s128
      %p132 = pneg %p126
      %p133 = scmp.eq.s32.totalorder %s23, 1
      %p134 = por %p132, %p133
      %p135 = scmp.ne.s32.totalorder %s127, %s130
      %p136 = scmp.eq.s32.totalorder %s23, 0
      %p137 = por %p135, %p136
      %p138 = scmp.ne.s32.totalorder %s127, %s130
      %p139 = scmp.eq.s32.totalorder %s28, 1
      %p140 = por %p138, %p139
      %p141 = scmp.ne.s32.totalorder %s130, %s131
      %p142 = scmp.eq.s32.totalorder %s28, 0
      %p143 = por %p141, %p142
      %p144 = scmp.ne.s32.totalorder %s130, %s131
      %p145 = scmp.eq.s32.totalorder %s29, 1
      %p146 = por %p144, %p145
      %p148 = scmp.ne.s32.totalorder %s131, %s147
      %p149 = scmp.eq.s32.totalorder %s29, 0
      %p150 = por %p148, %p149
      %s152 = sadd.s32 %s151, 1
      %p155 = scmp.eq.s32.totalorder %s23, 1
      %p156 = scmp.ne.s32.totalorder %s151, %s153
      %p157 = scmp.eq.s32.totalorder %s23, 0
      %p158 = por %p156, %p157
      %p159 = scmp.ne.s32.totalorder %s151, %s153
      %p160 = scmp.eq.s32.totalorder %s28, 1
      %p161 = por %p159, %p160
      %p162 = scmp.ne.s32.totalorder %s153, %s154
      %p163 = scmp.eq.s32.totalorder %s28, 0
      %p164 = por %p162, %p163
      %p165 = scmp.ne.s32.totalorder %s153, %s154
      %p166 = scmp.eq.s32.totalorder %s29, 1
      %p167 = por %p165, %p166
      %p169 = scmp.ne.s32.totalorder %s154, %s168
      %p170 = scmp.eq.s32.totalorder %s29, 0
      %p171 = por %p169, %p170
      %s173 = sadd.s32 %s172, 1
      %p176 = scmp.eq.s32.totalorder %s23, 1
      %p177 = scmp.ne.s32.totalorder %s172, %s174
      %p178 = scmp.eq.s32.totalorder %s23, 0
      %p179 = por %p177, %p178
      %p180 = scmp.ne.s32.totalorder %s172, %s174
      %p181 = scmp.eq.s32.totalorder %s28, 1
      %p182 = por %p180, %p181
      %p183 = scmp.ne.s32.totalorder %s174, %s175
      %p184 = scmp.eq.s32.totalorder %s28, 0
      %p185 = por %p183, %p184
      %p186 = scmp.ne.s32.totalorder %s174, %s175
      %p187 = scmp.eq.s32.totalorder %s29, 1
      %p188 = por %p186, %p187
      %p190 = scmp.ne.s32.totalorder %s175, %s189
      %p191 = scmp.eq.s32.totalorder %s29, 0
      %p192 = por %p190, %p191
      %s194 = sadd.s32 %s193, 1
      %p197 = scmp.eq.s32.totalorder %s23, 1
      %p198 = scmp.ne.s32.totalorder %s193, %s195
      %p199 = scmp.eq.s32.totalorder %s23, 0
      %p200 = por %p198, %p199
      %p201 = scmp.ne.s32.totalorder %s193, %s195
      %p202 = scmp.eq.s32.totalorder %s28, 1
      %p203 = por %p201, %p202
      %p204 = scmp.ne.s32.totalorder %s195, %s196
      %p205 = scmp.eq.s32.totalorder %s28, 0
      %p206 = por %p204, %p205
      %p207 = scmp.ne.s32.totalorder %s195, %s196
      %p208 = scmp.eq.s32.totalorder %s29, 1
      %p209 = por %p207, %p208
      %p211 = scmp.ne.s32.totalorder %s196, %s210
      %p212 = scmp.eq.s32.totalorder %s29, 0
      %p213 = por %p211, %p212
      %s215 = sadd.s32 %s214, 1
      %p218 = scmp.eq.s32.totalorder %s23, 1
      %p219 = scmp.ne.s32.totalorder %s214, %s216
      %p220 = scmp.eq.s32.totalorder %s23, 0
      %p221 = por %p219, %p220
      %p222 = scmp.ne.s32.totalorder %s214, %s216
      %p223 = scmp.eq.s32.totalorder %s28, 1
      %p224 = por %p222, %p223
      %p225 = scmp.ne.s32.totalorder %s216, %s217
      %p226 = scmp.eq.s32.totalorder %s28, 0
      %p227 = por %p225, %p226
      %p228 = scmp.ne.s32.totalorder %s216, %s217
      %p229 = scmp.eq.s32.totalorder %s29, 1
      %p230 = por %p228, %p229
      %p232 = scmp.ne.s32.totalorder %s217, %s231
      %p233 = scmp.eq.s32.totalorder %s29, 0
      %p234 = por %p232, %p233
      %s236 = sadd.s32 %s235, 1
      %p239 = scmp.eq.s32.totalorder %s23, 1
      %p240 = scmp.ne.s32.totalorder %s235, %s237
      %p241 = scmp.eq.s32.totalorder %s23, 0
      %p242 = por %p240, %p241
      %p243 = scmp.ne.s32.totalorder %s235, %s237
      %p244 = scmp.eq.s32.totalorder %s28, 1
      %p245 = por %p243, %p244
      %p246 = scmp.ne.s32.totalorder %s237, %s238
      %p247 = scmp.eq.s32.totalorder %s28, 0
      %p248 = por %p246, %p247
      %p249 = scmp.ne.s32.totalorder %s237, %s238
      %p250 = scmp.eq.s32.totalorder %s29, 1
      %p251 = por %p249, %p250
      %p253 = scmp.ne.s32.totalorder %s238, %s252
      %p254 = scmp.eq.s32.totalorder %s29, 0
      %p255 = por %p253, %p254
      %s256 = ssub.s32 %s30, %s42
      %s257 = ssub.s32 %s31, %s38
      %s258 = sor.u32 %s256, %s257
      %p259 = scmp.eq.s32.totalorder %s258, 0
      %s261 = sadd.s32 %s260, 1
      %s262 = scalar_select %p259, %s260, %s261
      %p265 = pneg %p259
      %p266 = scmp.eq.s32.totalorder %s23, 1
      %p267 = por %p265, %p266
      %p268 = scmp.ne.s32.totalorder %s260, %s263
      %p269 = scmp.eq.s32.totalorder %s23, 0
      %p270 = por %p268, %p269
      %p271 = scmp.ne.s32.totalorder %s260, %s263
      %p272 = scmp.eq.s32.totalorder %s28, 1
      %p273 = por %p271, %p272
      %p274 = scmp.ne.s32.totalorder %s263, %s264
      %p275 = scmp.eq.s32.totalorder %s28, 0
      %p276 = por %p274, %p275
      %p277 = scmp.ne.s32.totalorder %s263, %s264
      %p278 = scmp.eq.s32.totalorder %s29, 1
      %p279 = por %p277, %p278
      %p281 = scmp.ne.s32.totalorder %s264, %s280
      %p282 = scmp.eq.s32.totalorder %s29, 0
      %p283 = por %p281, %p282
      %s284 = ssub.s32 %s30, %s42
      %s285 = ssub.s32 %s31, %s38
      %s286 = sor.u32 %s284, %s285
      %p287 = scmp.eq.s32.totalorder %s286, 0
      %s289 = sadd.s32 %s288, 1
      %s290 = scalar_select %p287, %s288, %s289
      %p293 = pneg %p287
      %p294 = scmp.eq.s32.totalorder %s23, 1
      %p295 = por %p293, %p294
      %p296 = scmp.ne.s32.totalorder %s288, %s291
      %p297 = scmp.eq.s32.totalorder %s23, 0
      %p298 = por %p296, %p297
      %p299 = scmp.ne.s32.totalorder %s288, %s291
      %p300 = scmp.eq.s32.totalorder %s28, 1
      %p301 = por %p299, %p300
      %p302 = scmp.ne.s32.totalorder %s291, %s292
      %p303 = scmp.eq.s32.totalorder %s28, 0
      %p304 = por %p302, %p303
      %p305 = scmp.ne.s32.totalorder %s291, %s292
      %p306 = scmp.eq.s32.totalorder %s29, 1
      %p307 = por %p305, %p306
      %p309 = scmp.ne.s32.totalorder %s292, %s308
      %p310 = scmp.eq.s32.totalorder %s29, 0
      %p311 = por %p309, %p310
      %p312 = scmp.le.s32.totalorder 1, %s23
      %p313 = scmp.lt.s32.totalorder %s23, 3
      %p314 = pnand %p312, %p313
      %p315 = pneg %p314
      // Predicated region
      $region9: #{text_aware_transformer.3} parent=5 // pred_check
        _
      $region10: #{text_aware_transformer.3} parent=5 // pred_check_branch
        %317 = sbr.rel (%p314) target = $region12
      $region11: #{text_aware_transformer.3} parent=5 // pred_region
        %s318 = ssub.s32 %s23, 1
        // Predicated region
        $region13: #{text_aware_transformer.3} parent=11 // pred_check
          %p319 = pneg %p164
        $region14: #{text_aware_transformer.3} parent=11 // pred_check_branch
          %321 = sbr.rel (%p319) target = $region16
        $region15: #{text_aware_transformer.3} parent=11 // pred_region
          _
        $region16: #{text_aware_transformer.3} parent=11 // pred_fallthru
          _
        // Predicated region
        $region17: #{text_aware_transformer.3} parent=11 // pred_check
          %p322 = pneg %p185
        $region18: #{text_aware_transformer.3} parent=11 // pred_check_branch
          %324 = sbr.rel (%p322) target = $region20
        $region19: #{text_aware_transformer.3} parent=11 // pred_region
          _
        $region20: #{text_aware_transformer.3} parent=11 // pred_fallthru
          _
        // Predicated region
        $region21: #{text_aware_transformer.3} parent=11 // pred_check
          %p325 = pneg %p206
        $region22: #{text_aware_transformer.3} parent=11 // pred_check_branch
          %327 = sbr.rel (%p325) target = $region24
        $region23: #{text_aware_transformer.3} parent=11 // pred_region
          _
        $region24: #{text_aware_transformer.3} parent=11 // pred_fallthru
          _
        // Predicated region
        $region25: #{text_aware_transformer.3} parent=11 // pred_check
          %p328 = pneg %p227
        $region26: #{text_aware_transformer.3} parent=11 // pred_check_branch
          %330 = sbr.rel (%p328) target = $region28
        $region27: #{text_aware_transformer.3} parent=11 // pred_region
          _
        $region28: #{text_aware_transformer.3} parent=11 // pred_fallthru
          _
        // Predicated region
        $region29: #{text_aware_transformer.3} parent=11 // pred_check
          %p331 = pneg %p248
        $region30: #{text_aware_transformer.3} parent=11 // pred_check_branch
          %333 = sbr.rel (%p331) target = $region32
        $region31: #{text_aware_transformer.3} parent=11 // pred_region
          _
        $region32: #{text_aware_transformer.3} parent=11 // pred_fallthru
          _
      $region12: #{text_aware_transformer.3} parent=5 // pred_fallthru
        _
      %p334 = scmp.lt.s32.totalorder %s23, 2
      // Predicated region
      $region33: #{text_aware_transformer.3} parent=5 // pred_check
        %p335 = pneg %p334
      $region34: #{text_aware_transformer.3} parent=5 // pred_check_branch
        %337 = sbr.rel (%p335) target = $region36
      $region35: #{text_aware_transformer.3} parent=5 // pred_region
        // Predicated region
        $region37: #{text_aware_transformer.3} parent=35 // pred_check
          %p338 = pneg %p57
        $region38: #{text_aware_transformer.3} parent=35 // pred_check_branch
          %340 = sbr.rel (%p338) target = $region40
        $region39: #{text_aware_transformer.3} parent=35 // pred_region
          %p341 = scmp.lt.s32.totalorder %s30, 1
          %s342 = scalar_select %p341, %s30, 1
          %p343 = scmp.lt.s32.totalorder %s31, 0
          %s344 = scalar_select %p343, %s31, 0
          %s345 = sadd.s32 %s344, %s342
          %s346 = smul.addr %s345, 8
          %s347 = scalar_lea.vmem %s0, %s346
        $region40: #{text_aware_transformer.3} parent=35 // pred_fallthru
          _
        // Predicated region
        $region41: #{text_aware_transformer.3} parent=35 // pred_check
          %p348 = pneg %p83
        $region42: #{text_aware_transformer.3} parent=35 // pred_check_branch
          %350 = sbr.rel (%p348) target = $region44
        $region43: #{text_aware_transformer.3} parent=35 // pred_region
          %p351 = scmp.lt.s32.totalorder %s30, 1
          %s352 = scalar_select %p351, %s30, 1
          %s353 = smul.addr %s352, 8
          %s354 = scalar_lea.vmem %s1, %s353
        $region44: #{text_aware_transformer.3} parent=35 // pred_fallthru
          _
        // Predicated region
        $region45: #{text_aware_transformer.3} parent=35 // pred_check
          %p355 = pneg %p109
        $region46: #{text_aware_transformer.3} parent=35 // pred_check_branch
          %357 = sbr.rel (%p355) target = $region48
        $region47: #{text_aware_transformer.3} parent=35 // pred_region
          %p358 = scmp.lt.s32.totalorder %s30, 1
          %s359 = scalar_select %p358, %s30, 1
          %s360 = smul.addr %s359, 8
          %s361 = scalar_lea.vmem %s2, %s360
        $region48: #{text_aware_transformer.3} parent=35 // pred_fallthru
          _
        // Predicated region
        $region49: #{text_aware_transformer.3} parent=35 // pred_check
          %p362 = pneg %p137
        $region50: #{text_aware_transformer.3} parent=35 // pred_check_branch
          %364 = sbr.rel (%p362) target = $region52
        $region51: #{text_aware_transformer.3} parent=35 // pred_region
          %p365 = scmp.lt.s32.totalorder %s30, 1
          %s366 = scalar_select %p365, %s30, 1
          %p367 = scmp.lt.s32.totalorder %s31, 0
          %s368 = scalar_select %p367, %s31, 0
          %s369 = sadd.s32 %s368, %s366
          %s370 = smul.addr %s369, 8
          %s371 = scalar_lea.vmem %s3, %s370
        $region52: #{text_aware_transformer.3} parent=35 // pred_fallthru
          _
      $region36: #{text_aware_transformer.3} parent=5 // pred_fallthru
        _
      %p372 = scmp.le.s32.totalorder 1, %s23
      %p373 = scmp.lt.s32.totalorder %s23, 3
      %p374 = pnand %p372, %p373
      %p375 = pneg %p374
      // Predicated region
      $region53: #{text_aware_transformer.3} parent=5 // pred_check
        _
      $region54: #{text_aware_transformer.3} parent=5 // pred_check_branch
        %377 = sbr.rel (%p374) target = $region56
      $region55: #{text_aware_transformer.3} parent=5 // pred_region
        %s378 = ssub.s32 %s23, 1
        %p379 = scmp.lt.s32.totalorder %s32, 1
        %s380 = scalar_select %p379, %s32, 1
        %p381 = scmp.lt.s32.totalorder %s33, 0
        %s382 = scalar_select %p381, %s33, 0
        %s383 = sadd.s32 %s382, %s380
        %s384 = smul.addr %s383, 8
        %s385 = scalar_lea.vmem %s0, %s384
        %p386 = pneg %p63
        %p387 = pneg %p60
        %p388 = scmp.lt.s32.totalorder %s32, 1
        %s389 = scalar_select %p388, %s32, 1
        %s390 = smul.addr %s389, 8
        %s391 = scalar_lea.vmem %s1, %s390
        %p392 = pneg %p89
        %p393 = pneg %p86
        %p394 = scmp.lt.s32.totalorder %s32, 1
        %s395 = scalar_select %p394, %s32, 1
        %s396 = smul.addr %s395, 8
        %s397 = scalar_lea.vmem %s2, %s396
        %p398 = pneg %p115
        %p399 = pneg %p112
        %p400 = scmp.lt.s32.totalorder %s32, 1
        %s401 = scalar_select %p400, %s32, 1
        %p402 = scmp.lt.s32.totalorder %s33, 0
        %s403 = scalar_select %p402, %s33, 0
        %s404 = sadd.s32 %s403, %s401
        %s405 = smul.addr %s404, 8
        %s406 = scalar_lea.vmem %s3, %s405
        %p407 = pneg %p143
        %p408 = pneg %p140
        %p409 = pneg %p164
        %p410 = pneg %p161
        %p411 = pneg %p185
        %p412 = pneg %p182
        %p413 = pneg %p206
        %p414 = pneg %p203
        %p415 = pneg %p227
        %p416 = pneg %p224
        %p417 = pneg %p248
        %p418 = pneg %p245
        %p419 = pneg %p276
        %p420 = pneg %p273
        %s421 = sand.u32 %s263, 1
        %s422 = scalar_lea.sflag [#allocation6], %s421
        %s423 = sand.u32 %s263, 1
        %s424 = smul.addr %s423, 8
        %s425 = scalar_lea.vmem [#allocation5], %s424
        %p426 = pneg %p304
        %p427 = pneg %p301
        %s428 = sand.u32 %s291, 1
        %s429 = scalar_lea.sflag [#allocation8], %s428
        %s430 = sand.u32 %s291, 1
        %s431 = smul.addr %s430, 16
        %s432 = scalar_lea.vmem [#allocation7], %s431
        %p433 = scmp.lt.s32.totalorder %s32, 1
        %s434 = scalar_select %p433, %s32, 1
        %p435 = scmp.lt.s32.totalorder %s33, 0
        %s436 = scalar_select %p435, %s33, 0
        %s437 = sadd.s32 %s436, %s434
        %s438 = smul.addr %s437, 8
        %s439 = scalar_lea.vmem %s0, %s438
        %p440 = scmp.lt.s32.totalorder %s32, 1
        %s441 = scalar_select %p440, %s32, 1
        %s442 = smul.addr %s441, 8
        %s443 = scalar_lea.vmem %s1, %s442
        %p444 = scmp.lt.s32.totalorder %s32, 1
        %s445 = scalar_select %p444, %s32, 1
        %s446 = smul.addr %s445, 8
        %s447 = scalar_lea.vmem %s2, %s446
        %p448 = scmp.lt.s32.totalorder %s32, 1
        %s449 = scalar_select %p448, %s32, 1
        %p450 = scmp.lt.s32.totalorder %s33, 0
        %s451 = scalar_select %p450, %s33, 0
        %s452 = sadd.s32 %s451, %s449
        %s453 = smul.addr %s452, 8
        %s454 = scalar_lea.vmem %s3, %s453
        %v455 = vld [vmem:[%s4] sm:$0xff]
        %v456 = vld [vmem:[%s4 + $0x8] sm:$0x1f]
        %p457 = scmp.eq.s32.totalorder %s33, 0
        // Predicated region
        $region57: #{text_aware_transformer.3} parent=55 // pred_check
          %p458 = pneg %p457
        $region58: #{text_aware_transformer.3} parent=55 // pred_check_branch
          %460 = sbr.rel (%p458) target = $region60
        $region59: #{text_aware_transformer.3} parent=55 // pred_region
          %v461 = vld [vmem:[%s443] sm:$0xff]
          %vm462 = vcmask 261120
          %v463 = vsel %vm462, %v461, 0.0
          %464 = vadd.xlane.f32.xlu0 %v463
          %v465 = vpop.xlane.xlu0 %464
          %v466 = vrcp.pop 32.0
          %v467 = vmul.f32 %v465, %v466
          %v468 = vsub.f32 %v461, %v467
          %v469 = vmul.f32 %v468, %v468
          %v470 = vsel %vm462, %v469, 0.0
          %471 = vadd.xlane.f32.xlu0 %v470
          %v472 = vpop.xlane.xlu0 %471
          %v473 = vmul.f32 %v472, %v466
          %v474 = vadd.f32 %v473, 1e-08
          %v475 = vrsqrt.pop %v474
          %v476 = vmul.f32 %v468, %v475
          %v477 = vlaneseq
          %v478 = vshrl.u32 %v477, 7
          %v479 = vsub.s32 2, %v478
          %v480 = vrot.slane %v455, %v479
          %v481 = vmul.f32 %v476, %v480
          %v482 = vlaneseq
          %v483 = vshrl.u32 %v482, 7
          %v484 = vsub.s32 3, %v483
          %v485 = vrot.slane %v455, %v484
          %v486 = vadd.f32 %v481, %v485
          %v487 = vld [vmem:[%s447] sm:$0xff]
          %v488 = vsel %vm462, %v487, 0.0
          %489 = vadd.xlane.f32.xlu0 %v488
          %v490 = vpop.xlane.xlu0 %489
          %v491 = vmul.f32 %v490, %v466
          %v492 = vsub.f32 %v487, %v491
          %v493 = vmul.f32 %v492, %v492
          %v494 = vsel %vm462, %v493, 0.0
          %495 = vadd.xlane.f32.xlu0 %v494
          %v496 = vpop.xlane.xlu0 %495
          %v497 = vmul.f32 %v496, %v466
          %v498 = vadd.f32 %v497, 1e-08
          %v499 = vrsqrt.pop %v498
          %v500 = vmul.f32 %v492, %v499
          %v501 = vlaneseq
          %v502 = vshrl.u32 %v501, 7
          %v503 = vsub.s32 4, %v502
          %v504 = vrot.slane %v455, %v503
          %v505 = vmul.f32 %v500, %v504
          %v506 = vlaneseq
          %v507 = vshrl.u32 %v506, 7
          %v508 = vsub.s32 5, %v507
          %v509 = vrot.slane %v455, %v508
          %v510 = vadd.f32 %v505, %v509
          %511 = vst.msk [vmem:[#allocation2] sm:$0xff] %vm462, %v486
          %s512 = scalar_lea.vmem %s5, 64
          %v513 = vld [vmem:[%s512] sm:$0xff]
          %v514 = vld [vmem:[%s512 + $0x8] sm:$0xff]
          %v515 = vld [vmem:[%s512 + $0x10] sm:$0xff]
          %v516 = vld [vmem:[%s512 + $0x18] sm:$0xff]
          %v517 = vld [vmem:[%s512 + $0x20] sm:$0xff]
          %v518 = vld [vmem:[%s512 + $0x28] sm:$0xff]
          %v519 = vld [vmem:[%s512 + $0x30] sm:$0xff]
          %v520 = vld [vmem:[%s512 + $0x38] sm:$0xff]
          %s521 = scalar_lea.vmem %s6, 2
          %v522 = vld [vmem:[%s521] sm:$0x1]
          %v523 = vld [vmem:[%s521 + $0x1] sm:$0x1]
          %v526 = vlaneseq
          %v527 = vshrl.u32 %v526, 7
          %v528 = vsub.s32 0, %v527
          %v529 = vrot.slane %v522, %v528
          %v530 = vlaneseq
          %v531 = vshrl.u32 %v530, 7
          %v532 = vsub.s32 0, %v531
          %v533 = vrot.slane %v523, %v532
          %v537 = vsel %vm462, %v486, 0
          %539 = vmatprep.subr.mxu0 0.0
          %540 = vmatpush1.msra.mxu0 0.0
          %541 = vmatprep.subr.mxu0 0.0
          %542 = vmatpush1.msra.mxu0 0.0
          %543 = vmatprep.subr.mxu0 0.0
          %544 = vmatpush1.msra.mxu0 0.0
          %545 = vmatprep.subr.mxu0 0.0
          %546 = vmatpush1.msra.mxu0 0.0
          %547 = vmatprep.subr.mxu0 0.0
          %548 = vmatpush1.msra.mxu0 0.0
          %549 = vmatprep.subr.mxu0 0.0
          %550 = vmatpush1.msra.mxu0 0.0
          %551 = vmatprep.subr.mxu0 0.0
          %552 = vmatpush1.msra.mxu0 0.0
          %553 = vmatprep.subr.mxu0 0.0
          %554 = vmatpush1.msra.mxu0 0.0
          %555 = vmatprep.subr.mxu0 0.0
          %556 = vmatpush1.msra.mxu0 0.0
          %557 = vmatprep.subr.mxu0 0.0
          %558 = vmatpush1.msra.mxu0 0.0
          %559 = vmatprep.subr.mxu0 0.0
          %560 = vmatpush1.msra.mxu0 0.0
          %561 = vmatprep.subr.mxu0 0.0
          %562 = vmatpush1.msra.mxu0 0.0
          %563 = vmatprep.subr.mxu0 0.0
          %564 = vmatpush1.msra.mxu0 %v516
          %565 = vmatprep.subr.mxu0 0.0
          %566 = vmatpush1.msra.mxu0 %v515
          %567 = vmatprep.subr.mxu0 0.0
          %568 = vmatpush1.msra.mxu0 %v514
          %569 = vmatprep.subr.mxu0 0.0
          %570 = vmatpush1.msra.mxu0 %v513
          %571 = vmatprep.subr.mxu0 0.0
          %572 = vmatpush2.msra.mxu0 0.0
          %573 = vmatprep.subr.mxu0 0.0
          %574 = vmatpush2.msra.mxu0 0.0
          %575 = vmatprep.subr.mxu0 0.0
          %576 = vmatpush2.msra.mxu0 0.0
          %577 = vmatprep.subr.mxu0 0.0
          %578 = vmatpush2.msra.mxu0 0.0
          %579 = vmatprep.subr.mxu0 0.0
          %580 = vmatpush2.msra.mxu0 0.0
          %581 = vmatprep.subr.mxu0 0.0
          %582 = vmatpush2.msra.mxu0 0.0
          %583 = vmatprep.subr.mxu0 0.0
          %584 = vmatpush2.msra.mxu0 0.0
          %585 = vmatprep.subr.mxu0 0.0
          %586 = vmatpush2.msra.mxu0 0.0
          %587 = vmatprep.subr.mxu0 0.0
          %588 = vmatpush2.msra.mxu0 0.0
          %589 = vmatprep.subr.mxu0 0.0
          %590 = vmatpush2.msra.mxu0 0.0
          %591 = vmatprep.subr.mxu0 0.0
          %592 = vmatpush2.msra.mxu0 0.0
          %593 = vmatprep.subr.mxu0 0.0
          %594 = vmatpush2.msra.mxu0 0.0
          %595 = vmatprep.subr.mxu0 0.0
          %596 = vmatpush2.msra.mxu0 0.0
          %597 = vmatprep.subr.mxu0 0.0
          %598 = vmatpush2.msra.mxu0 0.0
          %599 = vmatprep.subr.mxu0 0.0
          %600 = vmatpush2.msra.mxu0 0.0
          %601 = vmatprep.subr.mxu0 0.0
          %602 = vmatpush2.msra.mxu0 0.0
          %603 = vmatprep.mubr.f32.mxu0 0.0
          %604 = vmatmul.mubr.f32.gmra.mxu0 %v537
          %v605 = vpop.f32.mrf.mxu0
          %v606 = vadd.f32 %v529, %v605
          %v607 = vpop.f32.mrf.mxu0
          %608 = vdwg.mxu0
          %609 = vmatprep.subr.mxu0 0.0
          %610 = vmatpush1.msra.mxu0 0.0
          %611 = vmatprep.subr.mxu0 0.0
          %612 = vmatpush1.msra.mxu0 0.0
          %613 = vmatprep.subr.mxu0 0.0
          %614 = vmatpush1.msra.mxu0 0.0
          %615 = vmatprep.subr.mxu0 0.0
          %616 = vmatpush1.msra.mxu0 0.0
          %617 = vmatprep.subr.mxu0 0.0
          %618 = vmatpush1.msra.mxu0 0.0
          %619 = vmatprep.subr.mxu0 0.0
          %620 = vmatpush1.msra.mxu0 0.0
          %621 = vmatprep.subr.mxu0 0.0
          %622 = vmatpush1.msra.mxu0 0.0
          %623 = vmatprep.subr.mxu0 0.0
          %624 = vmatpush1.msra.mxu0 0.0
          %625 = vmatprep.subr.mxu0 0.0
          %626 = vmatpush1.msra.mxu0 0.0
          %627 = vmatprep.subr.mxu0 0.0
          %628 = vmatpush1.msra.mxu0 0.0
          %629 = vmatprep.subr.mxu0 0.0
          %630 = vmatpush1.msra.mxu0 0.0
          %631 = vmatprep.subr.mxu0 0.0
          %632 = vmatpush1.msra.mxu0 0.0
          %633 = vmatprep.subr.mxu0 0.0
          %634 = vmatpush1.msra.mxu0 %v520
          %635 = vmatprep.subr.mxu0 0.0
          %636 = vmatpush1.msra.mxu0 %v519
          %637 = vmatprep.subr.mxu0 0.0
          %638 = vmatpush1.msra.mxu0 %v518
          %639 = vmatprep.subr.mxu0 0.0
          %640 = vmatpush1.msra.mxu0 %v517
          %641 = vmatprep.subr.mxu0 0.0
          %642 = vmatpush2.msra.mxu0 0.0
          %643 = vmatprep.subr.mxu0 0.0
          %644 = vmatpush2.msra.mxu0 0.0
          %645 = vmatprep.subr.mxu0 0.0
          %646 = vmatpush2.msra.mxu0 0.0
          %647 = vmatprep.subr.mxu0 0.0
          %648 = vmatpush2.msra.mxu0 0.0
          %649 = vmatprep.subr.mxu0 0.0
          %650 = vmatpush2.msra.mxu0 0.0
          %651 = vmatprep.subr.mxu0 0.0
          %652 = vmatpush2.msra.mxu0 0.0
          %653 = vmatprep.subr.mxu0 0.0
          %654 = vmatpush2.msra.mxu0 0.0
          %655 = vmatprep.subr.mxu0 0.0
          %656 = vmatpush2.msra.mxu0 0.0
          %657 = vmatprep.subr.mxu0 0.0
          %658 = vmatpush2.msra.mxu0 0.0
          %659 = vmatprep.subr.mxu0 0.0
          %660 = vmatpush2.msra.mxu0 0.0
          %661 = vmatprep.subr.mxu0 0.0
          %662 = vmatpush2.msra.mxu0 0.0
          %663 = vmatprep.subr.mxu0 0.0
          %664 = vmatpush2.msra.mxu0 0.0
          %665 = vmatprep.subr.mxu0 0.0
          %666 = vmatpush2.msra.mxu0 0.0
          %667 = vmatprep.subr.mxu0 0.0
          %668 = vmatpush2.msra.mxu0 0.0
          %669 = vmatprep.subr.mxu0 0.0
          %670 = vmatpush2.msra.mxu0 0.0
          %671 = vmatprep.subr.mxu0 0.0
          %672 = vmatpush2.msra.mxu0 0.0
          %673 = vmatprep.mubr.f32.mxu0 0.0
          %674 = vmatmul.mubr.f32.gmra.mxu0 %v537
          %v675 = vpop.f32.mrf.mxu0
          %v676 = vadd.f32 %v533, %v675
          %v677 = vpop.f32.mrf.mxu0
          %678 = vdwg.mxu0
          %vm679 = vcmask 130048
          %680 = vst.msk [vmem:[#allocation3] sm:$0xff] %vm679, %v606
          %681 = vst.msk [vmem:[#allocation3 + $0x8] sm:$0xff] %vm679, %v676
          %s682 = scalar_lea.vmem %s5, 128
          %v683 = vld [vmem:[%s682] sm:$0xff]
          %v684 = vld [vmem:[%s682 + $0x8] sm:$0xff]
          %v685 = vld [vmem:[%s682 + $0x10] sm:$0xff]
          %v686 = vld [vmem:[%s682 + $0x18] sm:$0xff]
          %v687 = vld [vmem:[%s682 + $0x20] sm:$0xff]
          %v688 = vld [vmem:[%s682 + $0x28] sm:$0xff]
          %v689 = vld [vmem:[%s682 + $0x30] sm:$0xff]
          %v690 = vld [vmem:[%s682 + $0x38] sm:$0xff]
          %s691 = scalar_lea.vmem %s6, 4
          %v692 = vld [vmem:[%s691] sm:$0x1]
          %v693 = vld [vmem:[%s691 + $0x1] sm:$0x1]
          %v696 = vlaneseq
          %v697 = vshrl.u32 %v696, 7
          %v698 = vsub.s32 0, %v697
          %v699 = vrot.slane %v692, %v698
          %v700 = vlaneseq
          %v701 = vshrl.u32 %v700, 7
          %v702 = vsub.s32 0, %v701
          %v703 = vrot.slane %v693, %v702
          %v707 = vsel %vm462, %v510, 0
          %709 = vmatprep.subr.mxu0 0.0
          %710 = vmatpush1.msra.mxu0 0.0
          %711 = vmatprep.subr.mxu0 0.0
          %712 = vmatpush1.msra.mxu0 0.0
          %713 = vmatprep.subr.mxu0 0.0
          %714 = vmatpush1.msra.mxu0 0.0
          %715 = vmatprep.subr.mxu0 0.0
          %716 = vmatpush1.msra.mxu0 0.0
          %717 = vmatprep.subr.mxu0 0.0
          %718 = vmatpush1.msra.mxu0 0.0
          %719 = vmatprep.subr.mxu0 0.0
          %720 = vmatpush1.msra.mxu0 0.0
          %721 = vmatprep.subr.mxu0 0.0
          %722 = vmatpush1.msra.mxu0 0.0
          %723 = vmatprep.subr.mxu0 0.0
          %724 = vmatpush1.msra.mxu0 0.0
          %725 = vmatprep.subr.mxu0 0.0
          %726 = vmatpush1.msra.mxu0 0.0
          %727 = vmatprep.subr.mxu0 0.0
          %728 = vmatpush1.msra.mxu0 0.0
          %729 = vmatprep.subr.mxu0 0.0
          %730 = vmatpush1.msra.mxu0 0.0
          %731 = vmatprep.subr.mxu0 0.0
          %732 = vmatpush1.msra.mxu0 0.0
          %733 = vmatprep.subr.mxu0 0.0
          %734 = vmatpush1.msra.mxu0 %v686
          %735 = vmatprep.subr.mxu0 0.0
          %736 = vmatpush1.msra.mxu0 %v685
          %737 = vmatprep.subr.mxu0 0.0
          %738 = vmatpush1.msra.mxu0 %v684
          %739 = vmatprep.subr.mxu0 0.0
          %740 = vmatpush1.msra.mxu0 %v683
          %741 = vmatprep.subr.mxu0 0.0
          %742 = vmatpush2.msra.mxu0 0.0
          %743 = vmatprep.subr.mxu0 0.0
          %744 = vmatpush2.msra.mxu0 0.0
          %745 = vmatprep.subr.mxu0 0.0
          %746 = vmatpush2.msra.mxu0 0.0
          %747 = vmatprep.subr.mxu0 0.0
          %748 = vmatpush2.msra.mxu0 0.0
          %749 = vmatprep.subr.mxu0 0.0
          %750 = vmatpush2.msra.mxu0 0.0
          %751 = vmatprep.subr.mxu0 0.0
          %752 = vmatpush2.msra.mxu0 0.0
          %753 = vmatprep.subr.mxu0 0.0
          %754 = vmatpush2.msra.mxu0 0.0
          %755 = vmatprep.subr.mxu0 0.0
          %756 = vmatpush2.msra.mxu0 0.0
          %757 = vmatprep.subr.mxu0 0.0
          %758 = vmatpush2.msra.mxu0 0.0
          %759 = vmatprep.subr.mxu0 0.0
          %760 = vmatpush2.msra.mxu0 0.0
          %761 = vmatprep.subr.mxu0 0.0
          %762 = vmatpush2.msra.mxu0 0.0
          %763 = vmatprep.subr.mxu0 0.0
          %764 = vmatpush2.msra.mxu0 0.0
          %765 = vmatprep.subr.mxu0 0.0
          %766 = vmatpush2.msra.mxu0 0.0
          %767 = vmatprep.subr.mxu0 0.0
          %768 = vmatpush2.msra.mxu0 0.0
          %769 = vmatprep.subr.mxu0 0.0
          %770 = vmatpush2.msra.mxu0 0.0
          %771 = vmatprep.subr.mxu0 0.0
          %772 = vmatpush2.msra.mxu0 0.0
          %773 = vmatprep.mubr.f32.mxu0 0.0
          %774 = vmatmul.mubr.f32.gmra.mxu0 %v707
          %v775 = vpop.f32.mrf.mxu0
          %v776 = vadd.f32 %v699, %v775
          %v777 = vpop.f32.mrf.mxu0
          %778 = vdwg.mxu0
          %779 = vmatprep.subr.mxu0 0.0
          %780 = vmatpush1.msra.mxu0 0.0
          %781 = vmatprep.subr.mxu0 0.0
          %782 = vmatpush1.msra.mxu0 0.0
          %783 = vmatprep.subr.mxu0 0.0
          %784 = vmatpush1.msra.mxu0 0.0
          %785 = vmatprep.subr.mxu0 0.0
          %786 = vmatpush1.msra.mxu0 0.0
          %787 = vmatprep.subr.mxu0 0.0
          %788 = vmatpush1.msra.mxu0 0.0
          %789 = vmatprep.subr.mxu0 0.0
          %790 = vmatpush1.msra.mxu0 0.0
          %791 = vmatprep.subr.mxu0 0.0
          %792 = vmatpush1.msra.mxu0 0.0
          %793 = vmatprep.subr.mxu0 0.0
          %794 = vmatpush1.msra.mxu0 0.0
          %795 = vmatprep.subr.mxu0 0.0
          %796 = vmatpush1.msra.mxu0 0.0
          %797 = vmatprep.subr.mxu0 0.0
          %798 = vmatpush1.msra.mxu0 0.0
          %799 = vmatprep.subr.mxu0 0.0
          %800 = vmatpush1.msra.mxu0 0.0
          %801 = vmatprep.subr.mxu0 0.0
          %802 = vmatpush1.msra.mxu0 0.0
          %803 = vmatprep.subr.mxu0 0.0
          %804 = vmatpush1.msra.mxu0 %v690
          %805 = vmatprep.subr.mxu0 0.0
          %806 = vmatpush1.msra.mxu0 %v689
          %807 = vmatprep.subr.mxu0 0.0
          %808 = vmatpush1.msra.mxu0 %v688
          %809 = vmatprep.subr.mxu0 0.0
          %810 = vmatpush1.msra.mxu0 %v687
          %811 = vmatprep.subr.mxu0 0.0
          %812 = vmatpush2.msra.mxu0 0.0
          %813 = vmatprep.subr.mxu0 0.0
          %814 = vmatpush2.msra.mxu0 0.0
          %815 = vmatprep.subr.mxu0 0.0
          %816 = vmatpush2.msra.mxu0 0.0
          %817 = vmatprep.subr.mxu0 0.0
          %818 = vmatpush2.msra.mxu0 0.0
          %819 = vmatprep.subr.mxu0 0.0
          %820 = vmatpush2.msra.mxu0 0.0
          %821 = vmatprep.subr.mxu0 0.0
          %822 = vmatpush2.msra.mxu0 0.0
          %823 = vmatprep.subr.mxu0 0.0
          %824 = vmatpush2.msra.mxu0 0.0
          %825 = vmatprep.subr.mxu0 0.0
          %826 = vmatpush2.msra.mxu0 0.0
          %827 = vmatprep.subr.mxu0 0.0
          %828 = vmatpush2.msra.mxu0 0.0
          %829 = vmatprep.subr.mxu0 0.0
          %830 = vmatpush2.msra.mxu0 0.0
          %831 = vmatprep.subr.mxu0 0.0
          %832 = vmatpush2.msra.mxu0 0.0
          %833 = vmatprep.subr.mxu0 0.0
          %834 = vmatpush2.msra.mxu0 0.0
          %835 = vmatprep.subr.mxu0 0.0
          %836 = vmatpush2.msra.mxu0 0.0
          %837 = vmatprep.subr.mxu0 0.0
          %838 = vmatpush2.msra.mxu0 0.0
          %839 = vmatprep.subr.mxu0 0.0
          %840 = vmatpush2.msra.mxu0 0.0
          %841 = vmatprep.subr.mxu0 0.0
          %842 = vmatpush2.msra.mxu0 0.0
          %843 = vmatprep.mubr.f32.mxu0 0.0
          %844 = vmatmul.mubr.f32.gmra.mxu0 %v707
          %v845 = vpop.f32.mrf.mxu0
          %v846 = vadd.f32 %v703, %v845
          %v847 = vpop.f32.mrf.mxu0
          %848 = vdwg.mxu0
          %849 = vst.msk [vmem:[#allocation4] sm:$0xff] %vm679, %v776
          %850 = vst.msk [vmem:[#allocation4 + $0x8] sm:$0xff] %vm679, %v846
        $region60: #{text_aware_transformer.3} parent=55 // pred_fallthru
          _
        %v851 = vld [vmem:[%s439] sm:$0xff]
        %vm852 = vcmask 261120
        %v853 = vsel %vm852, %v851, 0.0
        %854 = vadd.xlane.f32.xlu0 %v853
        %v855 = vpop.xlane.xlu0 %854
        %v856 = vrcp.pop 32.0
        %v857 = vmul.f32 %v855, %v856
        %v858 = vsub.f32 %v851, %v857
        %v859 = vmul.f32 %v858, %v858
        %v860 = vsel %vm852, %v859, 0.0
        %861 = vadd.xlane.f32.xlu0 %v860
        %v862 = vpop.xlane.xlu0 %861
        %v863 = vmul.f32 %v862, %v856
        %v864 = vadd.f32 %v863, 1e-08
        %v865 = vrsqrt.pop %v864
        %v866 = vmul.f32 %v858, %v865
        %v867 = vlaneseq
        %v868 = vshrl.u32 %v867, 7
        %v869 = vsub.s32 0, %v868
        %v870 = vrot.slane %v455, %v869
        %v871 = vmul.f32 %v866, %v870
        %v872 = vlaneseq
        %v873 = vshrl.u32 %v872, 7
        %v874 = vsub.s32 1, %v873
        %v875 = vrot.slane %v455, %v874
        %v876 = vadd.f32 %v871, %v875
        %v877 = vld [vmem:[%s5] sm:$0xff]
        %v878 = vld [vmem:[%s5 + $0x8] sm:$0xff]
        %v879 = vld [vmem:[%s5 + $0x10] sm:$0xff]
        %v880 = vld [vmem:[%s5 + $0x18] sm:$0xff]
        %v881 = vld [vmem:[%s5 + $0x20] sm:$0xff]
        %v882 = vld [vmem:[%s5 + $0x28] sm:$0xff]
        %v883 = vld [vmem:[%s5 + $0x30] sm:$0xff]
        %v884 = vld [vmem:[%s5 + $0x38] sm:$0xff]
        %v885 = vld [vmem:[%s6] sm:$0x1]
        %v886 = vld [vmem:[%s6 + $0x1] sm:$0x1]
        %v889 = vlaneseq
        %v890 = vshrl.u32 %v889, 7
        %v891 = vsub.s32 0, %v890
        %v892 = vrot.slane %v885, %v891
        %v893 = vlaneseq
        %v894 = vshrl.u32 %v893, 7
        %v895 = vsub.s32 0, %v894
        %v896 = vrot.slane %v886, %v895
        %v900 = vsel %vm852, %v876, 0
        %902 = vmatprep.subr.mxu0 0.0
        %903 = vmatpush1.msra.mxu0 0.0
        %904 = vmatprep.subr.mxu0 0.0
        %905 = vmatpush1.msra.mxu0 0.0
        %906 = vmatprep.subr.mxu0 0.0
        %907 = vmatpush1.msra.mxu0 0.0
        %908 = vmatprep.subr.mxu0 0.0
        %909 = vmatpush1.msra.mxu0 0.0
        %910 = vmatprep.subr.mxu0 0.0
        %911 = vmatpush1.msra.mxu0 0.0
        %912 = vmatprep.subr.mxu0 0.0
        %913 = vmatpush1.msra.mxu0 0.0
        %914 = vmatprep.subr.mxu0 0.0
        %915 = vmatpush1.msra.mxu0 0.0
        %916 = vmatprep.subr.mxu0 0.0
        %917 = vmatpush1.msra.mxu0 0.0
        %918 = vmatprep.subr.mxu0 0.0
        %919 = vmatpush1.msra.mxu0 0.0
        %920 = vmatprep.subr.mxu0 0.0
        %921 = vmatpush1.msra.mxu0 0.0
        %922 = vmatprep.subr.mxu0 0.0
        %923 = vmatpush1.msra.mxu0 0.0
        %924 = vmatprep.subr.mxu0 0.0
        %925 = vmatpush1.msra.mxu0 0.0
        %926 = vmatprep.subr.mxu0 0.0
        %927 = vmatpush1.msra.mxu0 %v880
        %928 = vmatprep.subr.mxu0 0.0
        %929 = vmatpush1.msra.mxu0 %v879
        %930 = vmatprep.subr.mxu0 0.0
        %931 = vmatpush1.msra.mxu0 %v878
        %932 = vmatprep.subr.mxu0 0.0
        %933 = vmatpush1.msra.mxu0 %v877
        %934 = vmatprep.subr.mxu0 0.0
        %935 = vmatpush2.msra.mxu0 0.0
        %936 = vmatprep.subr.mxu0 0.0
        %937 = vmatpush2.msra.mxu0 0.0
        %938 = vmatprep.subr.mxu0 0.0
        %939 = vmatpush2.msra.mxu0 0.0
        %940 = vmatprep.subr.mxu0 0.0
        %941 = vmatpush2.msra.mxu0 0.0
        %942 = vmatprep.subr.mxu0 0.0
        %943 = vmatpush2.msra.mxu0 0.0
        %944 = vmatprep.subr.mxu0 0.0
        %945 = vmatpush2.msra.mxu0 0.0
        %946 = vmatprep.subr.mxu0 0.0
        %947 = vmatpush2.msra.mxu0 0.0
        %948 = vmatprep.subr.mxu0 0.0
        %949 = vmatpush2.msra.mxu0 0.0
        %950 = vmatprep.subr.mxu0 0.0
        %951 = vmatpush2.msra.mxu0 0.0
        %952 = vmatprep.subr.mxu0 0.0
        %953 = vmatpush2.msra.mxu0 0.0
        %954 = vmatprep.subr.mxu0 0.0
        %955 = vmatpush2.msra.mxu0 0.0
        %956 = vmatprep.subr.mxu0 0.0
        %957 = vmatpush2.msra.mxu0 0.0
        %958 = vmatprep.subr.mxu0 0.0
        %959 = vmatpush2.msra.mxu0 0.0
        %960 = vmatprep.subr.mxu0 0.0
        %961 = vmatpush2.msra.mxu0 0.0
        %962 = vmatprep.subr.mxu0 0.0
        %963 = vmatpush2.msra.mxu0 0.0
        %964 = vmatprep.subr.mxu0 0.0
        %965 = vmatpush2.msra.mxu0 0.0
        %966 = vmatprep.mubr.f32.mxu0 0.0
        %967 = vmatmul.mubr.f32.gmra.mxu0 %v900
        %v968 = vpop.f32.mrf.mxu0
        %v969 = vadd.f32 %v892, %v968
        %v970 = vpop.f32.mrf.mxu0
        %971 = vdwg.mxu0
        %972 = vmatprep.subr.mxu0 0.0
        %973 = vmatpush1.msra.mxu0 0.0
        %974 = vmatprep.subr.mxu0 0.0
        %975 = vmatpush1.msra.mxu0 0.0
        %976 = vmatprep.subr.mxu0 0.0
        %977 = vmatpush1.msra.mxu0 0.0
        %978 = vmatprep.subr.mxu0 0.0
        %979 = vmatpush1.msra.mxu0 0.0
        %980 = vmatprep.subr.mxu0 0.0
        %981 = vmatpush1.msra.mxu0 0.0
        %982 = vmatprep.subr.mxu0 0.0
        %983 = vmatpush1.msra.mxu0 0.0
        %984 = vmatprep.subr.mxu0 0.0
        %985 = vmatpush1.msra.mxu0 0.0
        %986 = vmatprep.subr.mxu0 0.0
        %987 = vmatpush1.msra.mxu0 0.0
        %988 = vmatprep.subr.mxu0 0.0
        %989 = vmatpush1.msra.mxu0 0.0
        %990 = vmatprep.subr.mxu0 0.0
        %991 = vmatpush1.msra.mxu0 0.0
        %992 = vmatprep.subr.mxu0 0.0
        %993 = vmatpush1.msra.mxu0 0.0
        %994 = vmatprep.subr.mxu0 0.0
        %995 = vmatpush1.msra.mxu0 0.0
        %996 = vmatprep.subr.mxu0 0.0
        %997 = vmatpush1.msra.mxu0 %v884
        %998 = vmatprep.subr.mxu0 0.0
        %999 = vmatpush1.msra.mxu0 %v883
        %1000 = vmatprep.subr.mxu0 0.0
        %1001 = vmatpush1.msra.mxu0 %v882
        %1002 = vmatprep.subr.mxu0 0.0
        %1003 = vmatpush1.msra.mxu0 %v881
        %1004 = vmatprep.subr.mxu0 0.0
        %1005 = vmatpush2.msra.mxu0 0.0
        %1006 = vmatprep.subr.mxu0 0.0
        %1007 = vmatpush2.msra.mxu0 0.0
        %1008 = vmatprep.subr.mxu0 0.0
        %1009 = vmatpush2.msra.mxu0 0.0
        %1010 = vmatprep.subr.mxu0 0.0
        %1011 = vmatpush2.msra.mxu0 0.0
        %1012 = vmatprep.subr.mxu0 0.0
        %1013 = vmatpush2.msra.mxu0 0.0
        %1014 = vmatprep.subr.mxu0 0.0
        %1015 = vmatpush2.msra.mxu0 0.0
        %1016 = vmatprep.subr.mxu0 0.0
        %1017 = vmatpush2.msra.mxu0 0.0
        %1018 = vmatprep.subr.mxu0 0.0
        %1019 = vmatpush2.msra.mxu0 0.0
        %1020 = vmatprep.subr.mxu0 0.0
        %1021 = vmatpush2.msra.mxu0 0.0
        %1022 = vmatprep.subr.mxu0 0.0
        %1023 = vmatpush2.msra.mxu0 0.0
        %1024 = vmatprep.subr.mxu0 0.0
        %1025 = vmatpush2.msra.mxu0 0.0
        %1026 = vmatprep.subr.mxu0 0.0
        %1027 = vmatpush2.msra.mxu0 0.0
        %1028 = vmatprep.subr.mxu0 0.0
        %1029 = vmatpush2.msra.mxu0 0.0
        %1030 = vmatprep.subr.mxu0 0.0
        %1031 = vmatpush2.msra.mxu0 0.0
        %1032 = vmatprep.subr.mxu0 0.0
        %1033 = vmatpush2.msra.mxu0 0.0
        %1034 = vmatprep.subr.mxu0 0.0
        %1035 = vmatpush2.msra.mxu0 0.0
        %1036 = vmatprep.mubr.f32.mxu0 0.0
        %1037 = vmatmul.mubr.f32.gmra.mxu0 %v900
        %v1038 = vpop.f32.mrf.mxu0
        %v1039 = vadd.f32 %v896, %v1038
        %v1040 = vpop.f32.mrf.mxu0
        %1041 = vdwg.mxu0
        %v1042 = vmul.f32 %v969, 0.25
        %v1043 = vmul.f32 %v1039, 0.25
        %v1044 = vld [vmem:[#allocation3] sm:$0xff]
        %v1045 = vld [vmem:[#allocation3 + $0x8] sm:$0xff]
        %v1046 = vlaneseq
        %v1047 = vshrl.u32 %v1046, 7
        %s1048 = smul.u32 %s33, 8
        %v1049 = vstv %s1048
        %v1050 = vadd.s32 %v1047, %v1049
        %v1051 = vlaneseq
        %v1052 = vand.u32 %v1051, 127
        %vm1053 = vcmp.le.s32.totalorder %v1052, %v1050
        %v1054 = vsel %vm1053, 0.0, -inf
        %vm1055 = vcmask 130048
        %v1057 = vsel %vm1055, %v1042, 0
        %v1060 = vsel %vm1055, %v1044, 0
        %1062 = vmatprep.subr.mxu0 0.0
        %1063 = vmatpush1.xpose.msra.mxu0 0.0
        %1064 = vmatprep.subr.mxu0 0.0
        %1065 = vmatpush1.xpose.msra.mxu0 0.0
        %1066 = vmatprep.subr.mxu0 0.0
        %1067 = vmatpush1.xpose.msra.mxu0 0.0
        %1068 = vmatprep.subr.mxu0 0.0
        %1069 = vmatpush1.xpose.msra.mxu0 0.0
        %1070 = vmatprep.subr.mxu0 0.0
        %1071 = vmatpush1.xpose.msra.mxu0 0.0
        %1072 = vmatprep.subr.mxu0 0.0
        %1073 = vmatpush1.xpose.msra.mxu0 0.0
        %1074 = vmatprep.subr.mxu0 0.0
        %1075 = vmatpush1.xpose.msra.mxu0 0.0
        %1076 = vmatprep.subr.mxu0 0.0
        %1077 = vmatpush1.xpose.msra.mxu0 0.0
        %1078 = vmatprep.subr.mxu0 0.0
        %1079 = vmatpush1.xpose.msra.mxu0 0.0
        %1080 = vmatprep.subr.mxu0 0.0
        %1081 = vmatpush1.xpose.msra.mxu0 0.0
        %1082 = vmatprep.subr.mxu0 0.0
        %1083 = vmatpush1.xpose.msra.mxu0 0.0
        %1084 = vmatprep.subr.mxu0 0.0
        %1085 = vmatpush1.xpose.msra.mxu0 0.0
        %1086 = vmatprep.subr.mxu0 0.0
        %1087 = vmatpush1.xpose.msra.mxu0 0.0
        %1088 = vmatprep.subr.mxu0 0.0
        %1089 = vmatpush1.xpose.msra.mxu0 0.0
        %1090 = vmatprep.subr.mxu0 0.0
        %1091 = vmatpush1.xpose.msra.mxu0 0.0
        %1092 = vmatprep.subr.mxu0 0.0
        %1093 = vmatpush1.xpose.msra.mxu0 %v1060
        %1094 = vmatprep.subr.mxu0 0.0
        %1095 = vmatpush2.xpose.msra.mxu0 0.0
        %1096 = vmatprep.subr.mxu0 0.0
        %1097 = vmatpush2.xpose.msra.mxu0 0.0
        %1098 = vmatprep.subr.mxu0 0.0
        %1099 = vmatpush2.xpose.msra.mxu0 0.0
        %1100 = vmatprep.subr.mxu0 0.0
        %1101 = vmatpush2.xpose.msra.mxu0 0.0
        %1102 = vmatprep.subr.mxu0 0.0
        %1103 = vmatpush2.xpose.msra.mxu0 0.0
        %1104 = vmatprep.subr.mxu0 0.0
        %1105 = vmatpush2.xpose.msra.mxu0 0.0
        %1106 = vmatprep.subr.mxu0 0.0
        %1107 = vmatpush2.xpose.msra.mxu0 0.0
        %1108 = vmatprep.subr.mxu0 0.0
        %1109 = vmatpush2.xpose.msra.mxu0 0.0
        %1110 = vmatprep.subr.mxu0 0.0
        %1111 = vmatpush2.xpose.msra.mxu0 0.0
        %1112 = vmatprep.subr.mxu0 0.0
        %1113 = vmatpush2.xpose.msra.mxu0 0.0
        %1114 = vmatprep.subr.mxu0 0.0
        %1115 = vmatpush2.xpose.msra.mxu0 0.0
        %1116 = vmatprep.subr.mxu0 0.0
        %1117 = vmatpush2.xpose.msra.mxu0 0.0
        %1118 = vmatprep.subr.mxu0 0.0
        %1119 = vmatpush2.xpose.msra.mxu0 0.0
        %1120 = vmatprep.subr.mxu0 0.0
        %1121 = vmatpush2.xpose.msra.mxu0 0.0
        %1122 = vmatprep.subr.mxu0 0.0
        %1123 = vmatpush2.xpose.msra.mxu0 0.0
        %1124 = vmatprep.subr.mxu0 0.0
        %1125 = vmatpush2.xpose.msra.mxu0 0.0
        %1126 = vmatprep.mubr.f32.mxu0 0.0
        %1127 = vmatmul.mubr.f32.gmra.mxu0 %v1057
        %v1128 = vpop.f32.mrf.mxu0
        %v1129 = vadd.f32 %v1054, %v1128
        %v1130 = vpop.f32.mrf.mxu0
        %1131 = vdwg.mxu0
        %v1133 = vsel %vm1055, %v1043, 0
        %v1136 = vsel %vm1055, %v1045, 0
        %1138 = vmatprep.subr.mxu0 0.0
        %1139 = vmatpush1.xpose.msra.mxu0 0.0
        %1140 = vmatprep.subr.mxu0 0.0
        %1141 = vmatpush1.xpose.msra.mxu0 0.0
        %1142 = vmatprep.subr.mxu0 0.0
        %1143 = vmatpush1.xpose.msra.mxu0 0.0
        %1144 = vmatprep.subr.mxu0 0.0
        %1145 = vmatpush1.xpose.msra.mxu0 0.0
        %1146 = vmatprep.subr.mxu0 0.0
        %1147 = vmatpush1.xpose.msra.mxu0 0.0
        %1148 = vmatprep.subr.mxu0 0.0
        %1149 = vmatpush1.xpose.msra.mxu0 0.0
        %1150 = vmatprep.subr.mxu0 0.0
        %1151 = vmatpush1.xpose.msra.mxu0 0.0
        %1152 = vmatprep.subr.mxu0 0.0
        %1153 = vmatpush1.xpose.msra.mxu0 0.0
        %1154 = vmatprep.subr.mxu0 0.0
        %1155 = vmatpush1.xpose.msra.mxu0 0.0
        %1156 = vmatprep.subr.mxu0 0.0
        %1157 = vmatpush1.xpose.msra.mxu0 0.0
        %1158 = vmatprep.subr.mxu0 0.0
        %1159 = vmatpush1.xpose.msra.mxu0 0.0
        %1160 = vmatprep.subr.mxu0 0.0
        %1161 = vmatpush1.xpose.msra.mxu0 0.0
        %1162 = vmatprep.subr.mxu0 0.0
        %1163 = vmatpush1.xpose.msra.mxu0 0.0
        %1164 = vmatprep.subr.mxu0 0.0
        %1165 = vmatpush1.xpose.msra.mxu0 0.0
        %1166 = vmatprep.subr.mxu0 0.0
        %1167 = vmatpush1.xpose.msra.mxu0 0.0
        %1168 = vmatprep.subr.mxu0 0.0
        %1169 = vmatpush1.xpose.msra.mxu0 %v1136
        %1170 = vmatprep.subr.mxu0 0.0
        %1171 = vmatpush2.xpose.msra.mxu0 0.0
        %1172 = vmatprep.subr.mxu0 0.0
        %1173 = vmatpush2.xpose.msra.mxu0 0.0
        %1174 = vmatprep.subr.mxu0 0.0
        %1175 = vmatpush2.xpose.msra.mxu0 0.0
        %1176 = vmatprep.subr.mxu0 0.0
        %1177 = vmatpush2.xpose.msra.mxu0 0.0
        %1178 = vmatprep.subr.mxu0 0.0
        %1179 = vmatpush2.xpose.msra.mxu0 0.0
        %1180 = vmatprep.subr.mxu0 0.0
        %1181 = vmatpush2.xpose.msra.mxu0 0.0
        %1182 = vmatprep.subr.mxu0 0.0
        %1183 = vmatpush2.xpose.msra.mxu0 0.0
        %1184 = vmatprep.subr.mxu0 0.0
        %1185 = vmatpush2.xpose.msra.mxu0 0.0
        %1186 = vmatprep.subr.mxu0 0.0
        %1187 = vmatpush2.xpose.msra.mxu0 0.0
        %1188 = vmatprep.subr.mxu0 0.0
        %1189 = vmatpush2.xpose.msra.mxu0 0.0
        %1190 = vmatprep.subr.mxu0 0.0
        %1191 = vmatpush2.xpose.msra.mxu0 0.0
        %1192 = vmatprep.subr.mxu0 0.0
        %1193 = vmatpush2.xpose.msra.mxu0 0.0
        %1194 = vmatprep.subr.mxu0 0.0
        %1195 = vmatpush2.xpose.msra.mxu0 0.0
        %1196 = vmatprep.subr.mxu0 0.0
        %1197 = vmatpush2.xpose.msra.mxu0 0.0
        %1198 = vmatprep.subr.mxu0 0.0
        %1199 = vmatpush2.xpose.msra.mxu0 0.0
        %1200 = vmatprep.subr.mxu0 0.0
        %1201 = vmatpush2.xpose.msra.mxu0 0.0
        %1202 = vmatprep.mubr.f32.mxu0 0.0
        %1203 = vmatmul.mubr.f32.gmra.mxu0 %v1133
        %v1204 = vpop.f32.mrf.mxu0
        %v1205 = vadd.f32 %v1054, %v1204
        %v1206 = vpop.f32.mrf.mxu0
        %1207 = vdwg.mxu0
        %vm1208 = vcmask 64512
        %v1209 = vsel %vm1208, %v1129, -inf
        %1210 = vmax.xlane.f32.xlu0 %v1209
        %v1211 = vpop.xlane.xlu0 %1210
        %v1212 = vsel %vm1208, %v1205, -inf
        %1213 = vmax.xlane.f32.xlu0 %v1212
        %v1214 = vpop.xlane.xlu0 %1213
        %v1215 = vsub.f32 %v1129, %v1211
        %v1216 = vsub.f32 %v1205, %v1214
        %v1217 = vmul.f32 %v1215, 1.442695
        %v1218 = vpow.pop %v1217
        %v1219 = vmul.f32 %v1216, 1.442695
        %v1220 = vpow.pop %v1219
        %v1221 = vsel %vm1208, %v1218, 0.0
        %1222 = vadd.xlane.f32.xlu0 %v1221
        %v1223 = vpop.xlane.xlu0 %1222
        %v1224 = vsel %vm1208, %v1220, 0.0
        %1225 = vadd.xlane.f32.xlu0 %v1224
        %v1226 = vpop.xlane.xlu0 %1225
        %v1227 = vrcp.pop %v1223
        %v1228 = vmul.f32 %v1218, %v1227
        %v1229 = vrcp.pop %v1226
        %v1230 = vmul.f32 %v1220, %v1229
        %1231 = vst.msk [vmem:[%s432] sm:$0xff] %vm1208, %v1228
        %1232 = vst.msk [vmem:[%s432 + $0x8] sm:$0xff] %vm1208, %v1230
        %v1233 = vld [vmem:[#allocation4] sm:$0xff]
        %v1234 = vld [vmem:[#allocation4 + $0x8] sm:$0xff]
        %v1236 = vsel %vm1208, %v1228, 0
        %1238 = vmatprep.subr.mxu0 0.0
        %1239 = vmatpush1.msra.mxu0 0.0
        %1240 = vmatprep.subr.mxu0 0.0
        %1241 = vmatpush1.msra.mxu0 0.0
        %1242 = vmatprep.subr.mxu0 0.0
        %1243 = vmatpush1.msra.mxu0 0.0
        %1244 = vmatprep.subr.mxu0 0.0
        %1245 = vmatpush1.msra.mxu0 0.0
        %1246 = vmatprep.subr.mxu0 0.0
        %1247 = vmatpush1.msra.mxu0 0.0
        %1248 = vmatprep.subr.mxu0 0.0
        %1249 = vmatpush1.msra.mxu0 0.0
        %1250 = vmatprep.subr.mxu0 0.0
        %1251 = vmatpush1.msra.mxu0 0.0
        %1252 = vmatprep.subr.mxu0 0.0
        %1253 = vmatpush1.msra.mxu0 0.0
        %1254 = vmatprep.subr.mxu0 0.0
        %1255 = vmatpush1.msra.mxu0 0.0
        %1256 = vmatprep.subr.mxu0 0.0
        %1257 = vmatpush1.msra.mxu0 0.0
        %1258 = vmatprep.subr.mxu0 0.0
        %1259 = vmatpush1.msra.mxu0 0.0
        %1260 = vmatprep.subr.mxu0 0.0
        %1261 = vmatpush1.msra.mxu0 0.0
        %1262 = vmatprep.subr.mxu0 0.0
        %1263 = vmatpush1.msra.mxu0 0.0
        %1264 = vmatprep.subr.mxu0 0.0
        %1265 = vmatpush1.msra.mxu0 0.0
        %1266 = vmatprep.subr.mxu0 0.0
        %1267 = vmatpush1.msra.mxu0 0.0
        %1268 = vmatprep.subr.mxu0 0.0
        %1269 = vmatpush1.msra.mxu0 %v1233
        %1270 = vmatprep.subr.mxu0 0.0
        %1271 = vmatpush2.msra.mxu0 0.0
        %1272 = vmatprep.subr.mxu0 0.0
        %1273 = vmatpush2.msra.mxu0 0.0
        %1274 = vmatprep.subr.mxu0 0.0
        %1275 = vmatpush2.msra.mxu0 0.0
        %1276 = vmatprep.subr.mxu0 0.0
        %1277 = vmatpush2.msra.mxu0 0.0
        %1278 = vmatprep.subr.mxu0 0.0
        %1279 = vmatpush2.msra.mxu0 0.0
        %1280 = vmatprep.subr.mxu0 0.0
        %1281 = vmatpush2.msra.mxu0 0.0
        %1282 = vmatprep.subr.mxu0 0.0
        %1283 = vmatpush2.msra.mxu0 0.0
        %1284 = vmatprep.subr.mxu0 0.0
        %1285 = vmatpush2.msra.mxu0 0.0
        %1286 = vmatprep.subr.mxu0 0.0
        %1287 = vmatpush2.msra.mxu0 0.0
        %1288 = vmatprep.subr.mxu0 0.0
        %1289 = vmatpush2.msra.mxu0 0.0
        %1290 = vmatprep.subr.mxu0 0.0
        %1291 = vmatpush2.msra.mxu0 0.0
        %1292 = vmatprep.subr.mxu0 0.0
        %1293 = vmatpush2.msra.mxu0 0.0
        %1294 = vmatprep.subr.mxu0 0.0
        %1295 = vmatpush2.msra.mxu0 0.0
        %1296 = vmatprep.subr.mxu0 0.0
        %1297 = vmatpush2.msra.mxu0 0.0
        %1298 = vmatprep.subr.mxu0 0.0
        %1299 = vmatpush2.msra.mxu0 0.0
        %1300 = vmatprep.subr.mxu0 0.0
        %1301 = vmatpush2.msra.mxu0 0.0
        %1302 = vmatprep.mubr.f32.mxu0 0.0
        %1303 = vmatmul.mubr.f32.gmra.mxu0 %v1236
        %v1304 = vpop.f32.mrf.mxu0
        %v1305 = vadd.f32 0.0, %v1304
        %v1306 = vpop.f32.mrf.mxu0
        %1307 = vdwg.mxu0
        %v1309 = vsel %vm1208, %v1230, 0
        %1311 = vmatprep.subr.mxu0 0.0
        %1312 = vmatpush1.msra.mxu0 0.0
        %1313 = vmatprep.subr.mxu0 0.0
        %1314 = vmatpush1.msra.mxu0 0.0
        %1315 = vmatprep.subr.mxu0 0.0
        %1316 = vmatpush1.msra.mxu0 0.0
        %1317 = vmatprep.subr.mxu0 0.0
        %1318 = vmatpush1.msra.mxu0 0.0
        %1319 = vmatprep.subr.mxu0 0.0
        %1320 = vmatpush1.msra.mxu0 0.0
        %1321 = vmatprep.subr.mxu0 0.0
        %1322 = vmatpush1.msra.mxu0 0.0
        %1323 = vmatprep.subr.mxu0 0.0
        %1324 = vmatpush1.msra.mxu0 0.0
        %1325 = vmatprep.subr.mxu0 0.0
        %1326 = vmatpush1.msra.mxu0 0.0
        %1327 = vmatprep.subr.mxu0 0.0
        %1328 = vmatpush1.msra.mxu0 0.0
        %1329 = vmatprep.subr.mxu0 0.0
        %1330 = vmatpush1.msra.mxu0 0.0
        %1331 = vmatprep.subr.mxu0 0.0
        %1332 = vmatpush1.msra.mxu0 0.0
        %1333 = vmatprep.subr.mxu0 0.0
        %1334 = vmatpush1.msra.mxu0 0.0
        %1335 = vmatprep.subr.mxu0 0.0
        %1336 = vmatpush1.msra.mxu0 0.0
        %1337 = vmatprep.subr.mxu0 0.0
        %1338 = vmatpush1.msra.mxu0 0.0
        %1339 = vmatprep.subr.mxu0 0.0
        %1340 = vmatpush1.msra.mxu0 0.0
        %1341 = vmatprep.subr.mxu0 0.0
        %1342 = vmatpush1.msra.mxu0 %v1234
        %1343 = vmatprep.subr.mxu0 0.0
        %1344 = vmatpush2.msra.mxu0 0.0
        %1345 = vmatprep.subr.mxu0 0.0
        %1346 = vmatpush2.msra.mxu0 0.0
        %1347 = vmatprep.subr.mxu0 0.0
        %1348 = vmatpush2.msra.mxu0 0.0
        %1349 = vmatprep.subr.mxu0 0.0
        %1350 = vmatpush2.msra.mxu0 0.0
        %1351 = vmatprep.subr.mxu0 0.0
        %1352 = vmatpush2.msra.mxu0 0.0
        %1353 = vmatprep.subr.mxu0 0.0
        %1354 = vmatpush2.msra.mxu0 0.0
        %1355 = vmatprep.subr.mxu0 0.0
        %1356 = vmatpush2.msra.mxu0 0.0
        %1357 = vmatprep.subr.mxu0 0.0
        %1358 = vmatpush2.msra.mxu0 0.0
        %1359 = vmatprep.subr.mxu0 0.0
        %1360 = vmatpush2.msra.mxu0 0.0
        %1361 = vmatprep.subr.mxu0 0.0
        %1362 = vmatpush2.msra.mxu0 0.0
        %1363 = vmatprep.subr.mxu0 0.0
        %1364 = vmatpush2.msra.mxu0 0.0
        %1365 = vmatprep.subr.mxu0 0.0
        %1366 = vmatpush2.msra.mxu0 0.0
        %1367 = vmatprep.subr.mxu0 0.0
        %1368 = vmatpush2.msra.mxu0 0.0
        %1369 = vmatprep.subr.mxu0 0.0
        %1370 = vmatpush2.msra.mxu0 0.0
        %1371 = vmatprep.subr.mxu0 0.0
        %1372 = vmatpush2.msra.mxu0 0.0
        %1373 = vmatprep.subr.mxu0 0.0
        %1374 = vmatpush2.msra.mxu0 0.0
        %1375 = vmatprep.mubr.f32.mxu0 0.0
        %1376 = vmatmul.mubr.f32.gmra.mxu0 %v1309
        %v1377 = vpop.f32.mrf.mxu0
        %v1378 = vadd.f32 0.0, %v1377
        %v1379 = vpop.f32.mrf.mxu0
        %1380 = vdwg.mxu0
        %v1381 = vld [vmem:[%s7] sm:$0xff]
        %v1382 = vld [vmem:[%s7 + $0x8] sm:$0xff]
        %v1383 = vld [vmem:[%s7 + $0x10] sm:$0xff]
        %v1384 = vld [vmem:[%s7 + $0x18] sm:$0xff]
        %v1386 = vsel %vm1055, %v1305, 0
        %1388 = vmatprep.subr.mxu0 0.0
        %1389 = vmatpush1.msra.mxu0 0.0
        %1390 = vmatprep.subr.mxu0 0.0
        %1391 = vmatpush1.msra.mxu0 0.0
        %1392 = vmatprep.subr.mxu0 0.0
        %1393 = vmatpush1.msra.mxu0 0.0
        %1394 = vmatprep.subr.mxu0 0.0
        %1395 = vmatpush1.msra.mxu0 0.0
        %1396 = vmatprep.subr.mxu0 0.0
        %1397 = vmatpush1.msra.mxu0 0.0
        %1398 = vmatprep.subr.mxu0 0.0
        %1399 = vmatpush1.msra.mxu0 0.0
        %1400 = vmatprep.subr.mxu0 0.0
        %1401 = vmatpush1.msra.mxu0 0.0
        %1402 = vmatprep.subr.mxu0 0.0
        %1403 = vmatpush1.msra.mxu0 0.0
        %1404 = vmatprep.subr.mxu0 0.0
        %1405 = vmatpush1.msra.mxu0 0.0
        %1406 = vmatprep.subr.mxu0 0.0
        %1407 = vmatpush1.msra.mxu0 0.0
        %1408 = vmatprep.subr.mxu0 0.0
        %1409 = vmatpush1.msra.mxu0 0.0
        %1410 = vmatprep.subr.mxu0 0.0
        %1411 = vmatpush1.msra.mxu0 0.0
        %1412 = vmatprep.subr.mxu0 0.0
        %1413 = vmatpush1.msra.mxu0 0.0
        %1414 = vmatprep.subr.mxu0 0.0
        %1415 = vmatpush1.msra.mxu0 0.0
        %1416 = vmatprep.subr.mxu0 0.0
        %1417 = vmatpush1.msra.mxu0 %v1382
        %1418 = vmatprep.subr.mxu0 0.0
        %1419 = vmatpush1.msra.mxu0 %v1381
        %1420 = vmatprep.subr.mxu0 0.0
        %1421 = vmatpush2.msra.mxu0 0.0
        %1422 = vmatprep.subr.mxu0 0.0
        %1423 = vmatpush2.msra.mxu0 0.0
        %1424 = vmatprep.subr.mxu0 0.0
        %1425 = vmatpush2.msra.mxu0 0.0
        %1426 = vmatprep.subr.mxu0 0.0
        %1427 = vmatpush2.msra.mxu0 0.0
        %1428 = vmatprep.subr.mxu0 0.0
        %1429 = vmatpush2.msra.mxu0 0.0
        %1430 = vmatprep.subr.mxu0 0.0
        %1431 = vmatpush2.msra.mxu0 0.0
        %1432 = vmatprep.subr.mxu0 0.0
        %1433 = vmatpush2.msra.mxu0 0.0
        %1434 = vmatprep.subr.mxu0 0.0
        %1435 = vmatpush2.msra.mxu0 0.0
        %1436 = vmatprep.subr.mxu0 0.0
        %1437 = vmatpush2.msra.mxu0 0.0
        %1438 = vmatprep.subr.mxu0 0.0
        %1439 = vmatpush2.msra.mxu0 0.0
        %1440 = vmatprep.subr.mxu0 0.0
        %1441 = vmatpush2.msra.mxu0 0.0
        %1442 = vmatprep.subr.mxu0 0.0
        %1443 = vmatpush2.msra.mxu0 0.0
        %1444 = vmatprep.subr.mxu0 0.0
        %1445 = vmatpush2.msra.mxu0 0.0
        %1446 = vmatprep.subr.mxu0 0.0
        %1447 = vmatpush2.msra.mxu0 0.0
        %1448 = vmatprep.subr.mxu0 0.0
        %1449 = vmatpush2.msra.mxu0 0.0
        %1450 = vmatprep.subr.mxu0 0.0
        %1451 = vmatpush2.msra.mxu0 0.0
        %1452 = vmatprep.mubr.f32.mxu0 0.0
        %1453 = vmatmul.mubr.f32.gmra.mxu0 %v1386
        %v1454 = vpop.f32.mrf.mxu0
        %v1455 = vadd.f32 0.0, %v1454
        %v1456 = vpop.f32.mrf.mxu0
        %1457 = vdwg.mxu0
        %v1459 = vsel %vm1055, %v1378, 0
        %1461 = vmatprep.subr.mxu0 0.0
        %1462 = vmatpush1.msra.mxu0 0.0
        %1463 = vmatprep.subr.mxu0 0.0
        %1464 = vmatpush1.msra.mxu0 0.0
        %1465 = vmatprep.subr.mxu0 0.0
        %1466 = vmatpush1.msra.mxu0 0.0
        %1467 = vmatprep.subr.mxu0 0.0
        %1468 = vmatpush1.msra.mxu0 0.0
        %1469 = vmatprep.subr.mxu0 0.0
        %1470 = vmatpush1.msra.mxu0 0.0
        %1471 = vmatprep.subr.mxu0 0.0
        %1472 = vmatpush1.msra.mxu0 0.0
        %1473 = vmatprep.subr.mxu0 0.0
        %1474 = vmatpush1.msra.mxu0 0.0
        %1475 = vmatprep.subr.mxu0 0.0
        %1476 = vmatpush1.msra.mxu0 0.0
        %1477 = vmatprep.subr.mxu0 0.0
        %1478 = vmatpush1.msra.mxu0 0.0
        %1479 = vmatprep.subr.mxu0 0.0
        %1480 = vmatpush1.msra.mxu0 0.0
        %1481 = vmatprep.subr.mxu0 0.0
        %1482 = vmatpush1.msra.mxu0 0.0
        %1483 = vmatprep.subr.mxu0 0.0
        %1484 = vmatpush1.msra.mxu0 0.0
        %1485 = vmatprep.subr.mxu0 0.0
        %1486 = vmatpush1.msra.mxu0 0.0
        %1487 = vmatprep.subr.mxu0 0.0
        %1488 = vmatpush1.msra.mxu0 0.0
        %1489 = vmatprep.subr.mxu0 0.0
        %1490 = vmatpush1.msra.mxu0 %v1384
        %1491 = vmatprep.subr.mxu0 0.0
        %1492 = vmatpush1.msra.mxu0 %v1383
        %1493 = vmatprep.subr.mxu0 0.0
        %1494 = vmatpush2.msra.mxu0 0.0
        %1495 = vmatprep.subr.mxu0 0.0
        %1496 = vmatpush2.msra.mxu0 0.0
        %1497 = vmatprep.subr.mxu0 0.0
        %1498 = vmatpush2.msra.mxu0 0.0
        %1499 = vmatprep.subr.mxu0 0.0
        %1500 = vmatpush2.msra.mxu0 0.0
        %1501 = vmatprep.subr.mxu0 0.0
        %1502 = vmatpush2.msra.mxu0 0.0
        %1503 = vmatprep.subr.mxu0 0.0
        %1504 = vmatpush2.msra.mxu0 0.0
        %1505 = vmatprep.subr.mxu0 0.0
        %1506 = vmatpush2.msra.mxu0 0.0
        %1507 = vmatprep.subr.mxu0 0.0
        %1508 = vmatpush2.msra.mxu0 0.0
        %1509 = vmatprep.subr.mxu0 0.0
        %1510 = vmatpush2.msra.mxu0 0.0
        %1511 = vmatprep.subr.mxu0 0.0
        %1512 = vmatpush2.msra.mxu0 0.0
        %1513 = vmatprep.subr.mxu0 0.0
        %1514 = vmatpush2.msra.mxu0 0.0
        %1515 = vmatprep.subr.mxu0 0.0
        %1516 = vmatpush2.msra.mxu0 0.0
        %1517 = vmatprep.subr.mxu0 0.0
        %1518 = vmatpush2.msra.mxu0 0.0
        %1519 = vmatprep.subr.mxu0 0.0
        %1520 = vmatpush2.msra.mxu0 0.0
        %1521 = vmatprep.subr.mxu0 0.0
        %1522 = vmatpush2.msra.mxu0 0.0
        %1523 = vmatprep.subr.mxu0 0.0
        %1524 = vmatpush2.msra.mxu0 0.0
        %1525 = vmatprep.mubr.f32.mxu0 0.0
        %1526 = vmatmul.mubr.f32.gmra.mxu0 %v1459
        %v1527 = vpop.f32.mrf.mxu0
        %v1528 = vadd.f32 0.0, %v1527
        %v1529 = vpop.f32.mrf.mxu0
        %1530 = vdwg.mxu0
        %v1531 = vsel %vm852, %v1455, 0.0
        %v1532 = vsel %vm852, %v1528, 0.0
        %v1533 = vadd.f32 %v1531, %v1532
        %v1534 = vlaneseq
        %v1535 = vshrl.u32 %v1534, 7
        %v1536 = vsub.s32 0, %v1535
        %v1537 = vrot.slane %v456, %v1536
        %v1538 = vadd.f32 %v1533, %v1537
        %s1539 = scalar_lea.vmem [#allocation2], %s1048
        %v1540 = vld [vmem:[%s1539] sm:$0xff]
        %v1541 = vadd.f32 %v1538, %v1540
        %v1542 = vsel %vm852, %v1541, 0.0
        %1543 = vadd.xlane.f32.xlu0 %v1542
        %v1544 = vpop.xlane.xlu0 %1543
        %v1545 = vmul.f32 %v1544, %v856
        %v1546 = vsub.f32 %v1541, %v1545
        %v1547 = vmul.f32 %v1546, %v1546
        %v1548 = vsel %vm852, %v1547, 0.0
        %1549 = vadd.xlane.f32.xlu0 %v1548
        %v1550 = vpop.xlane.xlu0 %1549
        %v1551 = vmul.f32 %v1550, %v856
        %v1552 = vadd.f32 %v1551, 1e-08
        %v1553 = vrsqrt.pop %v1552
        %v1554 = vmul.f32 %v1546, %v1553
        %v1555 = vlaneseq
        %v1556 = vshrl.u32 %v1555, 7
        %v1557 = vsub.s32 6, %v1556
        %v1558 = vrot.slane %v455, %v1557
        %v1559 = vmul.f32 %v1554, %v1558
        %v1560 = vlaneseq
        %v1561 = vshrl.u32 %v1560, 7
        %v1562 = vsub.s32 7, %v1561
        %v1563 = vrot.slane %v455, %v1562
        %v1564 = vadd.f32 %v1559, %v1563
        %v1565 = vld [vmem:[%s8] sm:$0xff]
        %v1566 = vld [vmem:[%s8 + $0x8] sm:$0xff]
        %v1567 = vld [vmem:[%s8 + $0x10] sm:$0xff]
        %v1568 = vld [vmem:[%s8 + $0x18] sm:$0xff]
        %v1569 = vlaneseq
        %v1570 = vshrl.u32 %v1569, 7
        %v1571 = vsub.s32 1, %v1570
        %v1572 = vrot.slane %v456, %v1571
        %v1574 = vsel %vm852, %v1564, 0
        %1576 = vmatprep.subr.mxu0 0.0
        %1577 = vmatpush1.msra.mxu0 0.0
        %1578 = vmatprep.subr.mxu0 0.0
        %1579 = vmatpush1.msra.mxu0 0.0
        %1580 = vmatprep.subr.mxu0 0.0
        %1581 = vmatpush1.msra.mxu0 0.0
        %1582 = vmatprep.subr.mxu0 0.0
        %1583 = vmatpush1.msra.mxu0 0.0
        %1584 = vmatprep.subr.mxu0 0.0
        %1585 = vmatpush1.msra.mxu0 0.0
        %1586 = vmatprep.subr.mxu0 0.0
        %1587 = vmatpush1.msra.mxu0 0.0
        %1588 = vmatprep.subr.mxu0 0.0
        %1589 = vmatpush1.msra.mxu0 0.0
        %1590 = vmatprep.subr.mxu0 0.0
        %1591 = vmatpush1.msra.mxu0 0.0
        %1592 = vmatprep.subr.mxu0 0.0
        %1593 = vmatpush1.msra.mxu0 0.0
        %1594 = vmatprep.subr.mxu0 0.0
        %1595 = vmatpush1.msra.mxu0 0.0
        %1596 = vmatprep.subr.mxu0 0.0
        %1597 = vmatpush1.msra.mxu0 0.0
        %1598 = vmatprep.subr.mxu0 0.0
        %1599 = vmatpush1.msra.mxu0 0.0
        %1600 = vmatprep.subr.mxu0 0.0
        %1601 = vmatpush1.msra.mxu0 %v1568
        %1602 = vmatprep.subr.mxu0 0.0
        %1603 = vmatpush1.msra.mxu0 %v1567
        %1604 = vmatprep.subr.mxu0 0.0
        %1605 = vmatpush1.msra.mxu0 %v1566
        %1606 = vmatprep.subr.mxu0 0.0
        %1607 = vmatpush1.msra.mxu0 %v1565
        %1608 = vmatprep.subr.mxu0 0.0
        %1609 = vmatpush2.msra.mxu0 0.0
        %1610 = vmatprep.subr.mxu0 0.0
        %1611 = vmatpush2.msra.mxu0 0.0
        %1612 = vmatprep.subr.mxu0 0.0
        %1613 = vmatpush2.msra.mxu0 0.0
        %1614 = vmatprep.subr.mxu0 0.0
        %1615 = vmatpush2.msra.mxu0 0.0
        %1616 = vmatprep.subr.mxu0 0.0
        %1617 = vmatpush2.msra.mxu0 0.0
        %1618 = vmatprep.subr.mxu0 0.0
        %1619 = vmatpush2.msra.mxu0 0.0
        %1620 = vmatprep.subr.mxu0 0.0
        %1621 = vmatpush2.msra.mxu0 0.0
        %1622 = vmatprep.subr.mxu0 0.0
        %1623 = vmatpush2.msra.mxu0 0.0
        %1624 = vmatprep.subr.mxu0 0.0
        %1625 = vmatpush2.msra.mxu0 0.0
        %1626 = vmatprep.subr.mxu0 0.0
        %1627 = vmatpush2.msra.mxu0 0.0
        %1628 = vmatprep.subr.mxu0 0.0
        %1629 = vmatpush2.msra.mxu0 0.0
        %1630 = vmatprep.subr.mxu0 0.0
        %1631 = vmatpush2.msra.mxu0 0.0
        %1632 = vmatprep.subr.mxu0 0.0
        %1633 = vmatpush2.msra.mxu0 0.0
        %1634 = vmatprep.subr.mxu0 0.0
        %1635 = vmatpush2.msra.mxu0 0.0
        %1636 = vmatprep.subr.mxu0 0.0
        %1637 = vmatpush2.msra.mxu0 0.0
        %1638 = vmatprep.subr.mxu0 0.0
        %1639 = vmatpush2.msra.mxu0 0.0
        %1640 = vmatprep.mubr.f32.mxu0 0.0
        %1641 = vmatmul.mubr.f32.gmra.mxu0 %v1574
        %v1642 = vpop.f32.mrf.mxu0
        %v1643 = vadd.f32 %v1572, %v1642
        %v1644 = vpop.f32.mrf.mxu0
        %1645 = vdwg.mxu0
        %v1646 = vmax.f32 %v1643, 0.0
        %s1647 = scalar_lea.vmem %s8, 32
        %v1648 = vld [vmem:[%s1647] sm:$0xff]
        %v1649 = vld [vmem:[%s1647 + $0x8] sm:$0xff]
        %v1650 = vld [vmem:[%s1647 + $0x10] sm:$0xff]
        %v1651 = vld [vmem:[%s1647 + $0x18] sm:$0xff]
        %v1652 = vlaneseq
        %v1653 = vshrl.u32 %v1652, 7
        %v1654 = vsub.s32 2, %v1653
        %v1655 = vrot.slane %v456, %v1654
        %v1657 = vsel %vm852, %v1646, 0
        %1659 = vmatprep.subr.mxu0 0.0
        %1660 = vmatpush1.msra.mxu0 0.0
        %1661 = vmatprep.subr.mxu0 0.0
        %1662 = vmatpush1.msra.mxu0 0.0
        %1663 = vmatprep.subr.mxu0 0.0
        %1664 = vmatpush1.msra.mxu0 0.0
        %1665 = vmatprep.subr.mxu0 0.0
        %1666 = vmatpush1.msra.mxu0 0.0
        %1667 = vmatprep.subr.mxu0 0.0
        %1668 = vmatpush1.msra.mxu0 0.0
        %1669 = vmatprep.subr.mxu0 0.0
        %1670 = vmatpush1.msra.mxu0 0.0
        %1671 = vmatprep.subr.mxu0 0.0
        %1672 = vmatpush1.msra.mxu0 0.0
        %1673 = vmatprep.subr.mxu0 0.0
        %1674 = vmatpush1.msra.mxu0 0.0
        %1675 = vmatprep.subr.mxu0 0.0
        %1676 = vmatpush1.msra.mxu0 0.0
        %1677 = vmatprep.subr.mxu0 0.0
        %1678 = vmatpush1.msra.mxu0 0.0
        %1679 = vmatprep.subr.mxu0 0.0
        %1680 = vmatpush1.msra.mxu0 0.0
        %1681 = vmatprep.subr.mxu0 0.0
        %1682 = vmatpush1.msra.mxu0 0.0
        %1683 = vmatprep.subr.mxu0 0.0
        %1684 = vmatpush1.msra.mxu0 %v1651
        %1685 = vmatprep.subr.mxu0 0.0
        %1686 = vmatpush1.msra.mxu0 %v1650
        %1687 = vmatprep.subr.mxu0 0.0
        %1688 = vmatpush1.msra.mxu0 %v1649
        %1689 = vmatprep.subr.mxu0 0.0
        %1690 = vmatpush1.msra.mxu0 %v1648
        %1691 = vmatprep.subr.mxu0 0.0
        %1692 = vmatpush2.msra.mxu0 0.0
        %1693 = vmatprep.subr.mxu0 0.0
        %1694 = vmatpush2.msra.mxu0 0.0
        %1695 = vmatprep.subr.mxu0 0.0
        %1696 = vmatpush2.msra.mxu0 0.0
        %1697 = vmatprep.subr.mxu0 0.0
        %1698 = vmatpush2.msra.mxu0 0.0
        %1699 = vmatprep.subr.mxu0 0.0
        %1700 = vmatpush2.msra.mxu0 0.0
        %1701 = vmatprep.subr.mxu0 0.0
        %1702 = vmatpush2.msra.mxu0 0.0
        %1703 = vmatprep.subr.mxu0 0.0
        %1704 = vmatpush2.msra.mxu0 0.0
        %1705 = vmatprep.subr.mxu0 0.0
        %1706 = vmatpush2.msra.mxu0 0.0
        %1707 = vmatprep.subr.mxu0 0.0
        %1708 = vmatpush2.msra.mxu0 0.0
        %1709 = vmatprep.subr.mxu0 0.0
        %1710 = vmatpush2.msra.mxu0 0.0
        %1711 = vmatprep.subr.mxu0 0.0
        %1712 = vmatpush2.msra.mxu0 0.0
        %1713 = vmatprep.subr.mxu0 0.0
        %1714 = vmatpush2.msra.mxu0 0.0
        %1715 = vmatprep.subr.mxu0 0.0
        %1716 = vmatpush2.msra.mxu0 0.0
        %1717 = vmatprep.subr.mxu0 0.0
        %1718 = vmatpush2.msra.mxu0 0.0
        %1719 = vmatprep.subr.mxu0 0.0
        %1720 = vmatpush2.msra.mxu0 0.0
        %1721 = vmatprep.subr.mxu0 0.0
        %1722 = vmatpush2.msra.mxu0 0.0
        %1723 = vmatprep.mubr.f32.mxu0 0.0
        %1724 = vmatmul.mubr.f32.gmra.mxu0 %v1657
        %v1725 = vpop.f32.mrf.mxu0
        %v1726 = vadd.f32 %v1655, %v1725
        %v1727 = vpop.f32.mrf.mxu0
        %1728 = vdwg.mxu0
        %v1729 = vadd.f32 %v1726, %v1564
        %v1730 = vld [vmem:[%s454] sm:$0xff]
        %1732 = vset.pattern.permute.xlu0 0
        %1733 = vperm.xlu0 %1732, %v1730
        %v1734 = vpop.permute.xlu0 %1733
        %v1736 = vmul.f32 %v1729, %v1734
        %v1737 = vsel %vm852, %v1736, 0.0
        %1738 = vadd.xlane.f32.xlu0 %v1737
        %v1739 = vpop.xlane.xlu0 %1738
        %v1740 = vmul.f32 %v1739, %v856
        %v1741 = vsub.f32 %v1736, %v1740
        %v1742 = vmul.f32 %v1741, %v1741
        %v1743 = vsel %vm852, %v1742, 0.0
        %1744 = vadd.xlane.f32.xlu0 %v1743
        %v1745 = vpop.xlane.xlu0 %1744
        %v1746 = vmul.f32 %v1745, %v856
        %v1747 = vadd.f32 %v1746, 1e-08
        %v1748 = vrsqrt.pop %v1747
        %v1749 = vmul.f32 %v1741, %v1748
        %v1750 = vlaneseq
        %v1751 = vshrl.u32 %v1750, 7
        %v1752 = vsub.s32 3, %v1751
        %v1753 = vrot.slane %v456, %v1752
        %v1754 = vmul.f32 %v1749, %v1753
        %v1755 = vlaneseq
        %v1756 = vshrl.u32 %v1755, 7
        %v1757 = vsub.s32 4, %v1756
        %v1758 = vrot.slane %v456, %v1757
        %v1759 = vadd.f32 %v1754, %v1758
        %1760 = vst.msk [vmem:[%s425] sm:$0xff] %vm852, %v1759
        %s1761 = sand.u32 %s263, 1
        %s1762 = scalar_lea.sflag [#allocation6], %s1761
        %s1763 = sand.u32 %s263, 1
        %s1764 = smul.addr %s1763, 8
        %s1765 = scalar_lea.vmem [#allocation5], %s1764
        %s1766 = sand.u32 %s291, 1
        %s1767 = scalar_lea.sflag [#allocation8], %s1766
        %s1768 = sand.u32 %s291, 1
        %s1769 = smul.addr %s1768, 16
        %s1770 = scalar_lea.vmem [#allocation7], %s1769
        // Predicated region
        $region61: #{text_aware_transformer.3} parent=55 // pred_check
          %p1771 = pneg %p273
        $region62: #{text_aware_transformer.3} parent=55 // pred_check_branch
          %1773 = sbr.rel (%p1771) target = $region64
        $region63: #{text_aware_transformer.3} parent=55 // pred_region
          %s1775 = ssub.s32 128, 128
          %1776 = vsyncadd %s1762, %s1775
          %s1777 = sadd.s32 %s33, %s32
          %s1778 = smul.addr %s1777, 128
          %s1779 = scalar_lea.hbm %s9, %s1778
          %s1781 = sshll.u32 %s1765, 4
          %s1782 = int_to_ptr.vmem [resolvable:$true] %s1781
          %1784 = dma.vmem_to_hbm [thread:$0]  %s1782, 128, %s1779, %s1762
        $region64: #{text_aware_transformer.3} parent=55 // pred_fallthru
          _
        // Predicated region
        $region65: #{text_aware_transformer.3} parent=55 // pred_check
          %p1785 = pneg %p301
        $region66: #{text_aware_transformer.3} parent=55 // pred_check_branch
          %1787 = sbr.rel (%p1785) target = $region68
        $region67: #{text_aware_transformer.3} parent=55 // pred_region
          %s1789 = ssub.s32 256, 256
          %1790 = vsyncadd %s1767, %s1789
          %s1791 = smul.addr %s32, 2
          %s1792 = sadd.s32 %s33, %s1791
          %s1793 = smul.addr %s1792, 128
          %s1794 = scalar_lea.hbm %s10, %s1793
          %s1795 = sshll.u32 %s1770, 4
          %s1796 = int_to_ptr.vmem [resolvable:$true] %s1795
          %1801 = dma.vmem_to_hbm [thread:$0]  %s1796, 256, %s1794, %s1767, 128, 128, 8
        $region68: #{text_aware_transformer.3} parent=55 // pred_fallthru
          _
      $region56: #{text_aware_transformer.3} parent=5 // pred_fallthru
        _
      %p1802 = scmp.le.s32.totalorder 2, %s23
      // Predicated region
      $region69: #{text_aware_transformer.3} parent=5 // pred_check
        %p1803 = pneg %p1802
      $region70: #{text_aware_transformer.3} parent=5 // pred_check_branch
        %1805 = sbr.rel (%p1803) target = $region72
      $region71: #{text_aware_transformer.3} parent=5 // pred_region
        %s1806 = ssub.s32 %s23, 2
        // Predicated region
        $region73: #{text_aware_transformer.3} parent=71 // pred_check
          %p1807 = pneg %p279
        $region74: #{text_aware_transformer.3} parent=71 // pred_check_branch
          %1809 = sbr.rel (%p1807) target = $region76
        $region75: #{text_aware_transformer.3} parent=71 // pred_region
          %s1810 = sand.u32 %s264, 1
          %s1811 = scalar_lea.sflag [#allocation6], %s1810
          %s1812 = sand.u32 %s264, 1
          %s1813 = smul.addr %s1812, 8
          %s1814 = scalar_lea.vmem [#allocation5], %s1813
          %1815 = dma.done %s1811, 128
        $region76: #{text_aware_transformer.3} parent=71 // pred_fallthru
          _
        // Predicated region
        $region77: #{text_aware_transformer.3} parent=71 // pred_check
          %p1816 = pneg %p307
        $region78: #{text_aware_transformer.3} parent=71 // pred_check_branch
          %1818 = sbr.rel (%p1816) target = $region80
        $region79: #{text_aware_transformer.3} parent=71 // pred_region
          %s1819 = sand.u32 %s292, 1
          %s1820 = scalar_lea.sflag [#allocation8], %s1819
          %s1821 = sand.u32 %s292, 1
          %s1822 = smul.addr %s1821, 16
          %s1823 = scalar_lea.vmem [#allocation7], %s1822
          %1824 = dma.done %s1820, 256
        $region80: #{text_aware_transformer.3} parent=71 // pred_fallthru
          _
      $region72: #{text_aware_transformer.3} parent=5 // pred_fallthru
        _
    $region6: #{text_aware_transformer.3} parent=1 // loop_footer
      %s27 = sadd.s32 1, %s23
    $region7: #{text_aware_transformer.3} parent=1 // loop_footer_branch
      %22 = sbr.rel target = $region3
    $region8: #{text_aware_transformer.3} parent=1 // loop_exit
      _
    %1825 = vsyncpa [#allocation6], 1
    %s1826 = scalar_lea.sflag [#allocation6], 1
    %1827 = vsyncpa %s1826, 1
    %1828 = vsyncpa [#allocation8], 1
    %s1829 = scalar_lea.sflag [#allocation8], 1
    %1830 = vsyncpa %s1829, 1

// kernel: text_aware_transformer.3
$region0: #{text_aware_transformer.3}
  #allocation0 [shape = 'u32[]', space=smem, size = 0x4, offset = 0x4, fixed_abs, tag = 'smem constant byte address 0x4 - core index']
  #allocation1 [shape = 'u32[144,128]{1,0:T(1,128)}', space=vmem, size = 0x12000, scoped, tag = 'internal scratch']
  #allocation2 [shape = 'f32[8,32]{1,0:T(8,128)}', space=vmem, size = 0x1000, scoped, tag = 'scratch operand']
  #allocation3 [shape = 'f32[2,8,16]{2,1,0:T(8,128)}', space=vmem, size = 0x2000, scoped, tag = 'scratch operand']
  #allocation4 [shape = 'f32[2,8,16]{2,1,0:T(8,128)}', space=vmem, size = 0x2000, scoped, tag = 'scratch operand']
  %s0 = inlined_call_operand.vmem [shape: f32[2,8,32], index: 0, kind: input, shape index: {}]
  %s1 = inlined_call_operand.vmem [shape: f32[2,8,32], index: 1, kind: input, shape index: {}]
  %s2 = inlined_call_operand.vmem [shape: f32[2,8,32], index: 2, kind: input, shape index: {}]
  %s3 = inlined_call_operand.vmem [shape: f32[2,8,1], index: 3, kind: input, shape index: {}]
  %s4 = inlined_call_operand.vmem [shape: f32[13,32], index: 4, kind: input, shape index: {}]
  %s5 = inlined_call_operand.vmem [shape: f32[3,2,32,16], index: 5, kind: input, shape index: {}]
  %s6 = inlined_call_operand.vmem [shape: f32[3,2,1,16], index: 6, kind: input, shape index: {}]
  %s7 = inlined_call_operand.vmem [shape: f32[2,16,32], index: 7, kind: input, shape index: {}]
  %s8 = inlined_call_operand.vmem [shape: f32[2,32,32], index: 8, kind: input, shape index: {}]
  %s9 = inlined_call_operand.hbm [shape: f32[2,8,32], index: 9, kind: output, shape index: {0}]
  %s10 = inlined_call_operand.hbm [shape: f32[2,2,8,8], index: 10, kind: output, shape index: {1}]
  %11 = xla_tuple %s9, %s10
  %s12 = sld [smem:[#allocation0]]
  $region81: #{text_aware_transformer.3} parent=0
    _
  %s14 = ssub.s32 1, %s12
  %s15 = scalar_select 0, %s14, %s12
  $region1: #{text_aware_transformer.3} parent=0
    #allocation5 [shape = 'u8[8192]{0}', space=vmem, size = 0x2000, scoped, tag = 'output window, operand 0']
    #allocation6 [shape = 's32[2]{0}', space=sflag, size = 0x8, scoped, tag = 'scoped memory for text_aware_transformer.3']
    #allocation7 [shape = 'u8[16384]{0}', space=vmem, size = 0x4000, scoped, tag = 'output window, operand 1']
    #allocation8 [shape = 's32[2]{0}', space=sflag, size = 0x8, scoped, tag = 'scoped memory for text_aware_transformer.3']
    %16 = vsyncpa [#allocation6], 0
    %s17 = scalar_lea.sflag [#allocation6], 1
    %18 = vsyncpa %s17, 0
    %19 = vsyncpa [#allocation8], 0
    %s20 = scalar_lea.sflag [#allocation8], 1
    %21 = vsyncpa %s20, 0
    loop: start=0, step=1, limit=4
    $region2: #{text_aware_transformer.3} parent=1 // loop_pre_header
      _
    $region3: #{text_aware_transformer.3} parent=1 // loop_header
      %s23 = sphi 0, %s27
      %p24 = scmp.ge.s32.totalorder %s23, 4
      %s30 = sphi 0, %s42
      %s31 = sphi 0, %s38
      %s32 = sphi 0, %s30
      %s33 = sphi 0, %s31
      %s34 = sphi 0, %s32
      %s35 = sphi 0, %s33
      %s47 = sphi 0, %s49
      %s50 = sphi 0, %s47
      %s51 = sphi 0, %s50
      %s67 = sphi 0, %s51
      %s73 = sphi 0, %s75
      %s76 = sphi 0, %s73
      %s77 = sphi 0, %s76
      %s93 = sphi 0, %s77
      %s99 = sphi 0, %s101
      %s102 = sphi 0, %s99
      %s103 = sphi 0, %s102
      %s119 = sphi 0, %s103
      %s127 = sphi 0, %s129
      %s130 = sphi 0, %s127
      %s131 = sphi 0, %s130
      %s147 = sphi 0, %s131
      %s151 = sphi 0, %s151
      %s153 = sphi 0, %s151
      %s154 = sphi 0, %s153
      %s168 = sphi 0, %s154
      %s172 = sphi 0, %s172
      %s174 = sphi 0, %s172
      %s175 = sphi 0, %s174
      %s189 = sphi 0, %s175
      %s193 = sphi 0, %s193
      %s195 = sphi 0, %s193
      %s196 = sphi 0, %s195
      %s210 = sphi 0, %s196
      %s214 = sphi 0, %s214
      %s216 = sphi 0, %s214
      %s217 = sphi 0, %s216
      %s231 = sphi 0, %s217
      %s235 = sphi 0, %s235
      %s237 = sphi 0, %s235
      %s238 = sphi 0, %s237
      %s252 = sphi 0, %s238
      %s260 = sphi 0, %s262
      %s263 = sphi 0, %s260
      %s264 = sphi 0, %s263
      %s280 = sphi 0, %s264
      %s288 = sphi 0, %s290
      %s291 = sphi 0, %s288
      %s292 = sphi 0, %s291
      %s308 = sphi 0, %s292
    $region4: #{text_aware_transformer.3} parent=1 // loop_header_branch
      %26 = sbr.rel (%p24) target = $region8
    $region5: #{text_aware_transformer.3} parent=1 // loop_body
      %s28 = ssub.s32 %s23, 1
      %s29 = ssub.s32 %s23, 2
      %s36 = sadd.s32 1, %s31
      %p37 = scmp.ge.s32.totalorder %s36, 1
      %s38 = scalar_select %p37, 0, %s36
      %s39 = sadd.s32 1, %s30
      %s40 = scalar_select %p37, %s39, %s30
      %p41 = scmp.ge.s32.totalorder %s40, 2
      %s42 = scalar_select %p41, 0, %s40
      %s43 = ssub.s32 %s30, %s42
      %s44 = ssub.s32 %s31, %s38
      %s45 = sor.u32 %s43, %s44
      %p46 = scmp.eq.s32.totalorder %s45, 0
      %s48 = sadd.s32 %s47, 1
      %s49 = scalar_select %p46, %s47, %s48
      %p52 = pneg %p46
      %p53 = scmp.eq.s32.totalorder %s23, 1
      %p54 = por %p52, %p53
      %p55 = scmp.ne.s32.totalorder %s47, %s50
      %p56 = scmp.eq.s32.totalorder %s23, 0
      %p57 = por %p55, %p56
      %p58 = scmp.ne.s32.totalorder %s47, %s50
      %p59 = scmp.eq.s32.totalorder %s28, 1
      %p60 = por %p58, %p59
      %p61 = scmp.ne.s32.totalorder %s50, %s51
      %p62 = scmp.eq.s32.totalorder %s28, 0
      %p63 = por %p61, %p62
      %p64 = scmp.ne.s32.totalorder %s50, %s51
      %p65 = scmp.eq.s32.totalorder %s29, 1
      %p66 = por %p64, %p65
      %p68 = scmp.ne.s32.totalorder %s51, %s67
      %p69 = scmp.eq.s32.totalorder %s29, 0
      %p70 = por %p68, %p69
      %s71 = ssub.s32 %s30, %s42
      %p72 = scmp.eq.s32.totalorder %s71, 0
      %s74 = sadd.s32 %s73, 1
      %s75 = scalar_select %p72, %s73, %s74
      %p78 = pneg %p72
      %p79 = scmp.eq.s32.totalorder %s23, 1
      %p80 = por %p78, %p79
      %p81 = scmp.ne.s32.totalorder %s73, %s76
      %p82 = scmp.eq.s32.totalorder %s23, 0
      %p83 = por %p81, %p82
      %p84 = scmp.ne.s32.totalorder %s73, %s76
      %p85 = scmp.eq.s32.totalorder %s28, 1
      %p86 = por %p84, %p85
      %p87 = scmp.ne.s32.totalorder %s76, %s77
      %p88 = scmp.eq.s32.totalorder %s28, 0
      %p89 = por %p87, %p88
      %p90 = scmp.ne.s32.totalorder %s76, %s77
      %p91 = scmp.eq.s32.totalorder %s29, 1
      %p92 = por %p90, %p91
      %p94 = scmp.ne.s32.totalorder %s77, %s93
      %p95 = scmp.eq.s32.totalorder %s29, 0
      %p96 = por %p94, %p95
      %s97 = ssub.s32 %s30, %s42
      %p98 = scmp.eq.s32.totalorder %s97, 0
      %s100 = sadd.s32 %s99, 1
      %s101 = scalar_select %p98, %s99, %s100
      %p104 = pneg %p98
      %p105 = scmp.eq.s32.totalorder %s23, 1
      %p106 = por %p104, %p105
      %p107 = scmp.ne.s32.totalorder %s99, %s102
      %p108 = scmp.eq.s32.totalorder %s23, 0
      %p109 = por %p107, %p108
      %p110 = scmp.ne.s32.totalorder %s99, %s102
      %p111 = scmp.eq.s32.totalorder %s28, 1
      %p112 = por %p110, %p111
      %p113 = scmp.ne.s32.totalorder %s102, %s103
      %p114 = scmp.eq.s32.totalorder %s28, 0
      %p115 = por %p113, %p114
      %p116 = scmp.ne.s32.totalorder %s102, %s103
      %p117 = scmp.eq.s32.totalorder %s29, 1
      %p118 = por %p116, %p117
      %p120 = scmp.ne.s32.totalorder %s103, %s119
      %p121 = scmp.eq.s32.totalorder %s29, 0
      %p122 = por %p120, %p121
      %s123 = ssub.s32 %s30, %s42
      %s124 = ssub.s32 %s31, %s38
      %s125 = sor.u32 %s123, %s124
      %p126 = scmp.eq.s32.totalorder %s125, 0
      %s128 = sadd.s32 %s127, 1
      %s129 = scalar_select %p126, %s127, %s128
      %p132 = pneg %p126
      %p133 = scmp.eq.s32.totalorder %s23, 1
      %p134 = por %p132, %p133
      %p135 = scmp.ne.s32.totalorder %s127, %s130
      %p136 = scmp.eq.s32.totalorder %s23, 0
      %p137 = por %p135, %p136
      %p138 = scmp.ne.s32.totalorder %s127, %s130
      %p139 = scmp.eq.s32.totalorder %s28, 1
      %p140 = por %p138, %p139
      %p141 = scmp.ne.s32.totalorder %s130, %s131
      %p142 = scmp.eq.s32.totalorder %s28, 0
      %p143 = por %p141, %p142
      %p144 = scmp.ne.s32.totalorder %s130, %s131
      %p145 = scmp.eq.s32.totalorder %s29, 1
      %p146 = por %p144, %p145
      %p148 = scmp.ne.s32.totalorder %s131, %s147
      %p149 = scmp.eq.s32.totalorder %s29, 0
      %p150 = por %p148, %p149
      %s152 = sadd.s32 %s151, 1
      %p155 = scmp.eq.s32.totalorder %s23, 1
      %p156 = scmp.ne.s32.totalorder %s151, %s153
      %p157 = scmp.eq.s32.totalorder %s23, 0
      %p158 = por %p156, %p157
      %p159 = scmp.ne.s32.totalorder %s151, %s153
      %p160 = scmp.eq.s32.totalorder %s28, 1
      %p161 = por %p159, %p160
      %p162 = scmp.ne.s32.totalorder %s153, %s154
      %p163 = scmp.eq.s32.totalorder %s28, 0
      %p164 = por %p162, %p163
      %p165 = scmp.ne.s32.totalorder %s153, %s154
      %p166 = scmp.eq.s32.totalorder %s29, 1
      %p167 = por %p165, %p166
      %p169 = scmp.ne.s32.totalorder %s154, %s168
      %p170 = scmp.eq.s32.totalorder %s29, 0
      %p171 = por %p169, %p170
      %s173 = sadd.s32 %s172, 1
      %p176 = scmp.eq.s32.totalorder %s23, 1
      %p177 = scmp.ne.s32.totalorder %s172, %s174
      %p178 = scmp.eq.s32.totalorder %s23, 0
      %p179 = por %p177, %p178
      %p180 = scmp.ne.s32.totalorder %s172, %s174
      %p181 = scmp.eq.s32.totalorder %s28, 1
      %p182 = por %p180, %p181
      %p183 = scmp.ne.s32.totalorder %s174, %s175
      %p184 = scmp.eq.s32.totalorder %s28, 0
      %p185 = por %p183, %p184
      %p186 = scmp.ne.s32.totalorder %s174, %s175
      %p187 = scmp.eq.s32.totalorder %s29, 1
      %p188 = por %p186, %p187
      %p190 = scmp.ne.s32.totalorder %s175, %s189
      %p191 = scmp.eq.s32.totalorder %s29, 0
      %p192 = por %p190, %p191
      %s194 = sadd.s32 %s193, 1
      %p197 = scmp.eq.s32.totalorder %s23, 1
      %p198 = scmp.ne.s32.totalorder %s193, %s195
      %p199 = scmp.eq.s32.totalorder %s23, 0
      %p200 = por %p198, %p199
      %p201 = scmp.ne.s32.totalorder %s193, %s195
      %p202 = scmp.eq.s32.totalorder %s28, 1
      %p203 = por %p201, %p202
      %p204 = scmp.ne.s32.totalorder %s195, %s196
      %p205 = scmp.eq.s32.totalorder %s28, 0
      %p206 = por %p204, %p205
      %p207 = scmp.ne.s32.totalorder %s195, %s196
      %p208 = scmp.eq.s32.totalorder %s29, 1
      %p209 = por %p207, %p208
      %p211 = scmp.ne.s32.totalorder %s196, %s210
      %p212 = scmp.eq.s32.totalorder %s29, 0
      %p213 = por %p211, %p212
      %s215 = sadd.s32 %s214, 1
      %p218 = scmp.eq.s32.totalorder %s23, 1
      %p219 = scmp.ne.s32.totalorder %s214, %s216
      %p220 = scmp.eq.s32.totalorder %s23, 0
      %p221 = por %p219, %p220
      %p222 = scmp.ne.s32.totalorder %s214, %s216
      %p223 = scmp.eq.s32.totalorder %s28, 1
      %p224 = por %p222, %p223
      %p225 = scmp.ne.s32.totalorder %s216, %s217
      %p226 = scmp.eq.s32.totalorder %s28, 0
      %p227 = por %p225, %p226
      %p228 = scmp.ne.s32.totalorder %s216, %s217
      %p229 = scmp.eq.s32.totalorder %s29, 1
      %p230 = por %p228, %p229
      %p232 = scmp.ne.s32.totalorder %s217, %s231
      %p233 = scmp.eq.s32.totalorder %s29, 0
      %p234 = por %p232, %p233
      %s236 = sadd.s32 %s235, 1
      %p239 = scmp.eq.s32.totalorder %s23, 1
      %p240 = scmp.ne.s32.totalorder %s235, %s237
      %p241 = scmp.eq.s32.totalorder %s23, 0
      %p242 = por %p240, %p241
      %p243 = scmp.ne.s32.totalorder %s235, %s237
      %p244 = scmp.eq.s32.totalorder %s28, 1
      %p245 = por %p243, %p244
      %p246 = scmp.ne.s32.totalorder %s237, %s238
      %p247 = scmp.eq.s32.totalorder %s28, 0
      %p248 = por %p246, %p247
      %p249 = scmp.ne.s32.totalorder %s237, %s238
      %p250 = scmp.eq.s32.totalorder %s29, 1
      %p251 = por %p249, %p250
      %p253 = scmp.ne.s32.totalorder %s238, %s252
      %p254 = scmp.eq.s32.totalorder %s29, 0
      %p255 = por %p253, %p254
      %s256 = ssub.s32 %s30, %s42
      %s257 = ssub.s32 %s31, %s38
      %s258 = sor.u32 %s256, %s257
      %p259 = scmp.eq.s32.totalorder %s258, 0
      %s261 = sadd.s32 %s260, 1
      %s262 = scalar_select %p259, %s260, %s261
      %p265 = pneg %p259
      %p266 = scmp.eq.s32.totalorder %s23, 1
      %p267 = por %p265, %p266
      %p268 = scmp.ne.s32.totalorder %s260, %s263
      %p269 = scmp.eq.s32.totalorder %s23, 0
      %p270 = por %p268, %p269
      %p271 = scmp.ne.s32.totalorder %s260, %s263
      %p272 = scmp.eq.s32.totalorder %s28, 1
      %p273 = por %p271, %p272
      %p274 = scmp.ne.s32.totalorder %s263, %s264
      %p275 = scmp.eq.s32.totalorder %s28, 0
      %p276 = por %p274, %p275
      %p277 = scmp.ne.s32.totalorder %s263, %s264
      %p278 = scmp.eq.s32.totalorder %s29, 1
      %p279 = por %p277, %p278
      %p281 = scmp.ne.s32.totalorder %s264, %s280
      %p282 = scmp.eq.s32.totalorder %s29, 0
      %p283 = por %p281, %p282
      %s284 = ssub.s32 %s30, %s42
      %s285 = ssub.s32 %s31, %s38
      %s286 = sor.u32 %s284, %s285
      %p287 = scmp.eq.s32.totalorder %s286, 0
      %s289 = sadd.s32 %s288, 1
      %s290 = scalar_select %p287, %s288, %s289
      %p293 = pneg %p287
      %p294 = scmp.eq.s32.totalorder %s23, 1
      %p295 = por %p293, %p294
      %p296 = scmp.ne.s32.totalorder %s288, %s291
      %p297 = scmp.eq.s32.totalorder %s23, 0
      %p298 = por %p296, %p297
      %p299 = scmp.ne.s32.totalorder %s288, %s291
      %p300 = scmp.eq.s32.totalorder %s28, 1
      %p301 = por %p299, %p300
      %p302 = scmp.ne.s32.totalorder %s291, %s292
      %p303 = scmp.eq.s32.totalorder %s28, 0
      %p304 = por %p302, %p303
      %p305 = scmp.ne.s32.totalorder %s291, %s292
      %p306 = scmp.eq.s32.totalorder %s29, 1
      %p307 = por %p305, %p306
      %p309 = scmp.ne.s32.totalorder %s292, %s308
      %p310 = scmp.eq.s32.totalorder %s29, 0
      %p311 = por %p309, %p310
      %p312 = scmp.le.s32.totalorder 1, %s23
      %p313 = scmp.lt.s32.totalorder %s23, 3
      %p314 = pnand %p312, %p313
      %p315 = pneg %p314
      // Predicated region
      $region9: #{text_aware_transformer.3} parent=5 // pred_check
        _
      $region10: #{text_aware_transformer.3} parent=5 // pred_check_branch
        %317 = sbr.rel (%p314) target = $region12
      $region11: #{text_aware_transformer.3} parent=5 // pred_region
        %s318 = ssub.s32 %s23, 1
        // Predicated region
        $region13: #{text_aware_transformer.3} parent=11 // pred_check
          %p319 = pneg %p164
        $region14: #{text_aware_transformer.3} parent=11 // pred_check_branch
          %321 = sbr.rel (%p319) target = $region16
        $region15: #{text_aware_transformer.3} parent=11 // pred_region
          _
        $region16: #{text_aware_transformer.3} parent=11 // pred_fallthru
          _
        // Predicated region
        $region17: #{text_aware_transformer.3} parent=11 // pred_check
          %p322 = pneg %p185
        $region18: #{text_aware_transformer.3} parent=11 // pred_check_branch
          %324 = sbr.rel (%p322) target = $region20
        $region19: #{text_aware_transformer.3} parent=11 // pred_region
          _
        $region20: #{text_aware_transformer.3} parent=11 // pred_fallthru
          _
        // Predicated region
        $region21: #{text_aware_transformer.3} parent=11 // pred_check
          %p325 = pneg %p206
        $region22: #{text_aware_transformer.3} parent=11 // pred_check_branch
          %327 = sbr.rel (%p325) target = $region24
        $region23: #{text_aware_transformer.3} parent=11 // pred_region
          _
        $region24: #{text_aware_transformer.3} parent=11 // pred_fallthru
          _
        // Predicated region
        $region25: #{text_aware_transformer.3} parent=11 // pred_check
          %p328 = pneg %p227
        $region26: #{text_aware_transformer.3} parent=11 // pred_check_branch
          %330 = sbr.rel (%p328) target = $region28
        $region27: #{text_aware_transformer.3} parent=11 // pred_region
          _
        $region28: #{text_aware_transformer.3} parent=11 // pred_fallthru
          _
        // Predicated region
        $region29: #{text_aware_transformer.3} parent=11 // pred_check
          %p331 = pneg %p248
        $region30: #{text_aware_transformer.3} parent=11 // pred_check_branch
          %333 = sbr.rel (%p331) target = $region32
        $region31: #{text_aware_transformer.3} parent=11 // pred_region
          _
        $region32: #{text_aware_transformer.3} parent=11 // pred_fallthru
          _
      $region12: #{text_aware_transformer.3} parent=5 // pred_fallthru
        _
      %p334 = scmp.lt.s32.totalorder %s23, 2
      // Predicated region
      $region33: #{text_aware_transformer.3} parent=5 // pred_check
        %p335 = pneg %p334
      $region34: #{text_aware_transformer.3} parent=5 // pred_check_branch
        %337 = sbr.rel (%p335) target = $region36
      $region35: #{text_aware_transformer.3} parent=5 // pred_region
        // Predicated region
        $region37: #{text_aware_transformer.3} parent=35 // pred_check
          %p338 = pneg %p57
        $region38: #{text_aware_transformer.3} parent=35 // pred_check_branch
          %340 = sbr.rel (%p338) target = $region40
        $region39: #{text_aware_transformer.3} parent=35 // pred_region
          %p341 = scmp.lt.s32.totalorder %s30, 1
          %s342 = scalar_select %p341, %s30, 1
          %p343 = scmp.lt.s32.totalorder %s31, 0
          %s344 = scalar_select %p343, %s31, 0
          %s345 = sadd.s32 %s344, %s342
          %s346 = smul.addr %s345, 8
          %s347 = scalar_lea.vmem %s0, %s346
        $region40: #{text_aware_transformer.3} parent=35 // pred_fallthru
          _
        // Predicated region
        $region41: #{text_aware_transformer.3} parent=35 // pred_check
          %p348 = pneg %p83
        $region42: #{text_aware_transformer.3} parent=35 // pred_check_branch
          %350 = sbr.rel (%p348) target = $region44
        $region43: #{text_aware_transformer.3} parent=35 // pred_region
          %p351 = scmp.lt.s32.totalorder %s30, 1
          %s352 = scalar_select %p351, %s30, 1
          %s353 = smul.addr %s352, 8
          %s354 = scalar_lea.vmem %s1, %s353
        $region44: #{text_aware_transformer.3} parent=35 // pred_fallthru
          _
        // Predicated region
        $region45: #{text_aware_transformer.3} parent=35 // pred_check
          %p355 = pneg %p109
        $region46: #{text_aware_transformer.3} parent=35 // pred_check_branch
          %357 = sbr.rel (%p355) target = $region48
        $region47: #{text_aware_transformer.3} parent=35 // pred_region
          %p358 = scmp.lt.s32.totalorder %s30, 1
          %s359 = scalar_select %p358, %s30, 1
          %s360 = smul.addr %s359, 8
          %s361 = scalar_lea.vmem %s2, %s360
        $region48: #{text_aware_transformer.3} parent=35 // pred_fallthru
          _
        // Predicated region
        $region49: #{text_aware_transformer.3} parent=35 // pred_check
          %p362 = pneg %p137
        $region50: #{text_aware_transformer.3} parent=35 // pred_check_branch
          %364 = sbr.rel (%p362) target = $region52
        $region51: #{text_aware_transformer.3} parent=35 // pred_region
          %p365 = scmp.lt.s32.totalorder %s30, 1
          %s366 = scalar_select %p365, %s30, 1
          %p367 = scmp.lt.s32.totalorder %s31, 0
          %s368 = scalar_select %p367, %s31, 0
          %s369 = sadd.s32 %s368, %s366
          %s370 = smul.addr %s369, 8
          %s371 = scalar_lea.vmem %s3, %s370
        $region52: #{text_aware_transformer.3} parent=35 // pred_fallthru
          _
      $region36: #{text_aware_transformer.3} parent=5 // pred_fallthru
        _
      %p372 = scmp.le.s32.totalorder 1, %s23
      %p373 = scmp.lt.s32.totalorder %s23, 3
      %p374 = pnand %p372, %p373
      %p375 = pneg %p374
      // Predicated region
      $region53: #{text_aware_transformer.3} parent=5 // pred_check
        _
      $region54: #{text_aware_transformer.3} parent=5 // pred_check_branch
        %377 = sbr.rel (%p374) target = $region56
      $region55: #{text_aware_transformer.3} parent=5 // pred_region
        %s378 = ssub.s32 %s23, 1
        %p379 = scmp.lt.s32.totalorder %s32, 1
        %s380 = scalar_select %p379, %s32, 1
        %p381 = scmp.lt.s32.totalorder %s33, 0
        %s382 = scalar_select %p381, %s33, 0
        %s383 = sadd.s32 %s382, %s380
        %s384 = smul.addr %s383, 8
        %s385 = scalar_lea.vmem %s0, %s384
        %p386 = pneg %p63
        %p387 = pneg %p60
        %p388 = scmp.lt.s32.totalorder %s32, 1
        %s389 = scalar_select %p388, %s32, 1
        %s390 = smul.addr %s389, 8
        %s391 = scalar_lea.vmem %s1, %s390
        %p392 = pneg %p89
        %p393 = pneg %p86
        %p394 = scmp.lt.s32.totalorder %s32, 1
        %s395 = scalar_select %p394, %s32, 1
        %s396 = smul.addr %s395, 8
        %s397 = scalar_lea.vmem %s2, %s396
        %p398 = pneg %p115
        %p399 = pneg %p112
        %p400 = scmp.lt.s32.totalorder %s32, 1
        %s401 = scalar_select %p400, %s32, 1
        %p402 = scmp.lt.s32.totalorder %s33, 0
        %s403 = scalar_select %p402, %s33, 0
        %s404 = sadd.s32 %s403, %s401
        %s405 = smul.addr %s404, 8
        %s406 = scalar_lea.vmem %s3, %s405
        %p407 = pneg %p143
        %p408 = pneg %p140
        %p409 = pneg %p164
        %p410 = pneg %p161
        %p411 = pneg %p185
        %p412 = pneg %p182
        %p413 = pneg %p206
        %p414 = pneg %p203
        %p415 = pneg %p227
        %p416 = pneg %p224
        %p417 = pneg %p248
        %p418 = pneg %p245
        %p419 = pneg %p276
        %p420 = pneg %p273
        %s421 = sand.u32 %s263, 1
        %s422 = scalar_lea.sflag [#allocation6], %s421
        %s423 = sand.u32 %s263, 1
        %s424 = smul.addr %s423, 8
        %s425 = scalar_lea.vmem [#allocation5], %s424
        %p426 = pneg %p304
        %p427 = pneg %p301
        %s428 = sand.u32 %s291, 1
        %s429 = scalar_lea.sflag [#allocation8], %s428
        %s430 = sand.u32 %s291, 1
        %s431 = smul.addr %s430, 16
        %s432 = scalar_lea.vmem [#allocation7], %s431
        %p433 = scmp.lt.s32.totalorder %s32, 1
        %s434 = scalar_select %p433, %s32, 1
        %p435 = scmp.lt.s32.totalorder %s33, 0
        %s436 = scalar_select %p435, %s33, 0
        %s437 = sadd.s32 %s436, %s434
        %s438 = smul.addr %s437, 8
        %s439 = scalar_lea.vmem %s0, %s438
        %p440 = scmp.lt.s32.totalorder %s32, 1
        %s441 = scalar_select %p440, %s32, 1
        %s442 = smul.addr %s441, 8
        %s443 = scalar_lea.vmem %s1, %s442
        %p444 = scmp.lt.s32.totalorder %s32, 1
        %s445 = scalar_select %p444, %s32, 1
        %s446 = smul.addr %s445, 8
        %s447 = scalar_lea.vmem %s2, %s446
        %p448 = scmp.lt.s32.totalorder %s32, 1
        %s449 = scalar_select %p448, %s32, 1
        %p450 = scmp.lt.s32.totalorder %s33, 0
        %s451 = scalar_select %p450, %s33, 0
        %s452 = sadd.s32 %s451, %s449
        %s453 = smul.addr %s452, 8
        %s454 = scalar_lea.vmem %s3, %s453
        %v455 = vld [vmem:[%s4] sm:$0xff]
        %v456 = vld [vmem:[%s4 + $0x8] sm:$0x1f]
        %p457 = scmp.eq.s32.totalorder %s33, 0
        // Predicated region
        $region57: #{text_aware_transformer.3} parent=55 // pred_check
          %p458 = pneg %p457
        $region58: #{text_aware_transformer.3} parent=55 // pred_check_branch
          %460 = sbr.rel (%p458) target = $region60
        $region59: #{text_aware_transformer.3} parent=55 // pred_region
          %v461 = vld [vmem:[%s443] sm:$0xff]
          %vm462 = vcmask 261120
          %v463 = vsel %vm462, %v461, 0.0
          %464 = vadd.xlane.f32.xlu0 %v463
          %v465 = vpop.xlane.xlu0 %464
          %v466 = vrcp.pop 32.0
          %v467 = vmul.f32 %v465, %v466
          %v468 = vsub.f32 %v461, %v467
          %v469 = vmul.f32 %v468, %v468
          %v470 = vsel %vm462, %v469, 0.0
          %471 = vadd.xlane.f32.xlu0 %v470
          %v472 = vpop.xlane.xlu0 %471
          %v473 = vmul.f32 %v472, %v466
          %v474 = vadd.f32 %v473, 1e-08
          %v475 = vrsqrt.pop %v474
          %v476 = vmul.f32 %v468, %v475
          %v477 = vlaneseq
          %v478 = vshrl.u32 %v477, 7
          %v479 = vsub.s32 2, %v478
          %v480 = vrot.slane %v455, %v479
          %v481 = vmul.f32 %v476, %v480
          %v482 = vlaneseq
          %v483 = vshrl.u32 %v482, 7
          %v484 = vsub.s32 3, %v483
          %v485 = vrot.slane %v455, %v484
          %v486 = vadd.f32 %v481, %v485
          %v487 = vld [vmem:[%s447] sm:$0xff]
          %v488 = vsel %vm462, %v487, 0.0
          %489 = vadd.xlane.f32.xlu0 %v488
          %v490 = vpop.xlane.xlu0 %489
          %v491 = vmul.f32 %v490, %v466
          %v492 = vsub.f32 %v487, %v491
          %v493 = vmul.f32 %v492, %v492
          %v494 = vsel %vm462, %v493, 0.0
          %495 = vadd.xlane.f32.xlu0 %v494
          %v496 = vpop.xlane.xlu0 %495
          %v497 = vmul.f32 %v496, %v466
          %v498 = vadd.f32 %v497, 1e-08
          %v499 = vrsqrt.pop %v498
          %v500 = vmul.f32 %v492, %v499
          %v501 = vlaneseq
          %v502 = vshrl.u32 %v501, 7
          %v503 = vsub.s32 4, %v502
          %v504 = vrot.slane %v455, %v503
          %v505 = vmul.f32 %v500, %v504
          %v506 = vlaneseq
          %v507 = vshrl.u32 %v506, 7
          %v508 = vsub.s32 5, %v507
          %v509 = vrot.slane %v455, %v508
          %v510 = vadd.f32 %v505, %v509
          %511 = vst.msk [vmem:[#allocation2] sm:$0xff] %vm462, %v486
          %s512 = scalar_lea.vmem %s5, 64
          %v513 = vld [vmem:[%s512] sm:$0xff]
          %v514 = vld [vmem:[%s512 + $0x8] sm:$0xff]
          %v515 = vld [vmem:[%s512 + $0x10] sm:$0xff]
          %v516 = vld [vmem:[%s512 + $0x18] sm:$0xff]
          %v517 = vld [vmem:[%s512 + $0x20] sm:$0xff]
          %v518 = vld [vmem:[%s512 + $0x28] sm:$0xff]
          %v519 = vld [vmem:[%s512 + $0x30] sm:$0xff]
          %v520 = vld [vmem:[%s512 + $0x38] sm:$0xff]
          %s521 = scalar_lea.vmem %s6, 2
          %v522 = vld [vmem:[%s521] sm:$0x1]
          %v523 = vld [vmem:[%s521 + $0x1] sm:$0x1]
          %v526 = vlaneseq
          %v527 = vshrl.u32 %v526, 7
          %v528 = vsub.s32 0, %v527
          %v529 = vrot.slane %v522, %v528
          %v530 = vlaneseq
          %v531 = vshrl.u32 %v530, 7
          %v532 = vsub.s32 0, %v531
          %v533 = vrot.slane %v523, %v532
          %v537 = vsel %vm462, %v486, 0
          %539 = vmatprep.subr.mxu0 0.0
          %540 = vmatpush1.msra.mxu0 0.0
          %541 = vmatprep.subr.mxu0 0.0
          %542 = vmatpush1.msra.mxu0 0.0
          %543 = vmatprep.subr.mxu0 0.0
          %544 = vmatpush1.msra.mxu0 0.0
          %545 = vmatprep.subr.mxu0 0.0
          %546 = vmatpush1.msra.mxu0 0.0
          %547 = vmatprep.subr.mxu0 0.0
          %548 = vmatpush1.msra.mxu0 0.0
          %549 = vmatprep.subr.mxu0 0.0
          %550 = vmatpush1.msra.mxu0 0.0
          %551 = vmatprep.subr.mxu0 0.0
          %552 = vmatpush1.msra.mxu0 0.0
          %553 = vmatprep.subr.mxu0 0.0
          %554 = vmatpush1.msra.mxu0 0.0
          %555 = vmatprep.subr.mxu0 0.0
          %556 = vmatpush1.msra.mxu0 0.0
          %557 = vmatprep.subr.mxu0 0.0
          %558 = vmatpush1.msra.mxu0 0.0
          %559 = vmatprep.subr.mxu0 0.0
          %560 = vmatpush1.msra.mxu0 0.0
          %561 = vmatprep.subr.mxu0 0.0
          %562 = vmatpush1.msra.mxu0 0.0
          %563 = vmatprep.subr.mxu0 0.0
          %564 = vmatpush1.msra.mxu0 %v516
          %565 = vmatprep.subr.mxu0 0.0
          %566 = vmatpush1.msra.mxu0 %v515
          %567 = vmatprep.subr.mxu0 0.0
          %568 = vmatpush1.msra.mxu0 %v514
          %569 = vmatprep.subr.mxu0 0.0
          %570 = vmatpush1.msra.mxu0 %v513
          %571 = vmatprep.subr.mxu0 0.0
          %572 = vmatpush2.msra.mxu0 0.0
          %573 = vmatprep.subr.mxu0 0.0
          %574 = vmatpush2.msra.mxu0 0.0
          %575 = vmatprep.subr.mxu0 0.0
          %576 = vmatpush2.msra.mxu0 0.0
          %577 = vmatprep.subr.mxu0 0.0
          %578 = vmatpush2.msra.mxu0 0.0
          %579 = vmatprep.subr.mxu0 0.0
          %580 = vmatpush2.msra.mxu0 0.0
          %581 = vmatprep.subr.mxu0 0.0
          %582 = vmatpush2.msra.mxu0 0.0
          %583 = vmatprep.subr.mxu0 0.0
          %584 = vmatpush2.msra.mxu0 0.0
          %585 = vmatprep.subr.mxu0 0.0
          %586 = vmatpush2.msra.mxu0 0.0
          %587 = vmatprep.subr.mxu0 0.0
          %588 = vmatpush2.msra.mxu0 0.0
          %589 = vmatprep.subr.mxu0 0.0
          %590 = vmatpush2.msra.mxu0 0.0
          %591 = vmatprep.subr.mxu0 0.0
          %592 = vmatpush2.msra.mxu0 0.0
          %593 = vmatprep.subr.mxu0 0.0
          %594 = vmatpush2.msra.mxu0 0.0
          %595 = vmatprep.subr.mxu0 0.0
          %596 = vmatpush2.msra.mxu0 0.0
          %597 = vmatprep.subr.mxu0 0.0
          %598 = vmatpush2.msra.mxu0 0.0
          %599 = vmatprep.subr.mxu0 0.0
          %600 = vmatpush2.msra.mxu0 0.0
          %601 = vmatprep.subr.mxu0 0.0
          %602 = vmatpush2.msra.mxu0 0.0
          %603 = vmatprep.mubr.f32.mxu0 0.0
          %604 = vmatmul.mubr.f32.gmra.mxu0 %v537
          %v605 = vpop.f32.mrf.mxu0
          %v606 = vadd.f32 %v529, %v605
          %v607 = vpop.f32.mrf.mxu0
          %608 = vdwg.mxu0
          %609 = vmatprep.subr.mxu0 0.0
          %610 = vmatpush1.msra.mxu0 0.0
          %611 = vmatprep.subr.mxu0 0.0
          %612 = vmatpush1.msra.mxu0 0.0
          %613 = vmatprep.subr.mxu0 0.0
          %614 = vmatpush1.msra.mxu0 0.0
          %615 = vmatprep.subr.mxu0 0.0
          %616 = vmatpush1.msra.mxu0 0.0
          %617 = vmatprep.subr.mxu0 0.0
          %618 = vmatpush1.msra.mxu0 0.0
          %619 = vmatprep.subr.mxu0 0.0
          %620 = vmatpush1.msra.mxu0 0.0
          %621 = vmatprep.subr.mxu0 0.0
          %622 = vmatpush1.msra.mxu0 0.0
          %623 = vmatprep.subr.mxu0 0.0
          %624 = vmatpush1.msra.mxu0 0.0
          %625 = vmatprep.subr.mxu0 0.0
          %626 = vmatpush1.msra.mxu0 0.0
          %627 = vmatprep.subr.mxu0 0.0
          %628 = vmatpush1.msra.mxu0 0.0
          %629 = vmatprep.subr.mxu0 0.0
          %630 = vmatpush1.msra.mxu0 0.0
          %631 = vmatprep.subr.mxu0 0.0
          %632 = vmatpush1.msra.mxu0 0.0
          %633 = vmatprep.subr.mxu0 0.0
          %634 = vmatpush1.msra.mxu0 %v520
          %635 = vmatprep.subr.mxu0 0.0
          %636 = vmatpush1.msra.mxu0 %v519
          %637 = vmatprep.subr.mxu0 0.0
          %638 = vmatpush1.msra.mxu0 %v518
          %639 = vmatprep.subr.mxu0 0.0
          %640 = vmatpush1.msra.mxu0 %v517
          %641 = vmatprep.subr.mxu0 0.0
          %642 = vmatpush2.msra.mxu0 0.0
          %643 = vmatprep.subr.mxu0 0.0
          %644 = vmatpush2.msra.mxu0 0.0
          %645 = vmatprep.subr.mxu0 0.0
          %646 = vmatpush2.msra.mxu0 0.0
          %647 = vmatprep.subr.mxu0 0.0
          %648 = vmatpush2.msra.mxu0 0.0
          %649 = vmatprep.subr.mxu0 0.0
          %650 = vmatpush2.msra.mxu0 0.0
          %651 = vmatprep.subr.mxu0 0.0
          %652 = vmatpush2.msra.mxu0 0.0
          %653 = vmatprep.subr.mxu0 0.0
          %654 = vmatpush2.msra.mxu0 0.0
          %655 = vmatprep.subr.mxu0 0.0
          %656 = vmatpush2.msra.mxu0 0.0
          %657 = vmatprep.subr.mxu0 0.0
          %658 = vmatpush2.msra.mxu0 0.0
          %659 = vmatprep.subr.mxu0 0.0
          %660 = vmatpush2.msra.mxu0 0.0
          %661 = vmatprep.subr.mxu0 0.0
          %662 = vmatpush2.msra.mxu0 0.0
          %663 = vmatprep.subr.mxu0 0.0
          %664 = vmatpush2.msra.mxu0 0.0
          %665 = vmatprep.subr.mxu0 0.0
          %666 = vmatpush2.msra.mxu0 0.0
          %667 = vmatprep.subr.mxu0 0.0
          %668 = vmatpush2.msra.mxu0 0.0
          %669 = vmatprep.subr.mxu0 0.0
          %670 = vmatpush2.msra.mxu0 0.0
          %671 = vmatprep.subr.mxu0 0.0
          %672 = vmatpush2.msra.mxu0 0.0
          %673 = vmatprep.mubr.f32.mxu0 0.0
          %674 = vmatmul.mubr.f32.gmra.mxu0 %v537
          %v675 = vpop.f32.mrf.mxu0
          %v676 = vadd.f32 %v533, %v675
          %v677 = vpop.f32.mrf.mxu0
          %678 = vdwg.mxu0
          %vm679 = vcmask 130048
          %680 = vst.msk [vmem:[#allocation3] sm:$0xff] %vm679, %v606
          %681 = vst.msk [vmem:[#allocation3 + $0x8] sm:$0xff] %vm679, %v676
          %s682 = scalar_lea.vmem %s5, 128
          %v683 = vld [vmem:[%s682] sm:$0xff]
          %v684 = vld [vmem:[%s682 + $0x8] sm:$0xff]
          %v685 = vld [vmem:[%s682 + $0x10] sm:$0xff]
          %v686 = vld [vmem:[%s682 + $0x18] sm:$0xff]
          %v687 = vld [vmem:[%s682 + $0x20] sm:$0xff]
          %v688 = vld [vmem:[%s682 + $0x28] sm:$0xff]
          %v689 = vld [vmem:[%s682 + $0x30] sm:$0xff]
          %v690 = vld [vmem:[%s682 + $0x38] sm:$0xff]
          %s691 = scalar_lea.vmem %s6, 4
          %v692 = vld [vmem:[%s691] sm:$0x1]
          %v693 = vld [vmem:[%s691 + $0x1] sm:$0x1]
          %v696 = vlaneseq
          %v697 = vshrl.u32 %v696, 7
          %v698 = vsub.s32 0, %v697
          %v699 = vrot.slane %v692, %v698
          %v700 = vlaneseq
          %v701 = vshrl.u32 %v700, 7
          %v702 = vsub.s32 0, %v701
          %v703 = vrot.slane %v693, %v702
          %v707 = vsel %vm462, %v510, 0
          %709 = vmatprep.subr.mxu0 0.0
          %710 = vmatpush1.msra.mxu0 0.0
          %711 = vmatprep.subr.mxu0 0.0
          %712 = vmatpush1.msra.mxu0 0.0
          %713 = vmatprep.subr.mxu0 0.0
          %714 = vmatpush1.msra.mxu0 0.0
          %715 = vmatprep.subr.mxu0 0.0
          %716 = vmatpush1.msra.mxu0 0.0
          %717 = vmatprep.subr.mxu0 0.0
          %718 = vmatpush1.msra.mxu0 0.0
          %719 = vmatprep.subr.mxu0 0.0
          %720 = vmatpush1.msra.mxu0 0.0
          %721 = vmatprep.subr.mxu0 0.0
          %722 = vmatpush1.msra.mxu0 0.0
          %723 = vmatprep.subr.mxu0 0.0
          %724 = vmatpush1.msra.mxu0 0.0
          %725 = vmatprep.subr.mxu0 0.0
          %726 = vmatpush1.msra.mxu0 0.0
          %727 = vmatprep.subr.mxu0 0.0
          %728 = vmatpush1.msra.mxu0 0.0
          %729 = vmatprep.subr.mxu0 0.0
          %730 = vmatpush1.msra.mxu0 0.0
          %731 = vmatprep.subr.mxu0 0.0
          %732 = vmatpush1.msra.mxu0 0.0
          %733 = vmatprep.subr.mxu0 0.0
          %734 = vmatpush1.msra.mxu0 %v686
          %735 = vmatprep.subr.mxu0 0.0
          %736 = vmatpush1.msra.mxu0 %v685
          %737 = vmatprep.subr.mxu0 0.0
          %738 = vmatpush1.msra.mxu0 %v684
          %739 = vmatprep.subr.mxu0 0.0
          %740 = vmatpush1.msra.mxu0 %v683
          %741 = vmatprep.subr.mxu0 0.0
          %742 = vmatpush2.msra.mxu0 0.0
          %743 = vmatprep.subr.mxu0 0.0
          %744 = vmatpush2.msra.mxu0 0.0
          %745 = vmatprep.subr.mxu0 0.0
          %746 = vmatpush2.msra.mxu0 0.0
          %747 = vmatprep.subr.mxu0 0.0
          %748 = vmatpush2.msra.mxu0 0.0
          %749 = vmatprep.subr.mxu0 0.0
          %750 = vmatpush2.msra.mxu0 0.0
          %751 = vmatprep.subr.mxu0 0.0
          %752 = vmatpush2.msra.mxu0 0.0
          %753 = vmatprep.subr.mxu0 0.0
          %754 = vmatpush2.msra.mxu0 0.0
          %755 = vmatprep.subr.mxu0 0.0
          %756 = vmatpush2.msra.mxu0 0.0
          %757 = vmatprep.subr.mxu0 0.0
          %758 = vmatpush2.msra.mxu0 0.0
          %759 = vmatprep.subr.mxu0 0.0
          %760 = vmatpush2.msra.mxu0 0.0
          %761 = vmatprep.subr.mxu0 0.0
          %762 = vmatpush2.msra.mxu0 0.0
          %763 = vmatprep.subr.mxu0 0.0
          %764 = vmatpush2.msra.mxu0 0.0
          %765 = vmatprep.subr.mxu0 0.0
          %766 = vmatpush2.msra.mxu0 0.0
          %767 = vmatprep.subr.mxu0 0.0
          %768 = vmatpush2.msra.mxu0 0.0
          %769 = vmatprep.subr.mxu0 0.0
          %770 = vmatpush2.msra.mxu0 0.0
          %771 = vmatprep.subr.mxu0 0.0
          %772 = vmatpush2.msra.mxu0 0.0
          %773 = vmatprep.mubr.f32.mxu0 0.0
          %774 = vmatmul.mubr.f32.gmra.mxu0 %v707
          %v775 = vpop.f32.mrf.mxu0
          %v776 = vadd.f32 %v699, %v775
          %v777 = vpop.f32.mrf.mxu0
          %778 = vdwg.mxu0
          %779 = vmatprep.subr.mxu0 0.0
          %780 = vmatpush1.msra.mxu0 0.0
          %781 = vmatprep.subr.mxu0 0.0
          %782 = vmatpush1.msra.mxu0 0.0
          %783 = vmatprep.subr.mxu0 0.0
          %784 = vmatpush1.msra.mxu0 0.0
          %785 = vmatprep.subr.mxu0 0.0
          %786 = vmatpush1.msra.mxu0 0.0
          %787 = vmatprep.subr.mxu0 0.0
          %788 = vmatpush1.msra.mxu0 0.0
          %789 = vmatprep.subr.mxu0 0.0
          %790 = vmatpush1.msra.mxu0 0.0
          %791 = vmatprep.subr.mxu0 0.0
          %792 = vmatpush1.msra.mxu0 0.0
          %793 = vmatprep.subr.mxu0 0.0
          %794 = vmatpush1.msra.mxu0 0.0
          %795 = vmatprep.subr.mxu0 0.0
          %796 = vmatpush1.msra.mxu0 0.0
          %797 = vmatprep.subr.mxu0 0.0
          %798 = vmatpush1.msra.mxu0 0.0
          %799 = vmatprep.subr.mxu0 0.0
          %800 = vmatpush1.msra.mxu0 0.0
          %801 = vmatprep.subr.mxu0 0.0
          %802 = vmatpush1.msra.mxu0 0.0
          %803 = vmatprep.subr.mxu0 0.0
          %804 = vmatpush1.msra.mxu0 %v690
          %805 = vmatprep.subr.mxu0 0.0
          %806 = vmatpush1.msra.mxu0 %v689
          %807 = vmatprep.subr.mxu0 0.0
          %808 = vmatpush1.msra.mxu0 %v688
          %809 = vmatprep.subr.mxu0 0.0
          %810 = vmatpush1.msra.mxu0 %v687
          %811 = vmatprep.subr.mxu0 0.0
          %812 = vmatpush2.msra.mxu0 0.0
          %813 = vmatprep.subr.mxu0 0.0
          %814 = vmatpush2.msra.mxu0 0.0
          %815 = vmatprep.subr.mxu0 0.0
          %816 = vmatpush2.msra.mxu0 0.0
          %817 = vmatprep.subr.mxu0 0.0
          %818 = vmatpush2.msra.mxu0 0.0
          %819 = vmatprep.subr.mxu0 0.0
          %820 = vmatpush2.msra.mxu0 0.0
          %821 = vmatprep.subr.mxu0 0.0
          %822 = vmatpush2.msra.mxu0 0.0
          %823 = vmatprep.subr.mxu0 0.0
          %824 = vmatpush2.msra.mxu0 0.0
          %825 = vmatprep.subr.mxu0 0.0
          %826 = vmatpush2.msra.mxu0 0.0
          %827 = vmatprep.subr.mxu0 0.0
          %828 = vmatpush2.msra.mxu0 0.0
          %829 = vmatprep.subr.mxu0 0.0
          %830 = vmatpush2.msra.mxu0 0.0
          %831 = vmatprep.subr.mxu0 0.0
          %832 = vmatpush2.msra.mxu0 0.0
          %833 = vmatprep.subr.mxu0 0.0
          %834 = vmatpush2.msra.mxu0 0.0
          %835 = vmatprep.subr.mxu0 0.0
          %836 = vmatpush2.msra.mxu0 0.0
          %837 = vmatprep.subr.mxu0 0.0
          %838 = vmatpush2.msra.mxu0 0.0
          %839 = vmatprep.subr.mxu0 0.0
          %840 = vmatpush2.msra.mxu0 0.0
          %841 = vmatprep.subr.mxu0 0.0
          %842 = vmatpush2.msra.mxu0 0.0
          %843 = vmatprep.mubr.f32.mxu0 0.0
          %844 = vmatmul.mubr.f32.gmra.mxu0 %v707
          %v845 = vpop.f32.mrf.mxu0
          %v846 = vadd.f32 %v703, %v845
          %v847 = vpop.f32.mrf.mxu0
          %848 = vdwg.mxu0
          %849 = vst.msk [vmem:[#allocation4] sm:$0xff] %vm679, %v776
          %850 = vst.msk [vmem:[#allocation4 + $0x8] sm:$0xff] %vm679, %v846
        $region60: #{text_aware_transformer.3} parent=55 // pred_fallthru
          _
        %v851 = vld [vmem:[%s439] sm:$0xff]
        %vm852 = vcmask 261120
        %v853 = vsel %vm852, %v851, 0.0
        %854 = vadd.xlane.f32.xlu0 %v853
        %v855 = vpop.xlane.xlu0 %854
        %v856 = vrcp.pop 32.0
        %v857 = vmul.f32 %v855, %v856
        %v858 = vsub.f32 %v851, %v857
        %v859 = vmul.f32 %v858, %v858
        %v860 = vsel %vm852, %v859, 0.0
        %861 = vadd.xlane.f32.xlu0 %v860
        %v862 = vpop.xlane.xlu0 %861
        %v863 = vmul.f32 %v862, %v856
        %v864 = vadd.f32 %v863, 1e-08
        %v865 = vrsqrt.pop %v864
        %v866 = vmul.f32 %v858, %v865
        %v867 = vlaneseq
        %v868 = vshrl.u32 %v867, 7
        %v869 = vsub.s32 0, %v868
        %v870 = vrot.slane %v455, %v869
        %v871 = vmul.f32 %v866, %v870
        %v872 = vlaneseq
        %v873 = vshrl.u32 %v872, 7
        %v874 = vsub.s32 1, %v873
        %v875 = vrot.slane %v455, %v874
        %v876 = vadd.f32 %v871, %v875
        %v877 = vld [vmem:[%s5] sm:$0xff]
        %v878 = vld [vmem:[%s5 + $0x8] sm:$0xff]
        %v879 = vld [vmem:[%s5 + $0x10] sm:$0xff]
        %v880 = vld [vmem:[%s5 + $0x18] sm:$0xff]
        %v881 = vld [vmem:[%s5 + $0x20] sm:$0xff]
        %v882 = vld [vmem:[%s5 + $0x28] sm:$0xff]
        %v883 = vld [vmem:[%s5 + $0x30] sm:$0xff]
        %v884 = vld [vmem:[%s5 + $0x38] sm:$0xff]
        %v885 = vld [vmem:[%s6] sm:$0x1]
        %v886 = vld [vmem:[%s6 + $0x1] sm:$0x1]
        %v889 = vlaneseq
        %v890 = vshrl.u32 %v889, 7
        %v891 = vsub.s32 0, %v890
        %v892 = vrot.slane %v885, %v891
        %v893 = vlaneseq
        %v894 = vshrl.u32 %v893, 7
        %v895 = vsub.s32 0, %v894
        %v896 = vrot.slane %v886, %v895
        %v900 = vsel %vm852, %v876, 0
        %902 = vmatprep.subr.mxu0 0.0
        %903 = vmatpush1.msra.mxu0 0.0
        %904 = vmatprep.subr.mxu0 0.0
        %905 = vmatpush1.msra.mxu0 0.0
        %906 = vmatprep.subr.mxu0 0.0
        %907 = vmatpush1.msra.mxu0 0.0
        %908 = vmatprep.subr.mxu0 0.0
        %909 = vmatpush1.msra.mxu0 0.0
        %910 = vmatprep.subr.mxu0 0.0
        %911 = vmatpush1.msra.mxu0 0.0
        %912 = vmatprep.subr.mxu0 0.0
        %913 = vmatpush1.msra.mxu0 0.0
        %914 = vmatprep.subr.mxu0 0.0
        %915 = vmatpush1.msra.mxu0 0.0
        %916 = vmatprep.subr.mxu0 0.0
        %917 = vmatpush1.msra.mxu0 0.0
        %918 = vmatprep.subr.mxu0 0.0
        %919 = vmatpush1.msra.mxu0 0.0
        %920 = vmatprep.subr.mxu0 0.0
        %921 = vmatpush1.msra.mxu0 0.0
        %922 = vmatprep.subr.mxu0 0.0
        %923 = vmatpush1.msra.mxu0 0.0
        %924 = vmatprep.subr.mxu0 0.0
        %925 = vmatpush1.msra.mxu0 0.0
        %926 = vmatprep.subr.mxu0 0.0
        %927 = vmatpush1.msra.mxu0 %v880
        %928 = vmatprep.subr.mxu0 0.0
        %929 = vmatpush1.msra.mxu0 %v879
        %930 = vmatprep.subr.mxu0 0.0
        %931 = vmatpush1.msra.mxu0 %v878
        %932 = vmatprep.subr.mxu0 0.0
        %933 = vmatpush1.msra.mxu0 %v877
        %934 = vmatprep.subr.mxu0 0.0
        %935 = vmatpush2.msra.mxu0 0.0
        %936 = vmatprep.subr.mxu0 0.0
        %937 = vmatpush2.msra.mxu0 0.0
        %938 = vmatprep.subr.mxu0 0.0
        %939 = vmatpush2.msra.mxu0 0.0
        %940 = vmatprep.subr.mxu0 0.0
        %941 = vmatpush2.msra.mxu0 0.0
        %942 = vmatprep.subr.mxu0 0.0
        %943 = vmatpush2.msra.mxu0 0.0
        %944 = vmatprep.subr.mxu0 0.0
        %945 = vmatpush2.msra.mxu0 0.0
        %946 = vmatprep.subr.mxu0 0.0
        %947 = vmatpush2.msra.mxu0 0.0
        %948 = vmatprep.subr.mxu0 0.0
        %949 = vmatpush2.msra.mxu0 0.0
        %950 = vmatprep.subr.mxu0 0.0
        %951 = vmatpush2.msra.mxu0 0.0
        %952 = vmatprep.subr.mxu0 0.0
        %953 = vmatpush2.msra.mxu0 0.0
        %954 = vmatprep.subr.mxu0 0.0
        %955 = vmatpush2.msra.mxu0 0.0
        %956 = vmatprep.subr.mxu0 0.0
        %957 = vmatpush2.msra.mxu0 0.0
        %958 = vmatprep.subr.mxu0 0.0
        %959 = vmatpush2.msra.mxu0 0.0
        %960 = vmatprep.subr.mxu0 0.0
        %961 = vmatpush2.msra.mxu0 0.0
        %962 = vmatprep.subr.mxu0 0.0
        %963 = vmatpush2.msra.mxu0 0.0
        %964 = vmatprep.subr.mxu0 0.0
        %965 = vmatpush2.msra.mxu0 0.0
        %966 = vmatprep.mubr.f32.mxu0 0.0
        %967 = vmatmul.mubr.f32.gmra.mxu0 %v900
        %v968 = vpop.f32.mrf.mxu0
        %v969 = vadd.f32 %v892, %v968
        %v970 = vpop.f32.mrf.mxu0
        %971 = vdwg.mxu0
        %972 = vmatprep.subr.mxu0 0.0
        %973 = vmatpush1.msra.mxu0 0.0
        %974 = vmatprep.subr.mxu0 0.0
        %975 = vmatpush1.msra.mxu0 0.0
        %976 = vmatprep.subr.mxu0 0.0
        %977 = vmatpush1.msra.mxu0 0.0
        %978 = vmatprep.subr.mxu0 0.0
        %979 = vmatpush1.msra.mxu0 0.0
        %980 = vmatprep.subr.mxu0 0.0
        %981 = vmatpush1.msra.mxu0 0.0
        %982 = vmatprep.subr.mxu0 0.0
        %983 = vmatpush1.msra.mxu0 0.0
        %984 = vmatprep.subr.mxu0 0.0
        %985 = vmatpush1.msra.mxu0 0.0
        %986 = vmatprep.subr.mxu0 0.0
        %987 = vmatpush1.msra.mxu0 0.0
        %988 = vmatprep.subr.mxu0 0.0
        %989 = vmatpush1.msra.mxu0 0.0
        %990 = vmatprep.subr.mxu0 0.0
        %991 = vmatpush1.msra.mxu0 0.0
        %992 = vmatprep.subr.mxu0 0.0
        %993 = vmatpush1.msra.mxu0 0.0
        %994 = vmatprep.subr.mxu0 0.0
        %995 = vmatpush1.msra.mxu0 0.0
        %996 = vmatprep.subr.mxu0 0.0
        %997 = vmatpush1.msra.mxu0 %v884
        %998 = vmatprep.subr.mxu0 0.0
        %999 = vmatpush1.msra.mxu0 %v883
        %1000 = vmatprep.subr.mxu0 0.0
        %1001 = vmatpush1.msra.mxu0 %v882
        %1002 = vmatprep.subr.mxu0 0.0
        %1003 = vmatpush1.msra.mxu0 %v881
        %1004 = vmatprep.subr.mxu0 0.0
        %1005 = vmatpush2.msra.mxu0 0.0
        %1006 = vmatprep.subr.mxu0 0.0
        %1007 = vmatpush2.msra.mxu0 0.0
        %1008 = vmatprep.subr.mxu0 0.0
        %1009 = vmatpush2.msra.mxu0 0.0
        %1010 = vmatprep.subr.mxu0 0.0
        %1011 = vmatpush2.msra.mxu0 0.0
        %1012 = vmatprep.subr.mxu0 0.0
        %1013 = vmatpush2.msra.mxu0 0.0
        %1014 = vmatprep.subr.mxu0 0.0
        %1015 = vmatpush2.msra.mxu0 0.0
        %1016 = vmatprep.subr.mxu0 0.0
        %1017 = vmatpush2.msra.mxu0 0.0
        %1018 = vmatprep.subr.mxu0 0.0
        %1019 = vmatpush2.msra.mxu0 0.0
        %1020 = vmatprep.subr.mxu0 0.0
        %1021 = vmatpush2.msra.mxu0 0.0
        %1022 = vmatprep.subr.mxu0 0.0
        %1023 = vmatpush2.msra.mxu0 0.0
        %1024 = vmatprep.subr.mxu0 0.0
        %1025 = vmatpush2.msra.mxu0 0.0
        %1026 = vmatprep.subr.mxu0 0.0
        %1027 = vmatpush2.msra.mxu0 0.0
        %1028 = vmatprep.subr.mxu0 0.0
        %1029 = vmatpush2.msra.mxu0 0.0
        %1030 = vmatprep.subr.mxu0 0.0
        %1031 = vmatpush2.msra.mxu0 0.0
        %1032 = vmatprep.subr.mxu0 0.0
        %1033 = vmatpush2.msra.mxu0 0.0
        %1034 = vmatprep.subr.mxu0 0.0
        %1035 = vmatpush2.msra.mxu0 0.0
        %1036 = vmatprep.mubr.f32.mxu0 0.0
        %1037 = vmatmul.mubr.f32.gmra.mxu0 %v900
        %v1038 = vpop.f32.mrf.mxu0
        %v1039 = vadd.f32 %v896, %v1038
        %v1040 = vpop.f32.mrf.mxu0
        %1041 = vdwg.mxu0
        %v1042 = vmul.f32 %v969, 0.25
        %v1043 = vmul.f32 %v1039, 0.25
        %v1044 = vld [vmem:[#allocation3] sm:$0xff]
        %v1045 = vld [vmem:[#allocation3 + $0x8] sm:$0xff]
        %v1046 = vlaneseq
        %v1047 = vshrl.u32 %v1046, 7
        %s1048 = smul.u32 %s33, 8
        %v1049 = vstv %s1048
        %v1050 = vadd.s32 %v1047, %v1049
        %v1051 = vlaneseq
        %v1052 = vand.u32 %v1051, 127
        %vm1053 = vcmp.le.s32.totalorder %v1052, %v1050
        %v1054 = vsel %vm1053, 0.0, -inf
        %vm1055 = vcmask 130048
        %v1057 = vsel %vm1055, %v1042, 0
        %v1060 = vsel %vm1055, %v1044, 0
        %1062 = vmatprep.subr.mxu0 0.0
        %1063 = vmatpush1.xpose.msra.mxu0 0.0
        %1064 = vmatprep.subr.mxu0 0.0
        %1065 = vmatpush1.xpose.msra.mxu0 0.0
        %1066 = vmatprep.subr.mxu0 0.0
        %1067 = vmatpush1.xpose.msra.mxu0 0.0
        %1068 = vmatprep.subr.mxu0 0.0
        %1069 = vmatpush1.xpose.msra.mxu0 0.0
        %1070 = vmatprep.subr.mxu0 0.0
        %1071 = vmatpush1.xpose.msra.mxu0 0.0
        %1072 = vmatprep.subr.mxu0 0.0
        %1073 = vmatpush1.xpose.msra.mxu0 0.0
        %1074 = vmatprep.subr.mxu0 0.0
        %1075 = vmatpush1.xpose.msra.mxu0 0.0
        %1076 = vmatprep.subr.mxu0 0.0
        %1077 = vmatpush1.xpose.msra.mxu0 0.0
        %1078 = vmatprep.subr.mxu0 0.0
        %1079 = vmatpush1.xpose.msra.mxu0 0.0
        %1080 = vmatprep.subr.mxu0 0.0
        %1081 = vmatpush1.xpose.msra.mxu0 0.0
        %1082 = vmatprep.subr.mxu0 0.0
        %1083 = vmatpush1.xpose.msra.mxu0 0.0
        %1084 = vmatprep.subr.mxu0 0.0
        %1085 = vmatpush1.xpose.msra.mxu0 0.0
        %1086 = vmatprep.subr.mxu0 0.0
        %1087 = vmatpush1.xpose.msra.mxu0 0.0
        %1088 = vmatprep.subr.mxu0 0.0
        %1089 = vmatpush1.xpose.msra.mxu0 0.0
        %1090 = vmatprep.subr.mxu0 0.0
        %1091 = vmatpush1.xpose.msra.mxu0 0.0
        %1092 = vmatprep.subr.mxu0 0.0
        %1093 = vmatpush1.xpose.msra.mxu0 %v1060
        %1094 = vmatprep.subr.mxu0 0.0
        %1095 = vmatpush2.xpose.msra.mxu0 0.0
        %1096 = vmatprep.subr.mxu0 0.0
        %1097 = vmatpush2.xpose.msra.mxu0 0.0
        %1098 = vmatprep.subr.mxu0 0.0
        %1099 = vmatpush2.xpose.msra.mxu0 0.0
        %1100 = vmatprep.subr.mxu0 0.0
        %1101 = vmatpush2.xpose.msra.mxu0 0.0
        %1102 = vmatprep.subr.mxu0 0.0
        %1103 = vmatpush2.xpose.msra.mxu0 0.0
        %1104 = vmatprep.subr.mxu0 0.0
        %1105 = vmatpush2.xpose.msra.mxu0 0.0
        %1106 = vmatprep.subr.mxu0 0.0
        %1107 = vmatpush2.xpose.msra.mxu0 0.0
        %1108 = vmatprep.subr.mxu0 0.0
        %1109 = vmatpush2.xpose.msra.mxu0 0.0
        %1110 = vmatprep.subr.mxu0 0.0
        %1111 = vmatpush2.xpose.msra.mxu0 0.0
        %1112 = vmatprep.subr.mxu0 0.0
        %1113 = vmatpush2.xpose.msra.mxu0 0.0
        %1114 = vmatprep.subr.mxu0 0.0
        %1115 = vmatpush2.xpose.msra.mxu0 0.0
        %1116 = vmatprep.subr.mxu0 0.0
        %1117 = vmatpush2.xpose.msra.mxu0 0.0
        %1118 = vmatprep.subr.mxu0 0.0
        %1119 = vmatpush2.xpose.msra.mxu0 0.0
        %1120 = vmatprep.subr.mxu0 0.0
        %1121 = vmatpush2.xpose.msra.mxu0 0.0
        %1122 = vmatprep.subr.mxu0 0.0
        %1123 = vmatpush2.xpose.msra.mxu0 0.0
        %1124 = vmatprep.subr.mxu0 0.0
        %1125 = vmatpush2.xpose.msra.mxu0 0.0
        %1126 = vmatprep.mubr.f32.mxu0 0.0
        %1127 = vmatmul.mubr.f32.gmra.mxu0 %v1057
        %v1128 = vpop.f32.mrf.mxu0
        %v1129 = vadd.f32 %v1054, %v1128
        %v1130 = vpop.f32.mrf.mxu0
        %1131 = vdwg.mxu0
        %v1133 = vsel %vm1055, %v1043, 0
        %v1136 = vsel %vm1055, %v1045, 0
        %1138 = vmatprep.subr.mxu0 0.0
        %1139 = vmatpush1.xpose.msra.mxu0 0.0
        %1140 = vmatprep.subr.mxu0 0.0
        %1141 = vmatpush1.xpose.msra.mxu0 0.0
        %1142 = vmatprep.subr.mxu0 0.0
        %1143 = vmatpush1.xpose.msra.mxu0 0.0
        %1144 = vmatprep.subr.mxu0 0.0
        %1145 = vmatpush1.xpose.msra.mxu0 0.0
        %1146 = vmatprep.subr.mxu0 0.0
        %1147 = vmatpush1.xpose.msra.mxu0 0.0
        %1148 = vmatprep.subr.mxu0 0.0
        %1149 = vmatpush1.xpose.msra.mxu0 0.0
        %1150 = vmatprep.subr.mxu0 0.0
        %1151 = vmatpush1.xpose.msra.mxu0 0.0
        %1152 = vmatprep.subr.mxu0 0.0
        %1153 = vmatpush1.xpose.msra.mxu0 0.0
        %1154 = vmatprep.subr.mxu0 0.0
        %1155 = vmatpush1.xpose.msra.mxu0 0.0
        %1156 = vmatprep.subr.mxu0 0.0
        %1157 = vmatpush1.xpose.msra.mxu0 0.0
        %1158 = vmatprep.subr.mxu0 0.0
        %1159 = vmatpush1.xpose.msra.mxu0 0.0
        %1160 = vmatprep.subr.mxu0 0.0
        %1161 = vmatpush1.xpose.msra.mxu0 0.0
        %1162 = vmatprep.subr.mxu0 0.0
        %1163 = vmatpush1.xpose.msra.mxu0 0.0
        %1164 = vmatprep.subr.mxu0 0.0
        %1165 = vmatpush1.xpose.msra.mxu0 0.0
        %1166 = vmatprep.subr.mxu0 0.0
        %1167 = vmatpush1.xpose.msra.mxu0 0.0
        %1168 = vmatprep.subr.mxu0 0.0
        %1169 = vmatpush1.xpose.msra.mxu0 %v1136
        %1170 = vmatprep.subr.mxu0 0.0
        %1171 = vmatpush2.xpose.msra.mxu0 0.0
        %1172 = vmatprep.subr.mxu0 0.0
        %1173 = vmatpush2.xpose.msra.mxu0 0.0
        %1174 = vmatprep.subr.mxu0 0.0
        %1175 = vmatpush2.xpose.msra.mxu0 0.0
        %1176 = vmatprep.subr.mxu0 0.0
        %1177 = vmatpush2.xpose.msra.mxu0 0.0
        %1178 = vmatprep.subr.mxu0 0.0
        %1179 = vmatpush2.xpose.msra.mxu0 0.0
        %1180 = vmatprep.subr.mxu0 0.0
        %1181 = vmatpush2.xpose.msra.mxu0 0.0
        %1182 = vmatprep.subr.mxu0 0.0
        %1183 = vmatpush2.xpose.msra.mxu0 0.0
        %1184 = vmatprep.subr.mxu0 0.0
        %1185 = vmatpush2.xpose.msra.mxu0 0.0
        %1186 = vmatprep.subr.mxu0 0.0
        %1187 = vmatpush2.xpose.msra.mxu0 0.0
        %1188 = vmatprep.subr.mxu0 0.0
        %1189 = vmatpush2.xpose.msra.mxu0 0.0
        %1190 = vmatprep.subr.mxu0 0.0
        %1191 = vmatpush2.xpose.msra.mxu0 0.0
        %1192 = vmatprep.subr.mxu0 0.0
        %1193 = vmatpush2.xpose.msra.mxu0 0.0
        %1194 = vmatprep.subr.mxu0 0.0
        %1195 = vmatpush2.xpose.msra.mxu0 0.0
        %1196 = vmatprep.subr.mxu0 0.0
        %1197 = vmatpush2.xpose.msra.mxu0 0.0
        %1198 = vmatprep.subr.mxu0 0.0
        %1199 = vmatpush2.xpose.msra.mxu0 0.0
        %1200 = vmatprep.subr.mxu0 0.0
        %1201 = vmatpush2.xpose.msra.mxu0 0.0
        %1202 = vmatprep.mubr.f32.mxu0 0.0
        %1203 = vmatmul.mubr.f32.gmra.mxu0 %v1133
        %v1204 = vpop.f32.mrf.mxu0
        %v1205 = vadd.f32 %v1054, %v1204
        %v1206 = vpop.f32.mrf.mxu0
        %1207 = vdwg.mxu0
        %vm1208 = vcmask 64512
        %v1209 = vsel %vm1208, %v1129, -inf
        %1210 = vmax.xlane.f32.xlu0 %v1209
        %v1211 = vpop.xlane.xlu0 %1210
        %v1212 = vsel %vm1208, %v1205, -inf
        %1213 = vmax.xlane.f32.xlu0 %v1212
        %v1214 = vpop.xlane.xlu0 %1213
        %v1215 = vsub.f32 %v1129, %v1211
        %v1216 = vsub.f32 %v1205, %v1214
        %v1217 = vmul.f32 %v1215, 1.442695
        %v1218 = vpow.pop %v1217
        %v1219 = vmul.f32 %v1216, 1.442695
        %v1220 = vpow.pop %v1219
        %v1221 = vsel %vm1208, %v1218, 0.0
        %1222 = vadd.xlane.f32.xlu0 %v1221
        %v1223 = vpop.xlane.xlu0 %1222
        %v1224 = vsel %vm1208, %v1220, 0.0
        %1225 = vadd.xlane.f32.xlu0 %v1224
        %v1226 = vpop.xlane.xlu0 %1225
        %v1227 = vrcp.pop %v1223
        %v1228 = vmul.f32 %v1218, %v1227
        %v1229 = vrcp.pop %v1226
        %v1230 = vmul.f32 %v1220, %v1229
        %1231 = vst.msk [vmem:[%s432] sm:$0xff] %vm1208, %v1228
        %1232 = vst.msk [vmem:[%s432 + $0x8] sm:$0xff] %vm1208, %v1230
        %v1233 = vld [vmem:[#allocation4] sm:$0xff]
        %v1234 = vld [vmem:[#allocation4 + $0x8] sm:$0xff]
        %v1236 = vsel %vm1208, %v1228, 0
        %1238 = vmatprep.subr.mxu0 0.0
        %1239 = vmatpush1.msra.mxu0 0.0
        %1240 = vmatprep.subr.mxu0 0.0
        %1241 = vmatpush1.msra.mxu0 0.0
        %1242 = vmatprep.subr.mxu0 0.0
        %1243 = vmatpush1.msra.mxu0 0.0
        %1244 = vmatprep.subr.mxu0 0.0
        %1245 = vmatpush1.msra.mxu0 0.0
        %1246 = vmatprep.subr.mxu0 0.0
        %1247 = vmatpush1.msra.mxu0 0.0
        %1248 = vmatprep.subr.mxu0 0.0
        %1249 = vmatpush1.msra.mxu0 0.0
        %1250 = vmatprep.subr.mxu0 0.0
        %1251 = vmatpush1.msra.mxu0 0.0
        %1252 = vmatprep.subr.mxu0 0.0
        %1253 = vmatpush1.msra.mxu0 0.0
        %1254 = vmatprep.subr.mxu0 0.0
        %1255 = vmatpush1.msra.mxu0 0.0
        %1256 = vmatprep.subr.mxu0 0.0
        %1257 = vmatpush1.msra.mxu0 0.0
        %1258 = vmatprep.subr.mxu0 0.0
        %1259 = vmatpush1.msra.mxu0 0.0
        %1260 = vmatprep.subr.mxu0 0.0
        %1261 = vmatpush1.msra.mxu0 0.0
        %1262 = vmatprep.subr.mxu0 0.0
        %1263 = vmatpush1.msra.mxu0 0.0
        %1264 = vmatprep.subr.mxu0 0.0
        %1265 = vmatpush1.msra.mxu0 0.0
        %1266 = vmatprep.subr.mxu0 0.0
        %1267 = vmatpush1.msra.mxu0 0.0
        %1268 = vmatprep.subr.mxu0 0.0
        %1269 = vmatpush1.msra.mxu0 %v1233
        %1270 = vmatprep.subr.mxu0 0.0
        %1271 = vmatpush2.msra.mxu0 0.0
        %1272 = vmatprep.subr.mxu0 0.0
        %1273 = vmatpush2.msra.mxu0 0.0
        %1274 = vmatprep.subr.mxu0 0.0
        %1275 = vmatpush2.msra.mxu0 0.0
        %1276 = vmatprep.subr.mxu0 0.0
        %1277 = vmatpush2.msra.mxu0 0.0
        %1278 = vmatprep.subr.mxu0 0.0
        %1279 = vmatpush2.msra.mxu0 0.0
        %1280 = vmatprep.subr.mxu0 0.0
        %1281 = vmatpush2.msra.mxu0 0.0
        %1282 = vmatprep.subr.mxu0 0.0
        %1283 = vmatpush2.msra.mxu0 0.0
        %1284 = vmatprep.subr.mxu0 0.0
        %1285 = vmatpush2.msra.mxu0 0.0
        %1286 = vmatprep.subr.mxu0 0.0
        %1287 = vmatpush2.msra.mxu0 0.0
        %1288 = vmatprep.subr.mxu0 0.0
        %1289 = vmatpush2.msra.mxu0 0.0
        %1290 = vmatprep.subr.mxu0 0.0
        %1291 = vmatpush2.msra.mxu0 0.0
        %1292 = vmatprep.subr.mxu0 0.0
        %1293 = vmatpush2.msra.mxu0 0.0
        %1294 = vmatprep.subr.mxu0 0.0
        %1295 = vmatpush2.msra.mxu0 0.0
        %1296 = vmatprep.subr.mxu0 0.0
        %1297 = vmatpush2.msra.mxu0 0.0
        %1298 = vmatprep.subr.mxu0 0.0
        %1299 = vmatpush2.msra.mxu0 0.0
        %1300 = vmatprep.subr.mxu0 0.0
        %1301 = vmatpush2.msra.mxu0 0.0
        %1302 = vmatprep.mubr.f32.mxu0 0.0
        %1303 = vmatmul.mubr.f32.gmra.mxu0 %v1236
        %v1304 = vpop.f32.mrf.mxu0
        %v1305 = vadd.f32 0.0, %v1304
        %v1306 = vpop.f32.mrf.mxu0
        %1307 = vdwg.mxu0
        %v1309 = vsel %vm1208, %v1230, 0
        %1311 = vmatprep.subr.mxu0 0.0
        %1312 = vmatpush1.msra.mxu0 0.0
        %1313 = vmatprep.subr.mxu0 0.0
        %1314 = vmatpush1.msra.mxu0 0.0
        %1315 = vmatprep.subr.mxu0 0.0
        %1316 = vmatpush1.msra.mxu0 0.0
        %1317 = vmatprep.subr.mxu0 0.0
        %1318 = vmatpush1.msra.mxu0 0.0
        %1319 = vmatprep.subr.mxu0 0.0
        %1320 = vmatpush1.msra.mxu0 0.0
        %1321 = vmatprep.subr.mxu0 0.0
        %1322 = vmatpush1.msra.mxu0 0.0
        %1323 = vmatprep.subr.mxu0 0.0
        %1324 = vmatpush1.msra.mxu0 0.0
        %1325 = vmatprep.subr.mxu0 0.0
        %1326 = vmatpush1.msra.mxu0 0.0
        %1327 = vmatprep.subr.mxu0 0.0
        %1328 = vmatpush1.msra.mxu0 0.0
        %1329 = vmatprep.subr.mxu0 0.0
        %1330 = vmatpush1.msra.mxu0 0.0
        %1331 = vmatprep.subr.mxu0 0.0
        %1332 = vmatpush1.msra.mxu0 0.0
        %1333 = vmatprep.subr.mxu0 0.0
        %1334 = vmatpush1.msra.mxu0 0.0
        %1335 = vmatprep.subr.mxu0 0.0
        %1336 = vmatpush1.msra.mxu0 0.0
        %1337 = vmatprep.subr.mxu0 0.0
        %1338 = vmatpush1.msra.mxu0 0.0
        %1339 = vmatprep.subr.mxu0 0.0
        %1340 = vmatpush1.msra.mxu0 0.0
        %1341 = vmatprep.subr.mxu0 0.0
        %1342 = vmatpush1.msra.mxu0 %v1234
        %1343 = vmatprep.subr.mxu0 0.0
        %1344 = vmatpush2.msra.mxu0 0.0
        %1345 = vmatprep.subr.mxu0 0.0
        %1346 = vmatpush2.msra.mxu0 0.0
        %1347 = vmatprep.subr.mxu0 0.0
        %1348 = vmatpush2.msra.mxu0 0.0
        %1349 = vmatprep.subr.mxu0 0.0
        %1350 = vmatpush2.msra.mxu0 0.0
        %1351 = vmatprep.subr.mxu0 0.0
        %1352 = vmatpush2.msra.mxu0 0.0
        %1353 = vmatprep.subr.mxu0 0.0
        %1354 = vmatpush2.msra.mxu0 0.0
        %1355 = vmatprep.subr.mxu0 0.0
        %1356 = vmatpush2.msra.mxu0 0.0
        %1357 = vmatprep.subr.mxu0 0.0
        %1358 = vmatpush2.msra.mxu0 0.0
        %1359 = vmatprep.subr.mxu0 0.0
        %1360 = vmatpush2.msra.mxu0 0.0
        %1361 = vmatprep.subr.mxu0 0.0
        %1362 = vmatpush2.msra.mxu0 0.0
        %1363 = vmatprep.subr.mxu0 0.0
        %1364 = vmatpush2.msra.mxu0 0.0
        %1365 = vmatprep.subr.mxu0 0.0
        %1366 = vmatpush2.msra.mxu0 0.0
        %1367 = vmatprep.subr.mxu0 0.0
        %1368 = vmatpush2.msra.mxu0 0.0
        %1369 = vmatprep.subr.mxu0 0.0
        %1370 = vmatpush2.msra.mxu0 0.0
        %1371 = vmatprep.subr.mxu0 0.0
        %1372 = vmatpush2.msra.mxu0 0.0
        %1373 = vmatprep.subr.mxu0 0.0
        %1374 = vmatpush2.msra.mxu0 0.0
        %1375 = vmatprep.mubr.f32.mxu0 0.0
        %1376 = vmatmul.mubr.f32.gmra.mxu0 %v1309
        %v1377 = vpop.f32.mrf.mxu0
        %v1378 = vadd.f32 0.0, %v1377
        %v1379 = vpop.f32.mrf.mxu0
        %1380 = vdwg.mxu0
        %v1381 = vld [vmem:[%s7] sm:$0xff]
        %v1382 = vld [vmem:[%s7 + $0x8] sm:$0xff]
        %v1383 = vld [vmem:[%s7 + $0x10] sm:$0xff]
        %v1384 = vld [vmem:[%s7 + $0x18] sm:$0xff]
        %v1386 = vsel %vm1055, %v1305, 0
        %1388 = vmatprep.subr.mxu0 0.0
        %1389 = vmatpush1.msra.mxu0 0.0
        %1390 = vmatprep.subr.mxu0 0.0
        %1391 = vmatpush1.msra.mxu0 0.0
        %1392 = vmatprep.subr.mxu0 0.0
        %1393 = vmatpush1.msra.mxu0 0.0
        %1394 = vmatprep.subr.mxu0 0.0
        %1395 = vmatpush1.msra.mxu0 0.0
        %1396 = vmatprep.subr.mxu0 0.0
        %1397 = vmatpush1.msra.mxu0 0.0
        %1398 = vmatprep.subr.mxu0 0.0
        %1399 = vmatpush1.msra.mxu0 0.0
        %1400 = vmatprep.subr.mxu0 0.0
        %1401 = vmatpush1.msra.mxu0 0.0
        %1402 = vmatprep.subr.mxu0 0.0
        %1403 = vmatpush1.msra.mxu0 0.0
        %1404 = vmatprep.subr.mxu0 0.0
        %1405 = vmatpush1.msra.mxu0 0.0
        %1406 = vmatprep.subr.mxu0 0.0
        %1407 = vmatpush1.msra.mxu0 0.0
        %1408 = vmatprep.subr.mxu0 0.0
        %1409 = vmatpush1.msra.mxu0 0.0
        %1410 = vmatprep.subr.mxu0 0.0
        %1411 = vmatpush1.msra.mxu0 0.0
        %1412 = vmatprep.subr.mxu0 0.0
        %1413 = vmatpush1.msra.mxu0 0.0
        %1414 = vmatprep.subr.mxu0 0.0
        %1415 = vmatpush1.msra.mxu0 0.0
        %1416 = vmatprep.subr.mxu0 0.0
        %1417 = vmatpush1.msra.mxu0 %v1382
        %1418 = vmatprep.subr.mxu0 0.0
        %1419 = vmatpush1.msra.mxu0 %v1381
        %1420 = vmatprep.subr.mxu0 0.0
        %1421 = vmatpush2.msra.mxu0 0.0
        %1422 = vmatprep.subr.mxu0 0.0
        %1423 = vmatpush2.msra.mxu0 0.0
        %1424 = vmatprep.subr.mxu0 0.0
        %1425 = vmatpush2.msra.mxu0 0.0
        %1426 = vmatprep.subr.mxu0 0.0
        %1427 = vmatpush2.msra.mxu0 0.0
        %1428 = vmatprep.subr.mxu0 0.0
        %1429 = vmatpush2.msra.mxu0 0.0
        %1430 = vmatprep.subr.mxu0 0.0
        %1431 = vmatpush2.msra.mxu0 0.0
        %1432 = vmatprep.subr.mxu0 0.0
        %1433 = vmatpush2.msra.mxu0 0.0
        %1434 = vmatprep.subr.mxu0 0.0
        %1435 = vmatpush2.msra.mxu0 0.0
        %1436 = vmatprep.subr.mxu0 0.0
        %1437 = vmatpush2.msra.mxu0 0.0
        %1438 = vmatprep.subr.mxu0 0.0
        %1439 = vmatpush2.msra.mxu0 0.0
        %1440 = vmatprep.subr.mxu0 0.0
        %1441 = vmatpush2.msra.mxu0 0.0
        %1442 = vmatprep.subr.mxu0 0.0
        %1443 = vmatpush2.msra.mxu0 0.0
        %1444 = vmatprep.subr.mxu0 0.0
        %1445 = vmatpush2.msra.mxu0 0.0
        %1446 = vmatprep.subr.mxu0 0.0
        %1447 = vmatpush2.msra.mxu0 0.0
        %1448 = vmatprep.subr.mxu0 0.0
        %1449 = vmatpush2.msra.mxu0 0.0
        %1450 = vmatprep.subr.mxu0 0.0
        %1451 = vmatpush2.msra.mxu0 0.0
        %1452 = vmatprep.mubr.f32.mxu0 0.0
        %1453 = vmatmul.mubr.f32.gmra.mxu0 %v1386
        %v1454 = vpop.f32.mrf.mxu0
        %v1455 = vadd.f32 0.0, %v1454
        %v1456 = vpop.f32.mrf.mxu0
        %1457 = vdwg.mxu0
        %v1459 = vsel %vm1055, %v1378, 0
        %1461 = vmatprep.subr.mxu0 0.0
        %1462 = vmatpush1.msra.mxu0 0.0
        %1463 = vmatprep.subr.mxu0 0.0
        %1464 = vmatpush1.msra.mxu0 0.0
        %1465 = vmatprep.subr.mxu0 0.0
        %1466 = vmatpush1.msra.mxu0 0.0
        %1467 = vmatprep.subr.mxu0 0.0
        %1468 = vmatpush1.msra.mxu0 0.0
        %1469 = vmatprep.subr.mxu0 0.0
        %1470 = vmatpush1.msra.mxu0 0.0
        %1471 = vmatprep.subr.mxu0 0.0
        %1472 = vmatpush1.msra.mxu0 0.0
        %1473 = vmatprep.subr.mxu0 0.0
        %1474 = vmatpush1.msra.mxu0 0.0
        %1475 = vmatprep.subr.mxu0 0.0
        %1476 = vmatpush1.msra.mxu0 0.0
        %1477 = vmatprep.subr.mxu0 0.0
        %1478 = vmatpush1.msra.mxu0 0.0
        %1479 = vmatprep.subr.mxu0 0.0
        %1480 = vmatpush1.msra.mxu0 0.0
        %1481 = vmatprep.subr.mxu0 0.0
        %1482 = vmatpush1.msra.mxu0 0.0
        %1483 = vmatprep.subr.mxu0 0.0
        %1484 = vmatpush1.msra.mxu0 0.0
        %1485 = vmatprep.subr.mxu0 0.0
        %1486 = vmatpush1.msra.mxu0 0.0
        %1487 = vmatprep.subr.mxu0 0.0
        %1488 = vmatpush1.msra.mxu0 0.0
        %1489 = vmatprep.subr.mxu0 0.0
        %1490 = vmatpush1.msra.mxu0 %v1384
        %1491 = vmatprep.subr.mxu0 0.0
        %1492 = vmatpush1.msra.mxu0 %v1383
        %1493 = vmatprep.subr.mxu0 0.0
        %1494 = vmatpush2.msra.mxu0 0.0
        %1495 = vmatprep.subr.mxu0 0.0
        %1496 = vmatpush2.msra.mxu0 0.0
        %1497 = vmatprep.subr.mxu0 0.0
        %1498 = vmatpush2.msra.mxu0 0.0
        %1499 = vmatprep.subr.mxu0 0.0
        %1500 = vmatpush2.msra.mxu0 0.0
        %1501 = vmatprep.subr.mxu0 0.0
        %1502 = vmatpush2.msra.mxu0 0.0
        %1503 = vmatprep.subr.mxu0 0.0
        %1504 = vmatpush2.msra.mxu0 0.0
        %1505 = vmatprep.subr.mxu0 0.0
        %1506 = vmatpush2.msra.mxu0 0.0
        %1507 = vmatprep.subr.mxu0 0.0
        %1508 = vmatpush2.msra.mxu0 0.0
        %1509 = vmatprep.subr.mxu0 0.0
        %1510 = vmatpush2.msra.mxu0 0.0
        %1511 = vmatprep.subr.mxu0 0.0
        %1512 = vmatpush2.msra.mxu0 0.0
        %1513 = vmatprep.subr.mxu0 0.0
        %1514 = vmatpush2.msra.mxu0 0.0
        %1515 = vmatprep.subr.mxu0 0.0
        %1516 = vmatpush2.msra.mxu0 0.0
        %1517 = vmatprep.subr.mxu0 0.0
        %1518 = vmatpush2.msra.mxu0 0.0
        %1519 = vmatprep.subr.mxu0 0.0
        %1520 = vmatpush2.msra.mxu0 0.0
        %1521 = vmatprep.subr.mxu0 0.0
        %1522 = vmatpush2.msra.mxu0 0.0
        %1523 = vmatprep.subr.mxu0 0.0
        %1524 = vmatpush2.msra.mxu0 0.0
        %1525 = vmatprep.mubr.f32.mxu0 0.0
        %1526 = vmatmul.mubr.f32.gmra.mxu0 %v1459
        %v1527 = vpop.f32.mrf.mxu0
        %v1528 = vadd.f32 0.0, %v1527
        %v1529 = vpop.f32.mrf.mxu0
        %1530 = vdwg.mxu0
        %v1531 = vsel %vm852, %v1455, 0.0
        %v1532 = vsel %vm852, %v1528, 0.0
        %v1533 = vadd.f32 %v1531, %v1532
        %v1534 = vlaneseq
        %v1535 = vshrl.u32 %v1534, 7
        %v1536 = vsub.s32 0, %v1535
        %v1537 = vrot.slane %v456, %v1536
        %v1538 = vadd.f32 %v1533, %v1537
        %s1539 = scalar_lea.vmem [#allocation2], %s1048
        %v1540 = vld [vmem:[%s1539] sm:$0xff]
        %v1541 = vadd.f32 %v1538, %v1540
        %v1542 = vsel %vm852, %v1541, 0.0
        %1543 = vadd.xlane.f32.xlu0 %v1542
        %v1544 = vpop.xlane.xlu0 %1543
        %v1545 = vmul.f32 %v1544, %v856
        %v1546 = vsub.f32 %v1541, %v1545
        %v1547 = vmul.f32 %v1546, %v1546
        %v1548 = vsel %vm852, %v1547, 0.0
        %1549 = vadd.xlane.f32.xlu0 %v1548
        %v1550 = vpop.xlane.xlu0 %1549
        %v1551 = vmul.f32 %v1550, %v856
        %v1552 = vadd.f32 %v1551, 1e-08
        %v1553 = vrsqrt.pop %v1552
        %v1554 = vmul.f32 %v1546, %v1553
        %v1555 = vlaneseq
        %v1556 = vshrl.u32 %v1555, 7
        %v1557 = vsub.s32 6, %v1556
        %v1558 = vrot.slane %v455, %v1557
        %v1559 = vmul.f32 %v1554, %v1558
        %v1560 = vlaneseq
        %v1561 = vshrl.u32 %v1560, 7
        %v1562 = vsub.s32 7, %v1561
        %v1563 = vrot.slane %v455, %v1562
        %v1564 = vadd.f32 %v1559, %v1563
        %v1565 = vld [vmem:[%s8] sm:$0xff]
        %v1566 = vld [vmem:[%s8 + $0x8] sm:$0xff]
        %v1567 = vld [vmem:[%s8 + $0x10] sm:$0xff]
        %v1568 = vld [vmem:[%s8 + $0x18] sm:$0xff]
        %v1569 = vlaneseq
        %v1570 = vshrl.u32 %v1569, 7
        %v1571 = vsub.s32 1, %v1570
        %v1572 = vrot.slane %v456, %v1571
        %v1574 = vsel %vm852, %v1564, 0
        %1576 = vmatprep.subr.mxu0 0.0
        %1577 = vmatpush1.msra.mxu0 0.0
        %1578 = vmatprep.subr.mxu0 0.0
        %1579 = vmatpush1.msra.mxu0 0.0
        %1580 = vmatprep.subr.mxu0 0.0
        %1581 = vmatpush1.msra.mxu0 0.0
        %1582 = vmatprep.subr.mxu0 0.0
        %1583 = vmatpush1.msra.mxu0 0.0
        %1584 = vmatprep.subr.mxu0 0.0
        %1585 = vmatpush1.msra.mxu0 0.0
        %1586 = vmatprep.subr.mxu0 0.0
        %1587 = vmatpush1.msra.mxu0 0.0
        %1588 = vmatprep.subr.mxu0 0.0
        %1589 = vmatpush1.msra.mxu0 0.0
        %1590 = vmatprep.subr.mxu0 0.0
        %1591 = vmatpush1.msra.mxu0 0.0
        %1592 = vmatprep.subr.mxu0 0.0
        %1593 = vmatpush1.msra.mxu0 0.0
        %1594 = vmatprep.subr.mxu0 0.0
        %1595 = vmatpush1.msra.mxu0 0.0
        %1596 = vmatprep.subr.mxu0 0.0
        %1597 = vmatpush1.msra.mxu0 0.0
        %1598 = vmatprep.subr.mxu0 0.0
        %1599 = vmatpush1.msra.mxu0 0.0
        %1600 = vmatprep.subr.mxu0 0.0
        %1601 = vmatpush1.msra.mxu0 %v1568
        %1602 = vmatprep.subr.mxu0 0.0
        %1603 = vmatpush1.msra.mxu0 %v1567
        %1604 = vmatprep.subr.mxu0 0.0
        %1605 = vmatpush1.msra.mxu0 %v1566
        %1606 = vmatprep.subr.mxu0 0.0
        %1607 = vmatpush1.msra.mxu0 %v1565
        %1608 = vmatprep.subr.mxu0 0.0
        %1609 = vmatpush2.msra.mxu0 0.0
        %1610 = vmatprep.subr.mxu0 0.0
        %1611 = vmatpush2.msra.mxu0 0.0
        %1612 = vmatprep.subr.mxu0 0.0
        %1613 = vmatpush2.msra.mxu0 0.0
        %1614 = vmatprep.subr.mxu0 0.0
        %1615 = vmatpush2.msra.mxu0 0.0
        %1616 = vmatprep.subr.mxu0 0.0
        %1617 = vmatpush2.msra.mxu0 0.0
        %1618 = vmatprep.subr.mxu0 0.0
        %1619 = vmatpush2.msra.mxu0 0.0
        %1620 = vmatprep.subr.mxu0 0.0
        %1621 = vmatpush2.msra.mxu0 0.0
        %1622 = vmatprep.subr.mxu0 0.0
        %1623 = vmatpush2.msra.mxu0 0.0
        %1624 = vmatprep.subr.mxu0 0.0
        %1625 = vmatpush2.msra.mxu0 0.0
        %1626 = vmatprep.subr.mxu0 0.0
        %1627 = vmatpush2.msra.mxu0 0.0
        %1628 = vmatprep.subr.mxu0 0.0
        %1629 = vmatpush2.msra.mxu0 0.0
        %1630 = vmatprep.subr.mxu0 0.0
        %1631 = vmatpush2.msra.mxu0 0.0
        %1632 = vmatprep.subr.mxu0 0.0
        %1633 = vmatpush2.msra.mxu0 0.0
        %1634 = vmatprep.subr.mxu0 0.0
        %1635 = vmatpush2.msra.mxu0 0.0
        %1636 = vmatprep.subr.mxu0 0.0
        %1637 = vmatpush2.msra.mxu0 0.0
        %1638 = vmatprep.subr.mxu0 0.0
        %1639 = vmatpush2.msra.mxu0 0.0
        %1640 = vmatprep.mubr.f32.mxu0 0.0
        %1641 = vmatmul.mubr.f32.gmra.mxu0 %v1574
        %v1642 = vpop.f32.mrf.mxu0
        %v1643 = vadd.f32 %v1572, %v1642
        %v1644 = vpop.f32.mrf.mxu0
        %1645 = vdwg.mxu0
        %v1646 = vmax.f32 %v1643, 0.0
        %s1647 = scalar_lea.vmem %s8, 32
        %v1648 = vld [vmem:[%s1647] sm:$0xff]
        %v1649 = vld [vmem:[%s1647 + $0x8] sm:$0xff]
        %v1650 = vld [vmem:[%s1647 + $0x10] sm:$0xff]
        %v1651 = vld [vmem:[%s1647 + $0x18] sm:$0xff]
        %v1652 = vlaneseq
        %v1653 = vshrl.u32 %v1652, 7
        %v1654 = vsub.s32 2, %v1653
        %v1655 = vrot.slane %v456, %v1654
        %v1657 = vsel %vm852, %v1646, 0
        %1659 = vmatprep.subr.mxu0 0.0
        %1660 = vmatpush1.msra.mxu0 0.0
        %1661 = vmatprep.subr.mxu0 0.0
        %1662 = vmatpush1.msra.mxu0 0.0
        %1663 = vmatprep.subr.mxu0 0.0
        %1664 = vmatpush1.msra.mxu0 0.0
        %1665 = vmatprep.subr.mxu0 0.0
        %1666 = vmatpush1.msra.mxu0 0.0
        %1667 = vmatprep.subr.mxu0 0.0
        %1668 = vmatpush1.msra.mxu0 0.0
        %1669 = vmatprep.subr.mxu0 0.0
        %1670 = vmatpush1.msra.mxu0 0.0
        %1671 = vmatprep.subr.mxu0 0.0
        %1672 = vmatpush1.msra.mxu0 0.0
        %1673 = vmatprep.subr.mxu0 0.0
        %1674 = vmatpush1.msra.mxu0 0.0
        %1675 = vmatprep.subr.mxu0 0.0
        %1676 = vmatpush1.msra.mxu0 0.0
        %1677 = vmatprep.subr.mxu0 0.0
        %1678 = vmatpush1.msra.mxu0 0.0
        %1679 = vmatprep.subr.mxu0 0.0
        %1680 = vmatpush1.msra.mxu0 0.0
        %1681 = vmatprep.subr.mxu0 0.0
        %1682 = vmatpush1.msra.mxu0 0.0
        %1683 = vmatprep.subr.mxu0 0.0
        %1684 = vmatpush1.msra.mxu0 %v1651
        %1685 = vmatprep.subr.mxu0 0.0
        %1686 = vmatpush1.msra.mxu0 %v1650
        %1687 = vmatprep.subr.mxu0 0.0
        %1688 = vmatpush1.msra.mxu0 %v1649
        %1689 = vmatprep.subr.mxu0 0.0
        %1690 = vmatpush1.msra.mxu0 %v1648
        %1691 = vmatprep.subr.mxu0 0.0
        %1692 = vmatpush2.msra.mxu0 0.0
        %1693 = vmatprep.subr.mxu0 0.0
        %1694 = vmatpush2.msra.mxu0 0.0
        %1695 = vmatprep.subr.mxu0 0.0
        %1696 = vmatpush2.msra.mxu0 0.0
        %1697 = vmatprep.subr.mxu0 0.0
        %1698 = vmatpush2.msra.mxu0 0.0
        %1699 = vmatprep.subr.mxu0 0.0
        %1700 = vmatpush2.msra.mxu0 0.0
        %1701 = vmatprep.subr.mxu0 0.0
        %1702 = vmatpush2.msra.mxu0 0.0
        %1703 = vmatprep.subr.mxu0 0.0
        %1704 = vmatpush2.msra.mxu0 0.0
        %1705 = vmatprep.subr.mxu0 0.0
        %1706 = vmatpush2.msra.mxu0 0.0
        %1707 = vmatprep.subr.mxu0 0.0
        %1708 = vmatpush2.msra.mxu0 0.0
        %1709 = vmatprep.subr.mxu0 0.0
        %1710 = vmatpush2.msra.mxu0 0.0
        %1711 = vmatprep.subr.mxu0 0.0
        %1712 = vmatpush2.msra.mxu0 0.0
        %1713 = vmatprep.subr.mxu0 0.0
        %1714 = vmatpush2.msra.mxu0 0.0
        %1715 = vmatprep.subr.mxu0 0.0
        %1716 = vmatpush2.msra.mxu0 0.0
        %1717 = vmatprep.subr.mxu0 0.0
        %1718 = vmatpush2.msra.mxu0 0.0
        %1719 = vmatprep.subr.mxu0 0.0
        %1720 = vmatpush2.msra.mxu0 0.0
        %1721 = vmatprep.subr.mxu0 0.0
        %1722 = vmatpush2.msra.mxu0 0.0
        %1723 = vmatprep.mubr.f32.mxu0 0.0
        %1724 = vmatmul.mubr.f32.gmra.mxu0 %v1657
        %v1725 = vpop.f32.mrf.mxu0
        %v1726 = vadd.f32 %v1655, %v1725
        %v1727 = vpop.f32.mrf.mxu0
        %1728 = vdwg.mxu0
        %v1729 = vadd.f32 %v1726, %v1564
        %v1730 = vld [vmem:[%s454] sm:$0xff]
        %1732 = vset.pattern.permute.xlu0 0
        %1733 = vperm.xlu0 %1732, %v1730
        %v1734 = vpop.permute.xlu0 %1733
        %v1736 = vmul.f32 %v1729, %v1734
        %v1737 = vsel %vm852, %v1736, 0.0
        %1738 = vadd.xlane.f32.xlu0 %v1737
        %v1739 = vpop.xlane.xlu0 %1738
        %v1740 = vmul.f32 %v1739, %v856
        %v1741 = vsub.f32 %v1736, %v1740
        %v1742 = vmul.f32 %v1741, %v1741
        %v1743 = vsel %vm852, %v1742, 0.0
        %1744 = vadd.xlane.f32.xlu0 %v1743
        %v1745 = vpop.xlane.xlu0 %1744
        %v1746 = vmul.f32 %v1745, %v856
        %v1747 = vadd.f32 %v1746, 1e-08
        %v1748 = vrsqrt.pop %v1747
        %v1749 = vmul.f32 %v1741, %v1748
        %v1750 = vlaneseq
        %v1751 = vshrl.u32 %v1750, 7
        %v1752 = vsub.s32 3, %v1751
        %v1753 = vrot.slane %v456, %v1752
        %v1754 = vmul.f32 %v1749, %v1753
        %v1755 = vlaneseq
        %v1756 = vshrl.u32 %v1755, 7
        %v1757 = vsub.s32 4, %v1756
        %v1758 = vrot.slane %v456, %v1757
        %v1759 = vadd.f32 %v1754, %v1758
        %1760 = vst.msk [vmem:[%s425] sm:$0xff] %vm852, %v1759
        %s1761 = sand.u32 %s263, 1
        %s1762 = scalar_lea.sflag [#allocation6], %s1761
        %s1763 = sand.u32 %s263, 1
        %s1764 = smul.addr %s1763, 8
        %s1765 = scalar_lea.vmem [#allocation5], %s1764
        %s1766 = sand.u32 %s291, 1
        %s1767 = scalar_lea.sflag [#allocation8], %s1766
        %s1768 = sand.u32 %s291, 1
        %s1769 = smul.addr %s1768, 16
        %s1770 = scalar_lea.vmem [#allocation7], %s1769
        // Predicated region
        $region61: #{text_aware_transformer.3} parent=55 // pred_check
          %p1771 = pneg %p273
        $region62: #{text_aware_transformer.3} parent=55 // pred_check_branch
          %1773 = sbr.rel (%p1771) target = $region64
        $region63: #{text_aware_transformer.3} parent=55 // pred_region
          %s1775 = ssub.s32 128, 128
          %1776 = vsyncadd %s1762, %s1775
          %s1777 = sadd.s32 %s33, %s32
          %s1778 = smul.addr %s1777, 128
          %s1779 = scalar_lea.hbm %s9, %s1778
          %s1781 = sshll.u32 %s1765, 4
          %s1782 = int_to_ptr.vmem [resolvable:$true] %s1781
          %1784 = dma.vmem_to_hbm [thread:$0]  %s1782, 128, %s1779, %s1762
        $region64: #{text_aware_transformer.3} parent=55 // pred_fallthru
          _
        // Predicated region
        $region65: #{text_aware_transformer.3} parent=55 // pred_check
          %p1785 = pneg %p301
        $region66: #{text_aware_transformer.3} parent=55 // pred_check_branch
          %1787 = sbr.rel (%p1785) target = $region68
        $region67: #{text_aware_transformer.3} parent=55 // pred_region
          %s1789 = ssub.s32 256, 256
          %1790 = vsyncadd %s1767, %s1789
          %s1791 = smul.addr %s32, 2
          %s1792 = sadd.s32 %s33, %s1791
          %s1793 = smul.addr %s1792, 128
          %s1794 = scalar_lea.hbm %s10, %s1793
          %s1795 = sshll.u32 %s1770, 4
          %s1796 = int_to_ptr.vmem [resolvable:$true] %s1795
          %1801 = dma.vmem_to_hbm [thread:$0]  %s1796, 256, %s1794, %s1767, 128, 128, 8
        $region68: #{text_aware_transformer.3} parent=55 // pred_fallthru
          _
      $region56: #{text_aware_transformer.3} parent=5 // pred_fallthru
        _
      %p1802 = scmp.le.s32.totalorder 2, %s23
      // Predicated region
      $region69: #{text_aware_transformer.3} parent=5 // pred_check
        %p1803 = pneg %p1802
      $region70: #{text_aware_transformer.3} parent=5 // pred_check_branch
        %1805 = sbr.rel (%p1803) target = $region72
      $region71: #{text_aware_transformer.3} parent=5 // pred_region
        %s1806 = ssub.s32 %s23, 2
        // Predicated region
        $region73: #{text_aware_transformer.3} parent=71 // pred_check
          %p1807 = pneg %p279
        $region74: #{text_aware_transformer.3} parent=71 // pred_check_branch
          %1809 = sbr.rel (%p1807) target = $region76
        $region75: #{text_aware_transformer.3} parent=71 // pred_region
          %s1810 = sand.u32 %s264, 1
          %s1811 = scalar_lea.sflag [#allocation6], %s1810
          %s1812 = sand.u32 %s264, 1
          %s1813 = smul.addr %s1812, 8
          %s1814 = scalar_lea.vmem [#allocation5], %s1813
          %1815 = dma.done %s1811, 128
        $region76: #{text_aware_transformer.3} parent=71 // pred_fallthru
          _
        // Predicated region
        $region77: #{text_aware_transformer.3} parent=71 // pred_check
          %p1816 = pneg %p307
        $region78: #{text_aware_transformer.3} parent=71 // pred_check_branch
          %1818 = sbr.rel (%p1816) target = $region80
        $region79: #{text_aware_transformer.3} parent=71 // pred_region
          %s1819 = sand.u32 %s292, 1
          %s1820 = scalar_lea.sflag [#allocation8], %s1819
          %s1821 = sand.u32 %s292, 1
          %s1822 = smul.addr %s1821, 16
          %s1823 = scalar_lea.vmem [#allocation7], %s1822
          %1824 = dma.done %s1820, 256
        $region80: #{text_aware_transformer.3} parent=71 // pred_fallthru
          _
      $region72: #{text_aware_transformer.3} parent=5 // pred_fallthru
        _
    $region6: #{text_aware_transformer.3} parent=1 // loop_footer
      %s27 = sadd.s32 1, %s23
    $region7: #{text_aware_transformer.3} parent=1 // loop_footer_branch
      %22 = sbr.rel target = $region3
    $region8: #{text_aware_transformer.3} parent=1 // loop_exit
      _
    %1825 = vsyncpa [#allocation6], 1
    %s1826 = scalar_lea.sflag [#allocation6], 1
    %1827 = vsyncpa %s1826, 1
    %1828 = vsyncpa [#allocation8], 1
    %s1829 = scalar_lea.sflag [#allocation8], 1
    %1830 = vsyncpa %s1829, 1

// kernel: text_aware_transformer.2
$region0: #{text_aware_transformer.2}
  #allocation0 [shape = 'u32[]', space=smem, size = 0x4, offset = 0x4, fixed_abs, tag = 'smem constant byte address 0x4 - core index']
  #allocation1 [shape = 'u32[144,128]{1,0:T(1,128)}', space=vmem, size = 0x12000, scoped, tag = 'internal scratch']
  #allocation2 [shape = 'f32[8,32]{1,0:T(8,128)}', space=vmem, size = 0x1000, scoped, tag = 'scratch operand']
  #allocation3 [shape = 'f32[2,8,16]{2,1,0:T(8,128)}', space=vmem, size = 0x2000, scoped, tag = 'scratch operand']
  #allocation4 [shape = 'f32[2,8,16]{2,1,0:T(8,128)}', space=vmem, size = 0x2000, scoped, tag = 'scratch operand']
  %s0 = inlined_call_operand.vmem [shape: f32[2,8,32], index: 0, kind: input, shape index: {}]
  %s1 = inlined_call_operand.vmem [shape: f32[2,8,32], index: 1, kind: input, shape index: {}]
  %s2 = inlined_call_operand.vmem [shape: f32[2,8,32], index: 2, kind: input, shape index: {}]
  %s3 = inlined_call_operand.vmem [shape: f32[2,8,1], index: 3, kind: input, shape index: {}]
  %s4 = inlined_call_operand.vmem [shape: f32[13,32], index: 4, kind: input, shape index: {}]
  %s5 = inlined_call_operand.vmem [shape: f32[3,2,32,16], index: 5, kind: input, shape index: {}]
  %s6 = inlined_call_operand.vmem [shape: f32[3,2,1,16], index: 6, kind: input, shape index: {}]
  %s7 = inlined_call_operand.vmem [shape: f32[2,16,32], index: 7, kind: input, shape index: {}]
  %s8 = inlined_call_operand.vmem [shape: f32[2,32,32], index: 8, kind: input, shape index: {}]
  %s9 = inlined_call_operand.vmem [shape: f32[2,8,32], index: 9, kind: output, shape index: {0}]
  %s10 = inlined_call_operand.hbm [shape: f32[2,2,8,8], index: 10, kind: output, shape index: {1}]
  %11 = xla_tuple %s9, %s10
  %s12 = sld [smem:[#allocation0]]
  $region81: #{text_aware_transformer.2} parent=0
    _
  %s14 = ssub.s32 1, %s12
  %s15 = scalar_select 0, %s14, %s12
  $region1: #{text_aware_transformer.2} parent=0
    #allocation5 [shape = 'u8[16384]{0}', space=vmem, size = 0x4000, scoped, tag = 'output window, operand 1']
    #allocation6 [shape = 's32[2]{0}', space=sflag, size = 0x8, scoped, tag = 'scoped memory for text_aware_transformer.2']
    %16 = vsyncpa [#allocation6], 0
    %s17 = scalar_lea.sflag [#allocation6], 1
    %18 = vsyncpa %s17, 0
    loop: start=0, step=1, limit=4
    $region2: #{text_aware_transformer.2} parent=1 // loop_pre_header
      _
    $region3: #{text_aware_transformer.2} parent=1 // loop_header
      %s20 = sphi 0, %s24
      %p21 = scmp.ge.s32.totalorder %s20, 4
      %s27 = sphi 0, %s39
      %s28 = sphi 0, %s35
      %s29 = sphi 0, %s27
      %s30 = sphi 0, %s28
      %s31 = sphi 0, %s29
      %s32 = sphi 0, %s30
      %s44 = sphi 0, %s46
      %s47 = sphi 0, %s44
      %s48 = sphi 0, %s47
      %s64 = sphi 0, %s48
      %s70 = sphi 0, %s72
      %s73 = sphi 0, %s70
      %s74 = sphi 0, %s73
      %s90 = sphi 0, %s74
      %s96 = sphi 0, %s98
      %s99 = sphi 0, %s96
      %s100 = sphi 0, %s99
      %s116 = sphi 0, %s100
      %s124 = sphi 0, %s126
      %s127 = sphi 0, %s124
      %s128 = sphi 0, %s127
      %s144 = sphi 0, %s128
      %s148 = sphi 0, %s148
      %s150 = sphi 0, %s148
      %s151 = sphi 0, %s150
      %s165 = sphi 0, %s151
      %s169 = sphi 0, %s169
      %s171 = sphi 0, %s169
      %s172 = sphi 0, %s171
      %s186 = sphi 0, %s172
      %s190 = sphi 0, %s190
      %s192 = sphi 0, %s190
      %s193 = sphi 0, %s192
      %s207 = sphi 0, %s193
      %s211 = sphi 0, %s211
      %s213 = sphi 0, %s211
      %s214 = sphi 0, %s213
      %s228 = sphi 0, %s214
      %s232 = sphi 0, %s232
      %s234 = sphi 0, %s232
      %s235 = sphi 0, %s234
      %s249 = sphi 0, %s235
      %s257 = sphi 0, %s259
      %s260 = sphi 0, %s257
      %s261 = sphi 0, %s260
      %s277 = sphi 0, %s261
      %s285 = sphi 0, %s287
      %s288 = sphi 0, %s285
      %s289 = sphi 0, %s288
      %s305 = sphi 0, %s289
    $region4: #{text_aware_transformer.2} parent=1 // loop_header_branch
      %23 = sbr.rel (%p21) target = $region8
    $region5: #{text_aware_transformer.2} parent=1 // loop_body
      %s25 = ssub.s32 %s20, 1
      %s26 = ssub.s32 %s20, 2
      %s33 = sadd.s32 1, %s28
      %p34 = scmp.ge.s32.totalorder %s33, 1
      %s35 = scalar_select %p34, 0, %s33
      %s36 = sadd.s32 1, %s27
      %s37 = scalar_select %p34, %s36, %s27
      %p38 = scmp.ge.s32.totalorder %s37, 2
      %s39 = scalar_select %p38, 0, %s37
      %s40 = ssub.s32 %s27, %s39
      %s41 = ssub.s32 %s28, %s35
      %s42 = sor.u32 %s40, %s41
      %p43 = scmp.eq.s32.totalorder %s42, 0
      %s45 = sadd.s32 %s44, 1
      %s46 = scalar_select %p43, %s44, %s45
      %p49 = pneg %p43
      %p50 = scmp.eq.s32.totalorder %s20, 1
      %p51 = por %p49, %p50
      %p52 = scmp.ne.s32.totalorder %s44, %s47
      %p53 = scmp.eq.s32.totalorder %s20, 0
      %p54 = por %p52, %p53
      %p55 = scmp.ne.s32.totalorder %s44, %s47
      %p56 = scmp.eq.s32.totalorder %s25, 1
      %p57 = por %p55, %p56
      %p58 = scmp.ne.s32.totalorder %s47, %s48
      %p59 = scmp.eq.s32.totalorder %s25, 0
      %p60 = por %p58, %p59
      %p61 = scmp.ne.s32.totalorder %s47, %s48
      %p62 = scmp.eq.s32.totalorder %s26, 1
      %p63 = por %p61, %p62
      %p65 = scmp.ne.s32.totalorder %s48, %s64
      %p66 = scmp.eq.s32.totalorder %s26, 0
      %p67 = por %p65, %p66
      %s68 = ssub.s32 %s27, %s39
      %p69 = scmp.eq.s32.totalorder %s68, 0
      %s71 = sadd.s32 %s70, 1
      %s72 = scalar_select %p69, %s70, %s71
      %p75 = pneg %p69
      %p76 = scmp.eq.s32.totalorder %s20, 1
      %p77 = por %p75, %p76
      %p78 = scmp.ne.s32.totalorder %s70, %s73
      %p79 = scmp.eq.s32.totalorder %s20, 0
      %p80 = por %p78, %p79
      %p81 = scmp.ne.s32.totalorder %s70, %s73
      %p82 = scmp.eq.s32.totalorder %s25, 1
      %p83 = por %p81, %p82
      %p84 = scmp.ne.s32.totalorder %s73, %s74
      %p85 = scmp.eq.s32.totalorder %s25, 0
      %p86 = por %p84, %p85
      %p87 = scmp.ne.s32.totalorder %s73, %s74
      %p88 = scmp.eq.s32.totalorder %s26, 1
      %p89 = por %p87, %p88
      %p91 = scmp.ne.s32.totalorder %s74, %s90
      %p92 = scmp.eq.s32.totalorder %s26, 0
      %p93 = por %p91, %p92
      %s94 = ssub.s32 %s27, %s39
      %p95 = scmp.eq.s32.totalorder %s94, 0
      %s97 = sadd.s32 %s96, 1
      %s98 = scalar_select %p95, %s96, %s97
      %p101 = pneg %p95
      %p102 = scmp.eq.s32.totalorder %s20, 1
      %p103 = por %p101, %p102
      %p104 = scmp.ne.s32.totalorder %s96, %s99
      %p105 = scmp.eq.s32.totalorder %s20, 0
      %p106 = por %p104, %p105
      %p107 = scmp.ne.s32.totalorder %s96, %s99
      %p108 = scmp.eq.s32.totalorder %s25, 1
      %p109 = por %p107, %p108
      %p110 = scmp.ne.s32.totalorder %s99, %s100
      %p111 = scmp.eq.s32.totalorder %s25, 0
      %p112 = por %p110, %p111
      %p113 = scmp.ne.s32.totalorder %s99, %s100
      %p114 = scmp.eq.s32.totalorder %s26, 1
      %p115 = por %p113, %p114
      %p117 = scmp.ne.s32.totalorder %s100, %s116
      %p118 = scmp.eq.s32.totalorder %s26, 0
      %p119 = por %p117, %p118
      %s120 = ssub.s32 %s27, %s39
      %s121 = ssub.s32 %s28, %s35
      %s122 = sor.u32 %s120, %s121
      %p123 = scmp.eq.s32.totalorder %s122, 0
      %s125 = sadd.s32 %s124, 1
      %s126 = scalar_select %p123, %s124, %s125
      %p129 = pneg %p123
      %p130 = scmp.eq.s32.totalorder %s20, 1
      %p131 = por %p129, %p130
      %p132 = scmp.ne.s32.totalorder %s124, %s127
      %p133 = scmp.eq.s32.totalorder %s20, 0
      %p134 = por %p132, %p133
      %p135 = scmp.ne.s32.totalorder %s124, %s127
      %p136 = scmp.eq.s32.totalorder %s25, 1
      %p137 = por %p135, %p136
      %p138 = scmp.ne.s32.totalorder %s127, %s128
      %p139 = scmp.eq.s32.totalorder %s25, 0
      %p140 = por %p138, %p139
      %p141 = scmp.ne.s32.totalorder %s127, %s128
      %p142 = scmp.eq.s32.totalorder %s26, 1
      %p143 = por %p141, %p142
      %p145 = scmp.ne.s32.totalorder %s128, %s144
      %p146 = scmp.eq.s32.totalorder %s26, 0
      %p147 = por %p145, %p146
      %s149 = sadd.s32 %s148, 1
      %p152 = scmp.eq.s32.totalorder %s20, 1
      %p153 = scmp.ne.s32.totalorder %s148, %s150
      %p154 = scmp.eq.s32.totalorder %s20, 0
      %p155 = por %p153, %p154
      %p156 = scmp.ne.s32.totalorder %s148, %s150
      %p157 = scmp.eq.s32.totalorder %s25, 1
      %p158 = por %p156, %p157
      %p159 = scmp.ne.s32.totalorder %s150, %s151
      %p160 = scmp.eq.s32.totalorder %s25, 0
      %p161 = por %p159, %p160
      %p162 = scmp.ne.s32.totalorder %s150, %s151
      %p163 = scmp.eq.s32.totalorder %s26, 1
      %p164 = por %p162, %p163
      %p166 = scmp.ne.s32.totalorder %s151, %s165
      %p167 = scmp.eq.s32.totalorder %s26, 0
      %p168 = por %p166, %p167
      %s170 = sadd.s32 %s169, 1
      %p173 = scmp.eq.s32.totalorder %s20, 1
      %p174 = scmp.ne.s32.totalorder %s169, %s171
      %p175 = scmp.eq.s32.totalorder %s20, 0
      %p176 = por %p174, %p175
      %p177 = scmp.ne.s32.totalorder %s169, %s171
      %p178 = scmp.eq.s32.totalorder %s25, 1
      %p179 = por %p177, %p178
      %p180 = scmp.ne.s32.totalorder %s171, %s172
      %p181 = scmp.eq.s32.totalorder %s25, 0
      %p182 = por %p180, %p181
      %p183 = scmp.ne.s32.totalorder %s171, %s172
      %p184 = scmp.eq.s32.totalorder %s26, 1
      %p185 = por %p183, %p184
      %p187 = scmp.ne.s32.totalorder %s172, %s186
      %p188 = scmp.eq.s32.totalorder %s26, 0
      %p189 = por %p187, %p188
      %s191 = sadd.s32 %s190, 1
      %p194 = scmp.eq.s32.totalorder %s20, 1
      %p195 = scmp.ne.s32.totalorder %s190, %s192
      %p196 = scmp.eq.s32.totalorder %s20, 0
      %p197 = por %p195, %p196
      %p198 = scmp.ne.s32.totalorder %s190, %s192
      %p199 = scmp.eq.s32.totalorder %s25, 1
      %p200 = por %p198, %p199
      %p201 = scmp.ne.s32.totalorder %s192, %s193
      %p202 = scmp.eq.s32.totalorder %s25, 0
      %p203 = por %p201, %p202
      %p204 = scmp.ne.s32.totalorder %s192, %s193
      %p205 = scmp.eq.s32.totalorder %s26, 1
      %p206 = por %p204, %p205
      %p208 = scmp.ne.s32.totalorder %s193, %s207
      %p209 = scmp.eq.s32.totalorder %s26, 0
      %p210 = por %p208, %p209
      %s212 = sadd.s32 %s211, 1
      %p215 = scmp.eq.s32.totalorder %s20, 1
      %p216 = scmp.ne.s32.totalorder %s211, %s213
      %p217 = scmp.eq.s32.totalorder %s20, 0
      %p218 = por %p216, %p217
      %p219 = scmp.ne.s32.totalorder %s211, %s213
      %p220 = scmp.eq.s32.totalorder %s25, 1
      %p221 = por %p219, %p220
      %p222 = scmp.ne.s32.totalorder %s213, %s214
      %p223 = scmp.eq.s32.totalorder %s25, 0
      %p224 = por %p222, %p223
      %p225 = scmp.ne.s32.totalorder %s213, %s214
      %p226 = scmp.eq.s32.totalorder %s26, 1
      %p227 = por %p225, %p226
      %p229 = scmp.ne.s32.totalorder %s214, %s228
      %p230 = scmp.eq.s32.totalorder %s26, 0
      %p231 = por %p229, %p230
      %s233 = sadd.s32 %s232, 1
      %p236 = scmp.eq.s32.totalorder %s20, 1
      %p237 = scmp.ne.s32.totalorder %s232, %s234
      %p238 = scmp.eq.s32.totalorder %s20, 0
      %p239 = por %p237, %p238
      %p240 = scmp.ne.s32.totalorder %s232, %s234
      %p241 = scmp.eq.s32.totalorder %s25, 1
      %p242 = por %p240, %p241
      %p243 = scmp.ne.s32.totalorder %s234, %s235
      %p244 = scmp.eq.s32.totalorder %s25, 0
      %p245 = por %p243, %p244
      %p246 = scmp.ne.s32.totalorder %s234, %s235
      %p247 = scmp.eq.s32.totalorder %s26, 1
      %p248 = por %p246, %p247
      %p250 = scmp.ne.s32.totalorder %s235, %s249
      %p251 = scmp.eq.s32.totalorder %s26, 0
      %p252 = por %p250, %p251
      %s253 = ssub.s32 %s27, %s39
      %s254 = ssub.s32 %s28, %s35
      %s255 = sor.u32 %s253, %s254
      %p256 = scmp.eq.s32.totalorder %s255, 0
      %s258 = sadd.s32 %s257, 1
      %s259 = scalar_select %p256, %s257, %s258
      %p262 = pneg %p256
      %p263 = scmp.eq.s32.totalorder %s20, 1
      %p264 = por %p262, %p263
      %p265 = scmp.ne.s32.totalorder %s257, %s260
      %p266 = scmp.eq.s32.totalorder %s20, 0
      %p267 = por %p265, %p266
      %p268 = scmp.ne.s32.totalorder %s257, %s260
      %p269 = scmp.eq.s32.totalorder %s25, 1
      %p270 = por %p268, %p269
      %p271 = scmp.ne.s32.totalorder %s260, %s261
      %p272 = scmp.eq.s32.totalorder %s25, 0
      %p273 = por %p271, %p272
      %p274 = scmp.ne.s32.totalorder %s260, %s261
      %p275 = scmp.eq.s32.totalorder %s26, 1
      %p276 = por %p274, %p275
      %p278 = scmp.ne.s32.totalorder %s261, %s277
      %p279 = scmp.eq.s32.totalorder %s26, 0
      %p280 = por %p278, %p279
      %s281 = ssub.s32 %s27, %s39
      %s282 = ssub.s32 %s28, %s35
      %s283 = sor.u32 %s281, %s282
      %p284 = scmp.eq.s32.totalorder %s283, 0
      %s286 = sadd.s32 %s285, 1
      %s287 = scalar_select %p284, %s285, %s286
      %p290 = pneg %p284
      %p291 = scmp.eq.s32.totalorder %s20, 1
      %p292 = por %p290, %p291
      %p293 = scmp.ne.s32.totalorder %s285, %s288
      %p294 = scmp.eq.s32.totalorder %s20, 0
      %p295 = por %p293, %p294
      %p296 = scmp.ne.s32.totalorder %s285, %s288
      %p297 = scmp.eq.s32.totalorder %s25, 1
      %p298 = por %p296, %p297
      %p299 = scmp.ne.s32.totalorder %s288, %s289
      %p300 = scmp.eq.s32.totalorder %s25, 0
      %p301 = por %p299, %p300
      %p302 = scmp.ne.s32.totalorder %s288, %s289
      %p303 = scmp.eq.s32.totalorder %s26, 1
      %p304 = por %p302, %p303
      %p306 = scmp.ne.s32.totalorder %s289, %s305
      %p307 = scmp.eq.s32.totalorder %s26, 0
      %p308 = por %p306, %p307
      %p309 = scmp.le.s32.totalorder 1, %s20
      %p310 = scmp.lt.s32.totalorder %s20, 3
      %p311 = pnand %p309, %p310
      %p312 = pneg %p311
      // Predicated region
      $region9: #{text_aware_transformer.2} parent=5 // pred_check
        _
      $region10: #{text_aware_transformer.2} parent=5 // pred_check_branch
        %314 = sbr.rel (%p311) target = $region12
      $region11: #{text_aware_transformer.2} parent=5 // pred_region
        %s315 = ssub.s32 %s20, 1
        // Predicated region
        $region13: #{text_aware_transformer.2} parent=11 // pred_check
          %p316 = pneg %p161
        $region14: #{text_aware_transformer.2} parent=11 // pred_check_branch
          %318 = sbr.rel (%p316) target = $region16
        $region15: #{text_aware_transformer.2} parent=11 // pred_region
          _
        $region16: #{text_aware_transformer.2} parent=11 // pred_fallthru
          _
        // Predicated region
        $region17: #{text_aware_transformer.2} parent=11 // pred_check
          %p319 = pneg %p182
        $region18: #{text_aware_transformer.2} parent=11 // pred_check_branch
          %321 = sbr.rel (%p319) target = $region20
        $region19: #{text_aware_transformer.2} parent=11 // pred_region
          _
        $region20: #{text_aware_transformer.2} parent=11 // pred_fallthru
          _
        // Predicated region
        $region21: #{text_aware_transformer.2} parent=11 // pred_check
          %p322 = pneg %p203
        $region22: #{text_aware_transformer.2} parent=11 // pred_check_branch
          %324 = sbr.rel (%p322) target = $region24
        $region23: #{text_aware_transformer.2} parent=11 // pred_region
          _
        $region24: #{text_aware_transformer.2} parent=11 // pred_fallthru
          _
        // Predicated region
        $region25: #{text_aware_transformer.2} parent=11 // pred_check
          %p325 = pneg %p224
        $region26: #{text_aware_transformer.2} parent=11 // pred_check_branch
          %327 = sbr.rel (%p325) target = $region28
        $region27: #{text_aware_transformer.2} parent=11 // pred_region
          _
        $region28: #{text_aware_transformer.2} parent=11 // pred_fallthru
          _
        // Predicated region
        $region29: #{text_aware_transformer.2} parent=11 // pred_check
          %p328 = pneg %p245
        $region30: #{text_aware_transformer.2} parent=11 // pred_check_branch
          %330 = sbr.rel (%p328) target = $region32
        $region31: #{text_aware_transformer.2} parent=11 // pred_region
          _
        $region32: #{text_aware_transformer.2} parent=11 // pred_fallthru
          _
      $region12: #{text_aware_transformer.2} parent=5 // pred_fallthru
        _
      %p331 = scmp.lt.s32.totalorder %s20, 2
      // Predicated region
      $region33: #{text_aware_transformer.2} parent=5 // pred_check
        %p332 = pneg %p331
      $region34: #{text_aware_transformer.2} parent=5 // pred_check_branch
        %334 = sbr.rel (%p332) target = $region36
      $region35: #{text_aware_transformer.2} parent=5 // pred_region
        // Predicated region
        $region37: #{text_aware_transformer.2} parent=35 // pred_check
          %p335 = pneg %p54
        $region38: #{text_aware_transformer.2} parent=35 // pred_check_branch
          %337 = sbr.rel (%p335) target = $region40
        $region39: #{text_aware_transformer.2} parent=35 // pred_region
          %p338 = scmp.lt.s32.totalorder %s27, 1
          %s339 = scalar_select %p338, %s27, 1
          %p340 = scmp.lt.s32.totalorder %s28, 0
          %s341 = scalar_select %p340, %s28, 0
          %s342 = sadd.s32 %s341, %s339
          %s343 = smul.addr %s342, 8
          %s344 = scalar_lea.vmem %s0, %s343
        $region40: #{text_aware_transformer.2} parent=35 // pred_fallthru
          _
        // Predicated region
        $region41: #{text_aware_transformer.2} parent=35 // pred_check
          %p345 = pneg %p80
        $region42: #{text_aware_transformer.2} parent=35 // pred_check_branch
          %347 = sbr.rel (%p345) target = $region44
        $region43: #{text_aware_transformer.2} parent=35 // pred_region
          %p348 = scmp.lt.s32.totalorder %s27, 1
          %s349 = scalar_select %p348, %s27, 1
          %s350 = smul.addr %s349, 8
          %s351 = scalar_lea.vmem %s1, %s350
        $region44: #{text_aware_transformer.2} parent=35 // pred_fallthru
          _
        // Predicated region
        $region45: #{text_aware_transformer.2} parent=35 // pred_check
          %p352 = pneg %p106
        $region46: #{text_aware_transformer.2} parent=35 // pred_check_branch
          %354 = sbr.rel (%p352) target = $region48
        $region47: #{text_aware_transformer.2} parent=35 // pred_region
          %p355 = scmp.lt.s32.totalorder %s27, 1
          %s356 = scalar_select %p355, %s27, 1
          %s357 = smul.addr %s356, 8
          %s358 = scalar_lea.vmem %s2, %s357
        $region48: #{text_aware_transformer.2} parent=35 // pred_fallthru
          _
        // Predicated region
        $region49: #{text_aware_transformer.2} parent=35 // pred_check
          %p359 = pneg %p134
        $region50: #{text_aware_transformer.2} parent=35 // pred_check_branch
          %361 = sbr.rel (%p359) target = $region52
        $region51: #{text_aware_transformer.2} parent=35 // pred_region
          %p362 = scmp.lt.s32.totalorder %s27, 1
          %s363 = scalar_select %p362, %s27, 1
          %p364 = scmp.lt.s32.totalorder %s28, 0
          %s365 = scalar_select %p364, %s28, 0
          %s366 = sadd.s32 %s365, %s363
          %s367 = smul.addr %s366, 8
          %s368 = scalar_lea.vmem %s3, %s367
        $region52: #{text_aware_transformer.2} parent=35 // pred_fallthru
          _
      $region36: #{text_aware_transformer.2} parent=5 // pred_fallthru
        _
      %p369 = scmp.le.s32.totalorder 1, %s20
      %p370 = scmp.lt.s32.totalorder %s20, 3
      %p371 = pnand %p369, %p370
      %p372 = pneg %p371
      // Predicated region
      $region53: #{text_aware_transformer.2} parent=5 // pred_check
        _
      $region54: #{text_aware_transformer.2} parent=5 // pred_check_branch
        %374 = sbr.rel (%p371) target = $region56
      $region55: #{text_aware_transformer.2} parent=5 // pred_region
        %s375 = ssub.s32 %s20, 1
        %p376 = scmp.lt.s32.totalorder %s29, 1
        %s377 = scalar_select %p376, %s29, 1
        %p378 = scmp.lt.s32.totalorder %s30, 0
        %s379 = scalar_select %p378, %s30, 0
        %s380 = sadd.s32 %s379, %s377
        %s381 = smul.addr %s380, 8
        %s382 = scalar_lea.vmem %s0, %s381
        %p383 = pneg %p60
        %p384 = pneg %p57
        %p385 = scmp.lt.s32.totalorder %s29, 1
        %s386 = scalar_select %p385, %s29, 1
        %s387 = smul.addr %s386, 8
        %s388 = scalar_lea.vmem %s1, %s387
        %p389 = pneg %p86
        %p390 = pneg %p83
        %p391 = scmp.lt.s32.totalorder %s29, 1
        %s392 = scalar_select %p391, %s29, 1
        %s393 = smul.addr %s392, 8
        %s394 = scalar_lea.vmem %s2, %s393
        %p395 = pneg %p112
        %p396 = pneg %p109
        %p397 = scmp.lt.s32.totalorder %s29, 1
        %s398 = scalar_select %p397, %s29, 1
        %p399 = scmp.lt.s32.totalorder %s30, 0
        %s400 = scalar_select %p399, %s30, 0
        %s401 = sadd.s32 %s400, %s398
        %s402 = smul.addr %s401, 8
        %s403 = scalar_lea.vmem %s3, %s402
        %p404 = pneg %p140
        %p405 = pneg %p137
        %p406 = pneg %p161
        %p407 = pneg %p158
        %p408 = pneg %p182
        %p409 = pneg %p179
        %p410 = pneg %p203
        %p411 = pneg %p200
        %p412 = pneg %p224
        %p413 = pneg %p221
        %p414 = pneg %p245
        %p415 = pneg %p242
        %p416 = pneg %p273
        %p417 = pneg %p270
        %p418 = scmp.lt.s32.totalorder %s29, 1
        %s419 = scalar_select %p418, %s29, 1
        %p420 = scmp.lt.s32.totalorder %s30, 0
        %s421 = scalar_select %p420, %s30, 0
        %s422 = sadd.s32 %s421, %s419
        %s423 = smul.addr %s422, 8
        %s424 = scalar_lea.vmem %s9, %s423
        %p425 = pneg %p301
        %p426 = pneg %p298
        %s427 = sand.u32 %s288, 1
        %s428 = scalar_lea.sflag [#allocation6], %s427
        %s429 = sand.u32 %s288, 1
        %s430 = smul.addr %s429, 16
        %s431 = scalar_lea.vmem [#allocation5], %s430
        %p432 = scmp.lt.s32.totalorder %s29, 1
        %s433 = scalar_select %p432, %s29, 1
        %p434 = scmp.lt.s32.totalorder %s30, 0
        %s435 = scalar_select %p434, %s30, 0
        %s436 = sadd.s32 %s435, %s433
        %s437 = smul.addr %s436, 8
        %s438 = scalar_lea.vmem %s0, %s437
        %p439 = scmp.lt.s32.totalorder %s29, 1
        %s440 = scalar_select %p439, %s29, 1
        %s441 = smul.addr %s440, 8
        %s442 = scalar_lea.vmem %s1, %s441
        %p443 = scmp.lt.s32.totalorder %s29, 1
        %s444 = scalar_select %p443, %s29, 1
        %s445 = smul.addr %s444, 8
        %s446 = scalar_lea.vmem %s2, %s445
        %p447 = scmp.lt.s32.totalorder %s29, 1
        %s448 = scalar_select %p447, %s29, 1
        %p449 = scmp.lt.s32.totalorder %s30, 0
        %s450 = scalar_select %p449, %s30, 0
        %s451 = sadd.s32 %s450, %s448
        %s452 = smul.addr %s451, 8
        %s453 = scalar_lea.vmem %s3, %s452
        %p454 = scmp.lt.s32.totalorder %s29, 1
        %s455 = scalar_select %p454, %s29, 1
        %p456 = scmp.lt.s32.totalorder %s30, 0
        %s457 = scalar_select %p456, %s30, 0
        %s458 = sadd.s32 %s457, %s455
        %s459 = smul.addr %s458, 8
        %s460 = scalar_lea.vmem %s9, %s459
        %v461 = vld [vmem:[%s4] sm:$0xff]
        %v462 = vld [vmem:[%s4 + $0x8] sm:$0x1f]
        %p463 = scmp.eq.s32.totalorder %s30, 0
        // Predicated region
        $region57: #{text_aware_transformer.2} parent=55 // pred_check
          %p464 = pneg %p463
        $region58: #{text_aware_transformer.2} parent=55 // pred_check_branch
          %466 = sbr.rel (%p464) target = $region60
        $region59: #{text_aware_transformer.2} parent=55 // pred_region
          %v467 = vld [vmem:[%s442] sm:$0xff]
          %vm468 = vcmask 261120
          %v469 = vsel %vm468, %v467, 0.0
          %470 = vadd.xlane.f32.xlu0 %v469
          %v471 = vpop.xlane.xlu0 %470
          %v472 = vrcp.pop 32.0
          %v473 = vmul.f32 %v471, %v472
          %v474 = vsub.f32 %v467, %v473
          %v475 = vmul.f32 %v474, %v474
          %v476 = vsel %vm468, %v475, 0.0
          %477 = vadd.xlane.f32.xlu0 %v476
          %v478 = vpop.xlane.xlu0 %477
          %v479 = vmul.f32 %v478, %v472
          %v480 = vadd.f32 %v479, 1e-08
          %v481 = vrsqrt.pop %v480
          %v482 = vmul.f32 %v474, %v481
          %v483 = vlaneseq
          %v484 = vshrl.u32 %v483, 7
          %v485 = vsub.s32 2, %v484
          %v486 = vrot.slane %v461, %v485
          %v487 = vmul.f32 %v482, %v486
          %v488 = vlaneseq
          %v489 = vshrl.u32 %v488, 7
          %v490 = vsub.s32 3, %v489
          %v491 = vrot.slane %v461, %v490
          %v492 = vadd.f32 %v487, %v491
          %v493 = vld [vmem:[%s446] sm:$0xff]
          %v494 = vsel %vm468, %v493, 0.0
          %495 = vadd.xlane.f32.xlu0 %v494
          %v496 = vpop.xlane.xlu0 %495
          %v497 = vmul.f32 %v496, %v472
          %v498 = vsub.f32 %v493, %v497
          %v499 = vmul.f32 %v498, %v498
          %v500 = vsel %vm468, %v499, 0.0
          %501 = vadd.xlane.f32.xlu0 %v500
          %v502 = vpop.xlane.xlu0 %501
          %v503 = vmul.f32 %v502, %v472
          %v504 = vadd.f32 %v503, 1e-08
          %v505 = vrsqrt.pop %v504
          %v506 = vmul.f32 %v498, %v505
          %v507 = vlaneseq
          %v508 = vshrl.u32 %v507, 7
          %v509 = vsub.s32 4, %v508
          %v510 = vrot.slane %v461, %v509
          %v511 = vmul.f32 %v506, %v510
          %v512 = vlaneseq
          %v513 = vshrl.u32 %v512, 7
          %v514 = vsub.s32 5, %v513
          %v515 = vrot.slane %v461, %v514
          %v516 = vadd.f32 %v511, %v515
          %517 = vst.msk [vmem:[#allocation2] sm:$0xff] %vm468, %v492
          %s518 = scalar_lea.vmem %s5, 64
          %v519 = vld [vmem:[%s518] sm:$0xff]
          %v520 = vld [vmem:[%s518 + $0x8] sm:$0xff]
          %v521 = vld [vmem:[%s518 + $0x10] sm:$0xff]
          %v522 = vld [vmem:[%s518 + $0x18] sm:$0xff]
          %v523 = vld [vmem:[%s518 + $0x20] sm:$0xff]
          %v524 = vld [vmem:[%s518 + $0x28] sm:$0xff]
          %v525 = vld [vmem:[%s518 + $0x30] sm:$0xff]
          %v526 = vld [vmem:[%s518 + $0x38] sm:$0xff]
          %s527 = scalar_lea.vmem %s6, 2
          %v528 = vld [vmem:[%s527] sm:$0x1]
          %v529 = vld [vmem:[%s527 + $0x1] sm:$0x1]
          %v532 = vlaneseq
          %v533 = vshrl.u32 %v532, 7
          %v534 = vsub.s32 0, %v533
          %v535 = vrot.slane %v528, %v534
          %v536 = vlaneseq
          %v537 = vshrl.u32 %v536, 7
          %v538 = vsub.s32 0, %v537
          %v539 = vrot.slane %v529, %v538
          %v543 = vsel %vm468, %v492, 0
          %545 = vmatprep.subr.mxu0 0.0
          %546 = vmatpush1.msra.mxu0 0.0
          %547 = vmatprep.subr.mxu0 0.0
          %548 = vmatpush1.msra.mxu0 0.0
          %549 = vmatprep.subr.mxu0 0.0
          %550 = vmatpush1.msra.mxu0 0.0
          %551 = vmatprep.subr.mxu0 0.0
          %552 = vmatpush1.msra.mxu0 0.0
          %553 = vmatprep.subr.mxu0 0.0
          %554 = vmatpush1.msra.mxu0 0.0
          %555 = vmatprep.subr.mxu0 0.0
          %556 = vmatpush1.msra.mxu0 0.0
          %557 = vmatprep.subr.mxu0 0.0
          %558 = vmatpush1.msra.mxu0 0.0
          %559 = vmatprep.subr.mxu0 0.0
          %560 = vmatpush1.msra.mxu0 0.0
          %561 = vmatprep.subr.mxu0 0.0
          %562 = vmatpush1.msra.mxu0 0.0
          %563 = vmatprep.subr.mxu0 0.0
          %564 = vmatpush1.msra.mxu0 0.0
          %565 = vmatprep.subr.mxu0 0.0
          %566 = vmatpush1.msra.mxu0 0.0
          %567 = vmatprep.subr.mxu0 0.0
          %568 = vmatpush1.msra.mxu0 0.0
          %569 = vmatprep.subr.mxu0 0.0
          %570 = vmatpush1.msra.mxu0 %v522
          %571 = vmatprep.subr.mxu0 0.0
          %572 = vmatpush1.msra.mxu0 %v521
          %573 = vmatprep.subr.mxu0 0.0
          %574 = vmatpush1.msra.mxu0 %v520
          %575 = vmatprep.subr.mxu0 0.0
          %576 = vmatpush1.msra.mxu0 %v519
          %577 = vmatprep.subr.mxu0 0.0
          %578 = vmatpush2.msra.mxu0 0.0
          %579 = vmatprep.subr.mxu0 0.0
          %580 = vmatpush2.msra.mxu0 0.0
          %581 = vmatprep.subr.mxu0 0.0
          %582 = vmatpush2.msra.mxu0 0.0
          %583 = vmatprep.subr.mxu0 0.0
          %584 = vmatpush2.msra.mxu0 0.0
          %585 = vmatprep.subr.mxu0 0.0
          %586 = vmatpush2.msra.mxu0 0.0
          %587 = vmatprep.subr.mxu0 0.0
          %588 = vmatpush2.msra.mxu0 0.0
          %589 = vmatprep.subr.mxu0 0.0
          %590 = vmatpush2.msra.mxu0 0.0
          %591 = vmatprep.subr.mxu0 0.0
          %592 = vmatpush2.msra.mxu0 0.0
          %593 = vmatprep.subr.mxu0 0.0
          %594 = vmatpush2.msra.mxu0 0.0
          %595 = vmatprep.subr.mxu0 0.0
          %596 = vmatpush2.msra.mxu0 0.0
          %597 = vmatprep.subr.mxu0 0.0
          %598 = vmatpush2.msra.mxu0 0.0
          %599 = vmatprep.subr.mxu0 0.0
          %600 = vmatpush2.msra.mxu0 0.0
          %601 = vmatprep.subr.mxu0 0.0
          %602 = vmatpush2.msra.mxu0 0.0
          %603 = vmatprep.subr.mxu0 0.0
          %604 = vmatpush2.msra.mxu0 0.0
          %605 = vmatprep.subr.mxu0 0.0
          %606 = vmatpush2.msra.mxu0 0.0
          %607 = vmatprep.subr.mxu0 0.0
          %608 = vmatpush2.msra.mxu0 0.0
          %609 = vmatprep.mubr.f32.mxu0 0.0
          %610 = vmatmul.mubr.f32.gmra.mxu0 %v543
          %v611 = vpop.f32.mrf.mxu0
          %v612 = vadd.f32 %v535, %v611
          %v613 = vpop.f32.mrf.mxu0
          %614 = vdwg.mxu0
          %615 = vmatprep.subr.mxu0 0.0
          %616 = vmatpush1.msra.mxu0 0.0
          %617 = vmatprep.subr.mxu0 0.0
          %618 = vmatpush1.msra.mxu0 0.0
          %619 = vmatprep.subr.mxu0 0.0
          %620 = vmatpush1.msra.mxu0 0.0
          %621 = vmatprep.subr.mxu0 0.0
          %622 = vmatpush1.msra.mxu0 0.0
          %623 = vmatprep.subr.mxu0 0.0
          %624 = vmatpush1.msra.mxu0 0.0
          %625 = vmatprep.subr.mxu0 0.0
          %626 = vmatpush1.msra.mxu0 0.0
          %627 = vmatprep.subr.mxu0 0.0
          %628 = vmatpush1.msra.mxu0 0.0
          %629 = vmatprep.subr.mxu0 0.0
          %630 = vmatpush1.msra.mxu0 0.0
          %631 = vmatprep.subr.mxu0 0.0
          %632 = vmatpush1.msra.mxu0 0.0
          %633 = vmatprep.subr.mxu0 0.0
          %634 = vmatpush1.msra.mxu0 0.0
          %635 = vmatprep.subr.mxu0 0.0
          %636 = vmatpush1.msra.mxu0 0.0
          %637 = vmatprep.subr.mxu0 0.0
          %638 = vmatpush1.msra.mxu0 0.0
          %639 = vmatprep.subr.mxu0 0.0
          %640 = vmatpush1.msra.mxu0 %v526
          %641 = vmatprep.subr.mxu0 0.0
          %642 = vmatpush1.msra.mxu0 %v525
          %643 = vmatprep.subr.mxu0 0.0
          %644 = vmatpush1.msra.mxu0 %v524
          %645 = vmatprep.subr.mxu0 0.0
          %646 = vmatpush1.msra.mxu0 %v523
          %647 = vmatprep.subr.mxu0 0.0
          %648 = vmatpush2.msra.mxu0 0.0
          %649 = vmatprep.subr.mxu0 0.0
          %650 = vmatpush2.msra.mxu0 0.0
          %651 = vmatprep.subr.mxu0 0.0
          %652 = vmatpush2.msra.mxu0 0.0
          %653 = vmatprep.subr.mxu0 0.0
          %654 = vmatpush2.msra.mxu0 0.0
          %655 = vmatprep.subr.mxu0 0.0
          %656 = vmatpush2.msra.mxu0 0.0
          %657 = vmatprep.subr.mxu0 0.0
          %658 = vmatpush2.msra.mxu0 0.0
          %659 = vmatprep.subr.mxu0 0.0
          %660 = vmatpush2.msra.mxu0 0.0
          %661 = vmatprep.subr.mxu0 0.0
          %662 = vmatpush2.msra.mxu0 0.0
          %663 = vmatprep.subr.mxu0 0.0
          %664 = vmatpush2.msra.mxu0 0.0
          %665 = vmatprep.subr.mxu0 0.0
          %666 = vmatpush2.msra.mxu0 0.0
          %667 = vmatprep.subr.mxu0 0.0
          %668 = vmatpush2.msra.mxu0 0.0
          %669 = vmatprep.subr.mxu0 0.0
          %670 = vmatpush2.msra.mxu0 0.0
          %671 = vmatprep.subr.mxu0 0.0
          %672 = vmatpush2.msra.mxu0 0.0
          %673 = vmatprep.subr.mxu0 0.0
          %674 = vmatpush2.msra.mxu0 0.0
          %675 = vmatprep.subr.mxu0 0.0
          %676 = vmatpush2.msra.mxu0 0.0
          %677 = vmatprep.subr.mxu0 0.0
          %678 = vmatpush2.msra.mxu0 0.0
          %679 = vmatprep.mubr.f32.mxu0 0.0
          %680 = vmatmul.mubr.f32.gmra.mxu0 %v543
          %v681 = vpop.f32.mrf.mxu0
          %v682 = vadd.f32 %v539, %v681
          %v683 = vpop.f32.mrf.mxu0
          %684 = vdwg.mxu0
          %vm685 = vcmask 130048
          %686 = vst.msk [vmem:[#allocation3] sm:$0xff] %vm685, %v612
          %687 = vst.msk [vmem:[#allocation3 + $0x8] sm:$0xff] %vm685, %v682
          %s688 = scalar_lea.vmem %s5, 128
          %v689 = vld [vmem:[%s688] sm:$0xff]
          %v690 = vld [vmem:[%s688 + $0x8] sm:$0xff]
          %v691 = vld [vmem:[%s688 + $0x10] sm:$0xff]
          %v692 = vld [vmem:[%s688 + $0x18] sm:$0xff]
          %v693 = vld [vmem:[%s688 + $0x20] sm:$0xff]
          %v694 = vld [vmem:[%s688 + $0x28] sm:$0xff]
          %v695 = vld [vmem:[%s688 + $0x30] sm:$0xff]
          %v696 = vld [vmem:[%s688 + $0x38] sm:$0xff]
          %s697 = scalar_lea.vmem %s6, 4
          %v698 = vld [vmem:[%s697] sm:$0x1]
          %v699 = vld [vmem:[%s697 + $0x1] sm:$0x1]
          %v702 = vlaneseq
          %v703 = vshrl.u32 %v702, 7
          %v704 = vsub.s32 0, %v703
          %v705 = vrot.slane %v698, %v704
          %v706 = vlaneseq
          %v707 = vshrl.u32 %v706, 7
          %v708 = vsub.s32 0, %v707
          %v709 = vrot.slane %v699, %v708
          %v713 = vsel %vm468, %v516, 0
          %715 = vmatprep.subr.mxu0 0.0
          %716 = vmatpush1.msra.mxu0 0.0
          %717 = vmatprep.subr.mxu0 0.0
          %718 = vmatpush1.msra.mxu0 0.0
          %719 = vmatprep.subr.mxu0 0.0
          %720 = vmatpush1.msra.mxu0 0.0
          %721 = vmatprep.subr.mxu0 0.0
          %722 = vmatpush1.msra.mxu0 0.0
          %723 = vmatprep.subr.mxu0 0.0
          %724 = vmatpush1.msra.mxu0 0.0
          %725 = vmatprep.subr.mxu0 0.0
          %726 = vmatpush1.msra.mxu0 0.0
          %727 = vmatprep.subr.mxu0 0.0
          %728 = vmatpush1.msra.mxu0 0.0
          %729 = vmatprep.subr.mxu0 0.0
          %730 = vmatpush1.msra.mxu0 0.0
          %731 = vmatprep.subr.mxu0 0.0
          %732 = vmatpush1.msra.mxu0 0.0
          %733 = vmatprep.subr.mxu0 0.0
          %734 = vmatpush1.msra.mxu0 0.0
          %735 = vmatprep.subr.mxu0 0.0
          %736 = vmatpush1.msra.mxu0 0.0
          %737 = vmatprep.subr.mxu0 0.0
          %738 = vmatpush1.msra.mxu0 0.0
          %739 = vmatprep.subr.mxu0 0.0
          %740 = vmatpush1.msra.mxu0 %v692
          %741 = vmatprep.subr.mxu0 0.0
          %742 = vmatpush1.msra.mxu0 %v691
          %743 = vmatprep.subr.mxu0 0.0
          %744 = vmatpush1.msra.mxu0 %v690
          %745 = vmatprep.subr.mxu0 0.0
          %746 = vmatpush1.msra.mxu0 %v689
          %747 = vmatprep.subr.mxu0 0.0
          %748 = vmatpush2.msra.mxu0 0.0
          %749 = vmatprep.subr.mxu0 0.0
          %750 = vmatpush2.msra.mxu0 0.0
          %751 = vmatprep.subr.mxu0 0.0
          %752 = vmatpush2.msra.mxu0 0.0
          %753 = vmatprep.subr.mxu0 0.0
          %754 = vmatpush2.msra.mxu0 0.0
          %755 = vmatprep.subr.mxu0 0.0
          %756 = vmatpush2.msra.mxu0 0.0
          %757 = vmatprep.subr.mxu0 0.0
          %758 = vmatpush2.msra.mxu0 0.0
          %759 = vmatprep.subr.mxu0 0.0
          %760 = vmatpush2.msra.mxu0 0.0
          %761 = vmatprep.subr.mxu0 0.0
          %762 = vmatpush2.msra.mxu0 0.0
          %763 = vmatprep.subr.mxu0 0.0
          %764 = vmatpush2.msra.mxu0 0.0
          %765 = vmatprep.subr.mxu0 0.0
          %766 = vmatpush2.msra.mxu0 0.0
          %767 = vmatprep.subr.mxu0 0.0
          %768 = vmatpush2.msra.mxu0 0.0
          %769 = vmatprep.subr.mxu0 0.0
          %770 = vmatpush2.msra.mxu0 0.0
          %771 = vmatprep.subr.mxu0 0.0
          %772 = vmatpush2.msra.mxu0 0.0
          %773 = vmatprep.subr.mxu0 0.0
          %774 = vmatpush2.msra.mxu0 0.0
          %775 = vmatprep.subr.mxu0 0.0
          %776 = vmatpush2.msra.mxu0 0.0
          %777 = vmatprep.subr.mxu0 0.0
          %778 = vmatpush2.msra.mxu0 0.0
          %779 = vmatprep.mubr.f32.mxu0 0.0
          %780 = vmatmul.mubr.f32.gmra.mxu0 %v713
          %v781 = vpop.f32.mrf.mxu0
          %v782 = vadd.f32 %v705, %v781
          %v783 = vpop.f32.mrf.mxu0
          %784 = vdwg.mxu0
          %785 = vmatprep.subr.mxu0 0.0
          %786 = vmatpush1.msra.mxu0 0.0
          %787 = vmatprep.subr.mxu0 0.0
          %788 = vmatpush1.msra.mxu0 0.0
          %789 = vmatprep.subr.mxu0 0.0
          %790 = vmatpush1.msra.mxu0 0.0
          %791 = vmatprep.subr.mxu0 0.0
          %792 = vmatpush1.msra.mxu0 0.0
          %793 = vmatprep.subr.mxu0 0.0
          %794 = vmatpush1.msra.mxu0 0.0
          %795 = vmatprep.subr.mxu0 0.0
          %796 = vmatpush1.msra.mxu0 0.0
          %797 = vmatprep.subr.mxu0 0.0
          %798 = vmatpush1.msra.mxu0 0.0
          %799 = vmatprep.subr.mxu0 0.0
          %800 = vmatpush1.msra.mxu0 0.0
          %801 = vmatprep.subr.mxu0 0.0
          %802 = vmatpush1.msra.mxu0 0.0
          %803 = vmatprep.subr.mxu0 0.0
          %804 = vmatpush1.msra.mxu0 0.0
          %805 = vmatprep.subr.mxu0 0.0
          %806 = vmatpush1.msra.mxu0 0.0
          %807 = vmatprep.subr.mxu0 0.0
          %808 = vmatpush1.msra.mxu0 0.0
          %809 = vmatprep.subr.mxu0 0.0
          %810 = vmatpush1.msra.mxu0 %v696
          %811 = vmatprep.subr.mxu0 0.0
          %812 = vmatpush1.msra.mxu0 %v695
          %813 = vmatprep.subr.mxu0 0.0
          %814 = vmatpush1.msra.mxu0 %v694
          %815 = vmatprep.subr.mxu0 0.0
          %816 = vmatpush1.msra.mxu0 %v693
          %817 = vmatprep.subr.mxu0 0.0
          %818 = vmatpush2.msra.mxu0 0.0
          %819 = vmatprep.subr.mxu0 0.0
          %820 = vmatpush2.msra.mxu0 0.0
          %821 = vmatprep.subr.mxu0 0.0
          %822 = vmatpush2.msra.mxu0 0.0
          %823 = vmatprep.subr.mxu0 0.0
          %824 = vmatpush2.msra.mxu0 0.0
          %825 = vmatprep.subr.mxu0 0.0
          %826 = vmatpush2.msra.mxu0 0.0
          %827 = vmatprep.subr.mxu0 0.0
          %828 = vmatpush2.msra.mxu0 0.0
          %829 = vmatprep.subr.mxu0 0.0
          %830 = vmatpush2.msra.mxu0 0.0
          %831 = vmatprep.subr.mxu0 0.0
          %832 = vmatpush2.msra.mxu0 0.0
          %833 = vmatprep.subr.mxu0 0.0
          %834 = vmatpush2.msra.mxu0 0.0
          %835 = vmatprep.subr.mxu0 0.0
          %836 = vmatpush2.msra.mxu0 0.0
          %837 = vmatprep.subr.mxu0 0.0
          %838 = vmatpush2.msra.mxu0 0.0
          %839 = vmatprep.subr.mxu0 0.0
          %840 = vmatpush2.msra.mxu0 0.0
          %841 = vmatprep.subr.mxu0 0.0
          %842 = vmatpush2.msra.mxu0 0.0
          %843 = vmatprep.subr.mxu0 0.0
          %844 = vmatpush2.msra.mxu0 0.0
          %845 = vmatprep.subr.mxu0 0.0
          %846 = vmatpush2.msra.mxu0 0.0
          %847 = vmatprep.subr.mxu0 0.0
          %848 = vmatpush2.msra.mxu0 0.0
          %849 = vmatprep.mubr.f32.mxu0 0.0
          %850 = vmatmul.mubr.f32.gmra.mxu0 %v713
          %v851 = vpop.f32.mrf.mxu0
          %v852 = vadd.f32 %v709, %v851
          %v853 = vpop.f32.mrf.mxu0
          %854 = vdwg.mxu0
          %855 = vst.msk [vmem:[#allocation4] sm:$0xff] %vm685, %v782
          %856 = vst.msk [vmem:[#allocation4 + $0x8] sm:$0xff] %vm685, %v852
        $region60: #{text_aware_transformer.2} parent=55 // pred_fallthru
          _
        %v857 = vld [vmem:[%s438] sm:$0xff]
        %vm858 = vcmask 261120
        %v859 = vsel %vm858, %v857, 0.0
        %860 = vadd.xlane.f32.xlu0 %v859
        %v861 = vpop.xlane.xlu0 %860
        %v862 = vrcp.pop 32.0
        %v863 = vmul.f32 %v861, %v862
        %v864 = vsub.f32 %v857, %v863
        %v865 = vmul.f32 %v864, %v864
        %v866 = vsel %vm858, %v865, 0.0
        %867 = vadd.xlane.f32.xlu0 %v866
        %v868 = vpop.xlane.xlu0 %867
        %v869 = vmul.f32 %v868, %v862
        %v870 = vadd.f32 %v869, 1e-08
        %v871 = vrsqrt.pop %v870
        %v872 = vmul.f32 %v864, %v871
        %v873 = vlaneseq
        %v874 = vshrl.u32 %v873, 7
        %v875 = vsub.s32 0, %v874
        %v876 = vrot.slane %v461, %v875
        %v877 = vmul.f32 %v872, %v876
        %v878 = vlaneseq
        %v879 = vshrl.u32 %v878, 7
        %v880 = vsub.s32 1, %v879
        %v881 = vrot.slane %v461, %v880
        %v882 = vadd.f32 %v877, %v881
        %v883 = vld [vmem:[%s5] sm:$0xff]
        %v884 = vld [vmem:[%s5 + $0x8] sm:$0xff]
        %v885 = vld [vmem:[%s5 + $0x10] sm:$0xff]
        %v886 = vld [vmem:[%s5 + $0x18] sm:$0xff]
        %v887 = vld [vmem:[%s5 + $0x20] sm:$0xff]
        %v888 = vld [vmem:[%s5 + $0x28] sm:$0xff]
        %v889 = vld [vmem:[%s5 + $0x30] sm:$0xff]
        %v890 = vld [vmem:[%s5 + $0x38] sm:$0xff]
        %v891 = vld [vmem:[%s6] sm:$0x1]
        %v892 = vld [vmem:[%s6 + $0x1] sm:$0x1]
        %v895 = vlaneseq
        %v896 = vshrl.u32 %v895, 7
        %v897 = vsub.s32 0, %v896
        %v898 = vrot.slane %v891, %v897
        %v899 = vlaneseq
        %v900 = vshrl.u32 %v899, 7
        %v901 = vsub.s32 0, %v900
        %v902 = vrot.slane %v892, %v901
        %v906 = vsel %vm858, %v882, 0
        %908 = vmatprep.subr.mxu0 0.0
        %909 = vmatpush1.msra.mxu0 0.0
        %910 = vmatprep.subr.mxu0 0.0
        %911 = vmatpush1.msra.mxu0 0.0
        %912 = vmatprep.subr.mxu0 0.0
        %913 = vmatpush1.msra.mxu0 0.0
        %914 = vmatprep.subr.mxu0 0.0
        %915 = vmatpush1.msra.mxu0 0.0
        %916 = vmatprep.subr.mxu0 0.0
        %917 = vmatpush1.msra.mxu0 0.0
        %918 = vmatprep.subr.mxu0 0.0
        %919 = vmatpush1.msra.mxu0 0.0
        %920 = vmatprep.subr.mxu0 0.0
        %921 = vmatpush1.msra.mxu0 0.0
        %922 = vmatprep.subr.mxu0 0.0
        %923 = vmatpush1.msra.mxu0 0.0
        %924 = vmatprep.subr.mxu0 0.0
        %925 = vmatpush1.msra.mxu0 0.0
        %926 = vmatprep.subr.mxu0 0.0
        %927 = vmatpush1.msra.mxu0 0.0
        %928 = vmatprep.subr.mxu0 0.0
        %929 = vmatpush1.msra.mxu0 0.0
        %930 = vmatprep.subr.mxu0 0.0
        %931 = vmatpush1.msra.mxu0 0.0
        %932 = vmatprep.subr.mxu0 0.0
        %933 = vmatpush1.msra.mxu0 %v886
        %934 = vmatprep.subr.mxu0 0.0
        %935 = vmatpush1.msra.mxu0 %v885
        %936 = vmatprep.subr.mxu0 0.0
        %937 = vmatpush1.msra.mxu0 %v884
        %938 = vmatprep.subr.mxu0 0.0
        %939 = vmatpush1.msra.mxu0 %v883
        %940 = vmatprep.subr.mxu0 0.0
        %941 = vmatpush2.msra.mxu0 0.0
        %942 = vmatprep.subr.mxu0 0.0
        %943 = vmatpush2.msra.mxu0 0.0
        %944 = vmatprep.subr.mxu0 0.0
        %945 = vmatpush2.msra.mxu0 0.0
        %946 = vmatprep.subr.mxu0 0.0
        %947 = vmatpush2.msra.mxu0 0.0
        %948 = vmatprep.subr.mxu0 0.0
        %949 = vmatpush2.msra.mxu0 0.0
        %950 = vmatprep.subr.mxu0 0.0
        %951 = vmatpush2.msra.mxu0 0.0
        %952 = vmatprep.subr.mxu0 0.0
        %953 = vmatpush2.msra.mxu0 0.0
        %954 = vmatprep.subr.mxu0 0.0
        %955 = vmatpush2.msra.mxu0 0.0
        %956 = vmatprep.subr.mxu0 0.0
        %957 = vmatpush2.msra.mxu0 0.0
        %958 = vmatprep.subr.mxu0 0.0
        %959 = vmatpush2.msra.mxu0 0.0
        %960 = vmatprep.subr.mxu0 0.0
        %961 = vmatpush2.msra.mxu0 0.0
        %962 = vmatprep.subr.mxu0 0.0
        %963 = vmatpush2.msra.mxu0 0.0
        %964 = vmatprep.subr.mxu0 0.0
        %965 = vmatpush2.msra.mxu0 0.0
        %966 = vmatprep.subr.mxu0 0.0
        %967 = vmatpush2.msra.mxu0 0.0
        %968 = vmatprep.subr.mxu0 0.0
        %969 = vmatpush2.msra.mxu0 0.0
        %970 = vmatprep.subr.mxu0 0.0
        %971 = vmatpush2.msra.mxu0 0.0
        %972 = vmatprep.mubr.f32.mxu0 0.0
        %973 = vmatmul.mubr.f32.gmra.mxu0 %v906
        %v974 = vpop.f32.mrf.mxu0
        %v975 = vadd.f32 %v898, %v974
        %v976 = vpop.f32.mrf.mxu0
        %977 = vdwg.mxu0
        %978 = vmatprep.subr.mxu0 0.0
        %979 = vmatpush1.msra.mxu0 0.0
        %980 = vmatprep.subr.mxu0 0.0
        %981 = vmatpush1.msra.mxu0 0.0
        %982 = vmatprep.subr.mxu0 0.0
        %983 = vmatpush1.msra.mxu0 0.0
        %984 = vmatprep.subr.mxu0 0.0
        %985 = vmatpush1.msra.mxu0 0.0
        %986 = vmatprep.subr.mxu0 0.0
        %987 = vmatpush1.msra.mxu0 0.0
        %988 = vmatprep.subr.mxu0 0.0
        %989 = vmatpush1.msra.mxu0 0.0
        %990 = vmatprep.subr.mxu0 0.0
        %991 = vmatpush1.msra.mxu0 0.0
        %992 = vmatprep.subr.mxu0 0.0
        %993 = vmatpush1.msra.mxu0 0.0
        %994 = vmatprep.subr.mxu0 0.0
        %995 = vmatpush1.msra.mxu0 0.0
        %996 = vmatprep.subr.mxu0 0.0
        %997 = vmatpush1.msra.mxu0 0.0
        %998 = vmatprep.subr.mxu0 0.0
        %999 = vmatpush1.msra.mxu0 0.0
        %1000 = vmatprep.subr.mxu0 0.0
        %1001 = vmatpush1.msra.mxu0 0.0
        %1002 = vmatprep.subr.mxu0 0.0
        %1003 = vmatpush1.msra.mxu0 %v890
        %1004 = vmatprep.subr.mxu0 0.0
        %1005 = vmatpush1.msra.mxu0 %v889
        %1006 = vmatprep.subr.mxu0 0.0
        %1007 = vmatpush1.msra.mxu0 %v888
        %1008 = vmatprep.subr.mxu0 0.0
        %1009 = vmatpush1.msra.mxu0 %v887
        %1010 = vmatprep.subr.mxu0 0.0
        %1011 = vmatpush2.msra.mxu0 0.0
        %1012 = vmatprep.subr.mxu0 0.0
        %1013 = vmatpush2.msra.mxu0 0.0
        %1014 = vmatprep.subr.mxu0 0.0
        %1015 = vmatpush2.msra.mxu0 0.0
        %1016 = vmatprep.subr.mxu0 0.0
        %1017 = vmatpush2.msra.mxu0 0.0
        %1018 = vmatprep.subr.mxu0 0.0
        %1019 = vmatpush2.msra.mxu0 0.0
        %1020 = vmatprep.subr.mxu0 0.0
        %1021 = vmatpush2.msra.mxu0 0.0
        %1022 = vmatprep.subr.mxu0 0.0
        %1023 = vmatpush2.msra.mxu0 0.0
        %1024 = vmatprep.subr.mxu0 0.0
        %1025 = vmatpush2.msra.mxu0 0.0
        %1026 = vmatprep.subr.mxu0 0.0
        %1027 = vmatpush2.msra.mxu0 0.0
        %1028 = vmatprep.subr.mxu0 0.0
        %1029 = vmatpush2.msra.mxu0 0.0
        %1030 = vmatprep.subr.mxu0 0.0
        %1031 = vmatpush2.msra.mxu0 0.0
        %1032 = vmatprep.subr.mxu0 0.0
        %1033 = vmatpush2.msra.mxu0 0.0
        %1034 = vmatprep.subr.mxu0 0.0
        %1035 = vmatpush2.msra.mxu0 0.0
        %1036 = vmatprep.subr.mxu0 0.0
        %1037 = vmatpush2.msra.mxu0 0.0
        %1038 = vmatprep.subr.mxu0 0.0
        %1039 = vmatpush2.msra.mxu0 0.0
        %1040 = vmatprep.subr.mxu0 0.0
        %1041 = vmatpush2.msra.mxu0 0.0
        %1042 = vmatprep.mubr.f32.mxu0 0.0
        %1043 = vmatmul.mubr.f32.gmra.mxu0 %v906
        %v1044 = vpop.f32.mrf.mxu0
        %v1045 = vadd.f32 %v902, %v1044
        %v1046 = vpop.f32.mrf.mxu0
        %1047 = vdwg.mxu0
        %v1048 = vmul.f32 %v975, 0.25
        %v1049 = vmul.f32 %v1045, 0.25
        %v1050 = vld [vmem:[#allocation3] sm:$0xff]
        %v1051 = vld [vmem:[#allocation3 + $0x8] sm:$0xff]
        %v1052 = vlaneseq
        %v1053 = vshrl.u32 %v1052, 7
        %s1054 = smul.u32 %s30, 8
        %v1055 = vstv %s1054
        %v1056 = vadd.s32 %v1053, %v1055
        %v1057 = vlaneseq
        %v1058 = vand.u32 %v1057, 127
        %vm1059 = vcmp.le.s32.totalorder %v1058, %v1056
        %v1060 = vsel %vm1059, 0.0, -inf
        %vm1061 = vcmask 130048
        %v1063 = vsel %vm1061, %v1048, 0
        %v1066 = vsel %vm1061, %v1050, 0
        %1068 = vmatprep.subr.mxu0 0.0
        %1069 = vmatpush1.xpose.msra.mxu0 0.0
        %1070 = vmatprep.subr.mxu0 0.0
        %1071 = vmatpush1.xpose.msra.mxu0 0.0
        %1072 = vmatprep.subr.mxu0 0.0
        %1073 = vmatpush1.xpose.msra.mxu0 0.0
        %1074 = vmatprep.subr.mxu0 0.0
        %1075 = vmatpush1.xpose.msra.mxu0 0.0
        %1076 = vmatprep.subr.mxu0 0.0
        %1077 = vmatpush1.xpose.msra.mxu0 0.0
        %1078 = vmatprep.subr.mxu0 0.0
        %1079 = vmatpush1.xpose.msra.mxu0 0.0
        %1080 = vmatprep.subr.mxu0 0.0
        %1081 = vmatpush1.xpose.msra.mxu0 0.0
        %1082 = vmatprep.subr.mxu0 0.0
        %1083 = vmatpush1.xpose.msra.mxu0 0.0
        %1084 = vmatprep.subr.mxu0 0.0
        %1085 = vmatpush1.xpose.msra.mxu0 0.0
        %1086 = vmatprep.subr.mxu0 0.0
        %1087 = vmatpush1.xpose.msra.mxu0 0.0
        %1088 = vmatprep.subr.mxu0 0.0
        %1089 = vmatpush1.xpose.msra.mxu0 0.0
        %1090 = vmatprep.subr.mxu0 0.0
        %1091 = vmatpush1.xpose.msra.mxu0 0.0
        %1092 = vmatprep.subr.mxu0 0.0
        %1093 = vmatpush1.xpose.msra.mxu0 0.0
        %1094 = vmatprep.subr.mxu0 0.0
        %1095 = vmatpush1.xpose.msra.mxu0 0.0
        %1096 = vmatprep.subr.mxu0 0.0
        %1097 = vmatpush1.xpose.msra.mxu0 0.0
        %1098 = vmatprep.subr.mxu0 0.0
        %1099 = vmatpush1.xpose.msra.mxu0 %v1066
        %1100 = vmatprep.subr.mxu0 0.0
        %1101 = vmatpush2.xpose.msra.mxu0 0.0
        %1102 = vmatprep.subr.mxu0 0.0
        %1103 = vmatpush2.xpose.msra.mxu0 0.0
        %1104 = vmatprep.subr.mxu0 0.0
        %1105 = vmatpush2.xpose.msra.mxu0 0.0
        %1106 = vmatprep.subr.mxu0 0.0
        %1107 = vmatpush2.xpose.msra.mxu0 0.0
        %1108 = vmatprep.subr.mxu0 0.0
        %1109 = vmatpush2.xpose.msra.mxu0 0.0
        %1110 = vmatprep.subr.mxu0 0.0
        %1111 = vmatpush2.xpose.msra.mxu0 0.0
        %1112 = vmatprep.subr.mxu0 0.0
        %1113 = vmatpush2.xpose.msra.mxu0 0.0
        %1114 = vmatprep.subr.mxu0 0.0
        %1115 = vmatpush2.xpose.msra.mxu0 0.0
        %1116 = vmatprep.subr.mxu0 0.0
        %1117 = vmatpush2.xpose.msra.mxu0 0.0
        %1118 = vmatprep.subr.mxu0 0.0
        %1119 = vmatpush2.xpose.msra.mxu0 0.0
        %1120 = vmatprep.subr.mxu0 0.0
        %1121 = vmatpush2.xpose.msra.mxu0 0.0
        %1122 = vmatprep.subr.mxu0 0.0
        %1123 = vmatpush2.xpose.msra.mxu0 0.0
        %1124 = vmatprep.subr.mxu0 0.0
        %1125 = vmatpush2.xpose.msra.mxu0 0.0
        %1126 = vmatprep.subr.mxu0 0.0
        %1127 = vmatpush2.xpose.msra.mxu0 0.0
        %1128 = vmatprep.subr.mxu0 0.0
        %1129 = vmatpush2.xpose.msra.mxu0 0.0
        %1130 = vmatprep.subr.mxu0 0.0
        %1131 = vmatpush2.xpose.msra.mxu0 0.0
        %1132 = vmatprep.mubr.f32.mxu0 0.0
        %1133 = vmatmul.mubr.f32.gmra.mxu0 %v1063
        %v1134 = vpop.f32.mrf.mxu0
        %v1135 = vadd.f32 %v1060, %v1134
        %v1136 = vpop.f32.mrf.mxu0
        %1137 = vdwg.mxu0
        %v1139 = vsel %vm1061, %v1049, 0
        %v1142 = vsel %vm1061, %v1051, 0
        %1144 = vmatprep.subr.mxu0 0.0
        %1145 = vmatpush1.xpose.msra.mxu0 0.0
        %1146 = vmatprep.subr.mxu0 0.0
        %1147 = vmatpush1.xpose.msra.mxu0 0.0
        %1148 = vmatprep.subr.mxu0 0.0
        %1149 = vmatpush1.xpose.msra.mxu0 0.0
        %1150 = vmatprep.subr.mxu0 0.0
        %1151 = vmatpush1.xpose.msra.mxu0 0.0
        %1152 = vmatprep.subr.mxu0 0.0
        %1153 = vmatpush1.xpose.msra.mxu0 0.0
        %1154 = vmatprep.subr.mxu0 0.0
        %1155 = vmatpush1.xpose.msra.mxu0 0.0
        %1156 = vmatprep.subr.mxu0 0.0
        %1157 = vmatpush1.xpose.msra.mxu0 0.0
        %1158 = vmatprep.subr.mxu0 0.0
        %1159 = vmatpush1.xpose.msra.mxu0 0.0
        %1160 = vmatprep.subr.mxu0 0.0
        %1161 = vmatpush1.xpose.msra.mxu0 0.0
        %1162 = vmatprep.subr.mxu0 0.0
        %1163 = vmatpush1.xpose.msra.mxu0 0.0
        %1164 = vmatprep.subr.mxu0 0.0
        %1165 = vmatpush1.xpose.msra.mxu0 0.0
        %1166 = vmatprep.subr.mxu0 0.0
        %1167 = vmatpush1.xpose.msra.mxu0 0.0
        %1168 = vmatprep.subr.mxu0 0.0
        %1169 = vmatpush1.xpose.msra.mxu0 0.0
        %1170 = vmatprep.subr.mxu0 0.0
        %1171 = vmatpush1.xpose.msra.mxu0 0.0
        %1172 = vmatprep.subr.mxu0 0.0
        %1173 = vmatpush1.xpose.msra.mxu0 0.0
        %1174 = vmatprep.subr.mxu0 0.0
        %1175 = vmatpush1.xpose.msra.mxu0 %v1142
        %1176 = vmatprep.subr.mxu0 0.0
        %1177 = vmatpush2.xpose.msra.mxu0 0.0
        %1178 = vmatprep.subr.mxu0 0.0
        %1179 = vmatpush2.xpose.msra.mxu0 0.0
        %1180 = vmatprep.subr.mxu0 0.0
        %1181 = vmatpush2.xpose.msra.mxu0 0.0
        %1182 = vmatprep.subr.mxu0 0.0
        %1183 = vmatpush2.xpose.msra.mxu0 0.0
        %1184 = vmatprep.subr.mxu0 0.0
        %1185 = vmatpush2.xpose.msra.mxu0 0.0
        %1186 = vmatprep.subr.mxu0 0.0
        %1187 = vmatpush2.xpose.msra.mxu0 0.0
        %1188 = vmatprep.subr.mxu0 0.0
        %1189 = vmatpush2.xpose.msra.mxu0 0.0
        %1190 = vmatprep.subr.mxu0 0.0
        %1191 = vmatpush2.xpose.msra.mxu0 0.0
        %1192 = vmatprep.subr.mxu0 0.0
        %1193 = vmatpush2.xpose.msra.mxu0 0.0
        %1194 = vmatprep.subr.mxu0 0.0
        %1195 = vmatpush2.xpose.msra.mxu0 0.0
        %1196 = vmatprep.subr.mxu0 0.0
        %1197 = vmatpush2.xpose.msra.mxu0 0.0
        %1198 = vmatprep.subr.mxu0 0.0
        %1199 = vmatpush2.xpose.msra.mxu0 0.0
        %1200 = vmatprep.subr.mxu0 0.0
        %1201 = vmatpush2.xpose.msra.mxu0 0.0
        %1202 = vmatprep.subr.mxu0 0.0
        %1203 = vmatpush2.xpose.msra.mxu0 0.0
        %1204 = vmatprep.subr.mxu0 0.0
        %1205 = vmatpush2.xpose.msra.mxu0 0.0
        %1206 = vmatprep.subr.mxu0 0.0
        %1207 = vmatpush2.xpose.msra.mxu0 0.0
        %1208 = vmatprep.mubr.f32.mxu0 0.0
        %1209 = vmatmul.mubr.f32.gmra.mxu0 %v1139
        %v1210 = vpop.f32.mrf.mxu0
        %v1211 = vadd.f32 %v1060, %v1210
        %v1212 = vpop.f32.mrf.mxu0
        %1213 = vdwg.mxu0
        %vm1214 = vcmask 64512
        %v1215 = vsel %vm1214, %v1135, -inf
        %1216 = vmax.xlane.f32.xlu0 %v1215
        %v1217 = vpop.xlane.xlu0 %1216
        %v1218 = vsel %vm1214, %v1211, -inf
        %1219 = vmax.xlane.f32.xlu0 %v1218
        %v1220 = vpop.xlane.xlu0 %1219
        %v1221 = vsub.f32 %v1135, %v1217
        %v1222 = vsub.f32 %v1211, %v1220
        %v1223 = vmul.f32 %v1221, 1.442695
        %v1224 = vpow.pop %v1223
        %v1225 = vmul.f32 %v1222, 1.442695
        %v1226 = vpow.pop %v1225
        %v1227 = vsel %vm1214, %v1224, 0.0
        %1228 = vadd.xlane.f32.xlu0 %v1227
        %v1229 = vpop.xlane.xlu0 %1228
        %v1230 = vsel %vm1214, %v1226, 0.0
        %1231 = vadd.xlane.f32.xlu0 %v1230
        %v1232 = vpop.xlane.xlu0 %1231
        %v1233 = vrcp.pop %v1229
        %v1234 = vmul.f32 %v1224, %v1233
        %v1235 = vrcp.pop %v1232
        %v1236 = vmul.f32 %v1226, %v1235
        %1237 = vst.msk [vmem:[%s431] sm:$0xff] %vm1214, %v1234
        %1238 = vst.msk [vmem:[%s431 + $0x8] sm:$0xff] %vm1214, %v1236
        %v1239 = vld [vmem:[#allocation4] sm:$0xff]
        %v1240 = vld [vmem:[#allocation4 + $0x8] sm:$0xff]
        %v1242 = vsel %vm1214, %v1234, 0
        %1244 = vmatprep.subr.mxu0 0.0
        %1245 = vmatpush1.msra.mxu0 0.0
        %1246 = vmatprep.subr.mxu0 0.0
        %1247 = vmatpush1.msra.mxu0 0.0
        %1248 = vmatprep.subr.mxu0 0.0
        %1249 = vmatpush1.msra.mxu0 0.0
        %1250 = vmatprep.subr.mxu0 0.0
        %1251 = vmatpush1.msra.mxu0 0.0
        %1252 = vmatprep.subr.mxu0 0.0
        %1253 = vmatpush1.msra.mxu0 0.0
        %1254 = vmatprep.subr.mxu0 0.0
        %1255 = vmatpush1.msra.mxu0 0.0
        %1256 = vmatprep.subr.mxu0 0.0
        %1257 = vmatpush1.msra.mxu0 0.0
        %1258 = vmatprep.subr.mxu0 0.0
        %1259 = vmatpush1.msra.mxu0 0.0
        %1260 = vmatprep.subr.mxu0 0.0
        %1261 = vmatpush1.msra.mxu0 0.0
        %1262 = vmatprep.subr.mxu0 0.0
        %1263 = vmatpush1.msra.mxu0 0.0
        %1264 = vmatprep.subr.mxu0 0.0
        %1265 = vmatpush1.msra.mxu0 0.0
        %1266 = vmatprep.subr.mxu0 0.0
        %1267 = vmatpush1.msra.mxu0 0.0
        %1268 = vmatprep.subr.mxu0 0.0
        %1269 = vmatpush1.msra.mxu0 0.0
        %1270 = vmatprep.subr.mxu0 0.0
        %1271 = vmatpush1.msra.mxu0 0.0
        %1272 = vmatprep.subr.mxu0 0.0
        %1273 = vmatpush1.msra.mxu0 0.0
        %1274 = vmatprep.subr.mxu0 0.0
        %1275 = vmatpush1.msra.mxu0 %v1239
        %1276 = vmatprep.subr.mxu0 0.0
        %1277 = vmatpush2.msra.mxu0 0.0
        %1278 = vmatprep.subr.mxu0 0.0
        %1279 = vmatpush2.msra.mxu0 0.0
        %1280 = vmatprep.subr.mxu0 0.0
        %1281 = vmatpush2.msra.mxu0 0.0
        %1282 = vmatprep.subr.mxu0 0.0
        %1283 = vmatpush2.msra.mxu0 0.0
        %1284 = vmatprep.subr.mxu0 0.0
        %1285 = vmatpush2.msra.mxu0 0.0
        %1286 = vmatprep.subr.mxu0 0.0
        %1287 = vmatpush2.msra.mxu0 0.0
        %1288 = vmatprep.subr.mxu0 0.0
        %1289 = vmatpush2.msra.mxu0 0.0
        %1290 = vmatprep.subr.mxu0 0.0
        %1291 = vmatpush2.msra.mxu0 0.0
        %1292 = vmatprep.subr.mxu0 0.0
        %1293 = vmatpush2.msra.mxu0 0.0
        %1294 = vmatprep.subr.mxu0 0.0
        %1295 = vmatpush2.msra.mxu0 0.0
        %1296 = vmatprep.subr.mxu0 0.0
        %1297 = vmatpush2.msra.mxu0 0.0
        %1298 = vmatprep.subr.mxu0 0.0
        %1299 = vmatpush2.msra.mxu0 0.0
        %1300 = vmatprep.subr.mxu0 0.0
        %1301 = vmatpush2.msra.mxu0 0.0
        %1302 = vmatprep.subr.mxu0 0.0
        %1303 = vmatpush2.msra.mxu0 0.0
        %1304 = vmatprep.subr.mxu0 0.0
        %1305 = vmatpush2.msra.mxu0 0.0
        %1306 = vmatprep.subr.mxu0 0.0
        %1307 = vmatpush2.msra.mxu0 0.0
        %1308 = vmatprep.mubr.f32.mxu0 0.0
        %1309 = vmatmul.mubr.f32.gmra.mxu0 %v1242
        %v1310 = vpop.f32.mrf.mxu0
        %v1311 = vadd.f32 0.0, %v1310
        %v1312 = vpop.f32.mrf.mxu0
        %1313 = vdwg.mxu0
        %v1315 = vsel %vm1214, %v1236, 0
        %1317 = vmatprep.subr.mxu0 0.0
        %1318 = vmatpush1.msra.mxu0 0.0
        %1319 = vmatprep.subr.mxu0 0.0
        %1320 = vmatpush1.msra.mxu0 0.0
        %1321 = vmatprep.subr.mxu0 0.0
        %1322 = vmatpush1.msra.mxu0 0.0
        %1323 = vmatprep.subr.mxu0 0.0
        %1324 = vmatpush1.msra.mxu0 0.0
        %1325 = vmatprep.subr.mxu0 0.0
        %1326 = vmatpush1.msra.mxu0 0.0
        %1327 = vmatprep.subr.mxu0 0.0
        %1328 = vmatpush1.msra.mxu0 0.0
        %1329 = vmatprep.subr.mxu0 0.0
        %1330 = vmatpush1.msra.mxu0 0.0
        %1331 = vmatprep.subr.mxu0 0.0
        %1332 = vmatpush1.msra.mxu0 0.0
        %1333 = vmatprep.subr.mxu0 0.0
        %1334 = vmatpush1.msra.mxu0 0.0
        %1335 = vmatprep.subr.mxu0 0.0
        %1336 = vmatpush1.msra.mxu0 0.0
        %1337 = vmatprep.subr.mxu0 0.0
        %1338 = vmatpush1.msra.mxu0 0.0
        %1339 = vmatprep.subr.mxu0 0.0
        %1340 = vmatpush1.msra.mxu0 0.0
        %1341 = vmatprep.subr.mxu0 0.0
        %1342 = vmatpush1.msra.mxu0 0.0
        %1343 = vmatprep.subr.mxu0 0.0
        %1344 = vmatpush1.msra.mxu0 0.0
        %1345 = vmatprep.subr.mxu0 0.0
        %1346 = vmatpush1.msra.mxu0 0.0
        %1347 = vmatprep.subr.mxu0 0.0
        %1348 = vmatpush1.msra.mxu0 %v1240
        %1349 = vmatprep.subr.mxu0 0.0
        %1350 = vmatpush2.msra.mxu0 0.0
        %1351 = vmatprep.subr.mxu0 0.0
        %1352 = vmatpush2.msra.mxu0 0.0
        %1353 = vmatprep.subr.mxu0 0.0
        %1354 = vmatpush2.msra.mxu0 0.0
        %1355 = vmatprep.subr.mxu0 0.0
        %1356 = vmatpush2.msra.mxu0 0.0
        %1357 = vmatprep.subr.mxu0 0.0
        %1358 = vmatpush2.msra.mxu0 0.0
        %1359 = vmatprep.subr.mxu0 0.0
        %1360 = vmatpush2.msra.mxu0 0.0
        %1361 = vmatprep.subr.mxu0 0.0
        %1362 = vmatpush2.msra.mxu0 0.0
        %1363 = vmatprep.subr.mxu0 0.0
        %1364 = vmatpush2.msra.mxu0 0.0
        %1365 = vmatprep.subr.mxu0 0.0
        %1366 = vmatpush2.msra.mxu0 0.0
        %1367 = vmatprep.subr.mxu0 0.0
        %1368 = vmatpush2.msra.mxu0 0.0
        %1369 = vmatprep.subr.mxu0 0.0
        %1370 = vmatpush2.msra.mxu0 0.0
        %1371 = vmatprep.subr.mxu0 0.0
        %1372 = vmatpush2.msra.mxu0 0.0
        %1373 = vmatprep.subr.mxu0 0.0
        %1374 = vmatpush2.msra.mxu0 0.0
        %1375 = vmatprep.subr.mxu0 0.0
        %1376 = vmatpush2.msra.mxu0 0.0
        %1377 = vmatprep.subr.mxu0 0.0
        %1378 = vmatpush2.msra.mxu0 0.0
        %1379 = vmatprep.subr.mxu0 0.0
        %1380 = vmatpush2.msra.mxu0 0.0
        %1381 = vmatprep.mubr.f32.mxu0 0.0
        %1382 = vmatmul.mubr.f32.gmra.mxu0 %v1315
        %v1383 = vpop.f32.mrf.mxu0
        %v1384 = vadd.f32 0.0, %v1383
        %v1385 = vpop.f32.mrf.mxu0
        %1386 = vdwg.mxu0
        %v1387 = vld [vmem:[%s7] sm:$0xff]
        %v1388 = vld [vmem:[%s7 + $0x8] sm:$0xff]
        %v1389 = vld [vmem:[%s7 + $0x10] sm:$0xff]
        %v1390 = vld [vmem:[%s7 + $0x18] sm:$0xff]
        %v1392 = vsel %vm1061, %v1311, 0
        %1394 = vmatprep.subr.mxu0 0.0
        %1395 = vmatpush1.msra.mxu0 0.0
        %1396 = vmatprep.subr.mxu0 0.0
        %1397 = vmatpush1.msra.mxu0 0.0
        %1398 = vmatprep.subr.mxu0 0.0
        %1399 = vmatpush1.msra.mxu0 0.0
        %1400 = vmatprep.subr.mxu0 0.0
        %1401 = vmatpush1.msra.mxu0 0.0
        %1402 = vmatprep.subr.mxu0 0.0
        %1403 = vmatpush1.msra.mxu0 0.0
        %1404 = vmatprep.subr.mxu0 0.0
        %1405 = vmatpush1.msra.mxu0 0.0
        %1406 = vmatprep.subr.mxu0 0.0
        %1407 = vmatpush1.msra.mxu0 0.0
        %1408 = vmatprep.subr.mxu0 0.0
        %1409 = vmatpush1.msra.mxu0 0.0
        %1410 = vmatprep.subr.mxu0 0.0
        %1411 = vmatpush1.msra.mxu0 0.0
        %1412 = vmatprep.subr.mxu0 0.0
        %1413 = vmatpush1.msra.mxu0 0.0
        %1414 = vmatprep.subr.mxu0 0.0
        %1415 = vmatpush1.msra.mxu0 0.0
        %1416 = vmatprep.subr.mxu0 0.0
        %1417 = vmatpush1.msra.mxu0 0.0
        %1418 = vmatprep.subr.mxu0 0.0
        %1419 = vmatpush1.msra.mxu0 0.0
        %1420 = vmatprep.subr.mxu0 0.0
        %1421 = vmatpush1.msra.mxu0 0.0
        %1422 = vmatprep.subr.mxu0 0.0
        %1423 = vmatpush1.msra.mxu0 %v1388
        %1424 = vmatprep.subr.mxu0 0.0
        %1425 = vmatpush1.msra.mxu0 %v1387
        %1426 = vmatprep.subr.mxu0 0.0
        %1427 = vmatpush2.msra.mxu0 0.0
        %1428 = vmatprep.subr.mxu0 0.0
        %1429 = vmatpush2.msra.mxu0 0.0
        %1430 = vmatprep.subr.mxu0 0.0
        %1431 = vmatpush2.msra.mxu0 0.0
        %1432 = vmatprep.subr.mxu0 0.0
        %1433 = vmatpush2.msra.mxu0 0.0
        %1434 = vmatprep.subr.mxu0 0.0
        %1435 = vmatpush2.msra.mxu0 0.0
        %1436 = vmatprep.subr.mxu0 0.0
        %1437 = vmatpush2.msra.mxu0 0.0
        %1438 = vmatprep.subr.mxu0 0.0
        %1439 = vmatpush2.msra.mxu0 0.0
        %1440 = vmatprep.subr.mxu0 0.0
        %1441 = vmatpush2.msra.mxu0 0.0
        %1442 = vmatprep.subr.mxu0 0.0
        %1443 = vmatpush2.msra.mxu0 0.0
        %1444 = vmatprep.subr.mxu0 0.0
        %1445 = vmatpush2.msra.mxu0 0.0
        %1446 = vmatprep.subr.mxu0 0.0
        %1447 = vmatpush2.msra.mxu0 0.0
        %1448 = vmatprep.subr.mxu0 0.0
        %1449 = vmatpush2.msra.mxu0 0.0
        %1450 = vmatprep.subr.mxu0 0.0
        %1451 = vmatpush2.msra.mxu0 0.0
        %1452 = vmatprep.subr.mxu0 0.0
        %1453 = vmatpush2.msra.mxu0 0.0
        %1454 = vmatprep.subr.mxu0 0.0
        %1455 = vmatpush2.msra.mxu0 0.0
        %1456 = vmatprep.subr.mxu0 0.0
        %1457 = vmatpush2.msra.mxu0 0.0
        %1458 = vmatprep.mubr.f32.mxu0 0.0
        %1459 = vmatmul.mubr.f32.gmra.mxu0 %v1392
        %v1460 = vpop.f32.mrf.mxu0
        %v1461 = vadd.f32 0.0, %v1460
        %v1462 = vpop.f32.mrf.mxu0
        %1463 = vdwg.mxu0
        %v1465 = vsel %vm1061, %v1384, 0
        %1467 = vmatprep.subr.mxu0 0.0
        %1468 = vmatpush1.msra.mxu0 0.0
        %1469 = vmatprep.subr.mxu0 0.0
        %1470 = vmatpush1.msra.mxu0 0.0
        %1471 = vmatprep.subr.mxu0 0.0
        %1472 = vmatpush1.msra.mxu0 0.0
        %1473 = vmatprep.subr.mxu0 0.0
        %1474 = vmatpush1.msra.mxu0 0.0
        %1475 = vmatprep.subr.mxu0 0.0
        %1476 = vmatpush1.msra.mxu0 0.0
        %1477 = vmatprep.subr.mxu0 0.0
        %1478 = vmatpush1.msra.mxu0 0.0
        %1479 = vmatprep.subr.mxu0 0.0
        %1480 = vmatpush1.msra.mxu0 0.0
        %1481 = vmatprep.subr.mxu0 0.0
        %1482 = vmatpush1.msra.mxu0 0.0
        %1483 = vmatprep.subr.mxu0 0.0
        %1484 = vmatpush1.msra.mxu0 0.0
        %1485 = vmatprep.subr.mxu0 0.0
        %1486 = vmatpush1.msra.mxu0 0.0
        %1487 = vmatprep.subr.mxu0 0.0
        %1488 = vmatpush1.msra.mxu0 0.0
        %1489 = vmatprep.subr.mxu0 0.0
        %1490 = vmatpush1.msra.mxu0 0.0
        %1491 = vmatprep.subr.mxu0 0.0
        %1492 = vmatpush1.msra.mxu0 0.0
        %1493 = vmatprep.subr.mxu0 0.0
        %1494 = vmatpush1.msra.mxu0 0.0
        %1495 = vmatprep.subr.mxu0 0.0
        %1496 = vmatpush1.msra.mxu0 %v1390
        %1497 = vmatprep.subr.mxu0 0.0
        %1498 = vmatpush1.msra.mxu0 %v1389
        %1499 = vmatprep.subr.mxu0 0.0
        %1500 = vmatpush2.msra.mxu0 0.0
        %1501 = vmatprep.subr.mxu0 0.0
        %1502 = vmatpush2.msra.mxu0 0.0
        %1503 = vmatprep.subr.mxu0 0.0
        %1504 = vmatpush2.msra.mxu0 0.0
        %1505 = vmatprep.subr.mxu0 0.0
        %1506 = vmatpush2.msra.mxu0 0.0
        %1507 = vmatprep.subr.mxu0 0.0
        %1508 = vmatpush2.msra.mxu0 0.0
        %1509 = vmatprep.subr.mxu0 0.0
        %1510 = vmatpush2.msra.mxu0 0.0
        %1511 = vmatprep.subr.mxu0 0.0
        %1512 = vmatpush2.msra.mxu0 0.0
        %1513 = vmatprep.subr.mxu0 0.0
        %1514 = vmatpush2.msra.mxu0 0.0
        %1515 = vmatprep.subr.mxu0 0.0
        %1516 = vmatpush2.msra.mxu0 0.0
        %1517 = vmatprep.subr.mxu0 0.0
        %1518 = vmatpush2.msra.mxu0 0.0
        %1519 = vmatprep.subr.mxu0 0.0
        %1520 = vmatpush2.msra.mxu0 0.0
        %1521 = vmatprep.subr.mxu0 0.0
        %1522 = vmatpush2.msra.mxu0 0.0
        %1523 = vmatprep.subr.mxu0 0.0
        %1524 = vmatpush2.msra.mxu0 0.0
        %1525 = vmatprep.subr.mxu0 0.0
        %1526 = vmatpush2.msra.mxu0 0.0
        %1527 = vmatprep.subr.mxu0 0.0
        %1528 = vmatpush2.msra.mxu0 0.0
        %1529 = vmatprep.subr.mxu0 0.0
        %1530 = vmatpush2.msra.mxu0 0.0
        %1531 = vmatprep.mubr.f32.mxu0 0.0
        %1532 = vmatmul.mubr.f32.gmra.mxu0 %v1465
        %v1533 = vpop.f32.mrf.mxu0
        %v1534 = vadd.f32 0.0, %v1533
        %v1535 = vpop.f32.mrf.mxu0
        %1536 = vdwg.mxu0
        %v1537 = vsel %vm858, %v1461, 0.0
        %v1538 = vsel %vm858, %v1534, 0.0
        %v1539 = vadd.f32 %v1537, %v1538
        %v1540 = vlaneseq
        %v1541 = vshrl.u32 %v1540, 7
        %v1542 = vsub.s32 0, %v1541
        %v1543 = vrot.slane %v462, %v1542
        %v1544 = vadd.f32 %v1539, %v1543
        %s1545 = scalar_lea.vmem [#allocation2], %s1054
        %v1546 = vld [vmem:[%s1545] sm:$0xff]
        %v1547 = vadd.f32 %v1544, %v1546
        %v1548 = vsel %vm858, %v1547, 0.0
        %1549 = vadd.xlane.f32.xlu0 %v1548
        %v1550 = vpop.xlane.xlu0 %1549
        %v1551 = vmul.f32 %v1550, %v862
        %v1552 = vsub.f32 %v1547, %v1551
        %v1553 = vmul.f32 %v1552, %v1552
        %v1554 = vsel %vm858, %v1553, 0.0
        %1555 = vadd.xlane.f32.xlu0 %v1554
        %v1556 = vpop.xlane.xlu0 %1555
        %v1557 = vmul.f32 %v1556, %v862
        %v1558 = vadd.f32 %v1557, 1e-08
        %v1559 = vrsqrt.pop %v1558
        %v1560 = vmul.f32 %v1552, %v1559
        %v1561 = vlaneseq
        %v1562 = vshrl.u32 %v1561, 7
        %v1563 = vsub.s32 6, %v1562
        %v1564 = vrot.slane %v461, %v1563
        %v1565 = vmul.f32 %v1560, %v1564
        %v1566 = vlaneseq
        %v1567 = vshrl.u32 %v1566, 7
        %v1568 = vsub.s32 7, %v1567
        %v1569 = vrot.slane %v461, %v1568
        %v1570 = vadd.f32 %v1565, %v1569
        %v1571 = vld [vmem:[%s8] sm:$0xff]
        %v1572 = vld [vmem:[%s8 + $0x8] sm:$0xff]
        %v1573 = vld [vmem:[%s8 + $0x10] sm:$0xff]
        %v1574 = vld [vmem:[%s8 + $0x18] sm:$0xff]
        %v1575 = vlaneseq
        %v1576 = vshrl.u32 %v1575, 7
        %v1577 = vsub.s32 1, %v1576
        %v1578 = vrot.slane %v462, %v1577
        %v1580 = vsel %vm858, %v1570, 0
        %1582 = vmatprep.subr.mxu0 0.0
        %1583 = vmatpush1.msra.mxu0 0.0
        %1584 = vmatprep.subr.mxu0 0.0
        %1585 = vmatpush1.msra.mxu0 0.0
        %1586 = vmatprep.subr.mxu0 0.0
        %1587 = vmatpush1.msra.mxu0 0.0
        %1588 = vmatprep.subr.mxu0 0.0
        %1589 = vmatpush1.msra.mxu0 0.0
        %1590 = vmatprep.subr.mxu0 0.0
        %1591 = vmatpush1.msra.mxu0 0.0
        %1592 = vmatprep.subr.mxu0 0.0
        %1593 = vmatpush1.msra.mxu0 0.0
        %1594 = vmatprep.subr.mxu0 0.0
        %1595 = vmatpush1.msra.mxu0 0.0
        %1596 = vmatprep.subr.mxu0 0.0
        %1597 = vmatpush1.msra.mxu0 0.0
        %1598 = vmatprep.subr.mxu0 0.0
        %1599 = vmatpush1.msra.mxu0 0.0
        %1600 = vmatprep.subr.mxu0 0.0
        %1601 = vmatpush1.msra.mxu0 0.0
        %1602 = vmatprep.subr.mxu0 0.0
        %1603 = vmatpush1.msra.mxu0 0.0
        %1604 = vmatprep.subr.mxu0 0.0
        %1605 = vmatpush1.msra.mxu0 0.0
        %1606 = vmatprep.subr.mxu0 0.0
        %1607 = vmatpush1.msra.mxu0 %v1574
        %1608 = vmatprep.subr.mxu0 0.0
        %1609 = vmatpush1.msra.mxu0 %v1573
        %1610 = vmatprep.subr.mxu0 0.0
        %1611 = vmatpush1.msra.mxu0 %v1572
        %1612 = vmatprep.subr.mxu0 0.0
        %1613 = vmatpush1.msra.mxu0 %v1571
        %1614 = vmatprep.subr.mxu0 0.0
        %1615 = vmatpush2.msra.mxu0 0.0
        %1616 = vmatprep.subr.mxu0 0.0
        %1617 = vmatpush2.msra.mxu0 0.0
        %1618 = vmatprep.subr.mxu0 0.0
        %1619 = vmatpush2.msra.mxu0 0.0
        %1620 = vmatprep.subr.mxu0 0.0
        %1621 = vmatpush2.msra.mxu0 0.0
        %1622 = vmatprep.subr.mxu0 0.0
        %1623 = vmatpush2.msra.mxu0 0.0
        %1624 = vmatprep.subr.mxu0 0.0
        %1625 = vmatpush2.msra.mxu0 0.0
        %1626 = vmatprep.subr.mxu0 0.0
        %1627 = vmatpush2.msra.mxu0 0.0
        %1628 = vmatprep.subr.mxu0 0.0
        %1629 = vmatpush2.msra.mxu0 0.0
        %1630 = vmatprep.subr.mxu0 0.0
        %1631 = vmatpush2.msra.mxu0 0.0
        %1632 = vmatprep.subr.mxu0 0.0
        %1633 = vmatpush2.msra.mxu0 0.0
        %1634 = vmatprep.subr.mxu0 0.0
        %1635 = vmatpush2.msra.mxu0 0.0
        %1636 = vmatprep.subr.mxu0 0.0
        %1637 = vmatpush2.msra.mxu0 0.0
        %1638 = vmatprep.subr.mxu0 0.0
        %1639 = vmatpush2.msra.mxu0 0.0
        %1640 = vmatprep.subr.mxu0 0.0
        %1641 = vmatpush2.msra.mxu0 0.0
        %1642 = vmatprep.subr.mxu0 0.0
        %1643 = vmatpush2.msra.mxu0 0.0
        %1644 = vmatprep.subr.mxu0 0.0
        %1645 = vmatpush2.msra.mxu0 0.0
        %1646 = vmatprep.mubr.f32.mxu0 0.0
        %1647 = vmatmul.mubr.f32.gmra.mxu0 %v1580
        %v1648 = vpop.f32.mrf.mxu0
        %v1649 = vadd.f32 %v1578, %v1648
        %v1650 = vpop.f32.mrf.mxu0
        %1651 = vdwg.mxu0
        %v1652 = vmax.f32 %v1649, 0.0
        %s1653 = scalar_lea.vmem %s8, 32
        %v1654 = vld [vmem:[%s1653] sm:$0xff]
        %v1655 = vld [vmem:[%s1653 + $0x8] sm:$0xff]
        %v1656 = vld [vmem:[%s1653 + $0x10] sm:$0xff]
        %v1657 = vld [vmem:[%s1653 + $0x18] sm:$0xff]
        %v1658 = vlaneseq
        %v1659 = vshrl.u32 %v1658, 7
        %v1660 = vsub.s32 2, %v1659
        %v1661 = vrot.slane %v462, %v1660
        %v1663 = vsel %vm858, %v1652, 0
        %1665 = vmatprep.subr.mxu0 0.0
        %1666 = vmatpush1.msra.mxu0 0.0
        %1667 = vmatprep.subr.mxu0 0.0
        %1668 = vmatpush1.msra.mxu0 0.0
        %1669 = vmatprep.subr.mxu0 0.0
        %1670 = vmatpush1.msra.mxu0 0.0
        %1671 = vmatprep.subr.mxu0 0.0
        %1672 = vmatpush1.msra.mxu0 0.0
        %1673 = vmatprep.subr.mxu0 0.0
        %1674 = vmatpush1.msra.mxu0 0.0
        %1675 = vmatprep.subr.mxu0 0.0
        %1676 = vmatpush1.msra.mxu0 0.0
        %1677 = vmatprep.subr.mxu0 0.0
        %1678 = vmatpush1.msra.mxu0 0.0
        %1679 = vmatprep.subr.mxu0 0.0
        %1680 = vmatpush1.msra.mxu0 0.0
        %1681 = vmatprep.subr.mxu0 0.0
        %1682 = vmatpush1.msra.mxu0 0.0
        %1683 = vmatprep.subr.mxu0 0.0
        %1684 = vmatpush1.msra.mxu0 0.0
        %1685 = vmatprep.subr.mxu0 0.0
        %1686 = vmatpush1.msra.mxu0 0.0
        %1687 = vmatprep.subr.mxu0 0.0
        %1688 = vmatpush1.msra.mxu0 0.0
        %1689 = vmatprep.subr.mxu0 0.0
        %1690 = vmatpush1.msra.mxu0 %v1657
        %1691 = vmatprep.subr.mxu0 0.0
        %1692 = vmatpush1.msra.mxu0 %v1656
        %1693 = vmatprep.subr.mxu0 0.0
        %1694 = vmatpush1.msra.mxu0 %v1655
        %1695 = vmatprep.subr.mxu0 0.0
        %1696 = vmatpush1.msra.mxu0 %v1654
        %1697 = vmatprep.subr.mxu0 0.0
        %1698 = vmatpush2.msra.mxu0 0.0
        %1699 = vmatprep.subr.mxu0 0.0
        %1700 = vmatpush2.msra.mxu0 0.0
        %1701 = vmatprep.subr.mxu0 0.0
        %1702 = vmatpush2.msra.mxu0 0.0
        %1703 = vmatprep.subr.mxu0 0.0
        %1704 = vmatpush2.msra.mxu0 0.0
        %1705 = vmatprep.subr.mxu0 0.0
        %1706 = vmatpush2.msra.mxu0 0.0
        %1707 = vmatprep.subr.mxu0 0.0
        %1708 = vmatpush2.msra.mxu0 0.0
        %1709 = vmatprep.subr.mxu0 0.0
        %1710 = vmatpush2.msra.mxu0 0.0
        %1711 = vmatprep.subr.mxu0 0.0
        %1712 = vmatpush2.msra.mxu0 0.0
        %1713 = vmatprep.subr.mxu0 0.0
        %1714 = vmatpush2.msra.mxu0 0.0
        %1715 = vmatprep.subr.mxu0 0.0
        %1716 = vmatpush2.msra.mxu0 0.0
        %1717 = vmatprep.subr.mxu0 0.0
        %1718 = vmatpush2.msra.mxu0 0.0
        %1719 = vmatprep.subr.mxu0 0.0
        %1720 = vmatpush2.msra.mxu0 0.0
        %1721 = vmatprep.subr.mxu0 0.0
        %1722 = vmatpush2.msra.mxu0 0.0
        %1723 = vmatprep.subr.mxu0 0.0
        %1724 = vmatpush2.msra.mxu0 0.0
        %1725 = vmatprep.subr.mxu0 0.0
        %1726 = vmatpush2.msra.mxu0 0.0
        %1727 = vmatprep.subr.mxu0 0.0
        %1728 = vmatpush2.msra.mxu0 0.0
        %1729 = vmatprep.mubr.f32.mxu0 0.0
        %1730 = vmatmul.mubr.f32.gmra.mxu0 %v1663
        %v1731 = vpop.f32.mrf.mxu0
        %v1732 = vadd.f32 %v1661, %v1731
        %v1733 = vpop.f32.mrf.mxu0
        %1734 = vdwg.mxu0
        %v1735 = vadd.f32 %v1732, %v1570
        %v1736 = vld [vmem:[%s453] sm:$0xff]
        %1738 = vset.pattern.permute.xlu0 0
        %1739 = vperm.xlu0 %1738, %v1736
        %v1740 = vpop.permute.xlu0 %1739
        %v1742 = vmul.f32 %v1735, %v1740
        %1743 = vst.msk [vmem:[%s460] sm:$0xff] %vm858, %v1742
        %p1744 = scmp.lt.s32.totalorder %s29, 1
        %s1745 = scalar_select %p1744, %s29, 1
        %p1746 = scmp.lt.s32.totalorder %s30, 0
        %s1747 = scalar_select %p1746, %s30, 0
        %s1748 = sadd.s32 %s1747, %s1745
        %s1749 = smul.addr %s1748, 8
        %s1750 = scalar_lea.vmem %s9, %s1749
        %s1751 = sand.u32 %s288, 1
        %s1752 = scalar_lea.sflag [#allocation6], %s1751
        %s1753 = sand.u32 %s288, 1
        %s1754 = smul.addr %s1753, 16
        %s1755 = scalar_lea.vmem [#allocation5], %s1754
        // Predicated region
        $region61: #{text_aware_transformer.2} parent=55 // pred_check
          %p1756 = pneg %p270
        $region62: #{text_aware_transformer.2} parent=55 // pred_check_branch
          %1758 = sbr.rel (%p1756) target = $region64
        $region63: #{text_aware_transformer.2} parent=55 // pred_region
          _
        $region64: #{text_aware_transformer.2} parent=55 // pred_fallthru
          _
        // Predicated region
        $region65: #{text_aware_transformer.2} parent=55 // pred_check
          %p1759 = pneg %p298
        $region66: #{text_aware_transformer.2} parent=55 // pred_check_branch
          %1761 = sbr.rel (%p1759) target = $region68
        $region67: #{text_aware_transformer.2} parent=55 // pred_region
          %s1763 = ssub.s32 256, 256
          %1764 = vsyncadd %s1752, %s1763
          %s1765 = smul.addr %s29, 2
          %s1766 = sadd.s32 %s30, %s1765
          %s1767 = smul.addr %s1766, 128
          %s1768 = scalar_lea.hbm %s10, %s1767
          %s1769 = sshll.u32 %s1755, 4
          %s1770 = int_to_ptr.vmem [resolvable:$true] %s1769
          %1775 = dma.vmem_to_hbm [thread:$0]  %s1770, 256, %s1768, %s1752, 128, 128, 8
        $region68: #{text_aware_transformer.2} parent=55 // pred_fallthru
          _
      $region56: #{text_aware_transformer.2} parent=5 // pred_fallthru
        _
      %p1776 = scmp.le.s32.totalorder 2, %s20
      // Predicated region
      $region69: #{text_aware_transformer.2} parent=5 // pred_check
        %p1777 = pneg %p1776
      $region70: #{text_aware_transformer.2} parent=5 // pred_check_branch
        %1779 = sbr.rel (%p1777) target = $region72
      $region71: #{text_aware_transformer.2} parent=5 // pred_region
        %s1780 = ssub.s32 %s20, 2
        // Predicated region
        $region73: #{text_aware_transformer.2} parent=71 // pred_check
          %p1781 = pneg %p276
        $region74: #{text_aware_transformer.2} parent=71 // pred_check_branch
          %1783 = sbr.rel (%p1781) target = $region76
        $region75: #{text_aware_transformer.2} parent=71 // pred_region
          %p1784 = scmp.lt.s32.totalorder %s31, 1
          %s1785 = scalar_select %p1784, %s31, 1
          %p1786 = scmp.lt.s32.totalorder %s32, 0
          %s1787 = scalar_select %p1786, %s32, 0
          %s1788 = sadd.s32 %s1787, %s1785
          %s1789 = smul.addr %s1788, 8
          %s1790 = scalar_lea.vmem %s9, %s1789
        $region76: #{text_aware_transformer.2} parent=71 // pred_fallthru
          _
        // Predicated region
        $region77: #{text_aware_transformer.2} parent=71 // pred_check
          %p1791 = pneg %p304
        $region78: #{text_aware_transformer.2} parent=71 // pred_check_branch
          %1793 = sbr.rel (%p1791) target = $region80
        $region79: #{text_aware_transformer.2} parent=71 // pred_region
          %s1794 = sand.u32 %s289, 1
          %s1795 = scalar_lea.sflag [#allocation6], %s1794
          %s1796 = sand.u32 %s289, 1
          %s1797 = smul.addr %s1796, 16
          %s1798 = scalar_lea.vmem [#allocation5], %s1797
          %1799 = dma.done %s1795, 256
        $region80: #{text_aware_transformer.2} parent=71 // pred_fallthru
          _
      $region72: #{text_aware_transformer.2} parent=5 // pred_fallthru
        _
    $region6: #{text_aware_transformer.2} parent=1 // loop_footer
      %s24 = sadd.s32 1, %s20
    $region7: #{text_aware_transformer.2} parent=1 // loop_footer_branch
      %19 = sbr.rel target = $region3
    $region8: #{text_aware_transformer.2} parent=1 // loop_exit
      _
    %1800 = vsyncpa [#allocation6], 1
    %s1801 = scalar_lea.sflag [#allocation6], 1
    %1802 = vsyncpa %s1801, 1

</llo_original>
